<compile_context>
chip_gen: v6e
topology: v6e:2x2x1
jax: 0.10.0
libtpu: 0.0.40
codegen_flags: <defaults>
</compile_context>

<pallas_src>
import functools

import jax
import jax.numpy as jnp
from jax.experimental import pallas as pl
from jax.experimental.pallas import tpu as pltpu


# ---------------------------------------------------------------------------
# helpers
# ---------------------------------------------------------------------------
def _gelu_exact(x):
    """erf-based GELU (nn.GELU()) via Abramowitz-Stegun 7.1.26 (|erf err| < 1.5e-7).

    The divide is an EUP approx reciprocal refined with one Newton step, so the
    VALU never sees a multi-op divide sequence.
    """
    z = x * 0.7071067811865476
    sgn = jnp.where(z < 0.0, -1.0, 1.0)
    az = jnp.abs(z)
    v = 1.0 + 0.3275911 * az
    t = pl.reciprocal(v, approx=True)
    t = t * (2.0 - v * t)                       # one NR step -> ~f32 exact
    poly = ((((1.061405429 * t - 1.453152027) * t + 1.421413741) * t
             - 0.284496736) * t + 0.254829592) * t
    erf = sgn * (1.0 - poly * jnp.exp(-az * az))
    return 0.5 * x * (1.0 + erf)


def _channel_mix(w, x):
    """(Cout, Cin) @ (Cin, M) channel mix on already-loaded VMEM values.

    Small C (CTFuse uses C = 8..64) is memory/VPU bound: unrolled broadcast-FMAs
    keep M lane-dense and avoid a mostly-padding f32 MXU pass.  Only genuinely
    MXU-sized problems (C >= 128) take the jnp.dot path.
    """
    cout, cin = w.shape
    if cin >= 128 and cout >= 128:
        return jnp.dot(w, x, preferred_element_type=jnp.float32)
    acc = jnp.zeros((cout, x.shape[1]), jnp.float32)
    for i in range(cin):
        acc = acc + w[:, i:i + 1] * x[i:i + 1, :]
    return acc


def _masked_shift(src, da, db, *, h_pos, w_pos, H, W):
    """result[:, h*W + w] = src[:, (h+da)*W + (w+db)], zero where out of bounds.

    The flat roll's wrap-around lands exactly on masked positions, so the mask
    reproduces the zero padding of the depthwise convolutions.
    """
    HW = H * W
    s = da * W + db
    r = src if s == 0 else pltpu.roll(src, shift=(-s) % HW, axis=1)
    mask = None
    if da > 0:
        mask = h_pos < (H - da)
    elif da < 0:
        mask = h_pos >= (-da)
    if db > 0:
        m = w_pos < (W - db)
        mask = m if mask is None else (mask & m)
    elif db < 0:
        m = w_pos >= (-db)
        mask = m if mask is None else (mask & m)
    if mask is None:
        return r
    return jnp.where(mask, r, 0.0)


# ---------------------------------------------------------------------------
# fused kernel: one batch element per grid step, everything in VMEM
# ---------------------------------------------------------------------------
# packed per-channel scalar table layout (110 f32 per channel):
#   [0:25)  5x5 conv0 weights (row major)      [25]      conv0 bias
#   [26:33) 1x7 w    [33] bias   [34:41) 7x1 w   [41] bias
#   [42:53) 1x11 w   [53] bias   [54:65) 11x1 w  [65] bias
#   [66:87) 1x21 w   [87] bias   [88:109) 21x1 w [109] bias
def _spatial_attention_kernel(x_ref, hpos_ref, wpos_ref, w1_ref, b1_ref, dw_ref,
                              w3_ref, b3_ref, w2_ref, b2_ref, o_ref, *, C, H, W):
    HW = H * W
    x = x_ref[0]                      # (C, HW), lane-dense
    h_pos = hpos_ref[...]             # (1, HW) int32
    w_pos = wpos_ref[...]             # (1, HW) int32
    dw = dw_ref[...]                  # (C, 110) per-channel depthwise table

    shift = functools.partial(_masked_shift, h_pos=h_pos, w_pos=w_pos, H=H, W=W)

    # ---- u = GELU(proj_1(x) + b1) ------------------------------------------
    u = _gelu_exact(_channel_mix(w1_ref[...], x) + b1_ref[...])

    # ---- conv0: 5x5 depthwise, pad 2 ---------------------------------------
    attn = jnp.zeros((C, HW), jnp.float32)
    for a in range(5):
        for b in range(5):
            attn = attn + dw[:, 5 * a + b:5 * a + b + 1] * shift(u, a - 2, b - 2)
    attn = attn + dw[:, 25:26]

    # ---- horizontal 1x7 / 1x11 / 1x21 passes (shared shifted copies) -------
    hk7 = jnp.zeros((C, HW), jnp.float32)
    hk11 = jnp.zeros((C, HW), jnp.float32)
    hk21 = jnp.zeros((C, HW), jnp.float32)
    for db in range(-10, 11):
        sh = shift(attn, 0, db)
        hk21 = hk21 + dw[:, 66 + db + 10:66 + db + 11] * sh
        if abs(db) <= 5:
            hk11 = hk11 + dw[:, 42 + db + 5:42 + db + 6] * sh
        if abs(db) <= 3:
            hk7 = hk7 + dw[:, 26 + db + 3:26 + db + 4] * sh
    hk7 = hk7 + dw[:, 33:34]
    hk11 = hk11 + dw[:, 53:54]
    hk21 = hk21 + dw[:, 87:88]

    # ---- vertical 7x1 / 11x1 / 21x1 passes + branch sum ---------------------
    total = attn
    for hk, pad, voff in ((hk7, 3, 34), (hk11, 5, 54), (hk21, 10, 88)):
        taps = 2 * pad + 1
        vk = jnp.zeros((C, HW), jnp.float32)
        for a in range(taps):
            vk = vk + dw[:, voff + a:voff + a + 1] * shift(hk, a - pad, 0)
        total = total + vk + dw[:, voff + taps:voff + taps + 1]

    # ---- conv3 (1x1) -> attention gate -> proj_2 -> residual ----------------
    t = (_channel_mix(w3_ref[...], total) + b3_ref[...]) * u
    y = _channel_mix(w2_ref[...], t) + b2_ref[...]
    o_ref[0] = y + x_ref[0]


# ---------------------------------------------------------------------------
# SpatialAttention forward (NCHW, eval semantics — module has no BN/dropout)
# ---------------------------------------------------------------------------
def spatial_attention_forward(params, x):
    B, C, H, W = x.shape
    HW = H * W
    x2 = x.astype(jnp.float32).reshape(B, C, HW)      # metadata-only reshape

    pos = jnp.arange(HW, dtype=jnp.int32)
    h_pos = (pos // W).reshape(1, HW)
    w_pos = (pos % W).reshape(1, HW)

    # TODO(synk): for planes too large for VMEM (roughly C*H*W beyond a few M
    # f32 on v7x's 64 MiB), add an H-tiled variant with a 10-row vertical halo;
    # also split the spatial axis when B == 1 so both v7x TensorCores get work.
    kern = functools.partial(_spatial_attention_kernel, C=C, H=H, W=W)
    act = pl.BlockSpec((1, C, HW), lambda b: (b, 0, 0))
    rep = lambda s: pl.BlockSpec(s, lambda b: (0, 0))

    out = pl.pallas_call(
        kern,
        out_shape=jax.ShapeDtypeStruct((B, C, HW), jnp.float32),
        grid=(B,),
        in_specs=[act,
                  rep((1, HW)), rep((1, HW)),
                  rep((C, C)), rep((C, 1)),
                  rep((C, 110)),
                  rep((C, C)), rep((C, 1)),
                  rep((C, C)), rep((C, 1))],
        out_specs=act,
        compiler_params=pltpu.CompilerParams(
            dimension_semantics=("parallel",)),
    )(x2, h_pos, w_pos,
      params['proj1_w'], params['proj1_b'].reshape(C, 1),
      params['dw_packed'],
      params['conv3_w'], params['conv3_b'].reshape(C, 1),
      params['proj2_w'], params['proj2_b'].reshape(C, 1))
    return out.reshape(B, C, H, W)


# ---------------------------------------------------------------------------
# deterministic parameters + packed depthwise scalar table
# ---------------------------------------------------------------------------
def _pack_depthwise_table(p):
    d = p['dw0_w'].shape[0]
    cols = [p['dw0_w'].reshape(d, 25), p['dw0_b'][:, None],
            p['dw7h_w'], p['dw7h_b'][:, None], p['dw7v_w'], p['dw7v_b'][:, None],
            p['dw11h_w'], p['dw11h_b'][:, None], p['dw11v_w'], p['dw11v_b'][:, None],
            p['dw21h_w'], p['dw21h_b'][:, None], p['dw21v_w'], p['dw21v_b'][:, None]]
    return jnp.concatenate(cols, axis=1).astype(jnp.float32)   # (d, 110)


def make_spatial_attention_params(key, d):
    ks = jax.random.split(key, 20)
    n = lambda k, shape, std: (std * jax.random.normal(k, shape)).astype(jnp.float32)
    p = {
        'proj1_w': n(ks[0], (d, d), 0.2),   'proj1_b': n(ks[1], (d,), 0.05),
        'proj2_w': n(ks[2], (d, d), 0.2),   'proj2_b': n(ks[3], (d,), 0.05),
        'conv3_w': n(ks[4], (d, d), 0.2),   'conv3_b': n(ks[5], (d,), 0.05),
        'dw0_w':  n(ks[6], (d, 5, 5), 0.1),   'dw0_b':  n(ks[7], (d,), 0.05),
        'dw7h_w': n(ks[8], (d, 7), 0.1),      'dw7h_b': n(ks[9], (d,), 0.05),
        'dw7v_w': n(ks[10], (d, 7), 0.1),     'dw7v_b': n(ks[11], (d,), 0.05),
        'dw11h_w': n(ks[12], (d, 11), 0.1),   'dw11h_b': n(ks[13], (d,), 0.05),
        'dw11v_w': n(ks[14], (d, 11), 0.1),   'dw11v_b': n(ks[15], (d,), 0.05),
        'dw21h_w': n(ks[16], (d, 21), 0.08),  'dw21h_b': n(ks[17], (d,), 0.05),
        'dw21v_w': n(ks[18], (d, 21), 0.08),  'dw21v_b': n(ks[19], (d,), 0.05),
    }
    p['dw_packed'] = _pack_depthwise_table(p)
    return p


# ---------------------------------------------------------------------------
# pure-JAX (XLA) reference of the PyTorch module, for a correctness self-check
# ---------------------------------------------------------------------------
def reference_forward(p, x):
    d = x.shape[1]
    prec = jax.lax.Precision.HIGHEST

    def pw(w, b, t):
        return jnp.einsum('oi,bihw->bohw', w, t, precision=prec) + b[None, :, None, None]

    def dw(w4, b, t, ph, pw_):
        out = jax.lax.conv_general_dilated(
            t, w4, (1, 1), ((ph, ph), (pw_, pw_)),
            dimension_numbers=('NCHW', 'OIHW', 'NCHW'),
            feature_group_count=d, precision=prec)
        return out + b[None, :, None, None]

    sc = x
    u = jax.nn.gelu(pw(p['proj1_w'], p['proj1_b'], x), approximate=False)
    attn = dw(p['dw0_w'][:, None, :, :], p['dw0_b'], u, 2, 2)
    a0 = dw(p['dw7v_w'][:, None, :, None], p['dw7v_b'],
            dw(p['dw7h_w'][:, None, None, :], p['dw7h_b'], attn, 0, 3), 3, 0)
    a1 = dw(p['dw11v_w'][:, None, :, None], p['dw11v_b'],
            dw(p['dw11h_w'][:, None, None, :], p['dw11h_b'], attn, 0, 5), 5, 0)
    a2 = dw(p['dw21v_w'][:, None, :, None], p['dw21v_b'],
            dw(p['dw21h_w'][:, None, None, :], p['dw21h_b'], attn, 0, 10), 10, 0)
    attn = attn + a0 + a1 + a2
    attn = pw(p['conv3_w'], p['conv3_b'], attn)
    out = attn * u
    out = pw(p['proj2_w'], p['proj2_b'], out)
    return out + sc


if __name__ == "__main__":
    B, d_model, H, W = 2, 8, 32, 32

    key = jax.random.PRNGKey(0)
    pkey, xkey = jax.random.split(key)
    params = make_spatial_attention_params(pkey, d_model)
    x = jax.random.normal(xkey, (B, d_model, H, W), jnp.float32)

    fwd = jax.jit(spatial_attention_forward)
    out = jax.block_until_ready(fwd(params, x))

    assert out.shape == (B, d_model, H, W), out.shape
    assert bool(jnp.isfinite(out).all())

    # self-check against the pure-JAX/XLA reference of the PyTorch module
    ref = jax.block_until_ready(jax.jit(reference_forward)(params, x))
    err = float(jnp.max(jnp.abs(out - ref)))
    assert err < 1e-3, f"max abs error vs reference: {err}"

    print("KERNEL_OK")
</pallas_src>

<mosaic_0001>
module attributes {stable_mosaic.version = 11 : i64} {
  func.func @_spatial_attention_kernel(%arg0: i32, %arg1: memref<1x8x1024xf32, #tpu.memory_space<vmem>>, %arg2: memref<1x1024xi32, #tpu.memory_space<vmem>>, %arg3: memref<1x1024xi32, #tpu.memory_space<vmem>>, %arg4: memref<8x8xf32, #tpu.memory_space<vmem>>, %arg5: memref<8x1xf32, #tpu.memory_space<vmem>>, %arg6: memref<8x110xf32, #tpu.memory_space<vmem>>, %arg7: memref<8x8xf32, #tpu.memory_space<vmem>>, %arg8: memref<8x1xf32, #tpu.memory_space<vmem>>, %arg9: memref<8x8xf32, #tpu.memory_space<vmem>>, %arg10: memref<8x1xf32, #tpu.memory_space<vmem>>, %arg11: memref<1x8x1024xf32, #tpu.memory_space<vmem>>) attributes {dimension_semantics = [#tpu.dimension_semantics<parallel>], iteration_bounds = array<i64: 2>, scalar_prefetch = 0 : i64, scratch_operands = 0 : i64, tpu.core_type = #tpu.core_type<tc>, window_params = [{transform_indices = @transform_0, window_bounds = array<i64: 1, 8, 1024>}, {pipeline_mode = #tpu.pipeline_mode<synchronous>, transform_indices = @transform_1, window_bounds = array<i64: 1, 1024>}, {pipeline_mode = #tpu.pipeline_mode<synchronous>, transform_indices = @transform_2, window_bounds = array<i64: 1, 1024>}, {pipeline_mode = #tpu.pipeline_mode<synchronous>, transform_indices = @transform_3, window_bounds = array<i64: 8, 8>}, {pipeline_mode = #tpu.pipeline_mode<synchronous>, transform_indices = @transform_4, window_bounds = array<i64: 8, 1>}, {pipeline_mode = #tpu.pipeline_mode<synchronous>, transform_indices = @transform_5, window_bounds = array<i64: 8, 110>}, {pipeline_mode = #tpu.pipeline_mode<synchronous>, transform_indices = @transform_6, window_bounds = array<i64: 8, 8>}, {pipeline_mode = #tpu.pipeline_mode<synchronous>, transform_indices = @transform_7, window_bounds = array<i64: 8, 1>}, {pipeline_mode = #tpu.pipeline_mode<synchronous>, transform_indices = @transform_8, window_bounds = array<i64: 8, 8>}, {pipeline_mode = #tpu.pipeline_mode<synchronous>, transform_indices = @transform_9, window_bounds = array<i64: 8, 1>}, {transform_indices = @transform_10, window_bounds = array<i64: 1, 8, 1024>}]} {
    %c0 = arith.constant 0 : index
    %c0_0 = arith.constant 0 : index
    %c0_1 = arith.constant 0 : index
    %0 = vector.load %arg1[%c0, %c0_0, %c0_1] : memref<1x8x1024xf32, #tpu.memory_space<vmem>>, vector<1x8x1024xf32>
    %1 = vector.shape_cast %0 : vector<1x8x1024xf32> to vector<8x1024xf32>
    %c0_2 = arith.constant 0 : index
    %c0_3 = arith.constant 0 : index
    %2 = vector.load %arg2[%c0_2, %c0_3] : memref<1x1024xi32, #tpu.memory_space<vmem>>, vector<1x1024xi32>
    %c0_4 = arith.constant 0 : index
    %c0_5 = arith.constant 0 : index
    %3 = vector.load %arg3[%c0_4, %c0_5] : memref<1x1024xi32, #tpu.memory_space<vmem>>, vector<1x1024xi32>
    %c0_6 = arith.constant 0 : index
    %c0_7 = arith.constant 0 : index
    %4 = vector.load %arg6[%c0_6, %c0_7] : memref<8x110xf32, #tpu.memory_space<vmem>>, vector<8x110xf32>
    %c0_8 = arith.constant 0 : index
    %c0_9 = arith.constant 0 : index
    %5 = vector.load %arg4[%c0_8, %c0_9] : memref<8x8xf32, #tpu.memory_space<vmem>>, vector<8x8xf32>
    %cst = arith.constant 0.000000e+00 : f32
    %6 = vector.broadcast %cst : f32 to vector<8x1024xf32>
    %7 = vector.extract_strided_slice %5 {offsets = [0, 0], sizes = [8, 1], strides = [1, 1]} : vector<8x8xf32> to vector<8x1xf32>
    %8 = vector.extract_strided_slice %1 {offsets = [0, 0], sizes = [1, 1024], strides = [1, 1]} : vector<8x1024xf32> to vector<1x1024xf32>
    %9 = vector.broadcast %7 : vector<8x1xf32> to vector<8x1024xf32>
    %10 = vector.broadcast %8 : vector<1x1024xf32> to vector<8x1024xf32>
    %11 = arith.mulf %9, %10 : vector<8x1024xf32>
    %12 = arith.addf %6, %11 : vector<8x1024xf32>
    %13 = vector.extract_strided_slice %5 {offsets = [0, 1], sizes = [8, 1], strides = [1, 1]} : vector<8x8xf32> to vector<8x1xf32>
    %14 = vector.extract_strided_slice %1 {offsets = [1, 0], sizes = [1, 1024], strides = [1, 1]} : vector<8x1024xf32> to vector<1x1024xf32>
    %15 = vector.broadcast %13 : vector<8x1xf32> to vector<8x1024xf32>
    %16 = vector.broadcast %14 : vector<1x1024xf32> to vector<8x1024xf32>
    %17 = arith.mulf %15, %16 : vector<8x1024xf32>
    %18 = arith.addf %12, %17 : vector<8x1024xf32>
    %19 = vector.extract_strided_slice %5 {offsets = [0, 2], sizes = [8, 1], strides = [1, 1]} : vector<8x8xf32> to vector<8x1xf32>
    %20 = vector.extract_strided_slice %1 {offsets = [2, 0], sizes = [1, 1024], strides = [1, 1]} : vector<8x1024xf32> to vector<1x1024xf32>
    %21 = vector.broadcast %19 : vector<8x1xf32> to vector<8x1024xf32>
    %22 = vector.broadcast %20 : vector<1x1024xf32> to vector<8x1024xf32>
    %23 = arith.mulf %21, %22 : vector<8x1024xf32>
    %24 = arith.addf %18, %23 : vector<8x1024xf32>
    %25 = vector.extract_strided_slice %5 {offsets = [0, 3], sizes = [8, 1], strides = [1, 1]} : vector<8x8xf32> to vector<8x1xf32>
    %26 = vector.extract_strided_slice %1 {offsets = [3, 0], sizes = [1, 1024], strides = [1, 1]} : vector<8x1024xf32> to vector<1x1024xf32>
    %27 = vector.broadcast %25 : vector<8x1xf32> to vector<8x1024xf32>
    %28 = vector.broadcast %26 : vector<1x1024xf32> to vector<8x1024xf32>
    %29 = arith.mulf %27, %28 : vector<8x1024xf32>
    %30 = arith.addf %24, %29 : vector<8x1024xf32>
    %31 = vector.extract_strided_slice %5 {offsets = [0, 4], sizes = [8, 1], strides = [1, 1]} : vector<8x8xf32> to vector<8x1xf32>
    %32 = vector.extract_strided_slice %1 {offsets = [4, 0], sizes = [1, 1024], strides = [1, 1]} : vector<8x1024xf32> to vector<1x1024xf32>
    %33 = vector.broadcast %31 : vector<8x1xf32> to vector<8x1024xf32>
    %34 = vector.broadcast %32 : vector<1x1024xf32> to vector<8x1024xf32>
    %35 = arith.mulf %33, %34 : vector<8x1024xf32>
    %36 = arith.addf %30, %35 : vector<8x1024xf32>
    %37 = vector.extract_strided_slice %5 {offsets = [0, 5], sizes = [8, 1], strides = [1, 1]} : vector<8x8xf32> to vector<8x1xf32>
    %38 = vector.extract_strided_slice %1 {offsets = [5, 0], sizes = [1, 1024], strides = [1, 1]} : vector<8x1024xf32> to vector<1x1024xf32>
    %39 = vector.broadcast %37 : vector<8x1xf32> to vector<8x1024xf32>
    %40 = vector.broadcast %38 : vector<1x1024xf32> to vector<8x1024xf32>
    %41 = arith.mulf %39, %40 : vector<8x1024xf32>
    %42 = arith.addf %36, %41 : vector<8x1024xf32>
    %43 = vector.extract_strided_slice %5 {offsets = [0, 6], sizes = [8, 1], strides = [1, 1]} : vector<8x8xf32> to vector<8x1xf32>
    %44 = vector.extract_strided_slice %1 {offsets = [6, 0], sizes = [1, 1024], strides = [1, 1]} : vector<8x1024xf32> to vector<1x1024xf32>
    %45 = vector.broadcast %43 : vector<8x1xf32> to vector<8x1024xf32>
    %46 = vector.broadcast %44 : vector<1x1024xf32> to vector<8x1024xf32>
    %47 = arith.mulf %45, %46 : vector<8x1024xf32>
    %48 = arith.addf %42, %47 : vector<8x1024xf32>
    %49 = vector.extract_strided_slice %5 {offsets = [0, 7], sizes = [8, 1], strides = [1, 1]} : vector<8x8xf32> to vector<8x1xf32>
    %50 = vector.extract_strided_slice %1 {offsets = [7, 0], sizes = [1, 1024], strides = [1, 1]} : vector<8x1024xf32> to vector<1x1024xf32>
    %51 = vector.broadcast %49 : vector<8x1xf32> to vector<8x1024xf32>
    %52 = vector.broadcast %50 : vector<1x1024xf32> to vector<8x1024xf32>
    %53 = arith.mulf %51, %52 : vector<8x1024xf32>
    %54 = arith.addf %48, %53 : vector<8x1024xf32>
    %c0_10 = arith.constant 0 : index
    %c0_11 = arith.constant 0 : index
    %55 = vector.load %arg5[%c0_10, %c0_11] : memref<8x1xf32, #tpu.memory_space<vmem>>, vector<8x1xf32>
    %56 = vector.broadcast %55 : vector<8x1xf32> to vector<8x1024xf32>
    %57 = arith.addf %54, %56 : vector<8x1024xf32>
    %cst_12 = arith.constant 0.707106769 : f32
    %58 = vector.broadcast %cst_12 : f32 to vector<8x1024xf32>
    %59 = arith.mulf %57, %58 : vector<8x1024xf32>
    %cst_13 = arith.constant 0.000000e+00 : f32
    %60 = vector.broadcast %cst_13 : f32 to vector<8x1024xf32>
    %61 = arith.cmpf olt, %59, %60 : vector<8x1024xf32>
    %cst_14 = arith.constant -1.000000e+00 : f32
    %cst_15 = arith.constant 1.000000e+00 : f32
    %62 = vector.broadcast %cst_14 : f32 to vector<8x1024xf32>
    %63 = vector.broadcast %cst_15 : f32 to vector<8x1024xf32>
    %64 = arith.select %61, %62, %63 : vector<8x1024xi1>, vector<8x1024xf32>
    %65 = math.absf %59 : vector<8x1024xf32>
    %cst_16 = arith.constant 0.327591091 : f32
    %66 = vector.broadcast %cst_16 : f32 to vector<8x1024xf32>
    %67 = arith.mulf %66, %65 : vector<8x1024xf32>
    %cst_17 = arith.constant 1.000000e+00 : f32
    %68 = vector.broadcast %cst_17 : f32 to vector<8x1024xf32>
    %69 = arith.addf %68, %67 : vector<8x1024xf32>
    %70 = tpu.reciprocal %69 {approx = true} : vector<8x1024xf32> -> vector<8x1024xf32>
    %71 = arith.mulf %69, %70 : vector<8x1024xf32>
    %cst_18 = arith.constant 2.000000e+00 : f32
    %72 = vector.broadcast %cst_18 : f32 to vector<8x1024xf32>
    %73 = arith.subf %72, %71 : vector<8x1024xf32>
    %74 = arith.mulf %70, %73 : vector<8x1024xf32>
    %cst_19 = arith.constant 1.06140542 : f32
    %75 = vector.broadcast %cst_19 : f32 to vector<8x1024xf32>
    %76 = arith.mulf %75, %74 : vector<8x1024xf32>
    %cst_20 = arith.constant 1.45315206 : f32
    %77 = vector.broadcast %cst_20 : f32 to vector<8x1024xf32>
    %78 = arith.subf %76, %77 : vector<8x1024xf32>
    %79 = arith.mulf %78, %74 : vector<8x1024xf32>
    %cst_21 = arith.constant 1.42141378 : f32
    %80 = vector.broadcast %cst_21 : f32 to vector<8x1024xf32>
    %81 = arith.addf %79, %80 : vector<8x1024xf32>
    %82 = arith.mulf %81, %74 : vector<8x1024xf32>
    %cst_22 = arith.constant 0.284496725 : f32
    %83 = vector.broadcast %cst_22 : f32 to vector<8x1024xf32>
    %84 = arith.subf %82, %83 : vector<8x1024xf32>
    %85 = arith.mulf %84, %74 : vector<8x1024xf32>
    %cst_23 = arith.constant 0.254829586 : f32
    %86 = vector.broadcast %cst_23 : f32 to vector<8x1024xf32>
    %87 = arith.addf %85, %86 : vector<8x1024xf32>
    %88 = arith.mulf %87, %74 : vector<8x1024xf32>
    %cst_24 = arith.constant 0.000000e+00 : f32
    %89 = vector.broadcast %cst_24 : f32 to vector<8x1024xf32>
    %90 = arith.subf %89, %65 : vector<8x1024xf32>
    %91 = arith.mulf %90, %65 : vector<8x1024xf32>
    %92 = math.exp %91 : vector<8x1024xf32>
    %93 = arith.mulf %88, %92 : vector<8x1024xf32>
    %cst_25 = arith.constant 1.000000e+00 : f32
    %94 = vector.broadcast %cst_25 : f32 to vector<8x1024xf32>
    %95 = arith.subf %94, %93 : vector<8x1024xf32>
    %96 = arith.mulf %64, %95 : vector<8x1024xf32>
    %cst_26 = arith.constant 5.000000e-01 : f32
    %97 = vector.broadcast %cst_26 : f32 to vector<8x1024xf32>
    %98 = arith.mulf %97, %57 : vector<8x1024xf32>
    %cst_27 = arith.constant 1.000000e+00 : f32
    %99 = vector.broadcast %cst_27 : f32 to vector<8x1024xf32>
    %100 = arith.addf %99, %96 : vector<8x1024xf32>
    %101 = arith.mulf %98, %100 : vector<8x1024xf32>
    %cst_28 = arith.constant 0.000000e+00 : f32
    %102 = vector.broadcast %cst_28 : f32 to vector<8x1024xf32>
    %103 = vector.extract_strided_slice %4 {offsets = [0, 0], sizes = [8, 1], strides = [1, 1]} : vector<8x110xf32> to vector<8x1xf32>
    %c66_i32 = arith.constant 66 : i32
    %104 = tpu.dynamic_rotate %101 by %c66_i32 dim 1 : vector<8x1024xf32>, i32 -> vector<8x1024xf32>
    %c2_i32 = arith.constant 2 : i32
    %105 = vector.broadcast %c2_i32 : i32 to vector<1x1024xi32>
    %106 = arith.cmpi sge, %2, %105 : vector<1x1024xi32>
    %c2_i32_29 = arith.constant 2 : i32
    %107 = vector.broadcast %c2_i32_29 : i32 to vector<1x1024xi32>
    %108 = arith.cmpi sge, %3, %107 : vector<1x1024xi32>
    %109 = arith.andi %106, %108 : vector<1x1024xi1>
    %cst_30 = arith.constant 0.000000e+00 : f32
    %110 = vector.shape_cast %109 : vector<1x1024xi1> to vector<1x1024xi1>
    %111 = vector.broadcast %110 : vector<1x1024xi1> to vector<8x1024xi1>
    %112 = vector.broadcast %cst_30 : f32 to vector<8x1024xf32>
    %113 = arith.select %111, %104, %112 : vector<8x1024xi1>, vector<8x1024xf32>
    %114 = vector.broadcast %103 : vector<8x1xf32> to vector<8x1024xf32>
    %115 = arith.mulf %114, %113 : vector<8x1024xf32>
    %116 = arith.addf %102, %115 : vector<8x1024xf32>
    %117 = vector.extract_strided_slice %4 {offsets = [0, 1], sizes = [8, 1], strides = [1, 1]} : vector<8x110xf32> to vector<8x1xf32>
    %c65_i32 = arith.constant 65 : i32
    %118 = tpu.dynamic_rotate %101 by %c65_i32 dim 1 : vector<8x1024xf32>, i32 -> vector<8x1024xf32>
    %c2_i32_31 = arith.constant 2 : i32
    %119 = vector.broadcast %c2_i32_31 : i32 to vector<1x1024xi32>
    %120 = arith.cmpi sge, %2, %119 : vector<1x1024xi32>
    %c1_i32 = arith.constant 1 : i32
    %121 = vector.broadcast %c1_i32 : i32 to vector<1x1024xi32>
    %122 = arith.cmpi sge, %3, %121 : vector<1x1024xi32>
    %123 = arith.andi %120, %122 : vector<1x1024xi1>
    %cst_32 = arith.constant 0.000000e+00 : f32
    %124 = vector.shape_cast %123 : vector<1x1024xi1> to vector<1x1024xi1>
    %125 = vector.broadcast %124 : vector<1x1024xi1> to vector<8x1024xi1>
    %126 = vector.broadcast %cst_32 : f32 to vector<8x1024xf32>
    %127 = arith.select %125, %118, %126 : vector<8x1024xi1>, vector<8x1024xf32>
    %128 = vector.broadcast %117 : vector<8x1xf32> to vector<8x1024xf32>
    %129 = arith.mulf %128, %127 : vector<8x1024xf32>
    %130 = arith.addf %116, %129 : vector<8x1024xf32>
    %131 = vector.extract_strided_slice %4 {offsets = [0, 2], sizes = [8, 1], strides = [1, 1]} : vector<8x110xf32> to vector<8x1xf32>
    %c64_i32 = arith.constant 64 : i32
    %132 = tpu.dynamic_rotate %101 by %c64_i32 dim 1 : vector<8x1024xf32>, i32 -> vector<8x1024xf32>
    %c2_i32_33 = arith.constant 2 : i32
    %133 = vector.broadcast %c2_i32_33 : i32 to vector<1x1024xi32>
    %134 = arith.cmpi sge, %2, %133 : vector<1x1024xi32>
    %cst_34 = arith.constant 0.000000e+00 : f32
    %135 = vector.shape_cast %134 : vector<1x1024xi1> to vector<1x1024xi1>
    %136 = vector.broadcast %135 : vector<1x1024xi1> to vector<8x1024xi1>
    %137 = vector.broadcast %cst_34 : f32 to vector<8x1024xf32>
    %138 = arith.select %136, %132, %137 : vector<8x1024xi1>, vector<8x1024xf32>
    %139 = vector.broadcast %131 : vector<8x1xf32> to vector<8x1024xf32>
    %140 = arith.mulf %139, %138 : vector<8x1024xf32>
    %141 = arith.addf %130, %140 : vector<8x1024xf32>
    %142 = vector.extract_strided_slice %4 {offsets = [0, 3], sizes = [8, 1], strides = [1, 1]} : vector<8x110xf32> to vector<8x1xf32>
    %c63_i32 = arith.constant 63 : i32
    %143 = tpu.dynamic_rotate %101 by %c63_i32 dim 1 : vector<8x1024xf32>, i32 -> vector<8x1024xf32>
    %c2_i32_35 = arith.constant 2 : i32
    %144 = vector.broadcast %c2_i32_35 : i32 to vector<1x1024xi32>
    %145 = arith.cmpi sge, %2, %144 : vector<1x1024xi32>
    %c31_i32 = arith.constant 31 : i32
    %146 = vector.broadcast %c31_i32 : i32 to vector<1x1024xi32>
    %147 = arith.cmpi slt, %3, %146 : vector<1x1024xi32>
    %148 = arith.andi %145, %147 : vector<1x1024xi1>
    %cst_36 = arith.constant 0.000000e+00 : f32
    %149 = vector.shape_cast %148 : vector<1x1024xi1> to vector<1x1024xi1>
    %150 = vector.broadcast %149 : vector<1x1024xi1> to vector<8x1024xi1>
    %151 = vector.broadcast %cst_36 : f32 to vector<8x1024xf32>
    %152 = arith.select %150, %143, %151 : vector<8x1024xi1>, vector<8x1024xf32>
    %153 = vector.broadcast %142 : vector<8x1xf32> to vector<8x1024xf32>
    %154 = arith.mulf %153, %152 : vector<8x1024xf32>
    %155 = arith.addf %141, %154 : vector<8x1024xf32>
    %156 = vector.extract_strided_slice %4 {offsets = [0, 4], sizes = [8, 1], strides = [1, 1]} : vector<8x110xf32> to vector<8x1xf32>
    %c62_i32 = arith.constant 62 : i32
    %157 = tpu.dynamic_rotate %101 by %c62_i32 dim 1 : vector<8x1024xf32>, i32 -> vector<8x1024xf32>
    %c2_i32_37 = arith.constant 2 : i32
    %158 = vector.broadcast %c2_i32_37 : i32 to vector<1x1024xi32>
    %159 = arith.cmpi sge, %2, %158 : vector<1x1024xi32>
    %c30_i32 = arith.constant 30 : i32
    %160 = vector.broadcast %c30_i32 : i32 to vector<1x1024xi32>
    %161 = arith.cmpi slt, %3, %160 : vector<1x1024xi32>
    %162 = arith.andi %159, %161 : vector<1x1024xi1>
    %cst_38 = arith.constant 0.000000e+00 : f32
    %163 = vector.shape_cast %162 : vector<1x1024xi1> to vector<1x1024xi1>
    %164 = vector.broadcast %163 : vector<1x1024xi1> to vector<8x1024xi1>
    %165 = vector.broadcast %cst_38 : f32 to vector<8x1024xf32>
    %166 = arith.select %164, %157, %165 : vector<8x1024xi1>, vector<8x1024xf32>
    %167 = vector.broadcast %156 : vector<8x1xf32> to vector<8x1024xf32>
    %168 = arith.mulf %167, %166 : vector<8x1024xf32>
    %169 = arith.addf %155, %168 : vector<8x1024xf32>
    %170 = vector.extract_strided_slice %4 {offsets = [0, 5], sizes = [8, 1], strides = [1, 1]} : vector<8x110xf32> to vector<8x1xf32>
    %c34_i32 = arith.constant 34 : i32
    %171 = tpu.dynamic_rotate %101 by %c34_i32 dim 1 : vector<8x1024xf32>, i32 -> vector<8x1024xf32>
    %c1_i32_39 = arith.constant 1 : i32
    %172 = vector.broadcast %c1_i32_39 : i32 to vector<1x1024xi32>
    %173 = arith.cmpi sge, %2, %172 : vector<1x1024xi32>
    %c2_i32_40 = arith.constant 2 : i32
    %174 = vector.broadcast %c2_i32_40 : i32 to vector<1x1024xi32>
    %175 = arith.cmpi sge, %3, %174 : vector<1x1024xi32>
    %176 = arith.andi %173, %175 : vector<1x1024xi1>
    %cst_41 = arith.constant 0.000000e+00 : f32
    %177 = vector.shape_cast %176 : vector<1x1024xi1> to vector<1x1024xi1>
    %178 = vector.broadcast %177 : vector<1x1024xi1> to vector<8x1024xi1>
    %179 = vector.broadcast %cst_41 : f32 to vector<8x1024xf32>
    %180 = arith.select %178, %171, %179 : vector<8x1024xi1>, vector<8x1024xf32>
    %181 = vector.broadcast %170 : vector<8x1xf32> to vector<8x1024xf32>
    %182 = arith.mulf %181, %180 : vector<8x1024xf32>
    %183 = arith.addf %169, %182 : vector<8x1024xf32>
    %184 = vector.extract_strided_slice %4 {offsets = [0, 6], sizes = [8, 1], strides = [1, 1]} : vector<8x110xf32> to vector<8x1xf32>
    %c33_i32 = arith.constant 33 : i32
    %185 = tpu.dynamic_rotate %101 by %c33_i32 dim 1 : vector<8x1024xf32>, i32 -> vector<8x1024xf32>
    %c1_i32_42 = arith.constant 1 : i32
    %186 = vector.broadcast %c1_i32_42 : i32 to vector<1x1024xi32>
    %187 = arith.cmpi sge, %2, %186 : vector<1x1024xi32>
    %c1_i32_43 = arith.constant 1 : i32
    %188 = vector.broadcast %c1_i32_43 : i32 to vector<1x1024xi32>
    %189 = arith.cmpi sge, %3, %188 : vector<1x1024xi32>
    %190 = arith.andi %187, %189 : vector<1x1024xi1>
    %cst_44 = arith.constant 0.000000e+00 : f32
    %191 = vector.shape_cast %190 : vector<1x1024xi1> to vector<1x1024xi1>
    %192 = vector.broadcast %191 : vector<1x1024xi1> to vector<8x1024xi1>
    %193 = vector.broadcast %cst_44 : f32 to vector<8x1024xf32>
    %194 = arith.select %192, %185, %193 : vector<8x1024xi1>, vector<8x1024xf32>
    %195 = vector.broadcast %184 : vector<8x1xf32> to vector<8x1024xf32>
    %196 = arith.mulf %195, %194 : vector<8x1024xf32>
    %197 = arith.addf %183, %196 : vector<8x1024xf32>
    %198 = vector.extract_strided_slice %4 {offsets = [0, 7], sizes = [8, 1], strides = [1, 1]} : vector<8x110xf32> to vector<8x1xf32>
    %c32_i32 = arith.constant 32 : i32
    %199 = tpu.dynamic_rotate %101 by %c32_i32 dim 1 : vector<8x1024xf32>, i32 -> vector<8x1024xf32>
    %c1_i32_45 = arith.constant 1 : i32
    %200 = vector.broadcast %c1_i32_45 : i32 to vector<1x1024xi32>
    %201 = arith.cmpi sge, %2, %200 : vector<1x1024xi32>
    %cst_46 = arith.constant 0.000000e+00 : f32
    %202 = vector.shape_cast %201 : vector<1x1024xi1> to vector<1x1024xi1>
    %203 = vector.broadcast %202 : vector<1x1024xi1> to vector<8x1024xi1>
    %204 = vector.broadcast %cst_46 : f32 to vector<8x1024xf32>
    %205 = arith.select %203, %199, %204 : vector<8x1024xi1>, vector<8x1024xf32>
    %206 = vector.broadcast %198 : vector<8x1xf32> to vector<8x1024xf32>
    %207 = arith.mulf %206, %205 : vector<8x1024xf32>
    %208 = arith.addf %197, %207 : vector<8x1024xf32>
    %209 = vector.extract_strided_slice %4 {offsets = [0, 8], sizes = [8, 1], strides = [1, 1]} : vector<8x110xf32> to vector<8x1xf32>
    %c31_i32_47 = arith.constant 31 : i32
    %210 = tpu.dynamic_rotate %101 by %c31_i32_47 dim 1 : vector<8x1024xf32>, i32 -> vector<8x1024xf32>
    %c1_i32_48 = arith.constant 1 : i32
    %211 = vector.broadcast %c1_i32_48 : i32 to vector<1x1024xi32>
    %212 = arith.cmpi sge, %2, %211 : vector<1x1024xi32>
    %c31_i32_49 = arith.constant 31 : i32
    %213 = vector.broadcast %c31_i32_49 : i32 to vector<1x1024xi32>
    %214 = arith.cmpi slt, %3, %213 : vector<1x1024xi32>
    %215 = arith.andi %212, %214 : vector<1x1024xi1>
    %cst_50 = arith.constant 0.000000e+00 : f32
    %216 = vector.shape_cast %215 : vector<1x1024xi1> to vector<1x1024xi1>
    %217 = vector.broadcast %216 : vector<1x1024xi1> to vector<8x1024xi1>
    %218 = vector.broadcast %cst_50 : f32 to vector<8x1024xf32>
    %219 = arith.select %217, %210, %218 : vector<8x1024xi1>, vector<8x1024xf32>
    %220 = vector.broadcast %209 : vector<8x1xf32> to vector<8x1024xf32>
    %221 = arith.mulf %220, %219 : vector<8x1024xf32>
    %222 = arith.addf %208, %221 : vector<8x1024xf32>
    %223 = vector.extract_strided_slice %4 {offsets = [0, 9], sizes = [8, 1], strides = [1, 1]} : vector<8x110xf32> to vector<8x1xf32>
    %c30_i32_51 = arith.constant 30 : i32
    %224 = tpu.dynamic_rotate %101 by %c30_i32_51 dim 1 : vector<8x1024xf32>, i32 -> vector<8x1024xf32>
    %c1_i32_52 = arith.constant 1 : i32
    %225 = vector.broadcast %c1_i32_52 : i32 to vector<1x1024xi32>
    %226 = arith.cmpi sge, %2, %225 : vector<1x1024xi32>
    %c30_i32_53 = arith.constant 30 : i32
    %227 = vector.broadcast %c30_i32_53 : i32 to vector<1x1024xi32>
    %228 = arith.cmpi slt, %3, %227 : vector<1x1024xi32>
    %229 = arith.andi %226, %228 : vector<1x1024xi1>
    %cst_54 = arith.constant 0.000000e+00 : f32
    %230 = vector.shape_cast %229 : vector<1x1024xi1> to vector<1x1024xi1>
    %231 = vector.broadcast %230 : vector<1x1024xi1> to vector<8x1024xi1>
    %232 = vector.broadcast %cst_54 : f32 to vector<8x1024xf32>
    %233 = arith.select %231, %224, %232 : vector<8x1024xi1>, vector<8x1024xf32>
    %234 = vector.broadcast %223 : vector<8x1xf32> to vector<8x1024xf32>
    %235 = arith.mulf %234, %233 : vector<8x1024xf32>
    %236 = arith.addf %222, %235 : vector<8x1024xf32>
    %237 = vector.extract_strided_slice %4 {offsets = [0, 10], sizes = [8, 1], strides = [1, 1]} : vector<8x110xf32> to vector<8x1xf32>
    %c2_i32_55 = arith.constant 2 : i32
    %238 = tpu.dynamic_rotate %101 by %c2_i32_55 dim 1 : vector<8x1024xf32>, i32 -> vector<8x1024xf32>
    %c2_i32_56 = arith.constant 2 : i32
    %239 = vector.broadcast %c2_i32_56 : i32 to vector<1x1024xi32>
    %240 = arith.cmpi sge, %3, %239 : vector<1x1024xi32>
    %cst_57 = arith.constant 0.000000e+00 : f32
    %241 = vector.shape_cast %240 : vector<1x1024xi1> to vector<1x1024xi1>
    %242 = vector.broadcast %241 : vector<1x1024xi1> to vector<8x1024xi1>
    %243 = vector.broadcast %cst_57 : f32 to vector<8x1024xf32>
    %244 = arith.select %242, %238, %243 : vector<8x1024xi1>, vector<8x1024xf32>
    %245 = vector.broadcast %237 : vector<8x1xf32> to vector<8x1024xf32>
    %246 = arith.mulf %245, %244 : vector<8x1024xf32>
    %247 = arith.addf %236, %246 : vector<8x1024xf32>
    %248 = vector.extract_strided_slice %4 {offsets = [0, 11], sizes = [8, 1], strides = [1, 1]} : vector<8x110xf32> to vector<8x1xf32>
    %c1_i32_58 = arith.constant 1 : i32
    %249 = tpu.dynamic_rotate %101 by %c1_i32_58 dim 1 : vector<8x1024xf32>, i32 -> vector<8x1024xf32>
    %c1_i32_59 = arith.constant 1 : i32
    %250 = vector.broadcast %c1_i32_59 : i32 to vector<1x1024xi32>
    %251 = arith.cmpi sge, %3, %250 : vector<1x1024xi32>
    %cst_60 = arith.constant 0.000000e+00 : f32
    %252 = vector.shape_cast %251 : vector<1x1024xi1> to vector<1x1024xi1>
    %253 = vector.broadcast %252 : vector<1x1024xi1> to vector<8x1024xi1>
    %254 = vector.broadcast %cst_60 : f32 to vector<8x1024xf32>
    %255 = arith.select %253, %249, %254 : vector<8x1024xi1>, vector<8x1024xf32>
    %256 = vector.broadcast %248 : vector<8x1xf32> to vector<8x1024xf32>
    %257 = arith.mulf %256, %255 : vector<8x1024xf32>
    %258 = arith.addf %247, %257 : vector<8x1024xf32>
    %259 = vector.extract_strided_slice %4 {offsets = [0, 12], sizes = [8, 1], strides = [1, 1]} : vector<8x110xf32> to vector<8x1xf32>
    %260 = vector.broadcast %259 : vector<8x1xf32> to vector<8x1024xf32>
    %261 = arith.mulf %260, %101 : vector<8x1024xf32>
    %262 = arith.addf %258, %261 : vector<8x1024xf32>
    %263 = vector.extract_strided_slice %4 {offsets = [0, 13], sizes = [8, 1], strides = [1, 1]} : vector<8x110xf32> to vector<8x1xf32>
    %c1023_i32 = arith.constant 1023 : i32
    %264 = tpu.dynamic_rotate %101 by %c1023_i32 dim 1 : vector<8x1024xf32>, i32 -> vector<8x1024xf32>
    %c31_i32_61 = arith.constant 31 : i32
    %265 = vector.broadcast %c31_i32_61 : i32 to vector<1x1024xi32>
    %266 = arith.cmpi slt, %3, %265 : vector<1x1024xi32>
    %cst_62 = arith.constant 0.000000e+00 : f32
    %267 = vector.shape_cast %266 : vector<1x1024xi1> to vector<1x1024xi1>
    %268 = vector.broadcast %267 : vector<1x1024xi1> to vector<8x1024xi1>
    %269 = vector.broadcast %cst_62 : f32 to vector<8x1024xf32>
    %270 = arith.select %268, %264, %269 : vector<8x1024xi1>, vector<8x1024xf32>
    %271 = vector.broadcast %263 : vector<8x1xf32> to vector<8x1024xf32>
    %272 = arith.mulf %271, %270 : vector<8x1024xf32>
    %273 = arith.addf %262, %272 : vector<8x1024xf32>
    %274 = vector.extract_strided_slice %4 {offsets = [0, 14], sizes = [8, 1], strides = [1, 1]} : vector<8x110xf32> to vector<8x1xf32>
    %c1022_i32 = arith.constant 1022 : i32
    %275 = tpu.dynamic_rotate %101 by %c1022_i32 dim 1 : vector<8x1024xf32>, i32 -> vector<8x1024xf32>
    %c30_i32_63 = arith.constant 30 : i32
    %276 = vector.broadcast %c30_i32_63 : i32 to vector<1x1024xi32>
    %277 = arith.cmpi slt, %3, %276 : vector<1x1024xi32>
    %cst_64 = arith.constant 0.000000e+00 : f32
    %278 = vector.shape_cast %277 : vector<1x1024xi1> to vector<1x1024xi1>
    %279 = vector.broadcast %278 : vector<1x1024xi1> to vector<8x1024xi1>
    %280 = vector.broadcast %cst_64 : f32 to vector<8x1024xf32>
    %281 = arith.select %279, %275, %280 : vector<8x1024xi1>, vector<8x1024xf32>
    %282 = vector.broadcast %274 : vector<8x1xf32> to vector<8x1024xf32>
    %283 = arith.mulf %282, %281 : vector<8x1024xf32>
    %284 = arith.addf %273, %283 : vector<8x1024xf32>
    %285 = vector.extract_strided_slice %4 {offsets = [0, 15], sizes = [8, 1], strides = [1, 1]} : vector<8x110xf32> to vector<8x1xf32>
    %c994_i32 = arith.constant 994 : i32
    %286 = tpu.dynamic_rotate %101 by %c994_i32 dim 1 : vector<8x1024xf32>, i32 -> vector<8x1024xf32>
    %c31_i32_65 = arith.constant 31 : i32
    %287 = vector.broadcast %c31_i32_65 : i32 to vector<1x1024xi32>
    %288 = arith.cmpi slt, %2, %287 : vector<1x1024xi32>
    %c2_i32_66 = arith.constant 2 : i32
    %289 = vector.broadcast %c2_i32_66 : i32 to vector<1x1024xi32>
    %290 = arith.cmpi sge, %3, %289 : vector<1x1024xi32>
    %291 = arith.andi %288, %290 : vector<1x1024xi1>
    %cst_67 = arith.constant 0.000000e+00 : f32
    %292 = vector.shape_cast %291 : vector<1x1024xi1> to vector<1x1024xi1>
    %293 = vector.broadcast %292 : vector<1x1024xi1> to vector<8x1024xi1>
    %294 = vector.broadcast %cst_67 : f32 to vector<8x1024xf32>
    %295 = arith.select %293, %286, %294 : vector<8x1024xi1>, vector<8x1024xf32>
    %296 = vector.broadcast %285 : vector<8x1xf32> to vector<8x1024xf32>
    %297 = arith.mulf %296, %295 : vector<8x1024xf32>
    %298 = arith.addf %284, %297 : vector<8x1024xf32>
    %299 = vector.extract_strided_slice %4 {offsets = [0, 16], sizes = [8, 1], strides = [1, 1]} : vector<8x110xf32> to vector<8x1xf32>
    %c993_i32 = arith.constant 993 : i32
    %300 = tpu.dynamic_rotate %101 by %c993_i32 dim 1 : vector<8x1024xf32>, i32 -> vector<8x1024xf32>
    %c31_i32_68 = arith.constant 31 : i32
    %301 = vector.broadcast %c31_i32_68 : i32 to vector<1x1024xi32>
    %302 = arith.cmpi slt, %2, %301 : vector<1x1024xi32>
    %c1_i32_69 = arith.constant 1 : i32
    %303 = vector.broadcast %c1_i32_69 : i32 to vector<1x1024xi32>
    %304 = arith.cmpi sge, %3, %303 : vector<1x1024xi32>
    %305 = arith.andi %302, %304 : vector<1x1024xi1>
    %cst_70 = arith.constant 0.000000e+00 : f32
    %306 = vector.shape_cast %305 : vector<1x1024xi1> to vector<1x1024xi1>
    %307 = vector.broadcast %306 : vector<1x1024xi1> to vector<8x1024xi1>
    %308 = vector.broadcast %cst_70 : f32 to vector<8x1024xf32>
    %309 = arith.select %307, %300, %308 : vector<8x1024xi1>, vector<8x1024xf32>
    %310 = vector.broadcast %299 : vector<8x1xf32> to vector<8x1024xf32>
    %311 = arith.mulf %310, %309 : vector<8x1024xf32>
    %312 = arith.addf %298, %311 : vector<8x1024xf32>
    %313 = vector.extract_strided_slice %4 {offsets = [0, 17], sizes = [8, 1], strides = [1, 1]} : vector<8x110xf32> to vector<8x1xf32>
    %c992_i32 = arith.constant 992 : i32
    %314 = tpu.dynamic_rotate %101 by %c992_i32 dim 1 : vector<8x1024xf32>, i32 -> vector<8x1024xf32>
    %c31_i32_71 = arith.constant 31 : i32
    %315 = vector.broadcast %c31_i32_71 : i32 to vector<1x1024xi32>
    %316 = arith.cmpi slt, %2, %315 : vector<1x1024xi32>
    %cst_72 = arith.constant 0.000000e+00 : f32
    %317 = vector.shape_cast %316 : vector<1x1024xi1> to vector<1x1024xi1>
    %318 = vector.broadcast %317 : vector<1x1024xi1> to vector<8x1024xi1>
    %319 = vector.broadcast %cst_72 : f32 to vector<8x1024xf32>
    %320 = arith.select %318, %314, %319 : vector<8x1024xi1>, vector<8x1024xf32>
    %321 = vector.broadcast %313 : vector<8x1xf32> to vector<8x1024xf32>
    %322 = arith.mulf %321, %320 : vector<8x1024xf32>
    %323 = arith.addf %312, %322 : vector<8x1024xf32>
    %324 = vector.extract_strided_slice %4 {offsets = [0, 18], sizes = [8, 1], strides = [1, 1]} : vector<8x110xf32> to vector<8x1xf32>
    %c991_i32 = arith.constant 991 : i32
    %325 = tpu.dynamic_rotate %101 by %c991_i32 dim 1 : vector<8x1024xf32>, i32 -> vector<8x1024xf32>
    %c31_i32_73 = arith.constant 31 : i32
    %326 = vector.broadcast %c31_i32_73 : i32 to vector<1x1024xi32>
    %327 = arith.cmpi slt, %2, %326 : vector<1x1024xi32>
    %c31_i32_74 = arith.constant 31 : i32
    %328 = vector.broadcast %c31_i32_74 : i32 to vector<1x1024xi32>
    %329 = arith.cmpi slt, %3, %328 : vector<1x1024xi32>
    %330 = arith.andi %327, %329 : vector<1x1024xi1>
    %cst_75 = arith.constant 0.000000e+00 : f32
    %331 = vector.shape_cast %330 : vector<1x1024xi1> to vector<1x1024xi1>
    %332 = vector.broadcast %331 : vector<1x1024xi1> to vector<8x1024xi1>
    %333 = vector.broadcast %cst_75 : f32 to vector<8x1024xf32>
    %334 = arith.select %332, %325, %333 : vector<8x1024xi1>, vector<8x1024xf32>
    %335 = vector.broadcast %324 : vector<8x1xf32> to vector<8x1024xf32>
    %336 = arith.mulf %335, %334 : vector<8x1024xf32>
    %337 = arith.addf %323, %336 : vector<8x1024xf32>
    %338 = vector.extract_strided_slice %4 {offsets = [0, 19], sizes = [8, 1], strides = [1, 1]} : vector<8x110xf32> to vector<8x1xf32>
    %c990_i32 = arith.constant 990 : i32
    %339 = tpu.dynamic_rotate %101 by %c990_i32 dim 1 : vector<8x1024xf32>, i32 -> vector<8x1024xf32>
    %c31_i32_76 = arith.constant 31 : i32
    %340 = vector.broadcast %c31_i32_76 : i32 to vector<1x1024xi32>
    %341 = arith.cmpi slt, %2, %340 : vector<1x1024xi32>
    %c30_i32_77 = arith.constant 30 : i32
    %342 = vector.broadcast %c30_i32_77 : i32 to vector<1x1024xi32>
    %343 = arith.cmpi slt, %3, %342 : vector<1x1024xi32>
    %344 = arith.andi %341, %343 : vector<1x1024xi1>
    %cst_78 = arith.constant 0.000000e+00 : f32
    %345 = vector.shape_cast %344 : vector<1x1024xi1> to vector<1x1024xi1>
    %346 = vector.broadcast %345 : vector<1x1024xi1> to vector<8x1024xi1>
    %347 = vector.broadcast %cst_78 : f32 to vector<8x1024xf32>
    %348 = arith.select %346, %339, %347 : vector<8x1024xi1>, vector<8x1024xf32>
    %349 = vector.broadcast %338 : vector<8x1xf32> to vector<8x1024xf32>
    %350 = arith.mulf %349, %348 : vector<8x1024xf32>
    %351 = arith.addf %337, %350 : vector<8x1024xf32>
    %352 = vector.extract_strided_slice %4 {offsets = [0, 20], sizes = [8, 1], strides = [1, 1]} : vector<8x110xf32> to vector<8x1xf32>
    %c962_i32 = arith.constant 962 : i32
    %353 = tpu.dynamic_rotate %101 by %c962_i32 dim 1 : vector<8x1024xf32>, i32 -> vector<8x1024xf32>
    %c30_i32_79 = arith.constant 30 : i32
    %354 = vector.broadcast %c30_i32_79 : i32 to vector<1x1024xi32>
    %355 = arith.cmpi slt, %2, %354 : vector<1x1024xi32>
    %c2_i32_80 = arith.constant 2 : i32
    %356 = vector.broadcast %c2_i32_80 : i32 to vector<1x1024xi32>
    %357 = arith.cmpi sge, %3, %356 : vector<1x1024xi32>
    %358 = arith.andi %355, %357 : vector<1x1024xi1>
    %cst_81 = arith.constant 0.000000e+00 : f32
    %359 = vector.shape_cast %358 : vector<1x1024xi1> to vector<1x1024xi1>
    %360 = vector.broadcast %359 : vector<1x1024xi1> to vector<8x1024xi1>
    %361 = vector.broadcast %cst_81 : f32 to vector<8x1024xf32>
    %362 = arith.select %360, %353, %361 : vector<8x1024xi1>, vector<8x1024xf32>
    %363 = vector.broadcast %352 : vector<8x1xf32> to vector<8x1024xf32>
    %364 = arith.mulf %363, %362 : vector<8x1024xf32>
    %365 = arith.addf %351, %364 : vector<8x1024xf32>
    %366 = vector.extract_strided_slice %4 {offsets = [0, 21], sizes = [8, 1], strides = [1, 1]} : vector<8x110xf32> to vector<8x1xf32>
    %c961_i32 = arith.constant 961 : i32
    %367 = tpu.dynamic_rotate %101 by %c961_i32 dim 1 : vector<8x1024xf32>, i32 -> vector<8x1024xf32>
    %c30_i32_82 = arith.constant 30 : i32
    %368 = vector.broadcast %c30_i32_82 : i32 to vector<1x1024xi32>
    %369 = arith.cmpi slt, %2, %368 : vector<1x1024xi32>
    %c1_i32_83 = arith.constant 1 : i32
    %370 = vector.broadcast %c1_i32_83 : i32 to vector<1x1024xi32>
    %371 = arith.cmpi sge, %3, %370 : vector<1x1024xi32>
    %372 = arith.andi %369, %371 : vector<1x1024xi1>
    %cst_84 = arith.constant 0.000000e+00 : f32
    %373 = vector.shape_cast %372 : vector<1x1024xi1> to vector<1x1024xi1>
    %374 = vector.broadcast %373 : vector<1x1024xi1> to vector<8x1024xi1>
    %375 = vector.broadcast %cst_84 : f32 to vector<8x1024xf32>
    %376 = arith.select %374, %367, %375 : vector<8x1024xi1>, vector<8x1024xf32>
    %377 = vector.broadcast %366 : vector<8x1xf32> to vector<8x1024xf32>
    %378 = arith.mulf %377, %376 : vector<8x1024xf32>
    %379 = arith.addf %365, %378 : vector<8x1024xf32>
    %380 = vector.extract_strided_slice %4 {offsets = [0, 22], sizes = [8, 1], strides = [1, 1]} : vector<8x110xf32> to vector<8x1xf32>
    %c960_i32 = arith.constant 960 : i32
    %381 = tpu.dynamic_rotate %101 by %c960_i32 dim 1 : vector<8x1024xf32>, i32 -> vector<8x1024xf32>
    %c30_i32_85 = arith.constant 30 : i32
    %382 = vector.broadcast %c30_i32_85 : i32 to vector<1x1024xi32>
    %383 = arith.cmpi slt, %2, %382 : vector<1x1024xi32>
    %cst_86 = arith.constant 0.000000e+00 : f32
    %384 = vector.shape_cast %383 : vector<1x1024xi1> to vector<1x1024xi1>
    %385 = vector.broadcast %384 : vector<1x1024xi1> to vector<8x1024xi1>
    %386 = vector.broadcast %cst_86 : f32 to vector<8x1024xf32>
    %387 = arith.select %385, %381, %386 : vector<8x1024xi1>, vector<8x1024xf32>
    %388 = vector.broadcast %380 : vector<8x1xf32> to vector<8x1024xf32>
    %389 = arith.mulf %388, %387 : vector<8x1024xf32>
    %390 = arith.addf %379, %389 : vector<8x1024xf32>
    %391 = vector.extract_strided_slice %4 {offsets = [0, 23], sizes = [8, 1], strides = [1, 1]} : vector<8x110xf32> to vector<8x1xf32>
    %c959_i32 = arith.constant 959 : i32
    %392 = tpu.dynamic_rotate %101 by %c959_i32 dim 1 : vector<8x1024xf32>, i32 -> vector<8x1024xf32>
    %c30_i32_87 = arith.constant 30 : i32
    %393 = vector.broadcast %c30_i32_87 : i32 to vector<1x1024xi32>
    %394 = arith.cmpi slt, %2, %393 : vector<1x1024xi32>
    %c31_i32_88 = arith.constant 31 : i32
    %395 = vector.broadcast %c31_i32_88 : i32 to vector<1x1024xi32>
    %396 = arith.cmpi slt, %3, %395 : vector<1x1024xi32>
    %397 = arith.andi %394, %396 : vector<1x1024xi1>
    %cst_89 = arith.constant 0.000000e+00 : f32
    %398 = vector.shape_cast %397 : vector<1x1024xi1> to vector<1x1024xi1>
    %399 = vector.broadcast %398 : vector<1x1024xi1> to vector<8x1024xi1>
    %400 = vector.broadcast %cst_89 : f32 to vector<8x1024xf32>
    %401 = arith.select %399, %392, %400 : vector<8x1024xi1>, vector<8x1024xf32>
    %402 = vector.broadcast %391 : vector<8x1xf32> to vector<8x1024xf32>
    %403 = arith.mulf %402, %401 : vector<8x1024xf32>
    %404 = arith.addf %390, %403 : vector<8x1024xf32>
    %405 = vector.extract_strided_slice %4 {offsets = [0, 24], sizes = [8, 1], strides = [1, 1]} : vector<8x110xf32> to vector<8x1xf32>
    %c958_i32 = arith.constant 958 : i32
    %406 = tpu.dynamic_rotate %101 by %c958_i32 dim 1 : vector<8x1024xf32>, i32 -> vector<8x1024xf32>
    %c30_i32_90 = arith.constant 30 : i32
    %407 = vector.broadcast %c30_i32_90 : i32 to vector<1x1024xi32>
    %408 = arith.cmpi slt, %2, %407 : vector<1x1024xi32>
    %c30_i32_91 = arith.constant 30 : i32
    %409 = vector.broadcast %c30_i32_91 : i32 to vector<1x1024xi32>
    %410 = arith.cmpi slt, %3, %409 : vector<1x1024xi32>
    %411 = arith.andi %408, %410 : vector<1x1024xi1>
    %cst_92 = arith.constant 0.000000e+00 : f32
    %412 = vector.shape_cast %411 : vector<1x1024xi1> to vector<1x1024xi1>
    %413 = vector.broadcast %412 : vector<1x1024xi1> to vector<8x1024xi1>
    %414 = vector.broadcast %cst_92 : f32 to vector<8x1024xf32>
    %415 = arith.select %413, %406, %414 : vector<8x1024xi1>, vector<8x1024xf32>
    %416 = vector.broadcast %405 : vector<8x1xf32> to vector<8x1024xf32>
    %417 = arith.mulf %416, %415 : vector<8x1024xf32>
    %418 = arith.addf %404, %417 : vector<8x1024xf32>
    %419 = vector.extract_strided_slice %4 {offsets = [0, 25], sizes = [8, 1], strides = [1, 1]} : vector<8x110xf32> to vector<8x1xf32>
    %420 = vector.broadcast %419 : vector<8x1xf32> to vector<8x1024xf32>
    %421 = arith.addf %418, %420 : vector<8x1024xf32>
    %cst_93 = arith.constant 0.000000e+00 : f32
    %422 = vector.broadcast %cst_93 : f32 to vector<8x1024xf32>
    %cst_94 = arith.constant 0.000000e+00 : f32
    %423 = vector.broadcast %cst_94 : f32 to vector<8x1024xf32>
    %cst_95 = arith.constant 0.000000e+00 : f32
    %424 = vector.broadcast %cst_95 : f32 to vector<8x1024xf32>
    %c10_i32 = arith.constant 10 : i32
    %425 = tpu.dynamic_rotate %421 by %c10_i32 dim 1 : vector<8x1024xf32>, i32 -> vector<8x1024xf32>
    %c10_i32_96 = arith.constant 10 : i32
    %426 = vector.broadcast %c10_i32_96 : i32 to vector<1x1024xi32>
    %427 = arith.cmpi sge, %3, %426 : vector<1x1024xi32>
    %cst_97 = arith.constant 0.000000e+00 : f32
    %428 = vector.shape_cast %427 : vector<1x1024xi1> to vector<1x1024xi1>
    %429 = vector.broadcast %428 : vector<1x1024xi1> to vector<8x1024xi1>
    %430 = vector.broadcast %cst_97 : f32 to vector<8x1024xf32>
    %431 = arith.select %429, %425, %430 : vector<8x1024xi1>, vector<8x1024xf32>
    %432 = vector.extract_strided_slice %4 {offsets = [0, 66], sizes = [8, 1], strides = [1, 1]} : vector<8x110xf32> to vector<8x1xf32>
    %433 = vector.broadcast %432 : vector<8x1xf32> to vector<8x1024xf32>
    %434 = arith.mulf %433, %431 : vector<8x1024xf32>
    %435 = arith.addf %424, %434 : vector<8x1024xf32>
    %c9_i32 = arith.constant 9 : i32
    %436 = tpu.dynamic_rotate %421 by %c9_i32 dim 1 : vector<8x1024xf32>, i32 -> vector<8x1024xf32>
    %c9_i32_98 = arith.constant 9 : i32
    %437 = vector.broadcast %c9_i32_98 : i32 to vector<1x1024xi32>
    %438 = arith.cmpi sge, %3, %437 : vector<1x1024xi32>
    %cst_99 = arith.constant 0.000000e+00 : f32
    %439 = vector.shape_cast %438 : vector<1x1024xi1> to vector<1x1024xi1>
    %440 = vector.broadcast %439 : vector<1x1024xi1> to vector<8x1024xi1>
    %441 = vector.broadcast %cst_99 : f32 to vector<8x1024xf32>
    %442 = arith.select %440, %436, %441 : vector<8x1024xi1>, vector<8x1024xf32>
    %443 = vector.extract_strided_slice %4 {offsets = [0, 67], sizes = [8, 1], strides = [1, 1]} : vector<8x110xf32> to vector<8x1xf32>
    %444 = vector.broadcast %443 : vector<8x1xf32> to vector<8x1024xf32>
    %445 = arith.mulf %444, %442 : vector<8x1024xf32>
    %446 = arith.addf %435, %445 : vector<8x1024xf32>
    %c8_i32 = arith.constant 8 : i32
    %447 = tpu.dynamic_rotate %421 by %c8_i32 dim 1 : vector<8x1024xf32>, i32 -> vector<8x1024xf32>
    %c8_i32_100 = arith.constant 8 : i32
    %448 = vector.broadcast %c8_i32_100 : i32 to vector<1x1024xi32>
    %449 = arith.cmpi sge, %3, %448 : vector<1x1024xi32>
    %cst_101 = arith.constant 0.000000e+00 : f32
    %450 = vector.shape_cast %449 : vector<1x1024xi1> to vector<1x1024xi1>
    %451 = vector.broadcast %450 : vector<1x1024xi1> to vector<8x1024xi1>
    %452 = vector.broadcast %cst_101 : f32 to vector<8x1024xf32>
    %453 = arith.select %451, %447, %452 : vector<8x1024xi1>, vector<8x1024xf32>
    %454 = vector.extract_strided_slice %4 {offsets = [0, 68], sizes = [8, 1], strides = [1, 1]} : vector<8x110xf32> to vector<8x1xf32>
    %455 = vector.broadcast %454 : vector<8x1xf32> to vector<8x1024xf32>
    %456 = arith.mulf %455, %453 : vector<8x1024xf32>
    %457 = arith.addf %446, %456 : vector<8x1024xf32>
    %c7_i32 = arith.constant 7 : i32
    %458 = tpu.dynamic_rotate %421 by %c7_i32 dim 1 : vector<8x1024xf32>, i32 -> vector<8x1024xf32>
    %c7_i32_102 = arith.constant 7 : i32
    %459 = vector.broadcast %c7_i32_102 : i32 to vector<1x1024xi32>
    %460 = arith.cmpi sge, %3, %459 : vector<1x1024xi32>
    %cst_103 = arith.constant 0.000000e+00 : f32
    %461 = vector.shape_cast %460 : vector<1x1024xi1> to vector<1x1024xi1>
    %462 = vector.broadcast %461 : vector<1x1024xi1> to vector<8x1024xi1>
    %463 = vector.broadcast %cst_103 : f32 to vector<8x1024xf32>
    %464 = arith.select %462, %458, %463 : vector<8x1024xi1>, vector<8x1024xf32>
    %465 = vector.extract_strided_slice %4 {offsets = [0, 69], sizes = [8, 1], strides = [1, 1]} : vector<8x110xf32> to vector<8x1xf32>
    %466 = vector.broadcast %465 : vector<8x1xf32> to vector<8x1024xf32>
    %467 = arith.mulf %466, %464 : vector<8x1024xf32>
    %468 = arith.addf %457, %467 : vector<8x1024xf32>
    %c6_i32 = arith.constant 6 : i32
    %469 = tpu.dynamic_rotate %421 by %c6_i32 dim 1 : vector<8x1024xf32>, i32 -> vector<8x1024xf32>
    %c6_i32_104 = arith.constant 6 : i32
    %470 = vector.broadcast %c6_i32_104 : i32 to vector<1x1024xi32>
    %471 = arith.cmpi sge, %3, %470 : vector<1x1024xi32>
    %cst_105 = arith.constant 0.000000e+00 : f32
    %472 = vector.shape_cast %471 : vector<1x1024xi1> to vector<1x1024xi1>
    %473 = vector.broadcast %472 : vector<1x1024xi1> to vector<8x1024xi1>
    %474 = vector.broadcast %cst_105 : f32 to vector<8x1024xf32>
    %475 = arith.select %473, %469, %474 : vector<8x1024xi1>, vector<8x1024xf32>
    %476 = vector.extract_strided_slice %4 {offsets = [0, 70], sizes = [8, 1], strides = [1, 1]} : vector<8x110xf32> to vector<8x1xf32>
    %477 = vector.broadcast %476 : vector<8x1xf32> to vector<8x1024xf32>
    %478 = arith.mulf %477, %475 : vector<8x1024xf32>
    %479 = arith.addf %468, %478 : vector<8x1024xf32>
    %c5_i32 = arith.constant 5 : i32
    %480 = tpu.dynamic_rotate %421 by %c5_i32 dim 1 : vector<8x1024xf32>, i32 -> vector<8x1024xf32>
    %c5_i32_106 = arith.constant 5 : i32
    %481 = vector.broadcast %c5_i32_106 : i32 to vector<1x1024xi32>
    %482 = arith.cmpi sge, %3, %481 : vector<1x1024xi32>
    %cst_107 = arith.constant 0.000000e+00 : f32
    %483 = vector.shape_cast %482 : vector<1x1024xi1> to vector<1x1024xi1>
    %484 = vector.broadcast %483 : vector<1x1024xi1> to vector<8x1024xi1>
    %485 = vector.broadcast %cst_107 : f32 to vector<8x1024xf32>
    %486 = arith.select %484, %480, %485 : vector<8x1024xi1>, vector<8x1024xf32>
    %487 = vector.extract_strided_slice %4 {offsets = [0, 71], sizes = [8, 1], strides = [1, 1]} : vector<8x110xf32> to vector<8x1xf32>
    %488 = vector.broadcast %487 : vector<8x1xf32> to vector<8x1024xf32>
    %489 = arith.mulf %488, %486 : vector<8x1024xf32>
    %490 = arith.addf %479, %489 : vector<8x1024xf32>
    %491 = vector.extract_strided_slice %4 {offsets = [0, 42], sizes = [8, 1], strides = [1, 1]} : vector<8x110xf32> to vector<8x1xf32>
    %492 = vector.broadcast %491 : vector<8x1xf32> to vector<8x1024xf32>
    %493 = arith.mulf %492, %486 : vector<8x1024xf32>
    %494 = arith.addf %423, %493 : vector<8x1024xf32>
    %c4_i32 = arith.constant 4 : i32
    %495 = tpu.dynamic_rotate %421 by %c4_i32 dim 1 : vector<8x1024xf32>, i32 -> vector<8x1024xf32>
    %c4_i32_108 = arith.constant 4 : i32
    %496 = vector.broadcast %c4_i32_108 : i32 to vector<1x1024xi32>
    %497 = arith.cmpi sge, %3, %496 : vector<1x1024xi32>
    %cst_109 = arith.constant 0.000000e+00 : f32
    %498 = vector.shape_cast %497 : vector<1x1024xi1> to vector<1x1024xi1>
    %499 = vector.broadcast %498 : vector<1x1024xi1> to vector<8x1024xi1>
    %500 = vector.broadcast %cst_109 : f32 to vector<8x1024xf32>
    %501 = arith.select %499, %495, %500 : vector<8x1024xi1>, vector<8x1024xf32>
    %502 = vector.extract_strided_slice %4 {offsets = [0, 72], sizes = [8, 1], strides = [1, 1]} : vector<8x110xf32> to vector<8x1xf32>
    %503 = vector.broadcast %502 : vector<8x1xf32> to vector<8x1024xf32>
    %504 = arith.mulf %503, %501 : vector<8x1024xf32>
    %505 = arith.addf %490, %504 : vector<8x1024xf32>
    %506 = vector.extract_strided_slice %4 {offsets = [0, 43], sizes = [8, 1], strides = [1, 1]} : vector<8x110xf32> to vector<8x1xf32>
    %507 = vector.broadcast %506 : vector<8x1xf32> to vector<8x1024xf32>
    %508 = arith.mulf %507, %501 : vector<8x1024xf32>
    %509 = arith.addf %494, %508 : vector<8x1024xf32>
    %c3_i32 = arith.constant 3 : i32
    %510 = tpu.dynamic_rotate %421 by %c3_i32 dim 1 : vector<8x1024xf32>, i32 -> vector<8x1024xf32>
    %c3_i32_110 = arith.constant 3 : i32
    %511 = vector.broadcast %c3_i32_110 : i32 to vector<1x1024xi32>
    %512 = arith.cmpi sge, %3, %511 : vector<1x1024xi32>
    %cst_111 = arith.constant 0.000000e+00 : f32
    %513 = vector.shape_cast %512 : vector<1x1024xi1> to vector<1x1024xi1>
    %514 = vector.broadcast %513 : vector<1x1024xi1> to vector<8x1024xi1>
    %515 = vector.broadcast %cst_111 : f32 to vector<8x1024xf32>
    %516 = arith.select %514, %510, %515 : vector<8x1024xi1>, vector<8x1024xf32>
    %517 = vector.extract_strided_slice %4 {offsets = [0, 73], sizes = [8, 1], strides = [1, 1]} : vector<8x110xf32> to vector<8x1xf32>
    %518 = vector.broadcast %517 : vector<8x1xf32> to vector<8x1024xf32>
    %519 = arith.mulf %518, %516 : vector<8x1024xf32>
    %520 = arith.addf %505, %519 : vector<8x1024xf32>
    %521 = vector.extract_strided_slice %4 {offsets = [0, 44], sizes = [8, 1], strides = [1, 1]} : vector<8x110xf32> to vector<8x1xf32>
    %522 = vector.broadcast %521 : vector<8x1xf32> to vector<8x1024xf32>
    %523 = arith.mulf %522, %516 : vector<8x1024xf32>
    %524 = arith.addf %509, %523 : vector<8x1024xf32>
    %525 = vector.extract_strided_slice %4 {offsets = [0, 26], sizes = [8, 1], strides = [1, 1]} : vector<8x110xf32> to vector<8x1xf32>
    %526 = vector.broadcast %525 : vector<8x1xf32> to vector<8x1024xf32>
    %527 = arith.mulf %526, %516 : vector<8x1024xf32>
    %528 = arith.addf %422, %527 : vector<8x1024xf32>
    %c2_i32_112 = arith.constant 2 : i32
    %529 = tpu.dynamic_rotate %421 by %c2_i32_112 dim 1 : vector<8x1024xf32>, i32 -> vector<8x1024xf32>
    %c2_i32_113 = arith.constant 2 : i32
    %530 = vector.broadcast %c2_i32_113 : i32 to vector<1x1024xi32>
    %531 = arith.cmpi sge, %3, %530 : vector<1x1024xi32>
    %cst_114 = arith.constant 0.000000e+00 : f32
    %532 = vector.shape_cast %531 : vector<1x1024xi1> to vector<1x1024xi1>
    %533 = vector.broadcast %532 : vector<1x1024xi1> to vector<8x1024xi1>
    %534 = vector.broadcast %cst_114 : f32 to vector<8x1024xf32>
    %535 = arith.select %533, %529, %534 : vector<8x1024xi1>, vector<8x1024xf32>
    %536 = vector.extract_strided_slice %4 {offsets = [0, 74], sizes = [8, 1], strides = [1, 1]} : vector<8x110xf32> to vector<8x1xf32>
    %537 = vector.broadcast %536 : vector<8x1xf32> to vector<8x1024xf32>
    %538 = arith.mulf %537, %535 : vector<8x1024xf32>
    %539 = arith.addf %520, %538 : vector<8x1024xf32>
    %540 = vector.extract_strided_slice %4 {offsets = [0, 45], sizes = [8, 1], strides = [1, 1]} : vector<8x110xf32> to vector<8x1xf32>
    %541 = vector.broadcast %540 : vector<8x1xf32> to vector<8x1024xf32>
    %542 = arith.mulf %541, %535 : vector<8x1024xf32>
    %543 = arith.addf %524, %542 : vector<8x1024xf32>
    %544 = vector.extract_strided_slice %4 {offsets = [0, 27], sizes = [8, 1], strides = [1, 1]} : vector<8x110xf32> to vector<8x1xf32>
    %545 = vector.broadcast %544 : vector<8x1xf32> to vector<8x1024xf32>
    %546 = arith.mulf %545, %535 : vector<8x1024xf32>
    %547 = arith.addf %528, %546 : vector<8x1024xf32>
    %c1_i32_115 = arith.constant 1 : i32
    %548 = tpu.dynamic_rotate %421 by %c1_i32_115 dim 1 : vector<8x1024xf32>, i32 -> vector<8x1024xf32>
    %c1_i32_116 = arith.constant 1 : i32
    %549 = vector.broadcast %c1_i32_116 : i32 to vector<1x1024xi32>
    %550 = arith.cmpi sge, %3, %549 : vector<1x1024xi32>
    %cst_117 = arith.constant 0.000000e+00 : f32
    %551 = vector.shape_cast %550 : vector<1x1024xi1> to vector<1x1024xi1>
    %552 = vector.broadcast %551 : vector<1x1024xi1> to vector<8x1024xi1>
    %553 = vector.broadcast %cst_117 : f32 to vector<8x1024xf32>
    %554 = arith.select %552, %548, %553 : vector<8x1024xi1>, vector<8x1024xf32>
    %555 = vector.extract_strided_slice %4 {offsets = [0, 75], sizes = [8, 1], strides = [1, 1]} : vector<8x110xf32> to vector<8x1xf32>
    %556 = vector.broadcast %555 : vector<8x1xf32> to vector<8x1024xf32>
    %557 = arith.mulf %556, %554 : vector<8x1024xf32>
    %558 = arith.addf %539, %557 : vector<8x1024xf32>
    %559 = vector.extract_strided_slice %4 {offsets = [0, 46], sizes = [8, 1], strides = [1, 1]} : vector<8x110xf32> to vector<8x1xf32>
    %560 = vector.broadcast %559 : vector<8x1xf32> to vector<8x1024xf32>
    %561 = arith.mulf %560, %554 : vector<8x1024xf32>
    %562 = arith.addf %543, %561 : vector<8x1024xf32>
    %563 = vector.extract_strided_slice %4 {offsets = [0, 28], sizes = [8, 1], strides = [1, 1]} : vector<8x110xf32> to vector<8x1xf32>
    %564 = vector.broadcast %563 : vector<8x1xf32> to vector<8x1024xf32>
    %565 = arith.mulf %564, %554 : vector<8x1024xf32>
    %566 = arith.addf %547, %565 : vector<8x1024xf32>
    %567 = vector.extract_strided_slice %4 {offsets = [0, 76], sizes = [8, 1], strides = [1, 1]} : vector<8x110xf32> to vector<8x1xf32>
    %568 = vector.broadcast %567 : vector<8x1xf32> to vector<8x1024xf32>
    %569 = arith.mulf %568, %421 : vector<8x1024xf32>
    %570 = arith.addf %558, %569 : vector<8x1024xf32>
    %571 = vector.extract_strided_slice %4 {offsets = [0, 47], sizes = [8, 1], strides = [1, 1]} : vector<8x110xf32> to vector<8x1xf32>
    %572 = vector.broadcast %571 : vector<8x1xf32> to vector<8x1024xf32>
    %573 = arith.mulf %572, %421 : vector<8x1024xf32>
    %574 = arith.addf %562, %573 : vector<8x1024xf32>
    %575 = vector.extract_strided_slice %4 {offsets = [0, 29], sizes = [8, 1], strides = [1, 1]} : vector<8x110xf32> to vector<8x1xf32>
    %576 = vector.broadcast %575 : vector<8x1xf32> to vector<8x1024xf32>
    %577 = arith.mulf %576, %421 : vector<8x1024xf32>
    %578 = arith.addf %566, %577 : vector<8x1024xf32>
    %c1023_i32_118 = arith.constant 1023 : i32
    %579 = tpu.dynamic_rotate %421 by %c1023_i32_118 dim 1 : vector<8x1024xf32>, i32 -> vector<8x1024xf32>
    %c31_i32_119 = arith.constant 31 : i32
    %580 = vector.broadcast %c31_i32_119 : i32 to vector<1x1024xi32>
    %581 = arith.cmpi slt, %3, %580 : vector<1x1024xi32>
    %cst_120 = arith.constant 0.000000e+00 : f32
    %582 = vector.shape_cast %581 : vector<1x1024xi1> to vector<1x1024xi1>
    %583 = vector.broadcast %582 : vector<1x1024xi1> to vector<8x1024xi1>
    %584 = vector.broadcast %cst_120 : f32 to vector<8x1024xf32>
    %585 = arith.select %583, %579, %584 : vector<8x1024xi1>, vector<8x1024xf32>
    %586 = vector.extract_strided_slice %4 {offsets = [0, 77], sizes = [8, 1], strides = [1, 1]} : vector<8x110xf32> to vector<8x1xf32>
    %587 = vector.broadcast %586 : vector<8x1xf32> to vector<8x1024xf32>
    %588 = arith.mulf %587, %585 : vector<8x1024xf32>
    %589 = arith.addf %570, %588 : vector<8x1024xf32>
    %590 = vector.extract_strided_slice %4 {offsets = [0, 48], sizes = [8, 1], strides = [1, 1]} : vector<8x110xf32> to vector<8x1xf32>
    %591 = vector.broadcast %590 : vector<8x1xf32> to vector<8x1024xf32>
    %592 = arith.mulf %591, %585 : vector<8x1024xf32>
    %593 = arith.addf %574, %592 : vector<8x1024xf32>
    %594 = vector.extract_strided_slice %4 {offsets = [0, 30], sizes = [8, 1], strides = [1, 1]} : vector<8x110xf32> to vector<8x1xf32>
    %595 = vector.broadcast %594 : vector<8x1xf32> to vector<8x1024xf32>
    %596 = arith.mulf %595, %585 : vector<8x1024xf32>
    %597 = arith.addf %578, %596 : vector<8x1024xf32>
    %c1022_i32_121 = arith.constant 1022 : i32
    %598 = tpu.dynamic_rotate %421 by %c1022_i32_121 dim 1 : vector<8x1024xf32>, i32 -> vector<8x1024xf32>
    %c30_i32_122 = arith.constant 30 : i32
    %599 = vector.broadcast %c30_i32_122 : i32 to vector<1x1024xi32>
    %600 = arith.cmpi slt, %3, %599 : vector<1x1024xi32>
    %cst_123 = arith.constant 0.000000e+00 : f32
    %601 = vector.shape_cast %600 : vector<1x1024xi1> to vector<1x1024xi1>
    %602 = vector.broadcast %601 : vector<1x1024xi1> to vector<8x1024xi1>
    %603 = vector.broadcast %cst_123 : f32 to vector<8x1024xf32>
    %604 = arith.select %602, %598, %603 : vector<8x1024xi1>, vector<8x1024xf32>
    %605 = vector.extract_strided_slice %4 {offsets = [0, 78], sizes = [8, 1], strides = [1, 1]} : vector<8x110xf32> to vector<8x1xf32>
    %606 = vector.broadcast %605 : vector<8x1xf32> to vector<8x1024xf32>
    %607 = arith.mulf %606, %604 : vector<8x1024xf32>
    %608 = arith.addf %589, %607 : vector<8x1024xf32>
    %609 = vector.extract_strided_slice %4 {offsets = [0, 49], sizes = [8, 1], strides = [1, 1]} : vector<8x110xf32> to vector<8x1xf32>
    %610 = vector.broadcast %609 : vector<8x1xf32> to vector<8x1024xf32>
    %611 = arith.mulf %610, %604 : vector<8x1024xf32>
    %612 = arith.addf %593, %611 : vector<8x1024xf32>
    %613 = vector.extract_strided_slice %4 {offsets = [0, 31], sizes = [8, 1], strides = [1, 1]} : vector<8x110xf32> to vector<8x1xf32>
    %614 = vector.broadcast %613 : vector<8x1xf32> to vector<8x1024xf32>
    %615 = arith.mulf %614, %604 : vector<8x1024xf32>
    %616 = arith.addf %597, %615 : vector<8x1024xf32>
    %c1021_i32 = arith.constant 1021 : i32
    %617 = tpu.dynamic_rotate %421 by %c1021_i32 dim 1 : vector<8x1024xf32>, i32 -> vector<8x1024xf32>
    %c29_i32 = arith.constant 29 : i32
    %618 = vector.broadcast %c29_i32 : i32 to vector<1x1024xi32>
    %619 = arith.cmpi slt, %3, %618 : vector<1x1024xi32>
    %cst_124 = arith.constant 0.000000e+00 : f32
    %620 = vector.shape_cast %619 : vector<1x1024xi1> to vector<1x1024xi1>
    %621 = vector.broadcast %620 : vector<1x1024xi1> to vector<8x1024xi1>
    %622 = vector.broadcast %cst_124 : f32 to vector<8x1024xf32>
    %623 = arith.select %621, %617, %622 : vector<8x1024xi1>, vector<8x1024xf32>
    %624 = vector.extract_strided_slice %4 {offsets = [0, 79], sizes = [8, 1], strides = [1, 1]} : vector<8x110xf32> to vector<8x1xf32>
    %625 = vector.broadcast %624 : vector<8x1xf32> to vector<8x1024xf32>
    %626 = arith.mulf %625, %623 : vector<8x1024xf32>
    %627 = arith.addf %608, %626 : vector<8x1024xf32>
    %628 = vector.extract_strided_slice %4 {offsets = [0, 50], sizes = [8, 1], strides = [1, 1]} : vector<8x110xf32> to vector<8x1xf32>
    %629 = vector.broadcast %628 : vector<8x1xf32> to vector<8x1024xf32>
    %630 = arith.mulf %629, %623 : vector<8x1024xf32>
    %631 = arith.addf %612, %630 : vector<8x1024xf32>
    %632 = vector.extract_strided_slice %4 {offsets = [0, 32], sizes = [8, 1], strides = [1, 1]} : vector<8x110xf32> to vector<8x1xf32>
    %633 = vector.broadcast %632 : vector<8x1xf32> to vector<8x1024xf32>
    %634 = arith.mulf %633, %623 : vector<8x1024xf32>
    %635 = arith.addf %616, %634 : vector<8x1024xf32>
    %c1020_i32 = arith.constant 1020 : i32
    %636 = tpu.dynamic_rotate %421 by %c1020_i32 dim 1 : vector<8x1024xf32>, i32 -> vector<8x1024xf32>
    %c28_i32 = arith.constant 28 : i32
    %637 = vector.broadcast %c28_i32 : i32 to vector<1x1024xi32>
    %638 = arith.cmpi slt, %3, %637 : vector<1x1024xi32>
    %cst_125 = arith.constant 0.000000e+00 : f32
    %639 = vector.shape_cast %638 : vector<1x1024xi1> to vector<1x1024xi1>
    %640 = vector.broadcast %639 : vector<1x1024xi1> to vector<8x1024xi1>
    %641 = vector.broadcast %cst_125 : f32 to vector<8x1024xf32>
    %642 = arith.select %640, %636, %641 : vector<8x1024xi1>, vector<8x1024xf32>
    %643 = vector.extract_strided_slice %4 {offsets = [0, 80], sizes = [8, 1], strides = [1, 1]} : vector<8x110xf32> to vector<8x1xf32>
    %644 = vector.broadcast %643 : vector<8x1xf32> to vector<8x1024xf32>
    %645 = arith.mulf %644, %642 : vector<8x1024xf32>
    %646 = arith.addf %627, %645 : vector<8x1024xf32>
    %647 = vector.extract_strided_slice %4 {offsets = [0, 51], sizes = [8, 1], strides = [1, 1]} : vector<8x110xf32> to vector<8x1xf32>
    %648 = vector.broadcast %647 : vector<8x1xf32> to vector<8x1024xf32>
    %649 = arith.mulf %648, %642 : vector<8x1024xf32>
    %650 = arith.addf %631, %649 : vector<8x1024xf32>
    %c1019_i32 = arith.constant 1019 : i32
    %651 = tpu.dynamic_rotate %421 by %c1019_i32 dim 1 : vector<8x1024xf32>, i32 -> vector<8x1024xf32>
    %c27_i32 = arith.constant 27 : i32
    %652 = vector.broadcast %c27_i32 : i32 to vector<1x1024xi32>
    %653 = arith.cmpi slt, %3, %652 : vector<1x1024xi32>
    %cst_126 = arith.constant 0.000000e+00 : f32
    %654 = vector.shape_cast %653 : vector<1x1024xi1> to vector<1x1024xi1>
    %655 = vector.broadcast %654 : vector<1x1024xi1> to vector<8x1024xi1>
    %656 = vector.broadcast %cst_126 : f32 to vector<8x1024xf32>
    %657 = arith.select %655, %651, %656 : vector<8x1024xi1>, vector<8x1024xf32>
    %658 = vector.extract_strided_slice %4 {offsets = [0, 81], sizes = [8, 1], strides = [1, 1]} : vector<8x110xf32> to vector<8x1xf32>
    %659 = vector.broadcast %658 : vector<8x1xf32> to vector<8x1024xf32>
    %660 = arith.mulf %659, %657 : vector<8x1024xf32>
    %661 = arith.addf %646, %660 : vector<8x1024xf32>
    %662 = vector.extract_strided_slice %4 {offsets = [0, 52], sizes = [8, 1], strides = [1, 1]} : vector<8x110xf32> to vector<8x1xf32>
    %663 = vector.broadcast %662 : vector<8x1xf32> to vector<8x1024xf32>
    %664 = arith.mulf %663, %657 : vector<8x1024xf32>
    %665 = arith.addf %650, %664 : vector<8x1024xf32>
    %c1018_i32 = arith.constant 1018 : i32
    %666 = tpu.dynamic_rotate %421 by %c1018_i32 dim 1 : vector<8x1024xf32>, i32 -> vector<8x1024xf32>
    %c26_i32 = arith.constant 26 : i32
    %667 = vector.broadcast %c26_i32 : i32 to vector<1x1024xi32>
    %668 = arith.cmpi slt, %3, %667 : vector<1x1024xi32>
    %cst_127 = arith.constant 0.000000e+00 : f32
    %669 = vector.shape_cast %668 : vector<1x1024xi1> to vector<1x1024xi1>
    %670 = vector.broadcast %669 : vector<1x1024xi1> to vector<8x1024xi1>
    %671 = vector.broadcast %cst_127 : f32 to vector<8x1024xf32>
    %672 = arith.select %670, %666, %671 : vector<8x1024xi1>, vector<8x1024xf32>
    %673 = vector.extract_strided_slice %4 {offsets = [0, 82], sizes = [8, 1], strides = [1, 1]} : vector<8x110xf32> to vector<8x1xf32>
    %674 = vector.broadcast %673 : vector<8x1xf32> to vector<8x1024xf32>
    %675 = arith.mulf %674, %672 : vector<8x1024xf32>
    %676 = arith.addf %661, %675 : vector<8x1024xf32>
    %c1017_i32 = arith.constant 1017 : i32
    %677 = tpu.dynamic_rotate %421 by %c1017_i32 dim 1 : vector<8x1024xf32>, i32 -> vector<8x1024xf32>
    %c25_i32 = arith.constant 25 : i32
    %678 = vector.broadcast %c25_i32 : i32 to vector<1x1024xi32>
    %679 = arith.cmpi slt, %3, %678 : vector<1x1024xi32>
    %cst_128 = arith.constant 0.000000e+00 : f32
    %680 = vector.shape_cast %679 : vector<1x1024xi1> to vector<1x1024xi1>
    %681 = vector.broadcast %680 : vector<1x1024xi1> to vector<8x1024xi1>
    %682 = vector.broadcast %cst_128 : f32 to vector<8x1024xf32>
    %683 = arith.select %681, %677, %682 : vector<8x1024xi1>, vector<8x1024xf32>
    %684 = vector.extract_strided_slice %4 {offsets = [0, 83], sizes = [8, 1], strides = [1, 1]} : vector<8x110xf32> to vector<8x1xf32>
    %685 = vector.broadcast %684 : vector<8x1xf32> to vector<8x1024xf32>
    %686 = arith.mulf %685, %683 : vector<8x1024xf32>
    %687 = arith.addf %676, %686 : vector<8x1024xf32>
    %c1016_i32 = arith.constant 1016 : i32
    %688 = tpu.dynamic_rotate %421 by %c1016_i32 dim 1 : vector<8x1024xf32>, i32 -> vector<8x1024xf32>
    %c24_i32 = arith.constant 24 : i32
    %689 = vector.broadcast %c24_i32 : i32 to vector<1x1024xi32>
    %690 = arith.cmpi slt, %3, %689 : vector<1x1024xi32>
    %cst_129 = arith.constant 0.000000e+00 : f32
    %691 = vector.shape_cast %690 : vector<1x1024xi1> to vector<1x1024xi1>
    %692 = vector.broadcast %691 : vector<1x1024xi1> to vector<8x1024xi1>
    %693 = vector.broadcast %cst_129 : f32 to vector<8x1024xf32>
    %694 = arith.select %692, %688, %693 : vector<8x1024xi1>, vector<8x1024xf32>
    %695 = vector.extract_strided_slice %4 {offsets = [0, 84], sizes = [8, 1], strides = [1, 1]} : vector<8x110xf32> to vector<8x1xf32>
    %696 = vector.broadcast %695 : vector<8x1xf32> to vector<8x1024xf32>
    %697 = arith.mulf %696, %694 : vector<8x1024xf32>
    %698 = arith.addf %687, %697 : vector<8x1024xf32>
    %c1015_i32 = arith.constant 1015 : i32
    %699 = tpu.dynamic_rotate %421 by %c1015_i32 dim 1 : vector<8x1024xf32>, i32 -> vector<8x1024xf32>
    %c23_i32 = arith.constant 23 : i32
    %700 = vector.broadcast %c23_i32 : i32 to vector<1x1024xi32>
    %701 = arith.cmpi slt, %3, %700 : vector<1x1024xi32>
    %cst_130 = arith.constant 0.000000e+00 : f32
    %702 = vector.shape_cast %701 : vector<1x1024xi1> to vector<1x1024xi1>
    %703 = vector.broadcast %702 : vector<1x1024xi1> to vector<8x1024xi1>
    %704 = vector.broadcast %cst_130 : f32 to vector<8x1024xf32>
    %705 = arith.select %703, %699, %704 : vector<8x1024xi1>, vector<8x1024xf32>
    %706 = vector.extract_strided_slice %4 {offsets = [0, 85], sizes = [8, 1], strides = [1, 1]} : vector<8x110xf32> to vector<8x1xf32>
    %707 = vector.broadcast %706 : vector<8x1xf32> to vector<8x1024xf32>
    %708 = arith.mulf %707, %705 : vector<8x1024xf32>
    %709 = arith.addf %698, %708 : vector<8x1024xf32>
    %c1014_i32 = arith.constant 1014 : i32
    %710 = tpu.dynamic_rotate %421 by %c1014_i32 dim 1 : vector<8x1024xf32>, i32 -> vector<8x1024xf32>
    %c22_i32 = arith.constant 22 : i32
    %711 = vector.broadcast %c22_i32 : i32 to vector<1x1024xi32>
    %712 = arith.cmpi slt, %3, %711 : vector<1x1024xi32>
    %cst_131 = arith.constant 0.000000e+00 : f32
    %713 = vector.shape_cast %712 : vector<1x1024xi1> to vector<1x1024xi1>
    %714 = vector.broadcast %713 : vector<1x1024xi1> to vector<8x1024xi1>
    %715 = vector.broadcast %cst_131 : f32 to vector<8x1024xf32>
    %716 = arith.select %714, %710, %715 : vector<8x1024xi1>, vector<8x1024xf32>
    %717 = vector.extract_strided_slice %4 {offsets = [0, 86], sizes = [8, 1], strides = [1, 1]} : vector<8x110xf32> to vector<8x1xf32>
    %718 = vector.broadcast %717 : vector<8x1xf32> to vector<8x1024xf32>
    %719 = arith.mulf %718, %716 : vector<8x1024xf32>
    %720 = arith.addf %709, %719 : vector<8x1024xf32>
    %721 = vector.extract_strided_slice %4 {offsets = [0, 33], sizes = [8, 1], strides = [1, 1]} : vector<8x110xf32> to vector<8x1xf32>
    %722 = vector.broadcast %721 : vector<8x1xf32> to vector<8x1024xf32>
    %723 = arith.addf %635, %722 : vector<8x1024xf32>
    %724 = vector.extract_strided_slice %4 {offsets = [0, 53], sizes = [8, 1], strides = [1, 1]} : vector<8x110xf32> to vector<8x1xf32>
    %725 = vector.broadcast %724 : vector<8x1xf32> to vector<8x1024xf32>
    %726 = arith.addf %665, %725 : vector<8x1024xf32>
    %727 = vector.extract_strided_slice %4 {offsets = [0, 87], sizes = [8, 1], strides = [1, 1]} : vector<8x110xf32> to vector<8x1xf32>
    %728 = vector.broadcast %727 : vector<8x1xf32> to vector<8x1024xf32>
    %729 = arith.addf %720, %728 : vector<8x1024xf32>
    %cst_132 = arith.constant 0.000000e+00 : f32
    %730 = vector.broadcast %cst_132 : f32 to vector<8x1024xf32>
    %731 = vector.extract_strided_slice %4 {offsets = [0, 34], sizes = [8, 1], strides = [1, 1]} : vector<8x110xf32> to vector<8x1xf32>
    %c96_i32 = arith.constant 96 : i32
    %732 = tpu.dynamic_rotate %723 by %c96_i32 dim 1 : vector<8x1024xf32>, i32 -> vector<8x1024xf32>
    %c3_i32_133 = arith.constant 3 : i32
    %733 = vector.broadcast %c3_i32_133 : i32 to vector<1x1024xi32>
    %734 = arith.cmpi sge, %2, %733 : vector<1x1024xi32>
    %cst_134 = arith.constant 0.000000e+00 : f32
    %735 = vector.shape_cast %734 : vector<1x1024xi1> to vector<1x1024xi1>
    %736 = vector.broadcast %735 : vector<1x1024xi1> to vector<8x1024xi1>
    %737 = vector.broadcast %cst_134 : f32 to vector<8x1024xf32>
    %738 = arith.select %736, %732, %737 : vector<8x1024xi1>, vector<8x1024xf32>
    %739 = vector.broadcast %731 : vector<8x1xf32> to vector<8x1024xf32>
    %740 = arith.mulf %739, %738 : vector<8x1024xf32>
    %741 = arith.addf %730, %740 : vector<8x1024xf32>
    %742 = vector.extract_strided_slice %4 {offsets = [0, 35], sizes = [8, 1], strides = [1, 1]} : vector<8x110xf32> to vector<8x1xf32>
    %c64_i32_135 = arith.constant 64 : i32
    %743 = tpu.dynamic_rotate %723 by %c64_i32_135 dim 1 : vector<8x1024xf32>, i32 -> vector<8x1024xf32>
    %c2_i32_136 = arith.constant 2 : i32
    %744 = vector.broadcast %c2_i32_136 : i32 to vector<1x1024xi32>
    %745 = arith.cmpi sge, %2, %744 : vector<1x1024xi32>
    %cst_137 = arith.constant 0.000000e+00 : f32
    %746 = vector.shape_cast %745 : vector<1x1024xi1> to vector<1x1024xi1>
    %747 = vector.broadcast %746 : vector<1x1024xi1> to vector<8x1024xi1>
    %748 = vector.broadcast %cst_137 : f32 to vector<8x1024xf32>
    %749 = arith.select %747, %743, %748 : vector<8x1024xi1>, vector<8x1024xf32>
    %750 = vector.broadcast %742 : vector<8x1xf32> to vector<8x1024xf32>
    %751 = arith.mulf %750, %749 : vector<8x1024xf32>
    %752 = arith.addf %741, %751 : vector<8x1024xf32>
    %753 = vector.extract_strided_slice %4 {offsets = [0, 36], sizes = [8, 1], strides = [1, 1]} : vector<8x110xf32> to vector<8x1xf32>
    %c32_i32_138 = arith.constant 32 : i32
    %754 = tpu.dynamic_rotate %723 by %c32_i32_138 dim 1 : vector<8x1024xf32>, i32 -> vector<8x1024xf32>
    %c1_i32_139 = arith.constant 1 : i32
    %755 = vector.broadcast %c1_i32_139 : i32 to vector<1x1024xi32>
    %756 = arith.cmpi sge, %2, %755 : vector<1x1024xi32>
    %cst_140 = arith.constant 0.000000e+00 : f32
    %757 = vector.shape_cast %756 : vector<1x1024xi1> to vector<1x1024xi1>
    %758 = vector.broadcast %757 : vector<1x1024xi1> to vector<8x1024xi1>
    %759 = vector.broadcast %cst_140 : f32 to vector<8x1024xf32>
    %760 = arith.select %758, %754, %759 : vector<8x1024xi1>, vector<8x1024xf32>
    %761 = vector.broadcast %753 : vector<8x1xf32> to vector<8x1024xf32>
    %762 = arith.mulf %761, %760 : vector<8x1024xf32>
    %763 = arith.addf %752, %762 : vector<8x1024xf32>
    %764 = vector.extract_strided_slice %4 {offsets = [0, 37], sizes = [8, 1], strides = [1, 1]} : vector<8x110xf32> to vector<8x1xf32>
    %765 = vector.broadcast %764 : vector<8x1xf32> to vector<8x1024xf32>
    %766 = arith.mulf %765, %723 : vector<8x1024xf32>
    %767 = arith.addf %763, %766 : vector<8x1024xf32>
    %768 = vector.extract_strided_slice %4 {offsets = [0, 38], sizes = [8, 1], strides = [1, 1]} : vector<8x110xf32> to vector<8x1xf32>
    %c992_i32_141 = arith.constant 992 : i32
    %769 = tpu.dynamic_rotate %723 by %c992_i32_141 dim 1 : vector<8x1024xf32>, i32 -> vector<8x1024xf32>
    %c31_i32_142 = arith.constant 31 : i32
    %770 = vector.broadcast %c31_i32_142 : i32 to vector<1x1024xi32>
    %771 = arith.cmpi slt, %2, %770 : vector<1x1024xi32>
    %cst_143 = arith.constant 0.000000e+00 : f32
    %772 = vector.shape_cast %771 : vector<1x1024xi1> to vector<1x1024xi1>
    %773 = vector.broadcast %772 : vector<1x1024xi1> to vector<8x1024xi1>
    %774 = vector.broadcast %cst_143 : f32 to vector<8x1024xf32>
    %775 = arith.select %773, %769, %774 : vector<8x1024xi1>, vector<8x1024xf32>
    %776 = vector.broadcast %768 : vector<8x1xf32> to vector<8x1024xf32>
    %777 = arith.mulf %776, %775 : vector<8x1024xf32>
    %778 = arith.addf %767, %777 : vector<8x1024xf32>
    %779 = vector.extract_strided_slice %4 {offsets = [0, 39], sizes = [8, 1], strides = [1, 1]} : vector<8x110xf32> to vector<8x1xf32>
    %c960_i32_144 = arith.constant 960 : i32
    %780 = tpu.dynamic_rotate %723 by %c960_i32_144 dim 1 : vector<8x1024xf32>, i32 -> vector<8x1024xf32>
    %c30_i32_145 = arith.constant 30 : i32
    %781 = vector.broadcast %c30_i32_145 : i32 to vector<1x1024xi32>
    %782 = arith.cmpi slt, %2, %781 : vector<1x1024xi32>
    %cst_146 = arith.constant 0.000000e+00 : f32
    %783 = vector.shape_cast %782 : vector<1x1024xi1> to vector<1x1024xi1>
    %784 = vector.broadcast %783 : vector<1x1024xi1> to vector<8x1024xi1>
    %785 = vector.broadcast %cst_146 : f32 to vector<8x1024xf32>
    %786 = arith.select %784, %780, %785 : vector<8x1024xi1>, vector<8x1024xf32>
    %787 = vector.broadcast %779 : vector<8x1xf32> to vector<8x1024xf32>
    %788 = arith.mulf %787, %786 : vector<8x1024xf32>
    %789 = arith.addf %778, %788 : vector<8x1024xf32>
    %790 = vector.extract_strided_slice %4 {offsets = [0, 40], sizes = [8, 1], strides = [1, 1]} : vector<8x110xf32> to vector<8x1xf32>
    %c928_i32 = arith.constant 928 : i32
    %791 = tpu.dynamic_rotate %723 by %c928_i32 dim 1 : vector<8x1024xf32>, i32 -> vector<8x1024xf32>
    %c29_i32_147 = arith.constant 29 : i32
    %792 = vector.broadcast %c29_i32_147 : i32 to vector<1x1024xi32>
    %793 = arith.cmpi slt, %2, %792 : vector<1x1024xi32>
    %cst_148 = arith.constant 0.000000e+00 : f32
    %794 = vector.shape_cast %793 : vector<1x1024xi1> to vector<1x1024xi1>
    %795 = vector.broadcast %794 : vector<1x1024xi1> to vector<8x1024xi1>
    %796 = vector.broadcast %cst_148 : f32 to vector<8x1024xf32>
    %797 = arith.select %795, %791, %796 : vector<8x1024xi1>, vector<8x1024xf32>
    %798 = vector.broadcast %790 : vector<8x1xf32> to vector<8x1024xf32>
    %799 = arith.mulf %798, %797 : vector<8x1024xf32>
    %800 = arith.addf %789, %799 : vector<8x1024xf32>
    %801 = arith.addf %421, %800 : vector<8x1024xf32>
    %802 = vector.extract_strided_slice %4 {offsets = [0, 41], sizes = [8, 1], strides = [1, 1]} : vector<8x110xf32> to vector<8x1xf32>
    %803 = vector.broadcast %802 : vector<8x1xf32> to vector<8x1024xf32>
    %804 = arith.addf %801, %803 : vector<8x1024xf32>
    %cst_149 = arith.constant 0.000000e+00 : f32
    %805 = vector.broadcast %cst_149 : f32 to vector<8x1024xf32>
    %806 = vector.extract_strided_slice %4 {offsets = [0, 54], sizes = [8, 1], strides = [1, 1]} : vector<8x110xf32> to vector<8x1xf32>
    %c160_i32 = arith.constant 160 : i32
    %807 = tpu.dynamic_rotate %726 by %c160_i32 dim 1 : vector<8x1024xf32>, i32 -> vector<8x1024xf32>
    %c5_i32_150 = arith.constant 5 : i32
    %808 = vector.broadcast %c5_i32_150 : i32 to vector<1x1024xi32>
    %809 = arith.cmpi sge, %2, %808 : vector<1x1024xi32>
    %cst_151 = arith.constant 0.000000e+00 : f32
    %810 = vector.shape_cast %809 : vector<1x1024xi1> to vector<1x1024xi1>
    %811 = vector.broadcast %810 : vector<1x1024xi1> to vector<8x1024xi1>
    %812 = vector.broadcast %cst_151 : f32 to vector<8x1024xf32>
    %813 = arith.select %811, %807, %812 : vector<8x1024xi1>, vector<8x1024xf32>
    %814 = vector.broadcast %806 : vector<8x1xf32> to vector<8x1024xf32>
    %815 = arith.mulf %814, %813 : vector<8x1024xf32>
    %816 = arith.addf %805, %815 : vector<8x1024xf32>
    %817 = vector.extract_strided_slice %4 {offsets = [0, 55], sizes = [8, 1], strides = [1, 1]} : vector<8x110xf32> to vector<8x1xf32>
    %c128_i32 = arith.constant 128 : i32
    %818 = tpu.dynamic_rotate %726 by %c128_i32 dim 1 : vector<8x1024xf32>, i32 -> vector<8x1024xf32>
    %c4_i32_152 = arith.constant 4 : i32
    %819 = vector.broadcast %c4_i32_152 : i32 to vector<1x1024xi32>
    %820 = arith.cmpi sge, %2, %819 : vector<1x1024xi32>
    %cst_153 = arith.constant 0.000000e+00 : f32
    %821 = vector.shape_cast %820 : vector<1x1024xi1> to vector<1x1024xi1>
    %822 = vector.broadcast %821 : vector<1x1024xi1> to vector<8x1024xi1>
    %823 = vector.broadcast %cst_153 : f32 to vector<8x1024xf32>
    %824 = arith.select %822, %818, %823 : vector<8x1024xi1>, vector<8x1024xf32>
    %825 = vector.broadcast %817 : vector<8x1xf32> to vector<8x1024xf32>
    %826 = arith.mulf %825, %824 : vector<8x1024xf32>
    %827 = arith.addf %816, %826 : vector<8x1024xf32>
    %828 = vector.extract_strided_slice %4 {offsets = [0, 56], sizes = [8, 1], strides = [1, 1]} : vector<8x110xf32> to vector<8x1xf32>
    %c96_i32_154 = arith.constant 96 : i32
    %829 = tpu.dynamic_rotate %726 by %c96_i32_154 dim 1 : vector<8x1024xf32>, i32 -> vector<8x1024xf32>
    %c3_i32_155 = arith.constant 3 : i32
    %830 = vector.broadcast %c3_i32_155 : i32 to vector<1x1024xi32>
    %831 = arith.cmpi sge, %2, %830 : vector<1x1024xi32>
    %cst_156 = arith.constant 0.000000e+00 : f32
    %832 = vector.shape_cast %831 : vector<1x1024xi1> to vector<1x1024xi1>
    %833 = vector.broadcast %832 : vector<1x1024xi1> to vector<8x1024xi1>
    %834 = vector.broadcast %cst_156 : f32 to vector<8x1024xf32>
    %835 = arith.select %833, %829, %834 : vector<8x1024xi1>, vector<8x1024xf32>
    %836 = vector.broadcast %828 : vector<8x1xf32> to vector<8x1024xf32>
    %837 = arith.mulf %836, %835 : vector<8x1024xf32>
    %838 = arith.addf %827, %837 : vector<8x1024xf32>
    %839 = vector.extract_strided_slice %4 {offsets = [0, 57], sizes = [8, 1], strides = [1, 1]} : vector<8x110xf32> to vector<8x1xf32>
    %c64_i32_157 = arith.constant 64 : i32
    %840 = tpu.dynamic_rotate %726 by %c64_i32_157 dim 1 : vector<8x1024xf32>, i32 -> vector<8x1024xf32>
    %c2_i32_158 = arith.constant 2 : i32
    %841 = vector.broadcast %c2_i32_158 : i32 to vector<1x1024xi32>
    %842 = arith.cmpi sge, %2, %841 : vector<1x1024xi32>
    %cst_159 = arith.constant 0.000000e+00 : f32
    %843 = vector.shape_cast %842 : vector<1x1024xi1> to vector<1x1024xi1>
    %844 = vector.broadcast %843 : vector<1x1024xi1> to vector<8x1024xi1>
    %845 = vector.broadcast %cst_159 : f32 to vector<8x1024xf32>
    %846 = arith.select %844, %840, %845 : vector<8x1024xi1>, vector<8x1024xf32>
    %847 = vector.broadcast %839 : vector<8x1xf32> to vector<8x1024xf32>
    %848 = arith.mulf %847, %846 : vector<8x1024xf32>
    %849 = arith.addf %838, %848 : vector<8x1024xf32>
    %850 = vector.extract_strided_slice %4 {offsets = [0, 58], sizes = [8, 1], strides = [1, 1]} : vector<8x110xf32> to vector<8x1xf32>
    %c32_i32_160 = arith.constant 32 : i32
    %851 = tpu.dynamic_rotate %726 by %c32_i32_160 dim 1 : vector<8x1024xf32>, i32 -> vector<8x1024xf32>
    %c1_i32_161 = arith.constant 1 : i32
    %852 = vector.broadcast %c1_i32_161 : i32 to vector<1x1024xi32>
    %853 = arith.cmpi sge, %2, %852 : vector<1x1024xi32>
    %cst_162 = arith.constant 0.000000e+00 : f32
    %854 = vector.shape_cast %853 : vector<1x1024xi1> to vector<1x1024xi1>
    %855 = vector.broadcast %854 : vector<1x1024xi1> to vector<8x1024xi1>
    %856 = vector.broadcast %cst_162 : f32 to vector<8x1024xf32>
    %857 = arith.select %855, %851, %856 : vector<8x1024xi1>, vector<8x1024xf32>
    %858 = vector.broadcast %850 : vector<8x1xf32> to vector<8x1024xf32>
    %859 = arith.mulf %858, %857 : vector<8x1024xf32>
    %860 = arith.addf %849, %859 : vector<8x1024xf32>
    %861 = vector.extract_strided_slice %4 {offsets = [0, 59], sizes = [8, 1], strides = [1, 1]} : vector<8x110xf32> to vector<8x1xf32>
    %862 = vector.broadcast %861 : vector<8x1xf32> to vector<8x1024xf32>
    %863 = arith.mulf %862, %726 : vector<8x1024xf32>
    %864 = arith.addf %860, %863 : vector<8x1024xf32>
    %865 = vector.extract_strided_slice %4 {offsets = [0, 60], sizes = [8, 1], strides = [1, 1]} : vector<8x110xf32> to vector<8x1xf32>
    %c992_i32_163 = arith.constant 992 : i32
    %866 = tpu.dynamic_rotate %726 by %c992_i32_163 dim 1 : vector<8x1024xf32>, i32 -> vector<8x1024xf32>
    %c31_i32_164 = arith.constant 31 : i32
    %867 = vector.broadcast %c31_i32_164 : i32 to vector<1x1024xi32>
    %868 = arith.cmpi slt, %2, %867 : vector<1x1024xi32>
    %cst_165 = arith.constant 0.000000e+00 : f32
    %869 = vector.shape_cast %868 : vector<1x1024xi1> to vector<1x1024xi1>
    %870 = vector.broadcast %869 : vector<1x1024xi1> to vector<8x1024xi1>
    %871 = vector.broadcast %cst_165 : f32 to vector<8x1024xf32>
    %872 = arith.select %870, %866, %871 : vector<8x1024xi1>, vector<8x1024xf32>
    %873 = vector.broadcast %865 : vector<8x1xf32> to vector<8x1024xf32>
    %874 = arith.mulf %873, %872 : vector<8x1024xf32>
    %875 = arith.addf %864, %874 : vector<8x1024xf32>
    %876 = vector.extract_strided_slice %4 {offsets = [0, 61], sizes = [8, 1], strides = [1, 1]} : vector<8x110xf32> to vector<8x1xf32>
    %c960_i32_166 = arith.constant 960 : i32
    %877 = tpu.dynamic_rotate %726 by %c960_i32_166 dim 1 : vector<8x1024xf32>, i32 -> vector<8x1024xf32>
    %c30_i32_167 = arith.constant 30 : i32
    %878 = vector.broadcast %c30_i32_167 : i32 to vector<1x1024xi32>
    %879 = arith.cmpi slt, %2, %878 : vector<1x1024xi32>
    %cst_168 = arith.constant 0.000000e+00 : f32
    %880 = vector.shape_cast %879 : vector<1x1024xi1> to vector<1x1024xi1>
    %881 = vector.broadcast %880 : vector<1x1024xi1> to vector<8x1024xi1>
    %882 = vector.broadcast %cst_168 : f32 to vector<8x1024xf32>
    %883 = arith.select %881, %877, %882 : vector<8x1024xi1>, vector<8x1024xf32>
    %884 = vector.broadcast %876 : vector<8x1xf32> to vector<8x1024xf32>
    %885 = arith.mulf %884, %883 : vector<8x1024xf32>
    %886 = arith.addf %875, %885 : vector<8x1024xf32>
    %887 = vector.extract_strided_slice %4 {offsets = [0, 62], sizes = [8, 1], strides = [1, 1]} : vector<8x110xf32> to vector<8x1xf32>
    %c928_i32_169 = arith.constant 928 : i32
    %888 = tpu.dynamic_rotate %726 by %c928_i32_169 dim 1 : vector<8x1024xf32>, i32 -> vector<8x1024xf32>
    %c29_i32_170 = arith.constant 29 : i32
    %889 = vector.broadcast %c29_i32_170 : i32 to vector<1x1024xi32>
    %890 = arith.cmpi slt, %2, %889 : vector<1x1024xi32>
    %cst_171 = arith.constant 0.000000e+00 : f32
    %891 = vector.shape_cast %890 : vector<1x1024xi1> to vector<1x1024xi1>
    %892 = vector.broadcast %891 : vector<1x1024xi1> to vector<8x1024xi1>
    %893 = vector.broadcast %cst_171 : f32 to vector<8x1024xf32>
    %894 = arith.select %892, %888, %893 : vector<8x1024xi1>, vector<8x1024xf32>
    %895 = vector.broadcast %887 : vector<8x1xf32> to vector<8x1024xf32>
    %896 = arith.mulf %895, %894 : vector<8x1024xf32>
    %897 = arith.addf %886, %896 : vector<8x1024xf32>
    %898 = vector.extract_strided_slice %4 {offsets = [0, 63], sizes = [8, 1], strides = [1, 1]} : vector<8x110xf32> to vector<8x1xf32>
    %c896_i32 = arith.constant 896 : i32
    %899 = tpu.dynamic_rotate %726 by %c896_i32 dim 1 : vector<8x1024xf32>, i32 -> vector<8x1024xf32>
    %c28_i32_172 = arith.constant 28 : i32
    %900 = vector.broadcast %c28_i32_172 : i32 to vector<1x1024xi32>
    %901 = arith.cmpi slt, %2, %900 : vector<1x1024xi32>
    %cst_173 = arith.constant 0.000000e+00 : f32
    %902 = vector.shape_cast %901 : vector<1x1024xi1> to vector<1x1024xi1>
    %903 = vector.broadcast %902 : vector<1x1024xi1> to vector<8x1024xi1>
    %904 = vector.broadcast %cst_173 : f32 to vector<8x1024xf32>
    %905 = arith.select %903, %899, %904 : vector<8x1024xi1>, vector<8x1024xf32>
    %906 = vector.broadcast %898 : vector<8x1xf32> to vector<8x1024xf32>
    %907 = arith.mulf %906, %905 : vector<8x1024xf32>
    %908 = arith.addf %897, %907 : vector<8x1024xf32>
    %909 = vector.extract_strided_slice %4 {offsets = [0, 64], sizes = [8, 1], strides = [1, 1]} : vector<8x110xf32> to vector<8x1xf32>
    %c864_i32 = arith.constant 864 : i32
    %910 = tpu.dynamic_rotate %726 by %c864_i32 dim 1 : vector<8x1024xf32>, i32 -> vector<8x1024xf32>
    %c27_i32_174 = arith.constant 27 : i32
    %911 = vector.broadcast %c27_i32_174 : i32 to vector<1x1024xi32>
    %912 = arith.cmpi slt, %2, %911 : vector<1x1024xi32>
    %cst_175 = arith.constant 0.000000e+00 : f32
    %913 = vector.shape_cast %912 : vector<1x1024xi1> to vector<1x1024xi1>
    %914 = vector.broadcast %913 : vector<1x1024xi1> to vector<8x1024xi1>
    %915 = vector.broadcast %cst_175 : f32 to vector<8x1024xf32>
    %916 = arith.select %914, %910, %915 : vector<8x1024xi1>, vector<8x1024xf32>
    %917 = vector.broadcast %909 : vector<8x1xf32> to vector<8x1024xf32>
    %918 = arith.mulf %917, %916 : vector<8x1024xf32>
    %919 = arith.addf %908, %918 : vector<8x1024xf32>
    %920 = arith.addf %804, %919 : vector<8x1024xf32>
    %921 = vector.extract_strided_slice %4 {offsets = [0, 65], sizes = [8, 1], strides = [1, 1]} : vector<8x110xf32> to vector<8x1xf32>
    %922 = vector.broadcast %921 : vector<8x1xf32> to vector<8x1024xf32>
    %923 = arith.addf %920, %922 : vector<8x1024xf32>
    %cst_176 = arith.constant 0.000000e+00 : f32
    %924 = vector.broadcast %cst_176 : f32 to vector<8x1024xf32>
    %925 = vector.extract_strided_slice %4 {offsets = [0, 88], sizes = [8, 1], strides = [1, 1]} : vector<8x110xf32> to vector<8x1xf32>
    %c320_i32 = arith.constant 320 : i32
    %926 = tpu.dynamic_rotate %729 by %c320_i32 dim 1 : vector<8x1024xf32>, i32 -> vector<8x1024xf32>
    %c10_i32_177 = arith.constant 10 : i32
    %927 = vector.broadcast %c10_i32_177 : i32 to vector<1x1024xi32>
    %928 = arith.cmpi sge, %2, %927 : vector<1x1024xi32>
    %cst_178 = arith.constant 0.000000e+00 : f32
    %929 = vector.shape_cast %928 : vector<1x1024xi1> to vector<1x1024xi1>
    %930 = vector.broadcast %929 : vector<1x1024xi1> to vector<8x1024xi1>
    %931 = vector.broadcast %cst_178 : f32 to vector<8x1024xf32>
    %932 = arith.select %930, %926, %931 : vector<8x1024xi1>, vector<8x1024xf32>
    %933 = vector.broadcast %925 : vector<8x1xf32> to vector<8x1024xf32>
    %934 = arith.mulf %933, %932 : vector<8x1024xf32>
    %935 = arith.addf %924, %934 : vector<8x1024xf32>
    %936 = vector.extract_strided_slice %4 {offsets = [0, 89], sizes = [8, 1], strides = [1, 1]} : vector<8x110xf32> to vector<8x1xf32>
    %c288_i32 = arith.constant 288 : i32
    %937 = tpu.dynamic_rotate %729 by %c288_i32 dim 1 : vector<8x1024xf32>, i32 -> vector<8x1024xf32>
    %c9_i32_179 = arith.constant 9 : i32
    %938 = vector.broadcast %c9_i32_179 : i32 to vector<1x1024xi32>
    %939 = arith.cmpi sge, %2, %938 : vector<1x1024xi32>
    %cst_180 = arith.constant 0.000000e+00 : f32
    %940 = vector.shape_cast %939 : vector<1x1024xi1> to vector<1x1024xi1>
    %941 = vector.broadcast %940 : vector<1x1024xi1> to vector<8x1024xi1>
    %942 = vector.broadcast %cst_180 : f32 to vector<8x1024xf32>
    %943 = arith.select %941, %937, %942 : vector<8x1024xi1>, vector<8x1024xf32>
    %944 = vector.broadcast %936 : vector<8x1xf32> to vector<8x1024xf32>
    %945 = arith.mulf %944, %943 : vector<8x1024xf32>
    %946 = arith.addf %935, %945 : vector<8x1024xf32>
    %947 = vector.extract_strided_slice %4 {offsets = [0, 90], sizes = [8, 1], strides = [1, 1]} : vector<8x110xf32> to vector<8x1xf32>
    %c256_i32 = arith.constant 256 : i32
    %948 = tpu.dynamic_rotate %729 by %c256_i32 dim 1 : vector<8x1024xf32>, i32 -> vector<8x1024xf32>
    %c8_i32_181 = arith.constant 8 : i32
    %949 = vector.broadcast %c8_i32_181 : i32 to vector<1x1024xi32>
    %950 = arith.cmpi sge, %2, %949 : vector<1x1024xi32>
    %cst_182 = arith.constant 0.000000e+00 : f32
    %951 = vector.shape_cast %950 : vector<1x1024xi1> to vector<1x1024xi1>
    %952 = vector.broadcast %951 : vector<1x1024xi1> to vector<8x1024xi1>
    %953 = vector.broadcast %cst_182 : f32 to vector<8x1024xf32>
    %954 = arith.select %952, %948, %953 : vector<8x1024xi1>, vector<8x1024xf32>
    %955 = vector.broadcast %947 : vector<8x1xf32> to vector<8x1024xf32>
    %956 = arith.mulf %955, %954 : vector<8x1024xf32>
    %957 = arith.addf %946, %956 : vector<8x1024xf32>
    %958 = vector.extract_strided_slice %4 {offsets = [0, 91], sizes = [8, 1], strides = [1, 1]} : vector<8x110xf32> to vector<8x1xf32>
    %c224_i32 = arith.constant 224 : i32
    %959 = tpu.dynamic_rotate %729 by %c224_i32 dim 1 : vector<8x1024xf32>, i32 -> vector<8x1024xf32>
    %c7_i32_183 = arith.constant 7 : i32
    %960 = vector.broadcast %c7_i32_183 : i32 to vector<1x1024xi32>
    %961 = arith.cmpi sge, %2, %960 : vector<1x1024xi32>
    %cst_184 = arith.constant 0.000000e+00 : f32
    %962 = vector.shape_cast %961 : vector<1x1024xi1> to vector<1x1024xi1>
    %963 = vector.broadcast %962 : vector<1x1024xi1> to vector<8x1024xi1>
    %964 = vector.broadcast %cst_184 : f32 to vector<8x1024xf32>
    %965 = arith.select %963, %959, %964 : vector<8x1024xi1>, vector<8x1024xf32>
    %966 = vector.broadcast %958 : vector<8x1xf32> to vector<8x1024xf32>
    %967 = arith.mulf %966, %965 : vector<8x1024xf32>
    %968 = arith.addf %957, %967 : vector<8x1024xf32>
    %969 = vector.extract_strided_slice %4 {offsets = [0, 92], sizes = [8, 1], strides = [1, 1]} : vector<8x110xf32> to vector<8x1xf32>
    %c192_i32 = arith.constant 192 : i32
    %970 = tpu.dynamic_rotate %729 by %c192_i32 dim 1 : vector<8x1024xf32>, i32 -> vector<8x1024xf32>
    %c6_i32_185 = arith.constant 6 : i32
    %971 = vector.broadcast %c6_i32_185 : i32 to vector<1x1024xi32>
    %972 = arith.cmpi sge, %2, %971 : vector<1x1024xi32>
    %cst_186 = arith.constant 0.000000e+00 : f32
    %973 = vector.shape_cast %972 : vector<1x1024xi1> to vector<1x1024xi1>
    %974 = vector.broadcast %973 : vector<1x1024xi1> to vector<8x1024xi1>
    %975 = vector.broadcast %cst_186 : f32 to vector<8x1024xf32>
    %976 = arith.select %974, %970, %975 : vector<8x1024xi1>, vector<8x1024xf32>
    %977 = vector.broadcast %969 : vector<8x1xf32> to vector<8x1024xf32>
    %978 = arith.mulf %977, %976 : vector<8x1024xf32>
    %979 = arith.addf %968, %978 : vector<8x1024xf32>
    %980 = vector.extract_strided_slice %4 {offsets = [0, 93], sizes = [8, 1], strides = [1, 1]} : vector<8x110xf32> to vector<8x1xf32>
    %c160_i32_187 = arith.constant 160 : i32
    %981 = tpu.dynamic_rotate %729 by %c160_i32_187 dim 1 : vector<8x1024xf32>, i32 -> vector<8x1024xf32>
    %c5_i32_188 = arith.constant 5 : i32
    %982 = vector.broadcast %c5_i32_188 : i32 to vector<1x1024xi32>
    %983 = arith.cmpi sge, %2, %982 : vector<1x1024xi32>
    %cst_189 = arith.constant 0.000000e+00 : f32
    %984 = vector.shape_cast %983 : vector<1x1024xi1> to vector<1x1024xi1>
    %985 = vector.broadcast %984 : vector<1x1024xi1> to vector<8x1024xi1>
    %986 = vector.broadcast %cst_189 : f32 to vector<8x1024xf32>
    %987 = arith.select %985, %981, %986 : vector<8x1024xi1>, vector<8x1024xf32>
    %988 = vector.broadcast %980 : vector<8x1xf32> to vector<8x1024xf32>
    %989 = arith.mulf %988, %987 : vector<8x1024xf32>
    %990 = arith.addf %979, %989 : vector<8x1024xf32>
    %991 = vector.extract_strided_slice %4 {offsets = [0, 94], sizes = [8, 1], strides = [1, 1]} : vector<8x110xf32> to vector<8x1xf32>
    %c128_i32_190 = arith.constant 128 : i32
    %992 = tpu.dynamic_rotate %729 by %c128_i32_190 dim 1 : vector<8x1024xf32>, i32 -> vector<8x1024xf32>
    %c4_i32_191 = arith.constant 4 : i32
    %993 = vector.broadcast %c4_i32_191 : i32 to vector<1x1024xi32>
    %994 = arith.cmpi sge, %2, %993 : vector<1x1024xi32>
    %cst_192 = arith.constant 0.000000e+00 : f32
    %995 = vector.shape_cast %994 : vector<1x1024xi1> to vector<1x1024xi1>
    %996 = vector.broadcast %995 : vector<1x1024xi1> to vector<8x1024xi1>
    %997 = vector.broadcast %cst_192 : f32 to vector<8x1024xf32>
    %998 = arith.select %996, %992, %997 : vector<8x1024xi1>, vector<8x1024xf32>
    %999 = vector.broadcast %991 : vector<8x1xf32> to vector<8x1024xf32>
    %1000 = arith.mulf %999, %998 : vector<8x1024xf32>
    %1001 = arith.addf %990, %1000 : vector<8x1024xf32>
    %1002 = vector.extract_strided_slice %4 {offsets = [0, 95], sizes = [8, 1], strides = [1, 1]} : vector<8x110xf32> to vector<8x1xf32>
    %c96_i32_193 = arith.constant 96 : i32
    %1003 = tpu.dynamic_rotate %729 by %c96_i32_193 dim 1 : vector<8x1024xf32>, i32 -> vector<8x1024xf32>
    %c3_i32_194 = arith.constant 3 : i32
    %1004 = vector.broadcast %c3_i32_194 : i32 to vector<1x1024xi32>
    %1005 = arith.cmpi sge, %2, %1004 : vector<1x1024xi32>
    %cst_195 = arith.constant 0.000000e+00 : f32
    %1006 = vector.shape_cast %1005 : vector<1x1024xi1> to vector<1x1024xi1>
    %1007 = vector.broadcast %1006 : vector<1x1024xi1> to vector<8x1024xi1>
    %1008 = vector.broadcast %cst_195 : f32 to vector<8x1024xf32>
    %1009 = arith.select %1007, %1003, %1008 : vector<8x1024xi1>, vector<8x1024xf32>
    %1010 = vector.broadcast %1002 : vector<8x1xf32> to vector<8x1024xf32>
    %1011 = arith.mulf %1010, %1009 : vector<8x1024xf32>
    %1012 = arith.addf %1001, %1011 : vector<8x1024xf32>
    %1013 = vector.extract_strided_slice %4 {offsets = [0, 96], sizes = [8, 1], strides = [1, 1]} : vector<8x110xf32> to vector<8x1xf32>
    %c64_i32_196 = arith.constant 64 : i32
    %1014 = tpu.dynamic_rotate %729 by %c64_i32_196 dim 1 : vector<8x1024xf32>, i32 -> vector<8x1024xf32>
    %c2_i32_197 = arith.constant 2 : i32
    %1015 = vector.broadcast %c2_i32_197 : i32 to vector<1x1024xi32>
    %1016 = arith.cmpi sge, %2, %1015 : vector<1x1024xi32>
    %cst_198 = arith.constant 0.000000e+00 : f32
    %1017 = vector.shape_cast %1016 : vector<1x1024xi1> to vector<1x1024xi1>
    %1018 = vector.broadcast %1017 : vector<1x1024xi1> to vector<8x1024xi1>
    %1019 = vector.broadcast %cst_198 : f32 to vector<8x1024xf32>
    %1020 = arith.select %1018, %1014, %1019 : vector<8x1024xi1>, vector<8x1024xf32>
    %1021 = vector.broadcast %1013 : vector<8x1xf32> to vector<8x1024xf32>
    %1022 = arith.mulf %1021, %1020 : vector<8x1024xf32>
    %1023 = arith.addf %1012, %1022 : vector<8x1024xf32>
    %1024 = vector.extract_strided_slice %4 {offsets = [0, 97], sizes = [8, 1], strides = [1, 1]} : vector<8x110xf32> to vector<8x1xf32>
    %c32_i32_199 = arith.constant 32 : i32
    %1025 = tpu.dynamic_rotate %729 by %c32_i32_199 dim 1 : vector<8x1024xf32>, i32 -> vector<8x1024xf32>
    %c1_i32_200 = arith.constant 1 : i32
    %1026 = vector.broadcast %c1_i32_200 : i32 to vector<1x1024xi32>
    %1027 = arith.cmpi sge, %2, %1026 : vector<1x1024xi32>
    %cst_201 = arith.constant 0.000000e+00 : f32
    %1028 = vector.shape_cast %1027 : vector<1x1024xi1> to vector<1x1024xi1>
    %1029 = vector.broadcast %1028 : vector<1x1024xi1> to vector<8x1024xi1>
    %1030 = vector.broadcast %cst_201 : f32 to vector<8x1024xf32>
    %1031 = arith.select %1029, %1025, %1030 : vector<8x1024xi1>, vector<8x1024xf32>
    %1032 = vector.broadcast %1024 : vector<8x1xf32> to vector<8x1024xf32>
    %1033 = arith.mulf %1032, %1031 : vector<8x1024xf32>
    %1034 = arith.addf %1023, %1033 : vector<8x1024xf32>
    %1035 = vector.extract_strided_slice %4 {offsets = [0, 98], sizes = [8, 1], strides = [1, 1]} : vector<8x110xf32> to vector<8x1xf32>
    %1036 = vector.broadcast %1035 : vector<8x1xf32> to vector<8x1024xf32>
    %1037 = arith.mulf %1036, %729 : vector<8x1024xf32>
    %1038 = arith.addf %1034, %1037 : vector<8x1024xf32>
    %1039 = vector.extract_strided_slice %4 {offsets = [0, 99], sizes = [8, 1], strides = [1, 1]} : vector<8x110xf32> to vector<8x1xf32>
    %c992_i32_202 = arith.constant 992 : i32
    %1040 = tpu.dynamic_rotate %729 by %c992_i32_202 dim 1 : vector<8x1024xf32>, i32 -> vector<8x1024xf32>
    %c31_i32_203 = arith.constant 31 : i32
    %1041 = vector.broadcast %c31_i32_203 : i32 to vector<1x1024xi32>
    %1042 = arith.cmpi slt, %2, %1041 : vector<1x1024xi32>
    %cst_204 = arith.constant 0.000000e+00 : f32
    %1043 = vector.shape_cast %1042 : vector<1x1024xi1> to vector<1x1024xi1>
    %1044 = vector.broadcast %1043 : vector<1x1024xi1> to vector<8x1024xi1>
    %1045 = vector.broadcast %cst_204 : f32 to vector<8x1024xf32>
    %1046 = arith.select %1044, %1040, %1045 : vector<8x1024xi1>, vector<8x1024xf32>
    %1047 = vector.broadcast %1039 : vector<8x1xf32> to vector<8x1024xf32>
    %1048 = arith.mulf %1047, %1046 : vector<8x1024xf32>
    %1049 = arith.addf %1038, %1048 : vector<8x1024xf32>
    %1050 = vector.extract_strided_slice %4 {offsets = [0, 100], sizes = [8, 1], strides = [1, 1]} : vector<8x110xf32> to vector<8x1xf32>
    %c960_i32_205 = arith.constant 960 : i32
    %1051 = tpu.dynamic_rotate %729 by %c960_i32_205 dim 1 : vector<8x1024xf32>, i32 -> vector<8x1024xf32>
    %c30_i32_206 = arith.constant 30 : i32
    %1052 = vector.broadcast %c30_i32_206 : i32 to vector<1x1024xi32>
    %1053 = arith.cmpi slt, %2, %1052 : vector<1x1024xi32>
    %cst_207 = arith.constant 0.000000e+00 : f32
    %1054 = vector.shape_cast %1053 : vector<1x1024xi1> to vector<1x1024xi1>
    %1055 = vector.broadcast %1054 : vector<1x1024xi1> to vector<8x1024xi1>
    %1056 = vector.broadcast %cst_207 : f32 to vector<8x1024xf32>
    %1057 = arith.select %1055, %1051, %1056 : vector<8x1024xi1>, vector<8x1024xf32>
    %1058 = vector.broadcast %1050 : vector<8x1xf32> to vector<8x1024xf32>
    %1059 = arith.mulf %1058, %1057 : vector<8x1024xf32>
    %1060 = arith.addf %1049, %1059 : vector<8x1024xf32>
    %1061 = vector.extract_strided_slice %4 {offsets = [0, 101], sizes = [8, 1], strides = [1, 1]} : vector<8x110xf32> to vector<8x1xf32>
    %c928_i32_208 = arith.constant 928 : i32
    %1062 = tpu.dynamic_rotate %729 by %c928_i32_208 dim 1 : vector<8x1024xf32>, i32 -> vector<8x1024xf32>
    %c29_i32_209 = arith.constant 29 : i32
    %1063 = vector.broadcast %c29_i32_209 : i32 to vector<1x1024xi32>
    %1064 = arith.cmpi slt, %2, %1063 : vector<1x1024xi32>
    %cst_210 = arith.constant 0.000000e+00 : f32
    %1065 = vector.shape_cast %1064 : vector<1x1024xi1> to vector<1x1024xi1>
    %1066 = vector.broadcast %1065 : vector<1x1024xi1> to vector<8x1024xi1>
    %1067 = vector.broadcast %cst_210 : f32 to vector<8x1024xf32>
    %1068 = arith.select %1066, %1062, %1067 : vector<8x1024xi1>, vector<8x1024xf32>
    %1069 = vector.broadcast %1061 : vector<8x1xf32> to vector<8x1024xf32>
    %1070 = arith.mulf %1069, %1068 : vector<8x1024xf32>
    %1071 = arith.addf %1060, %1070 : vector<8x1024xf32>
    %1072 = vector.extract_strided_slice %4 {offsets = [0, 102], sizes = [8, 1], strides = [1, 1]} : vector<8x110xf32> to vector<8x1xf32>
    %c896_i32_211 = arith.constant 896 : i32
    %1073 = tpu.dynamic_rotate %729 by %c896_i32_211 dim 1 : vector<8x1024xf32>, i32 -> vector<8x1024xf32>
    %c28_i32_212 = arith.constant 28 : i32
    %1074 = vector.broadcast %c28_i32_212 : i32 to vector<1x1024xi32>
    %1075 = arith.cmpi slt, %2, %1074 : vector<1x1024xi32>
    %cst_213 = arith.constant 0.000000e+00 : f32
    %1076 = vector.shape_cast %1075 : vector<1x1024xi1> to vector<1x1024xi1>
    %1077 = vector.broadcast %1076 : vector<1x1024xi1> to vector<8x1024xi1>
    %1078 = vector.broadcast %cst_213 : f32 to vector<8x1024xf32>
    %1079 = arith.select %1077, %1073, %1078 : vector<8x1024xi1>, vector<8x1024xf32>
    %1080 = vector.broadcast %1072 : vector<8x1xf32> to vector<8x1024xf32>
    %1081 = arith.mulf %1080, %1079 : vector<8x1024xf32>
    %1082 = arith.addf %1071, %1081 : vector<8x1024xf32>
    %1083 = vector.extract_strided_slice %4 {offsets = [0, 103], sizes = [8, 1], strides = [1, 1]} : vector<8x110xf32> to vector<8x1xf32>
    %c864_i32_214 = arith.constant 864 : i32
    %1084 = tpu.dynamic_rotate %729 by %c864_i32_214 dim 1 : vector<8x1024xf32>, i32 -> vector<8x1024xf32>
    %c27_i32_215 = arith.constant 27 : i32
    %1085 = vector.broadcast %c27_i32_215 : i32 to vector<1x1024xi32>
    %1086 = arith.cmpi slt, %2, %1085 : vector<1x1024xi32>
    %cst_216 = arith.constant 0.000000e+00 : f32
    %1087 = vector.shape_cast %1086 : vector<1x1024xi1> to vector<1x1024xi1>
    %1088 = vector.broadcast %1087 : vector<1x1024xi1> to vector<8x1024xi1>
    %1089 = vector.broadcast %cst_216 : f32 to vector<8x1024xf32>
    %1090 = arith.select %1088, %1084, %1089 : vector<8x1024xi1>, vector<8x1024xf32>
    %1091 = vector.broadcast %1083 : vector<8x1xf32> to vector<8x1024xf32>
    %1092 = arith.mulf %1091, %1090 : vector<8x1024xf32>
    %1093 = arith.addf %1082, %1092 : vector<8x1024xf32>
    %1094 = vector.extract_strided_slice %4 {offsets = [0, 104], sizes = [8, 1], strides = [1, 1]} : vector<8x110xf32> to vector<8x1xf32>
    %c832_i32 = arith.constant 832 : i32
    %1095 = tpu.dynamic_rotate %729 by %c832_i32 dim 1 : vector<8x1024xf32>, i32 -> vector<8x1024xf32>
    %c26_i32_217 = arith.constant 26 : i32
    %1096 = vector.broadcast %c26_i32_217 : i32 to vector<1x1024xi32>
    %1097 = arith.cmpi slt, %2, %1096 : vector<1x1024xi32>
    %cst_218 = arith.constant 0.000000e+00 : f32
    %1098 = vector.shape_cast %1097 : vector<1x1024xi1> to vector<1x1024xi1>
    %1099 = vector.broadcast %1098 : vector<1x1024xi1> to vector<8x1024xi1>
    %1100 = vector.broadcast %cst_218 : f32 to vector<8x1024xf32>
    %1101 = arith.select %1099, %1095, %1100 : vector<8x1024xi1>, vector<8x1024xf32>
    %1102 = vector.broadcast %1094 : vector<8x1xf32> to vector<8x1024xf32>
    %1103 = arith.mulf %1102, %1101 : vector<8x1024xf32>
    %1104 = arith.addf %1093, %1103 : vector<8x1024xf32>
    %1105 = vector.extract_strided_slice %4 {offsets = [0, 105], sizes = [8, 1], strides = [1, 1]} : vector<8x110xf32> to vector<8x1xf32>
    %c800_i32 = arith.constant 800 : i32
    %1106 = tpu.dynamic_rotate %729 by %c800_i32 dim 1 : vector<8x1024xf32>, i32 -> vector<8x1024xf32>
    %c25_i32_219 = arith.constant 25 : i32
    %1107 = vector.broadcast %c25_i32_219 : i32 to vector<1x1024xi32>
    %1108 = arith.cmpi slt, %2, %1107 : vector<1x1024xi32>
    %cst_220 = arith.constant 0.000000e+00 : f32
    %1109 = vector.shape_cast %1108 : vector<1x1024xi1> to vector<1x1024xi1>
    %1110 = vector.broadcast %1109 : vector<1x1024xi1> to vector<8x1024xi1>
    %1111 = vector.broadcast %cst_220 : f32 to vector<8x1024xf32>
    %1112 = arith.select %1110, %1106, %1111 : vector<8x1024xi1>, vector<8x1024xf32>
    %1113 = vector.broadcast %1105 : vector<8x1xf32> to vector<8x1024xf32>
    %1114 = arith.mulf %1113, %1112 : vector<8x1024xf32>
    %1115 = arith.addf %1104, %1114 : vector<8x1024xf32>
    %1116 = vector.extract_strided_slice %4 {offsets = [0, 106], sizes = [8, 1], strides = [1, 1]} : vector<8x110xf32> to vector<8x1xf32>
    %c768_i32 = arith.constant 768 : i32
    %1117 = tpu.dynamic_rotate %729 by %c768_i32 dim 1 : vector<8x1024xf32>, i32 -> vector<8x1024xf32>
    %c24_i32_221 = arith.constant 24 : i32
    %1118 = vector.broadcast %c24_i32_221 : i32 to vector<1x1024xi32>
    %1119 = arith.cmpi slt, %2, %1118 : vector<1x1024xi32>
    %cst_222 = arith.constant 0.000000e+00 : f32
    %1120 = vector.shape_cast %1119 : vector<1x1024xi1> to vector<1x1024xi1>
    %1121 = vector.broadcast %1120 : vector<1x1024xi1> to vector<8x1024xi1>
    %1122 = vector.broadcast %cst_222 : f32 to vector<8x1024xf32>
    %1123 = arith.select %1121, %1117, %1122 : vector<8x1024xi1>, vector<8x1024xf32>
    %1124 = vector.broadcast %1116 : vector<8x1xf32> to vector<8x1024xf32>
    %1125 = arith.mulf %1124, %1123 : vector<8x1024xf32>
    %1126 = arith.addf %1115, %1125 : vector<8x1024xf32>
    %1127 = vector.extract_strided_slice %4 {offsets = [0, 107], sizes = [8, 1], strides = [1, 1]} : vector<8x110xf32> to vector<8x1xf32>
    %c736_i32 = arith.constant 736 : i32
    %1128 = tpu.dynamic_rotate %729 by %c736_i32 dim 1 : vector<8x1024xf32>, i32 -> vector<8x1024xf32>
    %c23_i32_223 = arith.constant 23 : i32
    %1129 = vector.broadcast %c23_i32_223 : i32 to vector<1x1024xi32>
    %1130 = arith.cmpi slt, %2, %1129 : vector<1x1024xi32>
    %cst_224 = arith.constant 0.000000e+00 : f32
    %1131 = vector.shape_cast %1130 : vector<1x1024xi1> to vector<1x1024xi1>
    %1132 = vector.broadcast %1131 : vector<1x1024xi1> to vector<8x1024xi1>
    %1133 = vector.broadcast %cst_224 : f32 to vector<8x1024xf32>
    %1134 = arith.select %1132, %1128, %1133 : vector<8x1024xi1>, vector<8x1024xf32>
    %1135 = vector.broadcast %1127 : vector<8x1xf32> to vector<8x1024xf32>
    %1136 = arith.mulf %1135, %1134 : vector<8x1024xf32>
    %1137 = arith.addf %1126, %1136 : vector<8x1024xf32>
    %1138 = vector.extract_strided_slice %4 {offsets = [0, 108], sizes = [8, 1], strides = [1, 1]} : vector<8x110xf32> to vector<8x1xf32>
    %c704_i32 = arith.constant 704 : i32
    %1139 = tpu.dynamic_rotate %729 by %c704_i32 dim 1 : vector<8x1024xf32>, i32 -> vector<8x1024xf32>
    %c22_i32_225 = arith.constant 22 : i32
    %1140 = vector.broadcast %c22_i32_225 : i32 to vector<1x1024xi32>
    %1141 = arith.cmpi slt, %2, %1140 : vector<1x1024xi32>
    %cst_226 = arith.constant 0.000000e+00 : f32
    %1142 = vector.shape_cast %1141 : vector<1x1024xi1> to vector<1x1024xi1>
    %1143 = vector.broadcast %1142 : vector<1x1024xi1> to vector<8x1024xi1>
    %1144 = vector.broadcast %cst_226 : f32 to vector<8x1024xf32>
    %1145 = arith.select %1143, %1139, %1144 : vector<8x1024xi1>, vector<8x1024xf32>
    %1146 = vector.broadcast %1138 : vector<8x1xf32> to vector<8x1024xf32>
    %1147 = arith.mulf %1146, %1145 : vector<8x1024xf32>
    %1148 = arith.addf %1137, %1147 : vector<8x1024xf32>
    %1149 = arith.addf %923, %1148 : vector<8x1024xf32>
    %1150 = vector.extract_strided_slice %4 {offsets = [0, 109], sizes = [8, 1], strides = [1, 1]} : vector<8x110xf32> to vector<8x1xf32>
    %1151 = vector.broadcast %1150 : vector<8x1xf32> to vector<8x1024xf32>
    %1152 = arith.addf %1149, %1151 : vector<8x1024xf32>
    %c0_227 = arith.constant 0 : index
    %c0_228 = arith.constant 0 : index
    %1153 = vector.load %arg7[%c0_227, %c0_228] : memref<8x8xf32, #tpu.memory_space<vmem>>, vector<8x8xf32>
    %cst_229 = arith.constant 0.000000e+00 : f32
    %1154 = vector.broadcast %cst_229 : f32 to vector<8x1024xf32>
    %1155 = vector.extract_strided_slice %1153 {offsets = [0, 0], sizes = [8, 1], strides = [1, 1]} : vector<8x8xf32> to vector<8x1xf32>
    %1156 = vector.extract_strided_slice %1152 {offsets = [0, 0], sizes = [1, 1024], strides = [1, 1]} : vector<8x1024xf32> to vector<1x1024xf32>
    %1157 = vector.broadcast %1155 : vector<8x1xf32> to vector<8x1024xf32>
    %1158 = vector.broadcast %1156 : vector<1x1024xf32> to vector<8x1024xf32>
    %1159 = arith.mulf %1157, %1158 : vector<8x1024xf32>
    %1160 = arith.addf %1154, %1159 : vector<8x1024xf32>
    %1161 = vector.extract_strided_slice %1153 {offsets = [0, 1], sizes = [8, 1], strides = [1, 1]} : vector<8x8xf32> to vector<8x1xf32>
    %1162 = vector.extract_strided_slice %1152 {offsets = [1, 0], sizes = [1, 1024], strides = [1, 1]} : vector<8x1024xf32> to vector<1x1024xf32>
    %1163 = vector.broadcast %1161 : vector<8x1xf32> to vector<8x1024xf32>
    %1164 = vector.broadcast %1162 : vector<1x1024xf32> to vector<8x1024xf32>
    %1165 = arith.mulf %1163, %1164 : vector<8x1024xf32>
    %1166 = arith.addf %1160, %1165 : vector<8x1024xf32>
    %1167 = vector.extract_strided_slice %1153 {offsets = [0, 2], sizes = [8, 1], strides = [1, 1]} : vector<8x8xf32> to vector<8x1xf32>
    %1168 = vector.extract_strided_slice %1152 {offsets = [2, 0], sizes = [1, 1024], strides = [1, 1]} : vector<8x1024xf32> to vector<1x1024xf32>
    %1169 = vector.broadcast %1167 : vector<8x1xf32> to vector<8x1024xf32>
    %1170 = vector.broadcast %1168 : vector<1x1024xf32> to vector<8x1024xf32>
    %1171 = arith.mulf %1169, %1170 : vector<8x1024xf32>
    %1172 = arith.addf %1166, %1171 : vector<8x1024xf32>
    %1173 = vector.extract_strided_slice %1153 {offsets = [0, 3], sizes = [8, 1], strides = [1, 1]} : vector<8x8xf32> to vector<8x1xf32>
    %1174 = vector.extract_strided_slice %1152 {offsets = [3, 0], sizes = [1, 1024], strides = [1, 1]} : vector<8x1024xf32> to vector<1x1024xf32>
    %1175 = vector.broadcast %1173 : vector<8x1xf32> to vector<8x1024xf32>
    %1176 = vector.broadcast %1174 : vector<1x1024xf32> to vector<8x1024xf32>
    %1177 = arith.mulf %1175, %1176 : vector<8x1024xf32>
    %1178 = arith.addf %1172, %1177 : vector<8x1024xf32>
    %1179 = vector.extract_strided_slice %1153 {offsets = [0, 4], sizes = [8, 1], strides = [1, 1]} : vector<8x8xf32> to vector<8x1xf32>
    %1180 = vector.extract_strided_slice %1152 {offsets = [4, 0], sizes = [1, 1024], strides = [1, 1]} : vector<8x1024xf32> to vector<1x1024xf32>
    %1181 = vector.broadcast %1179 : vector<8x1xf32> to vector<8x1024xf32>
    %1182 = vector.broadcast %1180 : vector<1x1024xf32> to vector<8x1024xf32>
    %1183 = arith.mulf %1181, %1182 : vector<8x1024xf32>
    %1184 = arith.addf %1178, %1183 : vector<8x1024xf32>
    %1185 = vector.extract_strided_slice %1153 {offsets = [0, 5], sizes = [8, 1], strides = [1, 1]} : vector<8x8xf32> to vector<8x1xf32>
    %1186 = vector.extract_strided_slice %1152 {offsets = [5, 0], sizes = [1, 1024], strides = [1, 1]} : vector<8x1024xf32> to vector<1x1024xf32>
    %1187 = vector.broadcast %1185 : vector<8x1xf32> to vector<8x1024xf32>
    %1188 = vector.broadcast %1186 : vector<1x1024xf32> to vector<8x1024xf32>
    %1189 = arith.mulf %1187, %1188 : vector<8x1024xf32>
    %1190 = arith.addf %1184, %1189 : vector<8x1024xf32>
    %1191 = vector.extract_strided_slice %1153 {offsets = [0, 6], sizes = [8, 1], strides = [1, 1]} : vector<8x8xf32> to vector<8x1xf32>
    %1192 = vector.extract_strided_slice %1152 {offsets = [6, 0], sizes = [1, 1024], strides = [1, 1]} : vector<8x1024xf32> to vector<1x1024xf32>
    %1193 = vector.broadcast %1191 : vector<8x1xf32> to vector<8x1024xf32>
    %1194 = vector.broadcast %1192 : vector<1x1024xf32> to vector<8x1024xf32>
    %1195 = arith.mulf %1193, %1194 : vector<8x1024xf32>
    %1196 = arith.addf %1190, %1195 : vector<8x1024xf32>
    %1197 = vector.extract_strided_slice %1153 {offsets = [0, 7], sizes = [8, 1], strides = [1, 1]} : vector<8x8xf32> to vector<8x1xf32>
    %1198 = vector.extract_strided_slice %1152 {offsets = [7, 0], sizes = [1, 1024], strides = [1, 1]} : vector<8x1024xf32> to vector<1x1024xf32>
    %1199 = vector.broadcast %1197 : vector<8x1xf32> to vector<8x1024xf32>
    %1200 = vector.broadcast %1198 : vector<1x1024xf32> to vector<8x1024xf32>
    %1201 = arith.mulf %1199, %1200 : vector<8x1024xf32>
    %1202 = arith.addf %1196, %1201 : vector<8x1024xf32>
    %c0_230 = arith.constant 0 : index
    %c0_231 = arith.constant 0 : index
    %1203 = vector.load %arg8[%c0_230, %c0_231] : memref<8x1xf32, #tpu.memory_space<vmem>>, vector<8x1xf32>
    %1204 = vector.broadcast %1203 : vector<8x1xf32> to vector<8x1024xf32>
    %1205 = arith.addf %1202, %1204 : vector<8x1024xf32>
    %1206 = arith.mulf %1205, %101 : vector<8x1024xf32>
    %c0_232 = arith.constant 0 : index
    %c0_233 = arith.constant 0 : index
    %1207 = vector.load %arg9[%c0_232, %c0_233] : memref<8x8xf32, #tpu.memory_space<vmem>>, vector<8x8xf32>
    %cst_234 = arith.constant 0.000000e+00 : f32
    %1208 = vector.broadcast %cst_234 : f32 to vector<8x1024xf32>
    %1209 = vector.extract_strided_slice %1207 {offsets = [0, 0], sizes = [8, 1], strides = [1, 1]} : vector<8x8xf32> to vector<8x1xf32>
    %1210 = vector.extract_strided_slice %1206 {offsets = [0, 0], sizes = [1, 1024], strides = [1, 1]} : vector<8x1024xf32> to vector<1x1024xf32>
    %1211 = vector.broadcast %1209 : vector<8x1xf32> to vector<8x1024xf32>
    %1212 = vector.broadcast %1210 : vector<1x1024xf32> to vector<8x1024xf32>
    %1213 = arith.mulf %1211, %1212 : vector<8x1024xf32>
    %1214 = arith.addf %1208, %1213 : vector<8x1024xf32>
    %1215 = vector.extract_strided_slice %1207 {offsets = [0, 1], sizes = [8, 1], strides = [1, 1]} : vector<8x8xf32> to vector<8x1xf32>
    %1216 = vector.extract_strided_slice %1206 {offsets = [1, 0], sizes = [1, 1024], strides = [1, 1]} : vector<8x1024xf32> to vector<1x1024xf32>
    %1217 = vector.broadcast %1215 : vector<8x1xf32> to vector<8x1024xf32>
    %1218 = vector.broadcast %1216 : vector<1x1024xf32> to vector<8x1024xf32>
    %1219 = arith.mulf %1217, %1218 : vector<8x1024xf32>
    %1220 = arith.addf %1214, %1219 : vector<8x1024xf32>
    %1221 = vector.extract_strided_slice %1207 {offsets = [0, 2], sizes = [8, 1], strides = [1, 1]} : vector<8x8xf32> to vector<8x1xf32>
    %1222 = vector.extract_strided_slice %1206 {offsets = [2, 0], sizes = [1, 1024], strides = [1, 1]} : vector<8x1024xf32> to vector<1x1024xf32>
    %1223 = vector.broadcast %1221 : vector<8x1xf32> to vector<8x1024xf32>
    %1224 = vector.broadcast %1222 : vector<1x1024xf32> to vector<8x1024xf32>
    %1225 = arith.mulf %1223, %1224 : vector<8x1024xf32>
    %1226 = arith.addf %1220, %1225 : vector<8x1024xf32>
    %1227 = vector.extract_strided_slice %1207 {offsets = [0, 3], sizes = [8, 1], strides = [1, 1]} : vector<8x8xf32> to vector<8x1xf32>
    %1228 = vector.extract_strided_slice %1206 {offsets = [3, 0], sizes = [1, 1024], strides = [1, 1]} : vector<8x1024xf32> to vector<1x1024xf32>
    %1229 = vector.broadcast %1227 : vector<8x1xf32> to vector<8x1024xf32>
    %1230 = vector.broadcast %1228 : vector<1x1024xf32> to vector<8x1024xf32>
    %1231 = arith.mulf %1229, %1230 : vector<8x1024xf32>
    %1232 = arith.addf %1226, %1231 : vector<8x1024xf32>
    %1233 = vector.extract_strided_slice %1207 {offsets = [0, 4], sizes = [8, 1], strides = [1, 1]} : vector<8x8xf32> to vector<8x1xf32>
    %1234 = vector.extract_strided_slice %1206 {offsets = [4, 0], sizes = [1, 1024], strides = [1, 1]} : vector<8x1024xf32> to vector<1x1024xf32>
    %1235 = vector.broadcast %1233 : vector<8x1xf32> to vector<8x1024xf32>
    %1236 = vector.broadcast %1234 : vector<1x1024xf32> to vector<8x1024xf32>
    %1237 = arith.mulf %1235, %1236 : vector<8x1024xf32>
    %1238 = arith.addf %1232, %1237 : vector<8x1024xf32>
    %1239 = vector.extract_strided_slice %1207 {offsets = [0, 5], sizes = [8, 1], strides = [1, 1]} : vector<8x8xf32> to vector<8x1xf32>
    %1240 = vector.extract_strided_slice %1206 {offsets = [5, 0], sizes = [1, 1024], strides = [1, 1]} : vector<8x1024xf32> to vector<1x1024xf32>
    %1241 = vector.broadcast %1239 : vector<8x1xf32> to vector<8x1024xf32>
    %1242 = vector.broadcast %1240 : vector<1x1024xf32> to vector<8x1024xf32>
    %1243 = arith.mulf %1241, %1242 : vector<8x1024xf32>
    %1244 = arith.addf %1238, %1243 : vector<8x1024xf32>
    %1245 = vector.extract_strided_slice %1207 {offsets = [0, 6], sizes = [8, 1], strides = [1, 1]} : vector<8x8xf32> to vector<8x1xf32>
    %1246 = vector.extract_strided_slice %1206 {offsets = [6, 0], sizes = [1, 1024], strides = [1, 1]} : vector<8x1024xf32> to vector<1x1024xf32>
    %1247 = vector.broadcast %1245 : vector<8x1xf32> to vector<8x1024xf32>
    %1248 = vector.broadcast %1246 : vector<1x1024xf32> to vector<8x1024xf32>
    %1249 = arith.mulf %1247, %1248 : vector<8x1024xf32>
    %1250 = arith.addf %1244, %1249 : vector<8x1024xf32>
    %1251 = vector.extract_strided_slice %1207 {offsets = [0, 7], sizes = [8, 1], strides = [1, 1]} : vector<8x8xf32> to vector<8x1xf32>
    %1252 = vector.extract_strided_slice %1206 {offsets = [7, 0], sizes = [1, 1024], strides = [1, 1]} : vector<8x1024xf32> to vector<1x1024xf32>
    %1253 = vector.broadcast %1251 : vector<8x1xf32> to vector<8x1024xf32>
    %1254 = vector.broadcast %1252 : vector<1x1024xf32> to vector<8x1024xf32>
    %1255 = arith.mulf %1253, %1254 : vector<8x1024xf32>
    %1256 = arith.addf %1250, %1255 : vector<8x1024xf32>
    %c0_235 = arith.constant 0 : index
    %c0_236 = arith.constant 0 : index
    %1257 = vector.load %arg10[%c0_235, %c0_236] : memref<8x1xf32, #tpu.memory_space<vmem>>, vector<8x1xf32>
    %1258 = vector.broadcast %1257 : vector<8x1xf32> to vector<8x1024xf32>
    %1259 = arith.addf %1256, %1258 : vector<8x1024xf32>
    %c0_237 = arith.constant 0 : index
    %c0_238 = arith.constant 0 : index
    %c0_239 = arith.constant 0 : index
    %1260 = vector.load %arg1[%c0_237, %c0_238, %c0_239] : memref<1x8x1024xf32, #tpu.memory_space<vmem>>, vector<1x8x1024xf32>
    %1261 = vector.shape_cast %1260 : vector<1x8x1024xf32> to vector<8x1024xf32>
    %1262 = arith.addf %1259, %1261 : vector<8x1024xf32>
    %c0_240 = arith.constant 0 : index
    %c0_241 = arith.constant 0 : index
    %c0_242 = arith.constant 0 : index
    %1263 = vector.load %arg11[%c0_240, %c0_241, %c0_242] : memref<1x8x1024xf32, #tpu.memory_space<vmem>>, vector<1x8x1024xf32>
    %1264 = vector.shape_cast %1263 : vector<1x8x1024xf32> to vector<8x1024xf32>
    %1265 = vector.shape_cast %1262 : vector<8x1024xf32> to vector<1x8x1024xf32>
    tpu.vector_store %arg11[%c0_240, %c0_241, %c0_242], %1265 {strides = array<i32>} : memref<1x8x1024xf32, #tpu.memory_space<vmem>>, vector<1x8x1024xf32>,
    return
  }
  func.func @transform_0(%arg0: i32) -> (i32, i32, i32) {
    %c0_i32 = arith.constant 0 : i32
    %c0_i32_0 = arith.constant 0 : i32
    %c0_i32_1 = arith.constant 0 : i32
    return %arg0, %c0_i32, %c0_i32_0 : i32, i32, i32
  }
  func.func @transform_1(%arg0: i32) -> (i32, i32) {
    %c0_i32 = arith.constant 0 : i32
    %c0_i32_0 = arith.constant 0 : i32
    %c0_i32_1 = arith.constant 0 : i32
    return %c0_i32, %c0_i32_0 : i32, i32
  }
  func.func @transform_2(%arg0: i32) -> (i32, i32) {
    %c0_i32 = arith.constant 0 : i32
    %c0_i32_0 = arith.constant 0 : i32
    %c0_i32_1 = arith.constant 0 : i32
    return %c0_i32, %c0_i32_0 : i32, i32
  }
  func.func @transform_3(%arg0: i32) -> (i32, i32) {
    %c0_i32 = arith.constant 0 : i32
    %c0_i32_0 = arith.constant 0 : i32
    %c0_i32_1 = arith.constant 0 : i32
    return %c0_i32, %c0_i32_0 : i32, i32
  }
  func.func @transform_4(%arg0: i32) -> (i32, i32) {
    %c0_i32 = arith.constant 0 : i32
    %c0_i32_0 = arith.constant 0 : i32
    %c0_i32_1 = arith.constant 0 : i32
    return %c0_i32, %c0_i32_0 : i32, i32
  }
  func.func @transform_5(%arg0: i32) -> (i32, i32) {
    %c0_i32 = arith.constant 0 : i32
    %c0_i32_0 = arith.constant 0 : i32
    %c0_i32_1 = arith.constant 0 : i32
    return %c0_i32, %c0_i32_0 : i32, i32
  }
  func.func @transform_6(%arg0: i32) -> (i32, i32) {
    %c0_i32 = arith.constant 0 : i32
    %c0_i32_0 = arith.constant 0 : i32
    %c0_i32_1 = arith.constant 0 : i32
    return %c0_i32, %c0_i32_0 : i32, i32
  }
  func.func @transform_7(%arg0: i32) -> (i32, i32) {
    %c0_i32 = arith.constant 0 : i32
    %c0_i32_0 = arith.constant 0 : i32
    %c0_i32_1 = arith.constant 0 : i32
    return %c0_i32, %c0_i32_0 : i32, i32
  }
  func.func @transform_8(%arg0: i32) -> (i32, i32) {
    %c0_i32 = arith.constant 0 : i32
    %c0_i32_0 = arith.constant 0 : i32
    %c0_i32_1 = arith.constant 0 : i32
    return %c0_i32, %c0_i32_0 : i32, i32
  }
  func.func @transform_9(%arg0: i32) -> (i32, i32) {
    %c0_i32 = arith.constant 0 : i32
    %c0_i32_0 = arith.constant 0 : i32
    %c0_i32_1 = arith.constant 0 : i32
    return %c0_i32, %c0_i32_0 : i32, i32
  }
  func.func @transform_10(%arg0: i32) -> (i32, i32, i32) {
    %c0_i32 = arith.constant 0 : i32
    %c0_i32_0 = arith.constant 0 : i32
    %c0_i32_1 = arith.constant 0 : i32
    return %arg0, %c0_i32, %c0_i32_0 : i32, i32, i32
  }
}

</mosaic_0001>

<llo_original>
// kernel: spatial_attention_forward.1
$region0: #{spatial_attention_forward.1}
  #allocation0 [shape = 'u32[]', space=smem, size = 0x4, offset = 0x4, fixed_abs, tag = 'smem constant byte address 0x4 - core index']
  #allocation1 [shape = 'u32[144,128]{1,0:T(1,128)}', space=vmem, size = 0x12000, scoped, tag = 'internal scratch']
  %s0 = inlined_call_operand.vmem [shape: f32[2,8,1024], index: 0, kind: input, shape index: {}]
  %s1 = inlined_call_operand.vmem [shape: s32[1,1024], index: 1, kind: input, shape index: {}]
  %s2 = inlined_call_operand.vmem [shape: s32[1,1024], index: 2, kind: input, shape index: {}]
  %s3 = inlined_call_operand.vmem [shape: f32[8,8], index: 3, kind: input, shape index: {}]
  %s4 = inlined_call_operand.vmem [shape: f32[8,1], index: 4, kind: input, shape index: {}]
  %s5 = inlined_call_operand.vmem [shape: f32[8,110], index: 5, kind: input, shape index: {}]
  %s6 = inlined_call_operand.vmem [shape: f32[8,8], index: 6, kind: input, shape index: {}]
  %s7 = inlined_call_operand.vmem [shape: f32[8,1], index: 7, kind: input, shape index: {}]
  %s8 = inlined_call_operand.vmem [shape: f32[8,8], index: 8, kind: input, shape index: {}]
  %s9 = inlined_call_operand.vmem [shape: f32[8,1], index: 9, kind: input, shape index: {}]
  %s10 = inlined_call_operand.vmem [shape: f32[2,8,1024], index: 10, kind: output, shape index: {}]
  %s11 = sld [smem:[#allocation0]]
  $region73: #{spatial_attention_forward.1} parent=0
    _
  %s13 = ssub.s32 1, %s11
  %s14 = scalar_select 0, %s13, %s11
  loop: start=0, step=1, limit=4
  $region2: #{spatial_attention_forward.1} parent=0 // loop_pre_header
    _
  $region3: #{spatial_attention_forward.1} parent=0 // loop_header
    %s16 = sphi 0, %s20
    %p17 = scmp.ge.s32.totalorder %s16, 4
    %s26 = sphi 0, %s28
    %s29 = sphi 0, %s26
    %s30 = sphi 0, %s29
    %s46 = sphi 0, %s30
    %s50 = sphi 0, %s50
    %s52 = sphi 0, %s50
    %s53 = sphi 0, %s52
    %s67 = sphi 0, %s53
    %s71 = sphi 0, %s71
    %s73 = sphi 0, %s71
    %s74 = sphi 0, %s73
    %s88 = sphi 0, %s74
    %s92 = sphi 0, %s92
    %s94 = sphi 0, %s92
    %s95 = sphi 0, %s94
    %s109 = sphi 0, %s95
    %s113 = sphi 0, %s113
    %s115 = sphi 0, %s113
    %s116 = sphi 0, %s115
    %s130 = sphi 0, %s116
    %s134 = sphi 0, %s134
    %s136 = sphi 0, %s134
    %s137 = sphi 0, %s136
    %s151 = sphi 0, %s137
    %s155 = sphi 0, %s155
    %s157 = sphi 0, %s155
    %s158 = sphi 0, %s157
    %s172 = sphi 0, %s158
    %s176 = sphi 0, %s176
    %s178 = sphi 0, %s176
    %s179 = sphi 0, %s178
    %s193 = sphi 0, %s179
    %s197 = sphi 0, %s197
    %s199 = sphi 0, %s197
    %s200 = sphi 0, %s199
    %s214 = sphi 0, %s200
    %s218 = sphi 0, %s218
    %s220 = sphi 0, %s218
    %s221 = sphi 0, %s220
    %s235 = sphi 0, %s221
    %s241 = sphi 0, %s243
    %s244 = sphi 0, %s241
    %s245 = sphi 0, %s244
    %s261 = sphi 0, %s245
  $region4: #{spatial_attention_forward.1} parent=0 // loop_header_branch
    %19 = sbr.rel (%p17) target = $region8
  $region5: #{spatial_attention_forward.1} parent=0 // loop_body
    %s21 = ssub.s32 %s16, 1
    %s22 = ssub.s32 %s16, 2
    %s23 = sadd.s32 %s16, 1
    %s24 = ssub.s32 %s16, %s23
    %p25 = scmp.eq.s32.totalorder %s24, 0
    %s27 = sadd.s32 %s26, 1
    %s28 = scalar_select %p25, %s26, %s27
    %p31 = pneg %p25
    %p32 = scmp.eq.s32.totalorder %s16, 1
    %p33 = por %p31, %p32
    %p34 = scmp.ne.s32.totalorder %s26, %s29
    %p35 = scmp.eq.s32.totalorder %s16, 0
    %p36 = por %p34, %p35
    %p37 = scmp.ne.s32.totalorder %s26, %s29
    %p38 = scmp.eq.s32.totalorder %s21, 1
    %p39 = por %p37, %p38
    %p40 = scmp.ne.s32.totalorder %s29, %s30
    %p41 = scmp.eq.s32.totalorder %s21, 0
    %p42 = por %p40, %p41
    %p43 = scmp.ne.s32.totalorder %s29, %s30
    %p44 = scmp.eq.s32.totalorder %s22, 1
    %p45 = por %p43, %p44
    %p47 = scmp.ne.s32.totalorder %s30, %s46
    %p48 = scmp.eq.s32.totalorder %s22, 0
    %p49 = por %p47, %p48
    %s51 = sadd.s32 %s50, 1
    %p54 = scmp.eq.s32.totalorder %s16, 1
    %p55 = scmp.ne.s32.totalorder %s50, %s52
    %p56 = scmp.eq.s32.totalorder %s16, 0
    %p57 = por %p55, %p56
    %p58 = scmp.ne.s32.totalorder %s50, %s52
    %p59 = scmp.eq.s32.totalorder %s21, 1
    %p60 = por %p58, %p59
    %p61 = scmp.ne.s32.totalorder %s52, %s53
    %p62 = scmp.eq.s32.totalorder %s21, 0
    %p63 = por %p61, %p62
    %p64 = scmp.ne.s32.totalorder %s52, %s53
    %p65 = scmp.eq.s32.totalorder %s22, 1
    %p66 = por %p64, %p65
    %p68 = scmp.ne.s32.totalorder %s53, %s67
    %p69 = scmp.eq.s32.totalorder %s22, 0
    %p70 = por %p68, %p69
    %s72 = sadd.s32 %s71, 1
    %p75 = scmp.eq.s32.totalorder %s16, 1
    %p76 = scmp.ne.s32.totalorder %s71, %s73
    %p77 = scmp.eq.s32.totalorder %s16, 0
    %p78 = por %p76, %p77
    %p79 = scmp.ne.s32.totalorder %s71, %s73
    %p80 = scmp.eq.s32.totalorder %s21, 1
    %p81 = por %p79, %p80
    %p82 = scmp.ne.s32.totalorder %s73, %s74
    %p83 = scmp.eq.s32.totalorder %s21, 0
    %p84 = por %p82, %p83
    %p85 = scmp.ne.s32.totalorder %s73, %s74
    %p86 = scmp.eq.s32.totalorder %s22, 1
    %p87 = por %p85, %p86
    %p89 = scmp.ne.s32.totalorder %s74, %s88
    %p90 = scmp.eq.s32.totalorder %s22, 0
    %p91 = por %p89, %p90
    %s93 = sadd.s32 %s92, 1
    %p96 = scmp.eq.s32.totalorder %s16, 1
    %p97 = scmp.ne.s32.totalorder %s92, %s94
    %p98 = scmp.eq.s32.totalorder %s16, 0
    %p99 = por %p97, %p98
    %p100 = scmp.ne.s32.totalorder %s92, %s94
    %p101 = scmp.eq.s32.totalorder %s21, 1
    %p102 = por %p100, %p101
    %p103 = scmp.ne.s32.totalorder %s94, %s95
    %p104 = scmp.eq.s32.totalorder %s21, 0
    %p105 = por %p103, %p104
    %p106 = scmp.ne.s32.totalorder %s94, %s95
    %p107 = scmp.eq.s32.totalorder %s22, 1
    %p108 = por %p106, %p107
    %p110 = scmp.ne.s32.totalorder %s95, %s109
    %p111 = scmp.eq.s32.totalorder %s22, 0
    %p112 = por %p110, %p111
    %s114 = sadd.s32 %s113, 1
    %p117 = scmp.eq.s32.totalorder %s16, 1
    %p118 = scmp.ne.s32.totalorder %s113, %s115
    %p119 = scmp.eq.s32.totalorder %s16, 0
    %p120 = por %p118, %p119
    %p121 = scmp.ne.s32.totalorder %s113, %s115
    %p122 = scmp.eq.s32.totalorder %s21, 1
    %p123 = por %p121, %p122
    %p124 = scmp.ne.s32.totalorder %s115, %s116
    %p125 = scmp.eq.s32.totalorder %s21, 0
    %p126 = por %p124, %p125
    %p127 = scmp.ne.s32.totalorder %s115, %s116
    %p128 = scmp.eq.s32.totalorder %s22, 1
    %p129 = por %p127, %p128
    %p131 = scmp.ne.s32.totalorder %s116, %s130
    %p132 = scmp.eq.s32.totalorder %s22, 0
    %p133 = por %p131, %p132
    %s135 = sadd.s32 %s134, 1
    %p138 = scmp.eq.s32.totalorder %s16, 1
    %p139 = scmp.ne.s32.totalorder %s134, %s136
    %p140 = scmp.eq.s32.totalorder %s16, 0
    %p141 = por %p139, %p140
    %p142 = scmp.ne.s32.totalorder %s134, %s136
    %p143 = scmp.eq.s32.totalorder %s21, 1
    %p144 = por %p142, %p143
    %p145 = scmp.ne.s32.totalorder %s136, %s137
    %p146 = scmp.eq.s32.totalorder %s21, 0
    %p147 = por %p145, %p146
    %p148 = scmp.ne.s32.totalorder %s136, %s137
    %p149 = scmp.eq.s32.totalorder %s22, 1
    %p150 = por %p148, %p149
    %p152 = scmp.ne.s32.totalorder %s137, %s151
    %p153 = scmp.eq.s32.totalorder %s22, 0
    %p154 = por %p152, %p153
    %s156 = sadd.s32 %s155, 1
    %p159 = scmp.eq.s32.totalorder %s16, 1
    %p160 = scmp.ne.s32.totalorder %s155, %s157
    %p161 = scmp.eq.s32.totalorder %s16, 0
    %p162 = por %p160, %p161
    %p163 = scmp.ne.s32.totalorder %s155, %s157
    %p164 = scmp.eq.s32.totalorder %s21, 1
    %p165 = por %p163, %p164
    %p166 = scmp.ne.s32.totalorder %s157, %s158
    %p167 = scmp.eq.s32.totalorder %s21, 0
    %p168 = por %p166, %p167
    %p169 = scmp.ne.s32.totalorder %s157, %s158
    %p170 = scmp.eq.s32.totalorder %s22, 1
    %p171 = por %p169, %p170
    %p173 = scmp.ne.s32.totalorder %s158, %s172
    %p174 = scmp.eq.s32.totalorder %s22, 0
    %p175 = por %p173, %p174
    %s177 = sadd.s32 %s176, 1
    %p180 = scmp.eq.s32.totalorder %s16, 1
    %p181 = scmp.ne.s32.totalorder %s176, %s178
    %p182 = scmp.eq.s32.totalorder %s16, 0
    %p183 = por %p181, %p182
    %p184 = scmp.ne.s32.totalorder %s176, %s178
    %p185 = scmp.eq.s32.totalorder %s21, 1
    %p186 = por %p184, %p185
    %p187 = scmp.ne.s32.totalorder %s178, %s179
    %p188 = scmp.eq.s32.totalorder %s21, 0
    %p189 = por %p187, %p188
    %p190 = scmp.ne.s32.totalorder %s178, %s179
    %p191 = scmp.eq.s32.totalorder %s22, 1
    %p192 = por %p190, %p191
    %p194 = scmp.ne.s32.totalorder %s179, %s193
    %p195 = scmp.eq.s32.totalorder %s22, 0
    %p196 = por %p194, %p195
    %s198 = sadd.s32 %s197, 1
    %p201 = scmp.eq.s32.totalorder %s16, 1
    %p202 = scmp.ne.s32.totalorder %s197, %s199
    %p203 = scmp.eq.s32.totalorder %s16, 0
    %p204 = por %p202, %p203
    %p205 = scmp.ne.s32.totalorder %s197, %s199
    %p206 = scmp.eq.s32.totalorder %s21, 1
    %p207 = por %p205, %p206
    %p208 = scmp.ne.s32.totalorder %s199, %s200
    %p209 = scmp.eq.s32.totalorder %s21, 0
    %p210 = por %p208, %p209
    %p211 = scmp.ne.s32.totalorder %s199, %s200
    %p212 = scmp.eq.s32.totalorder %s22, 1
    %p213 = por %p211, %p212
    %p215 = scmp.ne.s32.totalorder %s200, %s214
    %p216 = scmp.eq.s32.totalorder %s22, 0
    %p217 = por %p215, %p216
    %s219 = sadd.s32 %s218, 1
    %p222 = scmp.eq.s32.totalorder %s16, 1
    %p223 = scmp.ne.s32.totalorder %s218, %s220
    %p224 = scmp.eq.s32.totalorder %s16, 0
    %p225 = por %p223, %p224
    %p226 = scmp.ne.s32.totalorder %s218, %s220
    %p227 = scmp.eq.s32.totalorder %s21, 1
    %p228 = por %p226, %p227
    %p229 = scmp.ne.s32.totalorder %s220, %s221
    %p230 = scmp.eq.s32.totalorder %s21, 0
    %p231 = por %p229, %p230
    %p232 = scmp.ne.s32.totalorder %s220, %s221
    %p233 = scmp.eq.s32.totalorder %s22, 1
    %p234 = por %p232, %p233
    %p236 = scmp.ne.s32.totalorder %s221, %s235
    %p237 = scmp.eq.s32.totalorder %s22, 0
    %p238 = por %p236, %p237
    %s239 = ssub.s32 %s16, %s23
    %p240 = scmp.eq.s32.totalorder %s239, 0
    %s242 = sadd.s32 %s241, 1
    %s243 = scalar_select %p240, %s241, %s242
    %p246 = pneg %p240
    %p247 = scmp.eq.s32.totalorder %s16, 1
    %p248 = por %p246, %p247
    %p249 = scmp.ne.s32.totalorder %s241, %s244
    %p250 = scmp.eq.s32.totalorder %s16, 0
    %p251 = por %p249, %p250
    %p252 = scmp.ne.s32.totalorder %s241, %s244
    %p253 = scmp.eq.s32.totalorder %s21, 1
    %p254 = por %p252, %p253
    %p255 = scmp.ne.s32.totalorder %s244, %s245
    %p256 = scmp.eq.s32.totalorder %s21, 0
    %p257 = por %p255, %p256
    %p258 = scmp.ne.s32.totalorder %s244, %s245
    %p259 = scmp.eq.s32.totalorder %s22, 1
    %p260 = por %p258, %p259
    %p262 = scmp.ne.s32.totalorder %s245, %s261
    %p263 = scmp.eq.s32.totalorder %s22, 0
    %p264 = por %p262, %p263
    %p265 = scmp.le.s32.totalorder 1, %s16
    %p266 = scmp.lt.s32.totalorder %s16, 3
    %p267 = pnand %p265, %p266
    %p268 = pneg %p267
    // Predicated region
    $region9: #{spatial_attention_forward.1} parent=5 // pred_check
      _
    $region10: #{spatial_attention_forward.1} parent=5 // pred_check_branch
      %270 = sbr.rel (%p267) target = $region12
    $region11: #{spatial_attention_forward.1} parent=5 // pred_region
      %s271 = ssub.s32 %s16, 1
      // Predicated region
      $region13: #{spatial_attention_forward.1} parent=11 // pred_check
        %p272 = pneg %p63
      $region14: #{spatial_attention_forward.1} parent=11 // pred_check_branch
        %274 = sbr.rel (%p272) target = $region16
      $region15: #{spatial_attention_forward.1} parent=11 // pred_region
        _
      $region16: #{spatial_attention_forward.1} parent=11 // pred_fallthru
        _
      // Predicated region
      $region17: #{spatial_attention_forward.1} parent=11 // pred_check
        %p275 = pneg %p84
      $region18: #{spatial_attention_forward.1} parent=11 // pred_check_branch
        %277 = sbr.rel (%p275) target = $region20
      $region19: #{spatial_attention_forward.1} parent=11 // pred_region
        _
      $region20: #{spatial_attention_forward.1} parent=11 // pred_fallthru
        _
      // Predicated region
      $region21: #{spatial_attention_forward.1} parent=11 // pred_check
        %p278 = pneg %p105
      $region22: #{spatial_attention_forward.1} parent=11 // pred_check_branch
        %280 = sbr.rel (%p278) target = $region24
      $region23: #{spatial_attention_forward.1} parent=11 // pred_region
        _
      $region24: #{spatial_attention_forward.1} parent=11 // pred_fallthru
        _
      // Predicated region
      $region25: #{spatial_attention_forward.1} parent=11 // pred_check
        %p281 = pneg %p126
      $region26: #{spatial_attention_forward.1} parent=11 // pred_check_branch
        %283 = sbr.rel (%p281) target = $region28
      $region27: #{spatial_attention_forward.1} parent=11 // pred_region
        _
      $region28: #{spatial_attention_forward.1} parent=11 // pred_fallthru
        _
      // Predicated region
      $region29: #{spatial_attention_forward.1} parent=11 // pred_check
        %p284 = pneg %p147
      $region30: #{spatial_attention_forward.1} parent=11 // pred_check_branch
        %286 = sbr.rel (%p284) target = $region32
      $region31: #{spatial_attention_forward.1} parent=11 // pred_region
        _
      $region32: #{spatial_attention_forward.1} parent=11 // pred_fallthru
        _
      // Predicated region
      $region33: #{spatial_attention_forward.1} parent=11 // pred_check
        %p287 = pneg %p168
      $region34: #{spatial_attention_forward.1} parent=11 // pred_check_branch
        %289 = sbr.rel (%p287) target = $region36
      $region35: #{spatial_attention_forward.1} parent=11 // pred_region
        _
      $region36: #{spatial_attention_forward.1} parent=11 // pred_fallthru
        _
      // Predicated region
      $region37: #{spatial_attention_forward.1} parent=11 // pred_check
        %p290 = pneg %p189
      $region38: #{spatial_attention_forward.1} parent=11 // pred_check_branch
        %292 = sbr.rel (%p290) target = $region40
      $region39: #{spatial_attention_forward.1} parent=11 // pred_region
        _
      $region40: #{spatial_attention_forward.1} parent=11 // pred_fallthru
        _
      // Predicated region
      $region41: #{spatial_attention_forward.1} parent=11 // pred_check
        %p293 = pneg %p210
      $region42: #{spatial_attention_forward.1} parent=11 // pred_check_branch
        %295 = sbr.rel (%p293) target = $region44
      $region43: #{spatial_attention_forward.1} parent=11 // pred_region
        _
      $region44: #{spatial_attention_forward.1} parent=11 // pred_fallthru
        _
      // Predicated region
      $region45: #{spatial_attention_forward.1} parent=11 // pred_check
        %p296 = pneg %p231
      $region46: #{spatial_attention_forward.1} parent=11 // pred_check_branch
        %298 = sbr.rel (%p296) target = $region48
      $region47: #{spatial_attention_forward.1} parent=11 // pred_region
        _
      $region48: #{spatial_attention_forward.1} parent=11 // pred_fallthru
        _
    $region12: #{spatial_attention_forward.1} parent=5 // pred_fallthru
      _
    %p299 = scmp.lt.s32.totalorder %s16, 2
    // Predicated region
    $region49: #{spatial_attention_forward.1} parent=5 // pred_check
      %p300 = pneg %p299
    $region50: #{spatial_attention_forward.1} parent=5 // pred_check_branch
      %302 = sbr.rel (%p300) target = $region52
    $region51: #{spatial_attention_forward.1} parent=5 // pred_region
      // Predicated region
      $region53: #{spatial_attention_forward.1} parent=51 // pred_check
        %p303 = pneg %p36
      $region54: #{spatial_attention_forward.1} parent=51 // pred_check_branch
        %305 = sbr.rel (%p303) target = $region56
      $region55: #{spatial_attention_forward.1} parent=51 // pred_region
        %p306 = scmp.lt.s32.totalorder %s16, 1
        %s307 = scalar_select %p306, %s16, 1
        %s308 = smul.addr %s307, 8
        %s309 = smul.addr %s308, 8
        %s310 = scalar_lea.vmem %s0, %s309
      $region56: #{spatial_attention_forward.1} parent=51 // pred_fallthru
        _
    $region52: #{spatial_attention_forward.1} parent=5 // pred_fallthru
      _
    %p311 = scmp.le.s32.totalorder 1, %s16
    %p312 = scmp.lt.s32.totalorder %s16, 3
    %p313 = pnand %p311, %p312
    %p314 = pneg %p313
    // Predicated region
    $region57: #{spatial_attention_forward.1} parent=5 // pred_check
      _
    $region58: #{spatial_attention_forward.1} parent=5 // pred_check_branch
      %316 = sbr.rel (%p313) target = $region60
    $region59: #{spatial_attention_forward.1} parent=5 // pred_region
      %s317 = ssub.s32 %s16, 1
      %p318 = scmp.lt.s32.totalorder %s21, 1
      %s319 = scalar_select %p318, %s21, 1
      %s320 = smul.addr %s319, 8
      %s321 = smul.addr %s320, 8
      %s322 = scalar_lea.vmem %s0, %s321
      %p323 = pneg %p42
      %p324 = pneg %p39
      %p325 = pneg %p63
      %p326 = pneg %p60
      %p327 = pneg %p84
      %p328 = pneg %p81
      %p329 = pneg %p105
      %p330 = pneg %p102
      %p331 = pneg %p126
      %p332 = pneg %p123
      %p333 = pneg %p147
      %p334 = pneg %p144
      %p335 = pneg %p168
      %p336 = pneg %p165
      %p337 = pneg %p189
      %p338 = pneg %p186
      %p339 = pneg %p210
      %p340 = pneg %p207
      %p341 = pneg %p231
      %p342 = pneg %p228
      %p343 = pneg %p257
      %p344 = pneg %p254
      %p345 = scmp.lt.s32.totalorder %s21, 1
      %s346 = scalar_select %p345, %s21, 1
      %s347 = smul.addr %s346, 8
      %s348 = smul.addr %s347, 8
      %s349 = scalar_lea.vmem %s10, %s348
      %p350 = scmp.lt.s32.totalorder %s21, 1
      %s351 = scalar_select %p350, %s21, 1
      %s352 = smul.addr %s351, 8
      %s353 = smul.addr %s352, 8
      %s354 = scalar_lea.vmem %s0, %s353
      %p355 = scmp.lt.s32.totalorder %s21, 1
      %s356 = scalar_select %p355, %s21, 1
      %s357 = smul.addr %s356, 8
      %s358 = smul.addr %s357, 8
      %s359 = scalar_lea.vmem %s10, %s358
      %v360 = vld [vmem:[%s354] sm:$0xff]
      %v361 = vld [vmem:[%s354 + $0x8] sm:$0xff]
      %v362 = vld [vmem:[%s354 + $0x10] sm:$0xff]
      %v363 = vld [vmem:[%s354 + $0x18] sm:$0xff]
      %v364 = vld [vmem:[%s354 + $0x20] sm:$0xff]
      %v365 = vld [vmem:[%s354 + $0x28] sm:$0xff]
      %v366 = vld [vmem:[%s354 + $0x30] sm:$0xff]
      %v367 = vld [vmem:[%s354 + $0x38] sm:$0xff]
      %v368 = vld [vmem:[%s1] sm:$0xff]
      %v369 = vld [vmem:[%s2] sm:$0xff]
      %v370 = vld [vmem:[%s5] sm:$0xff]
      %v371 = vld [vmem:[%s3] sm:$0xff]
      %373 = vset.pattern.permute.xlu0 0
      %374 = vperm.xlu0 %373, %v371
      %v375 = vpop.permute.xlu0 %374
      %v377 = vlaneseq
      %v378 = vshrl.u32 %v377, 7
      %v379 = vsub.s32 0, %v378
      %v380 = vrot.slane %v360, %v379
      %v381 = vlaneseq
      %v382 = vshrl.u32 %v381, 7
      %v383 = vsub.s32 0, %v382
      %v384 = vrot.slane %v361, %v383
      %v385 = vlaneseq
      %v386 = vshrl.u32 %v385, 7
      %v387 = vsub.s32 0, %v386
      %v388 = vrot.slane %v362, %v387
      %v389 = vlaneseq
      %v390 = vshrl.u32 %v389, 7
      %v391 = vsub.s32 0, %v390
      %v392 = vrot.slane %v363, %v391
      %v393 = vlaneseq
      %v394 = vshrl.u32 %v393, 7
      %v395 = vsub.s32 0, %v394
      %v396 = vrot.slane %v364, %v395
      %v397 = vlaneseq
      %v398 = vshrl.u32 %v397, 7
      %v399 = vsub.s32 0, %v398
      %v400 = vrot.slane %v365, %v399
      %v401 = vlaneseq
      %v402 = vshrl.u32 %v401, 7
      %v403 = vsub.s32 0, %v402
      %v404 = vrot.slane %v366, %v403
      %v405 = vlaneseq
      %v406 = vshrl.u32 %v405, 7
      %v407 = vsub.s32 0, %v406
      %v408 = vrot.slane %v367, %v407
      %v409 = vmul.f32 %v375, %v380
      %v410 = vmul.f32 %v375, %v384
      %v411 = vmul.f32 %v375, %v388
      %v412 = vmul.f32 %v375, %v392
      %v413 = vmul.f32 %v375, %v396
      %v414 = vmul.f32 %v375, %v400
      %v415 = vmul.f32 %v375, %v404
      %v416 = vmul.f32 %v375, %v408
      %v417 = vadd.f32 %v409, 0.0
      %v418 = vadd.f32 %v410, 0.0
      %v419 = vadd.f32 %v411, 0.0
      %v420 = vadd.f32 %v412, 0.0
      %v421 = vadd.f32 %v413, 0.0
      %v422 = vadd.f32 %v414, 0.0
      %v423 = vadd.f32 %v415, 0.0
      %v424 = vadd.f32 %v416, 0.0
      %425 = vset.pattern.permute.xlu0 1
      %426 = vperm.xlu0 %425, %v371
      %v427 = vpop.permute.xlu0 %426
      %v429 = vlaneseq
      %v430 = vshrl.u32 %v429, 7
      %v431 = vsub.s32 1, %v430
      %v432 = vrot.slane %v360, %v431
      %v433 = vlaneseq
      %v434 = vshrl.u32 %v433, 7
      %v435 = vsub.s32 1, %v434
      %v436 = vrot.slane %v361, %v435
      %v437 = vlaneseq
      %v438 = vshrl.u32 %v437, 7
      %v439 = vsub.s32 1, %v438
      %v440 = vrot.slane %v362, %v439
      %v441 = vlaneseq
      %v442 = vshrl.u32 %v441, 7
      %v443 = vsub.s32 1, %v442
      %v444 = vrot.slane %v363, %v443
      %v445 = vlaneseq
      %v446 = vshrl.u32 %v445, 7
      %v447 = vsub.s32 1, %v446
      %v448 = vrot.slane %v364, %v447
      %v449 = vlaneseq
      %v450 = vshrl.u32 %v449, 7
      %v451 = vsub.s32 1, %v450
      %v452 = vrot.slane %v365, %v451
      %v453 = vlaneseq
      %v454 = vshrl.u32 %v453, 7
      %v455 = vsub.s32 1, %v454
      %v456 = vrot.slane %v366, %v455
      %v457 = vlaneseq
      %v458 = vshrl.u32 %v457, 7
      %v459 = vsub.s32 1, %v458
      %v460 = vrot.slane %v367, %v459
      %v461 = vmul.f32 %v427, %v432
      %v462 = vmul.f32 %v427, %v436
      %v463 = vmul.f32 %v427, %v440
      %v464 = vmul.f32 %v427, %v444
      %v465 = vmul.f32 %v427, %v448
      %v466 = vmul.f32 %v427, %v452
      %v467 = vmul.f32 %v427, %v456
      %v468 = vmul.f32 %v427, %v460
      %v469 = vadd.f32 %v417, %v461
      %v470 = vadd.f32 %v418, %v462
      %v471 = vadd.f32 %v419, %v463
      %v472 = vadd.f32 %v420, %v464
      %v473 = vadd.f32 %v421, %v465
      %v474 = vadd.f32 %v422, %v466
      %v475 = vadd.f32 %v423, %v467
      %v476 = vadd.f32 %v424, %v468
      %477 = vset.pattern.permute.xlu0 2
      %478 = vperm.xlu0 %477, %v371
      %v479 = vpop.permute.xlu0 %478
      %v481 = vlaneseq
      %v482 = vshrl.u32 %v481, 7
      %v483 = vsub.s32 2, %v482
      %v484 = vrot.slane %v360, %v483
      %v485 = vlaneseq
      %v486 = vshrl.u32 %v485, 7
      %v487 = vsub.s32 2, %v486
      %v488 = vrot.slane %v361, %v487
      %v489 = vlaneseq
      %v490 = vshrl.u32 %v489, 7
      %v491 = vsub.s32 2, %v490
      %v492 = vrot.slane %v362, %v491
      %v493 = vlaneseq
      %v494 = vshrl.u32 %v493, 7
      %v495 = vsub.s32 2, %v494
      %v496 = vrot.slane %v363, %v495
      %v497 = vlaneseq
      %v498 = vshrl.u32 %v497, 7
      %v499 = vsub.s32 2, %v498
      %v500 = vrot.slane %v364, %v499
      %v501 = vlaneseq
      %v502 = vshrl.u32 %v501, 7
      %v503 = vsub.s32 2, %v502
      %v504 = vrot.slane %v365, %v503
      %v505 = vlaneseq
      %v506 = vshrl.u32 %v505, 7
      %v507 = vsub.s32 2, %v506
      %v508 = vrot.slane %v366, %v507
      %v509 = vlaneseq
      %v510 = vshrl.u32 %v509, 7
      %v511 = vsub.s32 2, %v510
      %v512 = vrot.slane %v367, %v511
      %v513 = vmul.f32 %v479, %v484
      %v514 = vmul.f32 %v479, %v488
      %v515 = vmul.f32 %v479, %v492
      %v516 = vmul.f32 %v479, %v496
      %v517 = vmul.f32 %v479, %v500
      %v518 = vmul.f32 %v479, %v504
      %v519 = vmul.f32 %v479, %v508
      %v520 = vmul.f32 %v479, %v512
      %v521 = vadd.f32 %v469, %v513
      %v522 = vadd.f32 %v470, %v514
      %v523 = vadd.f32 %v471, %v515
      %v524 = vadd.f32 %v472, %v516
      %v525 = vadd.f32 %v473, %v517
      %v526 = vadd.f32 %v474, %v518
      %v527 = vadd.f32 %v475, %v519
      %v528 = vadd.f32 %v476, %v520
      %529 = vset.pattern.permute.xlu0 3
      %530 = vperm.xlu0 %529, %v371
      %v531 = vpop.permute.xlu0 %530
      %v533 = vlaneseq
      %v534 = vshrl.u32 %v533, 7
      %v535 = vsub.s32 3, %v534
      %v536 = vrot.slane %v360, %v535
      %v537 = vlaneseq
      %v538 = vshrl.u32 %v537, 7
      %v539 = vsub.s32 3, %v538
      %v540 = vrot.slane %v361, %v539
      %v541 = vlaneseq
      %v542 = vshrl.u32 %v541, 7
      %v543 = vsub.s32 3, %v542
      %v544 = vrot.slane %v362, %v543
      %v545 = vlaneseq
      %v546 = vshrl.u32 %v545, 7
      %v547 = vsub.s32 3, %v546
      %v548 = vrot.slane %v363, %v547
      %v549 = vlaneseq
      %v550 = vshrl.u32 %v549, 7
      %v551 = vsub.s32 3, %v550
      %v552 = vrot.slane %v364, %v551
      %v553 = vlaneseq
      %v554 = vshrl.u32 %v553, 7
      %v555 = vsub.s32 3, %v554
      %v556 = vrot.slane %v365, %v555
      %v557 = vlaneseq
      %v558 = vshrl.u32 %v557, 7
      %v559 = vsub.s32 3, %v558
      %v560 = vrot.slane %v366, %v559
      %v561 = vlaneseq
      %v562 = vshrl.u32 %v561, 7
      %v563 = vsub.s32 3, %v562
      %v564 = vrot.slane %v367, %v563
      %v565 = vmul.f32 %v531, %v536
      %v566 = vmul.f32 %v531, %v540
      %v567 = vmul.f32 %v531, %v544
      %v568 = vmul.f32 %v531, %v548
      %v569 = vmul.f32 %v531, %v552
      %v570 = vmul.f32 %v531, %v556
      %v571 = vmul.f32 %v531, %v560
      %v572 = vmul.f32 %v531, %v564
      %v573 = vadd.f32 %v521, %v565
      %v574 = vadd.f32 %v522, %v566
      %v575 = vadd.f32 %v523, %v567
      %v576 = vadd.f32 %v524, %v568
      %v577 = vadd.f32 %v525, %v569
      %v578 = vadd.f32 %v526, %v570
      %v579 = vadd.f32 %v527, %v571
      %v580 = vadd.f32 %v528, %v572
      %581 = vset.pattern.permute.xlu0 4
      %582 = vperm.xlu0 %581, %v371
      %v583 = vpop.permute.xlu0 %582
      %v585 = vlaneseq
      %v586 = vshrl.u32 %v585, 7
      %v587 = vsub.s32 4, %v586
      %v588 = vrot.slane %v360, %v587
      %v589 = vlaneseq
      %v590 = vshrl.u32 %v589, 7
      %v591 = vsub.s32 4, %v590
      %v592 = vrot.slane %v361, %v591
      %v593 = vlaneseq
      %v594 = vshrl.u32 %v593, 7
      %v595 = vsub.s32 4, %v594
      %v596 = vrot.slane %v362, %v595
      %v597 = vlaneseq
      %v598 = vshrl.u32 %v597, 7
      %v599 = vsub.s32 4, %v598
      %v600 = vrot.slane %v363, %v599
      %v601 = vlaneseq
      %v602 = vshrl.u32 %v601, 7
      %v603 = vsub.s32 4, %v602
      %v604 = vrot.slane %v364, %v603
      %v605 = vlaneseq
      %v606 = vshrl.u32 %v605, 7
      %v607 = vsub.s32 4, %v606
      %v608 = vrot.slane %v365, %v607
      %v609 = vlaneseq
      %v610 = vshrl.u32 %v609, 7
      %v611 = vsub.s32 4, %v610
      %v612 = vrot.slane %v366, %v611
      %v613 = vlaneseq
      %v614 = vshrl.u32 %v613, 7
      %v615 = vsub.s32 4, %v614
      %v616 = vrot.slane %v367, %v615
      %v617 = vmul.f32 %v583, %v588
      %v618 = vmul.f32 %v583, %v592
      %v619 = vmul.f32 %v583, %v596
      %v620 = vmul.f32 %v583, %v600
      %v621 = vmul.f32 %v583, %v604
      %v622 = vmul.f32 %v583, %v608
      %v623 = vmul.f32 %v583, %v612
      %v624 = vmul.f32 %v583, %v616
      %v625 = vadd.f32 %v573, %v617
      %v626 = vadd.f32 %v574, %v618
      %v627 = vadd.f32 %v575, %v619
      %v628 = vadd.f32 %v576, %v620
      %v629 = vadd.f32 %v577, %v621
      %v630 = vadd.f32 %v578, %v622
      %v631 = vadd.f32 %v579, %v623
      %v632 = vadd.f32 %v580, %v624
      %633 = vset.pattern.permute.xlu0 5
      %634 = vperm.xlu0 %633, %v371
      %v635 = vpop.permute.xlu0 %634
      %v637 = vlaneseq
      %v638 = vshrl.u32 %v637, 7
      %v639 = vsub.s32 5, %v638
      %v640 = vrot.slane %v360, %v639
      %v641 = vlaneseq
      %v642 = vshrl.u32 %v641, 7
      %v643 = vsub.s32 5, %v642
      %v644 = vrot.slane %v361, %v643
      %v645 = vlaneseq
      %v646 = vshrl.u32 %v645, 7
      %v647 = vsub.s32 5, %v646
      %v648 = vrot.slane %v362, %v647
      %v649 = vlaneseq
      %v650 = vshrl.u32 %v649, 7
      %v651 = vsub.s32 5, %v650
      %v652 = vrot.slane %v363, %v651
      %v653 = vlaneseq
      %v654 = vshrl.u32 %v653, 7
      %v655 = vsub.s32 5, %v654
      %v656 = vrot.slane %v364, %v655
      %v657 = vlaneseq
      %v658 = vshrl.u32 %v657, 7
      %v659 = vsub.s32 5, %v658
      %v660 = vrot.slane %v365, %v659
      %v661 = vlaneseq
      %v662 = vshrl.u32 %v661, 7
      %v663 = vsub.s32 5, %v662
      %v664 = vrot.slane %v366, %v663
      %v665 = vlaneseq
      %v666 = vshrl.u32 %v665, 7
      %v667 = vsub.s32 5, %v666
      %v668 = vrot.slane %v367, %v667
      %v669 = vmul.f32 %v635, %v640
      %v670 = vmul.f32 %v635, %v644
      %v671 = vmul.f32 %v635, %v648
      %v672 = vmul.f32 %v635, %v652
      %v673 = vmul.f32 %v635, %v656
      %v674 = vmul.f32 %v635, %v660
      %v675 = vmul.f32 %v635, %v664
      %v676 = vmul.f32 %v635, %v668
      %v677 = vadd.f32 %v625, %v669
      %v678 = vadd.f32 %v626, %v670
      %v679 = vadd.f32 %v627, %v671
      %v680 = vadd.f32 %v628, %v672
      %v681 = vadd.f32 %v629, %v673
      %v682 = vadd.f32 %v630, %v674
      %v683 = vadd.f32 %v631, %v675
      %v684 = vadd.f32 %v632, %v676
      %685 = vset.pattern.permute.xlu0 6
      %686 = vperm.xlu0 %685, %v371
      %v687 = vpop.permute.xlu0 %686
      %v689 = vlaneseq
      %v690 = vshrl.u32 %v689, 7
      %v691 = vsub.s32 6, %v690
      %v692 = vrot.slane %v360, %v691
      %v693 = vlaneseq
      %v694 = vshrl.u32 %v693, 7
      %v695 = vsub.s32 6, %v694
      %v696 = vrot.slane %v361, %v695
      %v697 = vlaneseq
      %v698 = vshrl.u32 %v697, 7
      %v699 = vsub.s32 6, %v698
      %v700 = vrot.slane %v362, %v699
      %v701 = vlaneseq
      %v702 = vshrl.u32 %v701, 7
      %v703 = vsub.s32 6, %v702
      %v704 = vrot.slane %v363, %v703
      %v705 = vlaneseq
      %v706 = vshrl.u32 %v705, 7
      %v707 = vsub.s32 6, %v706
      %v708 = vrot.slane %v364, %v707
      %v709 = vlaneseq
      %v710 = vshrl.u32 %v709, 7
      %v711 = vsub.s32 6, %v710
      %v712 = vrot.slane %v365, %v711
      %v713 = vlaneseq
      %v714 = vshrl.u32 %v713, 7
      %v715 = vsub.s32 6, %v714
      %v716 = vrot.slane %v366, %v715
      %v717 = vlaneseq
      %v718 = vshrl.u32 %v717, 7
      %v719 = vsub.s32 6, %v718
      %v720 = vrot.slane %v367, %v719
      %v721 = vmul.f32 %v687, %v692
      %v722 = vmul.f32 %v687, %v696
      %v723 = vmul.f32 %v687, %v700
      %v724 = vmul.f32 %v687, %v704
      %v725 = vmul.f32 %v687, %v708
      %v726 = vmul.f32 %v687, %v712
      %v727 = vmul.f32 %v687, %v716
      %v728 = vmul.f32 %v687, %v720
      %v729 = vadd.f32 %v677, %v721
      %v730 = vadd.f32 %v678, %v722
      %v731 = vadd.f32 %v679, %v723
      %v732 = vadd.f32 %v680, %v724
      %v733 = vadd.f32 %v681, %v725
      %v734 = vadd.f32 %v682, %v726
      %v735 = vadd.f32 %v683, %v727
      %v736 = vadd.f32 %v684, %v728
      %737 = vset.pattern.permute.xlu0 7
      %738 = vperm.xlu0 %737, %v371
      %v739 = vpop.permute.xlu0 %738
      %v741 = vlaneseq
      %v742 = vshrl.u32 %v741, 7
      %v743 = vsub.s32 7, %v742
      %v744 = vrot.slane %v360, %v743
      %v745 = vlaneseq
      %v746 = vshrl.u32 %v745, 7
      %v747 = vsub.s32 7, %v746
      %v748 = vrot.slane %v361, %v747
      %v749 = vlaneseq
      %v750 = vshrl.u32 %v749, 7
      %v751 = vsub.s32 7, %v750
      %v752 = vrot.slane %v362, %v751
      %v753 = vlaneseq
      %v754 = vshrl.u32 %v753, 7
      %v755 = vsub.s32 7, %v754
      %v756 = vrot.slane %v363, %v755
      %v757 = vlaneseq
      %v758 = vshrl.u32 %v757, 7
      %v759 = vsub.s32 7, %v758
      %v760 = vrot.slane %v364, %v759
      %v761 = vlaneseq
      %v762 = vshrl.u32 %v761, 7
      %v763 = vsub.s32 7, %v762
      %v764 = vrot.slane %v365, %v763
      %v765 = vlaneseq
      %v766 = vshrl.u32 %v765, 7
      %v767 = vsub.s32 7, %v766
      %v768 = vrot.slane %v366, %v767
      %v769 = vlaneseq
      %v770 = vshrl.u32 %v769, 7
      %v771 = vsub.s32 7, %v770
      %v772 = vrot.slane %v367, %v771
      %v773 = vmul.f32 %v739, %v744
      %v774 = vmul.f32 %v739, %v748
      %v775 = vmul.f32 %v739, %v752
      %v776 = vmul.f32 %v739, %v756
      %v777 = vmul.f32 %v739, %v760
      %v778 = vmul.f32 %v739, %v764
      %v779 = vmul.f32 %v739, %v768
      %v780 = vmul.f32 %v739, %v772
      %v781 = vadd.f32 %v729, %v773
      %v782 = vadd.f32 %v730, %v774
      %v783 = vadd.f32 %v731, %v775
      %v784 = vadd.f32 %v732, %v776
      %v785 = vadd.f32 %v733, %v777
      %v786 = vadd.f32 %v734, %v778
      %v787 = vadd.f32 %v735, %v779
      %v788 = vadd.f32 %v736, %v780
      %v789 = vld [vmem:[%s4] sm:$0xff]
      %791 = vset.pattern.permute.xlu0 0
      %792 = vperm.xlu0 %791, %v789
      %v793 = vpop.permute.xlu0 %792
      %v795 = vadd.f32 %v781, %v793
      %v796 = vadd.f32 %v782, %v793
      %v797 = vadd.f32 %v783, %v793
      %v798 = vadd.f32 %v784, %v793
      %v799 = vadd.f32 %v785, %v793
      %v800 = vadd.f32 %v786, %v793
      %v801 = vadd.f32 %v787, %v793
      %v802 = vadd.f32 %v788, %v793
      %v803 = vmul.f32 %v795, 0.70710677
      %v804 = vmul.f32 %v796, 0.70710677
      %v805 = vmul.f32 %v797, 0.70710677
      %v806 = vmul.f32 %v798, 0.70710677
      %v807 = vmul.f32 %v799, 0.70710677
      %v808 = vmul.f32 %v800, 0.70710677
      %v809 = vmul.f32 %v801, 0.70710677
      %v810 = vmul.f32 %v802, 0.70710677
      %vm811 = vcmp.lt.f32.partialorder %v803, 0.0
      %vm812 = vcmp.lt.f32.partialorder %v804, 0.0
      %vm813 = vcmp.lt.f32.partialorder %v805, 0.0
      %vm814 = vcmp.lt.f32.partialorder %v806, 0.0
      %vm815 = vcmp.lt.f32.partialorder %v807, 0.0
      %vm816 = vcmp.lt.f32.partialorder %v808, 0.0
      %vm817 = vcmp.lt.f32.partialorder %v809, 0.0
      %vm818 = vcmp.lt.f32.partialorder %v810, 0.0
      %v819 = vsel %vm811, -1.0, 1.0
      %v820 = vsel %vm812, -1.0, 1.0
      %v821 = vsel %vm813, -1.0, 1.0
      %v822 = vsel %vm814, -1.0, 1.0
      %v823 = vsel %vm815, -1.0, 1.0
      %v824 = vsel %vm816, -1.0, 1.0
      %v825 = vsel %vm817, -1.0, 1.0
      %v826 = vsel %vm818, -1.0, 1.0
      %v827 = vand.u32 2147483647, %v803
      %v828 = vand.u32 2147483647, %v804
      %v829 = vand.u32 2147483647, %v805
      %v830 = vand.u32 2147483647, %v806
      %v831 = vand.u32 2147483647, %v807
      %v832 = vand.u32 2147483647, %v808
      %v833 = vand.u32 2147483647, %v809
      %v834 = vand.u32 2147483647, %v810
      %v835 = vmul.f32 %v827, 0.3275911
      %v836 = vmul.f32 %v828, 0.3275911
      %v837 = vmul.f32 %v829, 0.3275911
      %v838 = vmul.f32 %v830, 0.3275911
      %v839 = vmul.f32 %v831, 0.3275911
      %v840 = vmul.f32 %v832, 0.3275911
      %v841 = vmul.f32 %v833, 0.3275911
      %v842 = vmul.f32 %v834, 0.3275911
      %v843 = vadd.f32 %v835, 1.0
      %v844 = vadd.f32 %v836, 1.0
      %v845 = vadd.f32 %v837, 1.0
      %v846 = vadd.f32 %v838, 1.0
      %v847 = vadd.f32 %v839, 1.0
      %v848 = vadd.f32 %v840, 1.0
      %v849 = vadd.f32 %v841, 1.0
      %v850 = vadd.f32 %v842, 1.0
      %v851 = vrcp.pop %v843
      %v852 = vrcp.pop %v844
      %v853 = vrcp.pop %v845
      %v854 = vrcp.pop %v846
      %v855 = vrcp.pop %v847
      %v856 = vrcp.pop %v848
      %v857 = vrcp.pop %v849
      %v858 = vrcp.pop %v850
      %v859 = vmul.f32 %v843, %v851
      %v860 = vmul.f32 %v844, %v852
      %v861 = vmul.f32 %v845, %v853
      %v862 = vmul.f32 %v846, %v854
      %v863 = vmul.f32 %v847, %v855
      %v864 = vmul.f32 %v848, %v856
      %v865 = vmul.f32 %v849, %v857
      %v866 = vmul.f32 %v850, %v858
      %v867 = vsub.f32 2.0, %v859
      %v868 = vsub.f32 2.0, %v860
      %v869 = vsub.f32 2.0, %v861
      %v870 = vsub.f32 2.0, %v862
      %v871 = vsub.f32 2.0, %v863
      %v872 = vsub.f32 2.0, %v864
      %v873 = vsub.f32 2.0, %v865
      %v874 = vsub.f32 2.0, %v866
      %v875 = vmul.f32 %v851, %v867
      %v876 = vmul.f32 %v852, %v868
      %v877 = vmul.f32 %v853, %v869
      %v878 = vmul.f32 %v854, %v870
      %v879 = vmul.f32 %v855, %v871
      %v880 = vmul.f32 %v856, %v872
      %v881 = vmul.f32 %v857, %v873
      %v882 = vmul.f32 %v858, %v874
      %v883 = vmul.f32 %v875, 1.0614054
      %v884 = vmul.f32 %v876, 1.0614054
      %v885 = vmul.f32 %v877, 1.0614054
      %v886 = vmul.f32 %v878, 1.0614054
      %v887 = vmul.f32 %v879, 1.0614054
      %v888 = vmul.f32 %v880, 1.0614054
      %v889 = vmul.f32 %v881, 1.0614054
      %v890 = vmul.f32 %v882, 1.0614054
      %v891 = vsub.f32 %v883, 1.4531521
      %v892 = vsub.f32 %v884, 1.4531521
      %v893 = vsub.f32 %v885, 1.4531521
      %v894 = vsub.f32 %v886, 1.4531521
      %v895 = vsub.f32 %v887, 1.4531521
      %v896 = vsub.f32 %v888, 1.4531521
      %v897 = vsub.f32 %v889, 1.4531521
      %v898 = vsub.f32 %v890, 1.4531521
      %v899 = vmul.f32 %v891, %v875
      %v900 = vmul.f32 %v892, %v876
      %v901 = vmul.f32 %v893, %v877
      %v902 = vmul.f32 %v894, %v878
      %v903 = vmul.f32 %v895, %v879
      %v904 = vmul.f32 %v896, %v880
      %v905 = vmul.f32 %v897, %v881
      %v906 = vmul.f32 %v898, %v882
      %v907 = vadd.f32 %v899, 1.4214138
      %v908 = vadd.f32 %v900, 1.4214138
      %v909 = vadd.f32 %v901, 1.4214138
      %v910 = vadd.f32 %v902, 1.4214138
      %v911 = vadd.f32 %v903, 1.4214138
      %v912 = vadd.f32 %v904, 1.4214138
      %v913 = vadd.f32 %v905, 1.4214138
      %v914 = vadd.f32 %v906, 1.4214138
      %v915 = vmul.f32 %v907, %v875
      %v916 = vmul.f32 %v908, %v876
      %v917 = vmul.f32 %v909, %v877
      %v918 = vmul.f32 %v910, %v878
      %v919 = vmul.f32 %v911, %v879
      %v920 = vmul.f32 %v912, %v880
      %v921 = vmul.f32 %v913, %v881
      %v922 = vmul.f32 %v914, %v882
      %v923 = vsub.f32 %v915, 0.28449672
      %v924 = vsub.f32 %v916, 0.28449672
      %v925 = vsub.f32 %v917, 0.28449672
      %v926 = vsub.f32 %v918, 0.28449672
      %v927 = vsub.f32 %v919, 0.28449672
      %v928 = vsub.f32 %v920, 0.28449672
      %v929 = vsub.f32 %v921, 0.28449672
      %v930 = vsub.f32 %v922, 0.28449672
      %v931 = vmul.f32 %v923, %v875
      %v932 = vmul.f32 %v924, %v876
      %v933 = vmul.f32 %v925, %v877
      %v934 = vmul.f32 %v926, %v878
      %v935 = vmul.f32 %v927, %v879
      %v936 = vmul.f32 %v928, %v880
      %v937 = vmul.f32 %v929, %v881
      %v938 = vmul.f32 %v930, %v882
      %v939 = vadd.f32 %v931, 0.2548296
      %v940 = vadd.f32 %v932, 0.2548296
      %v941 = vadd.f32 %v933, 0.2548296
      %v942 = vadd.f32 %v934, 0.2548296
      %v943 = vadd.f32 %v935, 0.2548296
      %v944 = vadd.f32 %v936, 0.2548296
      %v945 = vadd.f32 %v937, 0.2548296
      %v946 = vadd.f32 %v938, 0.2548296
      %v947 = vmul.f32 %v939, %v875
      %v948 = vmul.f32 %v940, %v876
      %v949 = vmul.f32 %v941, %v877
      %v950 = vmul.f32 %v942, %v878
      %v951 = vmul.f32 %v943, %v879
      %v952 = vmul.f32 %v944, %v880
      %v953 = vmul.f32 %v945, %v881
      %v954 = vmul.f32 %v946, %v882
      %v955 = vsub.f32 0.0, %v827
      %v956 = vsub.f32 0.0, %v828
      %v957 = vsub.f32 0.0, %v829
      %v958 = vsub.f32 0.0, %v830
      %v959 = vsub.f32 0.0, %v831
      %v960 = vsub.f32 0.0, %v832
      %v961 = vsub.f32 0.0, %v833
      %v962 = vsub.f32 0.0, %v834
      %v963 = vmul.f32 %v955, %v827
      %v964 = vmul.f32 %v956, %v828
      %v965 = vmul.f32 %v957, %v829
      %v966 = vmul.f32 %v958, %v830
      %v967 = vmul.f32 %v959, %v831
      %v968 = vmul.f32 %v960, %v832
      %v969 = vmul.f32 %v961, %v833
      %v970 = vmul.f32 %v962, %v834
      %v971 = vmul.f32 %v963, 1.442695
      %v972 = vpow.pop %v971
      %v973 = vmul.f32 %v964, 1.442695
      %v974 = vpow.pop %v973
      %v975 = vmul.f32 %v965, 1.442695
      %v976 = vpow.pop %v975
      %v977 = vmul.f32 %v966, 1.442695
      %v978 = vpow.pop %v977
      %v979 = vmul.f32 %v967, 1.442695
      %v980 = vpow.pop %v979
      %v981 = vmul.f32 %v968, 1.442695
      %v982 = vpow.pop %v981
      %v983 = vmul.f32 %v969, 1.442695
      %v984 = vpow.pop %v983
      %v985 = vmul.f32 %v970, 1.442695
      %v986 = vpow.pop %v985
      %v987 = vmul.f32 %v947, %v972
      %v988 = vmul.f32 %v948, %v974
      %v989 = vmul.f32 %v949, %v976
      %v990 = vmul.f32 %v950, %v978
      %v991 = vmul.f32 %v951, %v980
      %v992 = vmul.f32 %v952, %v982
      %v993 = vmul.f32 %v953, %v984
      %v994 = vmul.f32 %v954, %v986
      %v995 = vsub.f32 1.0, %v987
      %v996 = vsub.f32 1.0, %v988
      %v997 = vsub.f32 1.0, %v989
      %v998 = vsub.f32 1.0, %v990
      %v999 = vsub.f32 1.0, %v991
      %v1000 = vsub.f32 1.0, %v992
      %v1001 = vsub.f32 1.0, %v993
      %v1002 = vsub.f32 1.0, %v994
      %v1003 = vmul.f32 %v819, %v995
      %v1004 = vmul.f32 %v820, %v996
      %v1005 = vmul.f32 %v821, %v997
      %v1006 = vmul.f32 %v822, %v998
      %v1007 = vmul.f32 %v823, %v999
      %v1008 = vmul.f32 %v824, %v1000
      %v1009 = vmul.f32 %v825, %v1001
      %v1010 = vmul.f32 %v826, %v1002
      %v1011 = vmul.f32 %v795, 0.5
      %v1012 = vmul.f32 %v796, 0.5
      %v1013 = vmul.f32 %v797, 0.5
      %v1014 = vmul.f32 %v798, 0.5
      %v1015 = vmul.f32 %v799, 0.5
      %v1016 = vmul.f32 %v800, 0.5
      %v1017 = vmul.f32 %v801, 0.5
      %v1018 = vmul.f32 %v802, 0.5
      %v1019 = vadd.f32 %v1003, 1.0
      %v1020 = vadd.f32 %v1004, 1.0
      %v1021 = vadd.f32 %v1005, 1.0
      %v1022 = vadd.f32 %v1006, 1.0
      %v1023 = vadd.f32 %v1007, 1.0
      %v1024 = vadd.f32 %v1008, 1.0
      %v1025 = vadd.f32 %v1009, 1.0
      %v1026 = vadd.f32 %v1010, 1.0
      %v1027 = vmul.f32 %v1011, %v1019
      %v1028 = vmul.f32 %v1012, %v1020
      %v1029 = vmul.f32 %v1013, %v1021
      %v1030 = vmul.f32 %v1014, %v1022
      %v1031 = vmul.f32 %v1015, %v1023
      %v1032 = vmul.f32 %v1016, %v1024
      %v1033 = vmul.f32 %v1017, %v1025
      %v1034 = vmul.f32 %v1018, %v1026
      %1035 = vrot.lane.b32.xlu0 %v1027, 66
      %v1036 = vpop.permute.xlu0 %1035
      %1037 = vrot.lane.b32.xlu0 %v1028, 66
      %v1038 = vpop.permute.xlu0 %1037
      %1039 = vrot.lane.b32.xlu0 %v1029, 66
      %v1040 = vpop.permute.xlu0 %1039
      %1041 = vrot.lane.b32.xlu0 %v1030, 66
      %v1042 = vpop.permute.xlu0 %1041
      %1043 = vrot.lane.b32.xlu0 %v1031, 66
      %v1044 = vpop.permute.xlu0 %1043
      %1045 = vrot.lane.b32.xlu0 %v1032, 66
      %v1046 = vpop.permute.xlu0 %1045
      %1047 = vrot.lane.b32.xlu0 %v1033, 66
      %v1048 = vpop.permute.xlu0 %1047
      %1049 = vrot.lane.b32.xlu0 %v1034, 66
      %v1050 = vpop.permute.xlu0 %1049
      %v1051 = vlaneseq
      %v1052 = vand.u32 %v1051, 127
      %vm1053 = vcmp.lt.s32.totalorder %v1052, 66
      %v1054 = vsel %vm1053, %v1048, %v1050
      %v1055 = vsel %vm1053, %v1046, %v1048
      %v1056 = vsel %vm1053, %v1044, %v1046
      %v1057 = vsel %vm1053, %v1042, %v1044
      %v1058 = vsel %vm1053, %v1040, %v1042
      %v1059 = vsel %vm1053, %v1038, %v1040
      %v1060 = vsel %vm1053, %v1036, %v1038
      %v1061 = vsel %vm1053, %v1050, %v1036
      %vm1062 = vcmp.ge.s32.totalorder %v368, 2
      %vm1063 = vcmp.ge.s32.totalorder %v369, 2
      %vm1064 = vmand %vm1062, %vm1063
      %v1065 = vsel %vm1064, 1, 0
      %v1066 = vlaneseq
      %v1067 = vshrl.u32 %v1066, 7
      %v1068 = vsub.s32 0, %v1067
      %v1069 = vrot.slane %v1065, %v1068
      %v1070 = vlaneseq
      %v1071 = vshrl.u32 %v1070, 7
      %v1072 = vsub.s32 1, %v1071
      %v1073 = vrot.slane %v1065, %v1072
      %v1074 = vlaneseq
      %v1075 = vshrl.u32 %v1074, 7
      %v1076 = vsub.s32 2, %v1075
      %v1077 = vrot.slane %v1065, %v1076
      %v1078 = vlaneseq
      %v1079 = vshrl.u32 %v1078, 7
      %v1080 = vsub.s32 3, %v1079
      %v1081 = vrot.slane %v1065, %v1080
      %v1082 = vlaneseq
      %v1083 = vshrl.u32 %v1082, 7
      %v1084 = vsub.s32 4, %v1083
      %v1085 = vrot.slane %v1065, %v1084
      %v1086 = vlaneseq
      %v1087 = vshrl.u32 %v1086, 7
      %v1088 = vsub.s32 5, %v1087
      %v1089 = vrot.slane %v1065, %v1088
      %v1090 = vlaneseq
      %v1091 = vshrl.u32 %v1090, 7
      %v1092 = vsub.s32 6, %v1091
      %v1093 = vrot.slane %v1065, %v1092
      %v1094 = vlaneseq
      %v1095 = vshrl.u32 %v1094, 7
      %v1096 = vsub.s32 7, %v1095
      %v1097 = vrot.slane %v1065, %v1096
      %vm1098 = vcmp.eq.s32.totalorder %v1069, 1
      %vm1099 = vcmp.eq.s32.totalorder %v1073, 1
      %vm1100 = vcmp.eq.s32.totalorder %v1077, 1
      %vm1101 = vcmp.eq.s32.totalorder %v1081, 1
      %vm1102 = vcmp.eq.s32.totalorder %v1085, 1
      %vm1103 = vcmp.eq.s32.totalorder %v1089, 1
      %vm1104 = vcmp.eq.s32.totalorder %v1093, 1
      %vm1105 = vcmp.eq.s32.totalorder %v1097, 1
      %v1106 = vsel %vm1098, %v1061, 0.0
      %v1107 = vsel %vm1099, %v1060, 0.0
      %v1108 = vsel %vm1100, %v1059, 0.0
      %v1109 = vsel %vm1101, %v1058, 0.0
      %v1110 = vsel %vm1102, %v1057, 0.0
      %v1111 = vsel %vm1103, %v1056, 0.0
      %v1112 = vsel %vm1104, %v1055, 0.0
      %v1113 = vsel %vm1105, %v1054, 0.0
      %1115 = vset.pattern.permute.xlu0 0
      %1116 = vperm.xlu0 %1115, %v370
      %v1117 = vpop.permute.xlu0 %1116
      %v1119 = vmul.f32 %v1117, %v1106
      %v1120 = vmul.f32 %v1117, %v1107
      %v1121 = vmul.f32 %v1117, %v1108
      %v1122 = vmul.f32 %v1117, %v1109
      %v1123 = vmul.f32 %v1117, %v1110
      %v1124 = vmul.f32 %v1117, %v1111
      %v1125 = vmul.f32 %v1117, %v1112
      %v1126 = vmul.f32 %v1117, %v1113
      %v1127 = vadd.f32 %v1119, 0.0
      %v1128 = vadd.f32 %v1120, 0.0
      %v1129 = vadd.f32 %v1121, 0.0
      %v1130 = vadd.f32 %v1122, 0.0
      %v1131 = vadd.f32 %v1123, 0.0
      %v1132 = vadd.f32 %v1124, 0.0
      %v1133 = vadd.f32 %v1125, 0.0
      %v1134 = vadd.f32 %v1126, 0.0
      %1135 = vrot.lane.b32.xlu0 %v1027, 65
      %v1136 = vpop.permute.xlu0 %1135
      %1137 = vrot.lane.b32.xlu0 %v1028, 65
      %v1138 = vpop.permute.xlu0 %1137
      %1139 = vrot.lane.b32.xlu0 %v1029, 65
      %v1140 = vpop.permute.xlu0 %1139
      %1141 = vrot.lane.b32.xlu0 %v1030, 65
      %v1142 = vpop.permute.xlu0 %1141
      %1143 = vrot.lane.b32.xlu0 %v1031, 65
      %v1144 = vpop.permute.xlu0 %1143
      %1145 = vrot.lane.b32.xlu0 %v1032, 65
      %v1146 = vpop.permute.xlu0 %1145
      %1147 = vrot.lane.b32.xlu0 %v1033, 65
      %v1148 = vpop.permute.xlu0 %1147
      %1149 = vrot.lane.b32.xlu0 %v1034, 65
      %v1150 = vpop.permute.xlu0 %1149
      %vm1151 = vcmp.lt.s32.totalorder %v1052, 65
      %v1152 = vsel %vm1151, %v1148, %v1150
      %v1153 = vsel %vm1151, %v1146, %v1148
      %v1154 = vsel %vm1151, %v1144, %v1146
      %v1155 = vsel %vm1151, %v1142, %v1144
      %v1156 = vsel %vm1151, %v1140, %v1142
      %v1157 = vsel %vm1151, %v1138, %v1140
      %v1158 = vsel %vm1151, %v1136, %v1138
      %v1159 = vsel %vm1151, %v1150, %v1136
      %vm1160 = vcmp.ge.s32.totalorder %v369, 1
      %vm1161 = vmand %vm1062, %vm1160
      %v1162 = vsel %vm1161, 1, 0
      %v1163 = vlaneseq
      %v1164 = vshrl.u32 %v1163, 7
      %v1165 = vsub.s32 0, %v1164
      %v1166 = vrot.slane %v1162, %v1165
      %v1167 = vlaneseq
      %v1168 = vshrl.u32 %v1167, 7
      %v1169 = vsub.s32 1, %v1168
      %v1170 = vrot.slane %v1162, %v1169
      %v1171 = vlaneseq
      %v1172 = vshrl.u32 %v1171, 7
      %v1173 = vsub.s32 2, %v1172
      %v1174 = vrot.slane %v1162, %v1173
      %v1175 = vlaneseq
      %v1176 = vshrl.u32 %v1175, 7
      %v1177 = vsub.s32 3, %v1176
      %v1178 = vrot.slane %v1162, %v1177
      %v1179 = vlaneseq
      %v1180 = vshrl.u32 %v1179, 7
      %v1181 = vsub.s32 4, %v1180
      %v1182 = vrot.slane %v1162, %v1181
      %v1183 = vlaneseq
      %v1184 = vshrl.u32 %v1183, 7
      %v1185 = vsub.s32 5, %v1184
      %v1186 = vrot.slane %v1162, %v1185
      %v1187 = vlaneseq
      %v1188 = vshrl.u32 %v1187, 7
      %v1189 = vsub.s32 6, %v1188
      %v1190 = vrot.slane %v1162, %v1189
      %v1191 = vlaneseq
      %v1192 = vshrl.u32 %v1191, 7
      %v1193 = vsub.s32 7, %v1192
      %v1194 = vrot.slane %v1162, %v1193
      %vm1195 = vcmp.eq.s32.totalorder %v1166, 1
      %vm1196 = vcmp.eq.s32.totalorder %v1170, 1
      %vm1197 = vcmp.eq.s32.totalorder %v1174, 1
      %vm1198 = vcmp.eq.s32.totalorder %v1178, 1
      %vm1199 = vcmp.eq.s32.totalorder %v1182, 1
      %vm1200 = vcmp.eq.s32.totalorder %v1186, 1
      %vm1201 = vcmp.eq.s32.totalorder %v1190, 1
      %vm1202 = vcmp.eq.s32.totalorder %v1194, 1
      %v1203 = vsel %vm1195, %v1159, 0.0
      %v1204 = vsel %vm1196, %v1158, 0.0
      %v1205 = vsel %vm1197, %v1157, 0.0
      %v1206 = vsel %vm1198, %v1156, 0.0
      %v1207 = vsel %vm1199, %v1155, 0.0
      %v1208 = vsel %vm1200, %v1154, 0.0
      %v1209 = vsel %vm1201, %v1153, 0.0
      %v1210 = vsel %vm1202, %v1152, 0.0
      %1211 = vset.pattern.permute.xlu0 1
      %1212 = vperm.xlu0 %1211, %v370
      %v1213 = vpop.permute.xlu0 %1212
      %v1215 = vmul.f32 %v1213, %v1203
      %v1216 = vmul.f32 %v1213, %v1204
      %v1217 = vmul.f32 %v1213, %v1205
      %v1218 = vmul.f32 %v1213, %v1206
      %v1219 = vmul.f32 %v1213, %v1207
      %v1220 = vmul.f32 %v1213, %v1208
      %v1221 = vmul.f32 %v1213, %v1209
      %v1222 = vmul.f32 %v1213, %v1210
      %v1223 = vadd.f32 %v1127, %v1215
      %v1224 = vadd.f32 %v1128, %v1216
      %v1225 = vadd.f32 %v1129, %v1217
      %v1226 = vadd.f32 %v1130, %v1218
      %v1227 = vadd.f32 %v1131, %v1219
      %v1228 = vadd.f32 %v1132, %v1220
      %v1229 = vadd.f32 %v1133, %v1221
      %v1230 = vadd.f32 %v1134, %v1222
      %1231 = vrot.lane.b32.xlu0 %v1027, 64
      %v1232 = vpop.permute.xlu0 %1231
      %1233 = vrot.lane.b32.xlu0 %v1028, 64
      %v1234 = vpop.permute.xlu0 %1233
      %1235 = vrot.lane.b32.xlu0 %v1029, 64
      %v1236 = vpop.permute.xlu0 %1235
      %1237 = vrot.lane.b32.xlu0 %v1030, 64
      %v1238 = vpop.permute.xlu0 %1237
      %1239 = vrot.lane.b32.xlu0 %v1031, 64
      %v1240 = vpop.permute.xlu0 %1239
      %1241 = vrot.lane.b32.xlu0 %v1032, 64
      %v1242 = vpop.permute.xlu0 %1241
      %1243 = vrot.lane.b32.xlu0 %v1033, 64
      %v1244 = vpop.permute.xlu0 %1243
      %1245 = vrot.lane.b32.xlu0 %v1034, 64
      %v1246 = vpop.permute.xlu0 %1245
      %vm1247 = vcmp.lt.s32.totalorder %v1052, 64
      %v1248 = vsel %vm1247, %v1244, %v1246
      %v1249 = vsel %vm1247, %v1242, %v1244
      %v1250 = vsel %vm1247, %v1240, %v1242
      %v1251 = vsel %vm1247, %v1238, %v1240
      %v1252 = vsel %vm1247, %v1236, %v1238
      %v1253 = vsel %vm1247, %v1234, %v1236
      %v1254 = vsel %vm1247, %v1232, %v1234
      %v1255 = vsel %vm1247, %v1246, %v1232
      %v1256 = vsel %vm1062, 1, 0
      %v1257 = vlaneseq
      %v1258 = vshrl.u32 %v1257, 7
      %v1259 = vsub.s32 0, %v1258
      %v1260 = vrot.slane %v1256, %v1259
      %v1261 = vlaneseq
      %v1262 = vshrl.u32 %v1261, 7
      %v1263 = vsub.s32 1, %v1262
      %v1264 = vrot.slane %v1256, %v1263
      %v1265 = vlaneseq
      %v1266 = vshrl.u32 %v1265, 7
      %v1267 = vsub.s32 2, %v1266
      %v1268 = vrot.slane %v1256, %v1267
      %v1269 = vlaneseq
      %v1270 = vshrl.u32 %v1269, 7
      %v1271 = vsub.s32 3, %v1270
      %v1272 = vrot.slane %v1256, %v1271
      %v1273 = vlaneseq
      %v1274 = vshrl.u32 %v1273, 7
      %v1275 = vsub.s32 4, %v1274
      %v1276 = vrot.slane %v1256, %v1275
      %v1277 = vlaneseq
      %v1278 = vshrl.u32 %v1277, 7
      %v1279 = vsub.s32 5, %v1278
      %v1280 = vrot.slane %v1256, %v1279
      %v1281 = vlaneseq
      %v1282 = vshrl.u32 %v1281, 7
      %v1283 = vsub.s32 6, %v1282
      %v1284 = vrot.slane %v1256, %v1283
      %v1285 = vlaneseq
      %v1286 = vshrl.u32 %v1285, 7
      %v1287 = vsub.s32 7, %v1286
      %v1288 = vrot.slane %v1256, %v1287
      %vm1289 = vcmp.eq.s32.totalorder %v1260, 1
      %vm1290 = vcmp.eq.s32.totalorder %v1264, 1
      %vm1291 = vcmp.eq.s32.totalorder %v1268, 1
      %vm1292 = vcmp.eq.s32.totalorder %v1272, 1
      %vm1293 = vcmp.eq.s32.totalorder %v1276, 1
      %vm1294 = vcmp.eq.s32.totalorder %v1280, 1
      %vm1295 = vcmp.eq.s32.totalorder %v1284, 1
      %vm1296 = vcmp.eq.s32.totalorder %v1288, 1
      %v1297 = vsel %vm1289, %v1255, 0.0
      %v1298 = vsel %vm1290, %v1254, 0.0
      %v1299 = vsel %vm1291, %v1253, 0.0
      %v1300 = vsel %vm1292, %v1252, 0.0
      %v1301 = vsel %vm1293, %v1251, 0.0
      %v1302 = vsel %vm1294, %v1250, 0.0
      %v1303 = vsel %vm1295, %v1249, 0.0
      %v1304 = vsel %vm1296, %v1248, 0.0
      %1305 = vset.pattern.permute.xlu0 2
      %1306 = vperm.xlu0 %1305, %v370
      %v1307 = vpop.permute.xlu0 %1306
      %v1309 = vmul.f32 %v1307, %v1297
      %v1310 = vmul.f32 %v1307, %v1298
      %v1311 = vmul.f32 %v1307, %v1299
      %v1312 = vmul.f32 %v1307, %v1300
      %v1313 = vmul.f32 %v1307, %v1301
      %v1314 = vmul.f32 %v1307, %v1302
      %v1315 = vmul.f32 %v1307, %v1303
      %v1316 = vmul.f32 %v1307, %v1304
      %v1317 = vadd.f32 %v1223, %v1309
      %v1318 = vadd.f32 %v1224, %v1310
      %v1319 = vadd.f32 %v1225, %v1311
      %v1320 = vadd.f32 %v1226, %v1312
      %v1321 = vadd.f32 %v1227, %v1313
      %v1322 = vadd.f32 %v1228, %v1314
      %v1323 = vadd.f32 %v1229, %v1315
      %v1324 = vadd.f32 %v1230, %v1316
      %1325 = vrot.lane.b32.xlu0 %v1027, 63
      %v1326 = vpop.permute.xlu0 %1325
      %1327 = vrot.lane.b32.xlu0 %v1028, 63
      %v1328 = vpop.permute.xlu0 %1327
      %1329 = vrot.lane.b32.xlu0 %v1029, 63
      %v1330 = vpop.permute.xlu0 %1329
      %1331 = vrot.lane.b32.xlu0 %v1030, 63
      %v1332 = vpop.permute.xlu0 %1331
      %1333 = vrot.lane.b32.xlu0 %v1031, 63
      %v1334 = vpop.permute.xlu0 %1333
      %1335 = vrot.lane.b32.xlu0 %v1032, 63
      %v1336 = vpop.permute.xlu0 %1335
      %1337 = vrot.lane.b32.xlu0 %v1033, 63
      %v1338 = vpop.permute.xlu0 %1337
      %1339 = vrot.lane.b32.xlu0 %v1034, 63
      %v1340 = vpop.permute.xlu0 %1339
      %vm1341 = vcmp.lt.s32.totalorder %v1052, 63
      %v1342 = vsel %vm1341, %v1338, %v1340
      %v1343 = vsel %vm1341, %v1336, %v1338
      %v1344 = vsel %vm1341, %v1334, %v1336
      %v1345 = vsel %vm1341, %v1332, %v1334
      %v1346 = vsel %vm1341, %v1330, %v1332
      %v1347 = vsel %vm1341, %v1328, %v1330
      %v1348 = vsel %vm1341, %v1326, %v1328
      %v1349 = vsel %vm1341, %v1340, %v1326
      %vm1350 = vcmp.lt.s32.totalorder %v369, 31
      %vm1351 = vmand %vm1062, %vm1350
      %v1352 = vsel %vm1351, 1, 0
      %v1353 = vlaneseq
      %v1354 = vshrl.u32 %v1353, 7
      %v1355 = vsub.s32 0, %v1354
      %v1356 = vrot.slane %v1352, %v1355
      %v1357 = vlaneseq
      %v1358 = vshrl.u32 %v1357, 7
      %v1359 = vsub.s32 1, %v1358
      %v1360 = vrot.slane %v1352, %v1359
      %v1361 = vlaneseq
      %v1362 = vshrl.u32 %v1361, 7
      %v1363 = vsub.s32 2, %v1362
      %v1364 = vrot.slane %v1352, %v1363
      %v1365 = vlaneseq
      %v1366 = vshrl.u32 %v1365, 7
      %v1367 = vsub.s32 3, %v1366
      %v1368 = vrot.slane %v1352, %v1367
      %v1369 = vlaneseq
      %v1370 = vshrl.u32 %v1369, 7
      %v1371 = vsub.s32 4, %v1370
      %v1372 = vrot.slane %v1352, %v1371
      %v1373 = vlaneseq
      %v1374 = vshrl.u32 %v1373, 7
      %v1375 = vsub.s32 5, %v1374
      %v1376 = vrot.slane %v1352, %v1375
      %v1377 = vlaneseq
      %v1378 = vshrl.u32 %v1377, 7
      %v1379 = vsub.s32 6, %v1378
      %v1380 = vrot.slane %v1352, %v1379
      %v1381 = vlaneseq
      %v1382 = vshrl.u32 %v1381, 7
      %v1383 = vsub.s32 7, %v1382
      %v1384 = vrot.slane %v1352, %v1383
      %vm1385 = vcmp.eq.s32.totalorder %v1356, 1
      %vm1386 = vcmp.eq.s32.totalorder %v1360, 1
      %vm1387 = vcmp.eq.s32.totalorder %v1364, 1
      %vm1388 = vcmp.eq.s32.totalorder %v1368, 1
      %vm1389 = vcmp.eq.s32.totalorder %v1372, 1
      %vm1390 = vcmp.eq.s32.totalorder %v1376, 1
      %vm1391 = vcmp.eq.s32.totalorder %v1380, 1
      %vm1392 = vcmp.eq.s32.totalorder %v1384, 1
      %v1393 = vsel %vm1385, %v1349, 0.0
      %v1394 = vsel %vm1386, %v1348, 0.0
      %v1395 = vsel %vm1387, %v1347, 0.0
      %v1396 = vsel %vm1388, %v1346, 0.0
      %v1397 = vsel %vm1389, %v1345, 0.0
      %v1398 = vsel %vm1390, %v1344, 0.0
      %v1399 = vsel %vm1391, %v1343, 0.0
      %v1400 = vsel %vm1392, %v1342, 0.0
      %1401 = vset.pattern.permute.xlu0 3
      %1402 = vperm.xlu0 %1401, %v370
      %v1403 = vpop.permute.xlu0 %1402
      %v1405 = vmul.f32 %v1403, %v1393
      %v1406 = vmul.f32 %v1403, %v1394
      %v1407 = vmul.f32 %v1403, %v1395
      %v1408 = vmul.f32 %v1403, %v1396
      %v1409 = vmul.f32 %v1403, %v1397
      %v1410 = vmul.f32 %v1403, %v1398
      %v1411 = vmul.f32 %v1403, %v1399
      %v1412 = vmul.f32 %v1403, %v1400
      %v1413 = vadd.f32 %v1317, %v1405
      %v1414 = vadd.f32 %v1318, %v1406
      %v1415 = vadd.f32 %v1319, %v1407
      %v1416 = vadd.f32 %v1320, %v1408
      %v1417 = vadd.f32 %v1321, %v1409
      %v1418 = vadd.f32 %v1322, %v1410
      %v1419 = vadd.f32 %v1323, %v1411
      %v1420 = vadd.f32 %v1324, %v1412
      %1421 = vrot.lane.b32.xlu0 %v1027, 62
      %v1422 = vpop.permute.xlu0 %1421
      %1423 = vrot.lane.b32.xlu0 %v1028, 62
      %v1424 = vpop.permute.xlu0 %1423
      %1425 = vrot.lane.b32.xlu0 %v1029, 62
      %v1426 = vpop.permute.xlu0 %1425
      %1427 = vrot.lane.b32.xlu0 %v1030, 62
      %v1428 = vpop.permute.xlu0 %1427
      %1429 = vrot.lane.b32.xlu0 %v1031, 62
      %v1430 = vpop.permute.xlu0 %1429
      %1431 = vrot.lane.b32.xlu0 %v1032, 62
      %v1432 = vpop.permute.xlu0 %1431
      %1433 = vrot.lane.b32.xlu0 %v1033, 62
      %v1434 = vpop.permute.xlu0 %1433
      %1435 = vrot.lane.b32.xlu0 %v1034, 62
      %v1436 = vpop.permute.xlu0 %1435
      %vm1437 = vcmp.lt.s32.totalorder %v1052, 62
      %v1438 = vsel %vm1437, %v1434, %v1436
      %v1439 = vsel %vm1437, %v1432, %v1434
      %v1440 = vsel %vm1437, %v1430, %v1432
      %v1441 = vsel %vm1437, %v1428, %v1430
      %v1442 = vsel %vm1437, %v1426, %v1428
      %v1443 = vsel %vm1437, %v1424, %v1426
      %v1444 = vsel %vm1437, %v1422, %v1424
      %v1445 = vsel %vm1437, %v1436, %v1422
      %vm1446 = vcmp.lt.s32.totalorder %v369, 30
      %vm1447 = vmand %vm1062, %vm1446
      %v1448 = vsel %vm1447, 1, 0
      %v1449 = vlaneseq
      %v1450 = vshrl.u32 %v1449, 7
      %v1451 = vsub.s32 0, %v1450
      %v1452 = vrot.slane %v1448, %v1451
      %v1453 = vlaneseq
      %v1454 = vshrl.u32 %v1453, 7
      %v1455 = vsub.s32 1, %v1454
      %v1456 = vrot.slane %v1448, %v1455
      %v1457 = vlaneseq
      %v1458 = vshrl.u32 %v1457, 7
      %v1459 = vsub.s32 2, %v1458
      %v1460 = vrot.slane %v1448, %v1459
      %v1461 = vlaneseq
      %v1462 = vshrl.u32 %v1461, 7
      %v1463 = vsub.s32 3, %v1462
      %v1464 = vrot.slane %v1448, %v1463
      %v1465 = vlaneseq
      %v1466 = vshrl.u32 %v1465, 7
      %v1467 = vsub.s32 4, %v1466
      %v1468 = vrot.slane %v1448, %v1467
      %v1469 = vlaneseq
      %v1470 = vshrl.u32 %v1469, 7
      %v1471 = vsub.s32 5, %v1470
      %v1472 = vrot.slane %v1448, %v1471
      %v1473 = vlaneseq
      %v1474 = vshrl.u32 %v1473, 7
      %v1475 = vsub.s32 6, %v1474
      %v1476 = vrot.slane %v1448, %v1475
      %v1477 = vlaneseq
      %v1478 = vshrl.u32 %v1477, 7
      %v1479 = vsub.s32 7, %v1478
      %v1480 = vrot.slane %v1448, %v1479
      %vm1481 = vcmp.eq.s32.totalorder %v1452, 1
      %vm1482 = vcmp.eq.s32.totalorder %v1456, 1
      %vm1483 = vcmp.eq.s32.totalorder %v1460, 1
      %vm1484 = vcmp.eq.s32.totalorder %v1464, 1
      %vm1485 = vcmp.eq.s32.totalorder %v1468, 1
      %vm1486 = vcmp.eq.s32.totalorder %v1472, 1
      %vm1487 = vcmp.eq.s32.totalorder %v1476, 1
      %vm1488 = vcmp.eq.s32.totalorder %v1480, 1
      %v1489 = vsel %vm1481, %v1445, 0.0
      %v1490 = vsel %vm1482, %v1444, 0.0
      %v1491 = vsel %vm1483, %v1443, 0.0
      %v1492 = vsel %vm1484, %v1442, 0.0
      %v1493 = vsel %vm1485, %v1441, 0.0
      %v1494 = vsel %vm1486, %v1440, 0.0
      %v1495 = vsel %vm1487, %v1439, 0.0
      %v1496 = vsel %vm1488, %v1438, 0.0
      %1497 = vset.pattern.permute.xlu0 4
      %1498 = vperm.xlu0 %1497, %v370
      %v1499 = vpop.permute.xlu0 %1498
      %v1501 = vmul.f32 %v1499, %v1489
      %v1502 = vmul.f32 %v1499, %v1490
      %v1503 = vmul.f32 %v1499, %v1491
      %v1504 = vmul.f32 %v1499, %v1492
      %v1505 = vmul.f32 %v1499, %v1493
      %v1506 = vmul.f32 %v1499, %v1494
      %v1507 = vmul.f32 %v1499, %v1495
      %v1508 = vmul.f32 %v1499, %v1496
      %v1509 = vadd.f32 %v1413, %v1501
      %v1510 = vadd.f32 %v1414, %v1502
      %v1511 = vadd.f32 %v1415, %v1503
      %v1512 = vadd.f32 %v1416, %v1504
      %v1513 = vadd.f32 %v1417, %v1505
      %v1514 = vadd.f32 %v1418, %v1506
      %v1515 = vadd.f32 %v1419, %v1507
      %v1516 = vadd.f32 %v1420, %v1508
      %1517 = vrot.lane.b32.xlu0 %v1027, 34
      %v1518 = vpop.permute.xlu0 %1517
      %1519 = vrot.lane.b32.xlu0 %v1028, 34
      %v1520 = vpop.permute.xlu0 %1519
      %1521 = vrot.lane.b32.xlu0 %v1029, 34
      %v1522 = vpop.permute.xlu0 %1521
      %1523 = vrot.lane.b32.xlu0 %v1030, 34
      %v1524 = vpop.permute.xlu0 %1523
      %1525 = vrot.lane.b32.xlu0 %v1031, 34
      %v1526 = vpop.permute.xlu0 %1525
      %1527 = vrot.lane.b32.xlu0 %v1032, 34
      %v1528 = vpop.permute.xlu0 %1527
      %1529 = vrot.lane.b32.xlu0 %v1033, 34
      %v1530 = vpop.permute.xlu0 %1529
      %1531 = vrot.lane.b32.xlu0 %v1034, 34
      %v1532 = vpop.permute.xlu0 %1531
      %vm1533 = vcmp.lt.s32.totalorder %v1052, 34
      %v1534 = vsel %vm1533, %v1530, %v1532
      %v1535 = vsel %vm1533, %v1528, %v1530
      %v1536 = vsel %vm1533, %v1526, %v1528
      %v1537 = vsel %vm1533, %v1524, %v1526
      %v1538 = vsel %vm1533, %v1522, %v1524
      %v1539 = vsel %vm1533, %v1520, %v1522
      %v1540 = vsel %vm1533, %v1518, %v1520
      %v1541 = vsel %vm1533, %v1532, %v1518
      %vm1542 = vcmp.ge.s32.totalorder %v368, 1
      %vm1543 = vmand %vm1542, %vm1063
      %v1544 = vsel %vm1543, 1, 0
      %v1545 = vlaneseq
      %v1546 = vshrl.u32 %v1545, 7
      %v1547 = vsub.s32 0, %v1546
      %v1548 = vrot.slane %v1544, %v1547
      %v1549 = vlaneseq
      %v1550 = vshrl.u32 %v1549, 7
      %v1551 = vsub.s32 1, %v1550
      %v1552 = vrot.slane %v1544, %v1551
      %v1553 = vlaneseq
      %v1554 = vshrl.u32 %v1553, 7
      %v1555 = vsub.s32 2, %v1554
      %v1556 = vrot.slane %v1544, %v1555
      %v1557 = vlaneseq
      %v1558 = vshrl.u32 %v1557, 7
      %v1559 = vsub.s32 3, %v1558
      %v1560 = vrot.slane %v1544, %v1559
      %v1561 = vlaneseq
      %v1562 = vshrl.u32 %v1561, 7
      %v1563 = vsub.s32 4, %v1562
      %v1564 = vrot.slane %v1544, %v1563
      %v1565 = vlaneseq
      %v1566 = vshrl.u32 %v1565, 7
      %v1567 = vsub.s32 5, %v1566
      %v1568 = vrot.slane %v1544, %v1567
      %v1569 = vlaneseq
      %v1570 = vshrl.u32 %v1569, 7
      %v1571 = vsub.s32 6, %v1570
      %v1572 = vrot.slane %v1544, %v1571
      %v1573 = vlaneseq
      %v1574 = vshrl.u32 %v1573, 7
      %v1575 = vsub.s32 7, %v1574
      %v1576 = vrot.slane %v1544, %v1575
      %vm1577 = vcmp.eq.s32.totalorder %v1548, 1
      %vm1578 = vcmp.eq.s32.totalorder %v1552, 1
      %vm1579 = vcmp.eq.s32.totalorder %v1556, 1
      %vm1580 = vcmp.eq.s32.totalorder %v1560, 1
      %vm1581 = vcmp.eq.s32.totalorder %v1564, 1
      %vm1582 = vcmp.eq.s32.totalorder %v1568, 1
      %vm1583 = vcmp.eq.s32.totalorder %v1572, 1
      %vm1584 = vcmp.eq.s32.totalorder %v1576, 1
      %v1585 = vsel %vm1577, %v1541, 0.0
      %v1586 = vsel %vm1578, %v1540, 0.0
      %v1587 = vsel %vm1579, %v1539, 0.0
      %v1588 = vsel %vm1580, %v1538, 0.0
      %v1589 = vsel %vm1581, %v1537, 0.0
      %v1590 = vsel %vm1582, %v1536, 0.0
      %v1591 = vsel %vm1583, %v1535, 0.0
      %v1592 = vsel %vm1584, %v1534, 0.0
      %1593 = vset.pattern.permute.xlu0 5
      %1594 = vperm.xlu0 %1593, %v370
      %v1595 = vpop.permute.xlu0 %1594
      %v1597 = vmul.f32 %v1595, %v1585
      %v1598 = vmul.f32 %v1595, %v1586
      %v1599 = vmul.f32 %v1595, %v1587
      %v1600 = vmul.f32 %v1595, %v1588
      %v1601 = vmul.f32 %v1595, %v1589
      %v1602 = vmul.f32 %v1595, %v1590
      %v1603 = vmul.f32 %v1595, %v1591
      %v1604 = vmul.f32 %v1595, %v1592
      %v1605 = vadd.f32 %v1509, %v1597
      %v1606 = vadd.f32 %v1510, %v1598
      %v1607 = vadd.f32 %v1511, %v1599
      %v1608 = vadd.f32 %v1512, %v1600
      %v1609 = vadd.f32 %v1513, %v1601
      %v1610 = vadd.f32 %v1514, %v1602
      %v1611 = vadd.f32 %v1515, %v1603
      %v1612 = vadd.f32 %v1516, %v1604
      %1613 = vrot.lane.b32.xlu0 %v1027, 33
      %v1614 = vpop.permute.xlu0 %1613
      %1615 = vrot.lane.b32.xlu0 %v1028, 33
      %v1616 = vpop.permute.xlu0 %1615
      %1617 = vrot.lane.b32.xlu0 %v1029, 33
      %v1618 = vpop.permute.xlu0 %1617
      %1619 = vrot.lane.b32.xlu0 %v1030, 33
      %v1620 = vpop.permute.xlu0 %1619
      %1621 = vrot.lane.b32.xlu0 %v1031, 33
      %v1622 = vpop.permute.xlu0 %1621
      %1623 = vrot.lane.b32.xlu0 %v1032, 33
      %v1624 = vpop.permute.xlu0 %1623
      %1625 = vrot.lane.b32.xlu0 %v1033, 33
      %v1626 = vpop.permute.xlu0 %1625
      %1627 = vrot.lane.b32.xlu0 %v1034, 33
      %v1628 = vpop.permute.xlu0 %1627
      %vm1629 = vcmp.lt.s32.totalorder %v1052, 33
      %v1630 = vsel %vm1629, %v1626, %v1628
      %v1631 = vsel %vm1629, %v1624, %v1626
      %v1632 = vsel %vm1629, %v1622, %v1624
      %v1633 = vsel %vm1629, %v1620, %v1622
      %v1634 = vsel %vm1629, %v1618, %v1620
      %v1635 = vsel %vm1629, %v1616, %v1618
      %v1636 = vsel %vm1629, %v1614, %v1616
      %v1637 = vsel %vm1629, %v1628, %v1614
      %vm1638 = vmand %vm1542, %vm1160
      %v1639 = vsel %vm1638, 1, 0
      %v1640 = vlaneseq
      %v1641 = vshrl.u32 %v1640, 7
      %v1642 = vsub.s32 0, %v1641
      %v1643 = vrot.slane %v1639, %v1642
      %v1644 = vlaneseq
      %v1645 = vshrl.u32 %v1644, 7
      %v1646 = vsub.s32 1, %v1645
      %v1647 = vrot.slane %v1639, %v1646
      %v1648 = vlaneseq
      %v1649 = vshrl.u32 %v1648, 7
      %v1650 = vsub.s32 2, %v1649
      %v1651 = vrot.slane %v1639, %v1650
      %v1652 = vlaneseq
      %v1653 = vshrl.u32 %v1652, 7
      %v1654 = vsub.s32 3, %v1653
      %v1655 = vrot.slane %v1639, %v1654
      %v1656 = vlaneseq
      %v1657 = vshrl.u32 %v1656, 7
      %v1658 = vsub.s32 4, %v1657
      %v1659 = vrot.slane %v1639, %v1658
      %v1660 = vlaneseq
      %v1661 = vshrl.u32 %v1660, 7
      %v1662 = vsub.s32 5, %v1661
      %v1663 = vrot.slane %v1639, %v1662
      %v1664 = vlaneseq
      %v1665 = vshrl.u32 %v1664, 7
      %v1666 = vsub.s32 6, %v1665
      %v1667 = vrot.slane %v1639, %v1666
      %v1668 = vlaneseq
      %v1669 = vshrl.u32 %v1668, 7
      %v1670 = vsub.s32 7, %v1669
      %v1671 = vrot.slane %v1639, %v1670
      %vm1672 = vcmp.eq.s32.totalorder %v1643, 1
      %vm1673 = vcmp.eq.s32.totalorder %v1647, 1
      %vm1674 = vcmp.eq.s32.totalorder %v1651, 1
      %vm1675 = vcmp.eq.s32.totalorder %v1655, 1
      %vm1676 = vcmp.eq.s32.totalorder %v1659, 1
      %vm1677 = vcmp.eq.s32.totalorder %v1663, 1
      %vm1678 = vcmp.eq.s32.totalorder %v1667, 1
      %vm1679 = vcmp.eq.s32.totalorder %v1671, 1
      %v1680 = vsel %vm1672, %v1637, 0.0
      %v1681 = vsel %vm1673, %v1636, 0.0
      %v1682 = vsel %vm1674, %v1635, 0.0
      %v1683 = vsel %vm1675, %v1634, 0.0
      %v1684 = vsel %vm1676, %v1633, 0.0
      %v1685 = vsel %vm1677, %v1632, 0.0
      %v1686 = vsel %vm1678, %v1631, 0.0
      %v1687 = vsel %vm1679, %v1630, 0.0
      %1688 = vset.pattern.permute.xlu0 6
      %1689 = vperm.xlu0 %1688, %v370
      %v1690 = vpop.permute.xlu0 %1689
      %v1692 = vmul.f32 %v1690, %v1680
      %v1693 = vmul.f32 %v1690, %v1681
      %v1694 = vmul.f32 %v1690, %v1682
      %v1695 = vmul.f32 %v1690, %v1683
      %v1696 = vmul.f32 %v1690, %v1684
      %v1697 = vmul.f32 %v1690, %v1685
      %v1698 = vmul.f32 %v1690, %v1686
      %v1699 = vmul.f32 %v1690, %v1687
      %v1700 = vadd.f32 %v1605, %v1692
      %v1701 = vadd.f32 %v1606, %v1693
      %v1702 = vadd.f32 %v1607, %v1694
      %v1703 = vadd.f32 %v1608, %v1695
      %v1704 = vadd.f32 %v1609, %v1696
      %v1705 = vadd.f32 %v1610, %v1697
      %v1706 = vadd.f32 %v1611, %v1698
      %v1707 = vadd.f32 %v1612, %v1699
      %1708 = vrot.lane.b32.xlu0 %v1027, 32
      %v1709 = vpop.permute.xlu0 %1708
      %1710 = vrot.lane.b32.xlu0 %v1028, 32
      %v1711 = vpop.permute.xlu0 %1710
      %1712 = vrot.lane.b32.xlu0 %v1029, 32
      %v1713 = vpop.permute.xlu0 %1712
      %1714 = vrot.lane.b32.xlu0 %v1030, 32
      %v1715 = vpop.permute.xlu0 %1714
      %1716 = vrot.lane.b32.xlu0 %v1031, 32
      %v1717 = vpop.permute.xlu0 %1716
      %1718 = vrot.lane.b32.xlu0 %v1032, 32
      %v1719 = vpop.permute.xlu0 %1718
      %1720 = vrot.lane.b32.xlu0 %v1033, 32
      %v1721 = vpop.permute.xlu0 %1720
      %1722 = vrot.lane.b32.xlu0 %v1034, 32
      %v1723 = vpop.permute.xlu0 %1722
      %vm1724 = vcmp.lt.s32.totalorder %v1052, 32
      %v1725 = vsel %vm1724, %v1721, %v1723
      %v1726 = vsel %vm1724, %v1719, %v1721
      %v1727 = vsel %vm1724, %v1717, %v1719
      %v1728 = vsel %vm1724, %v1715, %v1717
      %v1729 = vsel %vm1724, %v1713, %v1715
      %v1730 = vsel %vm1724, %v1711, %v1713
      %v1731 = vsel %vm1724, %v1709, %v1711
      %v1732 = vsel %vm1724, %v1723, %v1709
      %v1733 = vsel %vm1542, 1, 0
      %v1734 = vlaneseq
      %v1735 = vshrl.u32 %v1734, 7
      %v1736 = vsub.s32 0, %v1735
      %v1737 = vrot.slane %v1733, %v1736
      %v1738 = vlaneseq
      %v1739 = vshrl.u32 %v1738, 7
      %v1740 = vsub.s32 1, %v1739
      %v1741 = vrot.slane %v1733, %v1740
      %v1742 = vlaneseq
      %v1743 = vshrl.u32 %v1742, 7
      %v1744 = vsub.s32 2, %v1743
      %v1745 = vrot.slane %v1733, %v1744
      %v1746 = vlaneseq
      %v1747 = vshrl.u32 %v1746, 7
      %v1748 = vsub.s32 3, %v1747
      %v1749 = vrot.slane %v1733, %v1748
      %v1750 = vlaneseq
      %v1751 = vshrl.u32 %v1750, 7
      %v1752 = vsub.s32 4, %v1751
      %v1753 = vrot.slane %v1733, %v1752
      %v1754 = vlaneseq
      %v1755 = vshrl.u32 %v1754, 7
      %v1756 = vsub.s32 5, %v1755
      %v1757 = vrot.slane %v1733, %v1756
      %v1758 = vlaneseq
      %v1759 = vshrl.u32 %v1758, 7
      %v1760 = vsub.s32 6, %v1759
      %v1761 = vrot.slane %v1733, %v1760
      %v1762 = vlaneseq
      %v1763 = vshrl.u32 %v1762, 7
      %v1764 = vsub.s32 7, %v1763
      %v1765 = vrot.slane %v1733, %v1764
      %vm1766 = vcmp.eq.s32.totalorder %v1737, 1
      %vm1767 = vcmp.eq.s32.totalorder %v1741, 1
      %vm1768 = vcmp.eq.s32.totalorder %v1745, 1
      %vm1769 = vcmp.eq.s32.totalorder %v1749, 1
      %vm1770 = vcmp.eq.s32.totalorder %v1753, 1
      %vm1771 = vcmp.eq.s32.totalorder %v1757, 1
      %vm1772 = vcmp.eq.s32.totalorder %v1761, 1
      %vm1773 = vcmp.eq.s32.totalorder %v1765, 1
      %v1774 = vsel %vm1766, %v1732, 0.0
      %v1775 = vsel %vm1767, %v1731, 0.0
      %v1776 = vsel %vm1768, %v1730, 0.0
      %v1777 = vsel %vm1769, %v1729, 0.0
      %v1778 = vsel %vm1770, %v1728, 0.0
      %v1779 = vsel %vm1771, %v1727, 0.0
      %v1780 = vsel %vm1772, %v1726, 0.0
      %v1781 = vsel %vm1773, %v1725, 0.0
      %1782 = vset.pattern.permute.xlu0 7
      %1783 = vperm.xlu0 %1782, %v370
      %v1784 = vpop.permute.xlu0 %1783
      %v1786 = vmul.f32 %v1784, %v1774
      %v1787 = vmul.f32 %v1784, %v1775
      %v1788 = vmul.f32 %v1784, %v1776
      %v1789 = vmul.f32 %v1784, %v1777
      %v1790 = vmul.f32 %v1784, %v1778
      %v1791 = vmul.f32 %v1784, %v1779
      %v1792 = vmul.f32 %v1784, %v1780
      %v1793 = vmul.f32 %v1784, %v1781
      %v1794 = vadd.f32 %v1700, %v1786
      %v1795 = vadd.f32 %v1701, %v1787
      %v1796 = vadd.f32 %v1702, %v1788
      %v1797 = vadd.f32 %v1703, %v1789
      %v1798 = vadd.f32 %v1704, %v1790
      %v1799 = vadd.f32 %v1705, %v1791
      %v1800 = vadd.f32 %v1706, %v1792
      %v1801 = vadd.f32 %v1707, %v1793
      %1802 = vrot.lane.b32.xlu0 %v1027, 31
      %v1803 = vpop.permute.xlu0 %1802
      %1804 = vrot.lane.b32.xlu0 %v1028, 31
      %v1805 = vpop.permute.xlu0 %1804
      %1806 = vrot.lane.b32.xlu0 %v1029, 31
      %v1807 = vpop.permute.xlu0 %1806
      %1808 = vrot.lane.b32.xlu0 %v1030, 31
      %v1809 = vpop.permute.xlu0 %1808
      %1810 = vrot.lane.b32.xlu0 %v1031, 31
      %v1811 = vpop.permute.xlu0 %1810
      %1812 = vrot.lane.b32.xlu0 %v1032, 31
      %v1813 = vpop.permute.xlu0 %1812
      %1814 = vrot.lane.b32.xlu0 %v1033, 31
      %v1815 = vpop.permute.xlu0 %1814
      %1816 = vrot.lane.b32.xlu0 %v1034, 31
      %v1817 = vpop.permute.xlu0 %1816
      %vm1818 = vcmp.lt.s32.totalorder %v1052, 31
      %v1819 = vsel %vm1818, %v1815, %v1817
      %v1820 = vsel %vm1818, %v1813, %v1815
      %v1821 = vsel %vm1818, %v1811, %v1813
      %v1822 = vsel %vm1818, %v1809, %v1811
      %v1823 = vsel %vm1818, %v1807, %v1809
      %v1824 = vsel %vm1818, %v1805, %v1807
      %v1825 = vsel %vm1818, %v1803, %v1805
      %v1826 = vsel %vm1818, %v1817, %v1803
      %vm1827 = vmand %vm1542, %vm1350
      %v1828 = vsel %vm1827, 1, 0
      %v1829 = vlaneseq
      %v1830 = vshrl.u32 %v1829, 7
      %v1831 = vsub.s32 0, %v1830
      %v1832 = vrot.slane %v1828, %v1831
      %v1833 = vlaneseq
      %v1834 = vshrl.u32 %v1833, 7
      %v1835 = vsub.s32 1, %v1834
      %v1836 = vrot.slane %v1828, %v1835
      %v1837 = vlaneseq
      %v1838 = vshrl.u32 %v1837, 7
      %v1839 = vsub.s32 2, %v1838
      %v1840 = vrot.slane %v1828, %v1839
      %v1841 = vlaneseq
      %v1842 = vshrl.u32 %v1841, 7
      %v1843 = vsub.s32 3, %v1842
      %v1844 = vrot.slane %v1828, %v1843
      %v1845 = vlaneseq
      %v1846 = vshrl.u32 %v1845, 7
      %v1847 = vsub.s32 4, %v1846
      %v1848 = vrot.slane %v1828, %v1847
      %v1849 = vlaneseq
      %v1850 = vshrl.u32 %v1849, 7
      %v1851 = vsub.s32 5, %v1850
      %v1852 = vrot.slane %v1828, %v1851
      %v1853 = vlaneseq
      %v1854 = vshrl.u32 %v1853, 7
      %v1855 = vsub.s32 6, %v1854
      %v1856 = vrot.slane %v1828, %v1855
      %v1857 = vlaneseq
      %v1858 = vshrl.u32 %v1857, 7
      %v1859 = vsub.s32 7, %v1858
      %v1860 = vrot.slane %v1828, %v1859
      %vm1861 = vcmp.eq.s32.totalorder %v1832, 1
      %vm1862 = vcmp.eq.s32.totalorder %v1836, 1
      %vm1863 = vcmp.eq.s32.totalorder %v1840, 1
      %vm1864 = vcmp.eq.s32.totalorder %v1844, 1
      %vm1865 = vcmp.eq.s32.totalorder %v1848, 1
      %vm1866 = vcmp.eq.s32.totalorder %v1852, 1
      %vm1867 = vcmp.eq.s32.totalorder %v1856, 1
      %vm1868 = vcmp.eq.s32.totalorder %v1860, 1
      %v1869 = vsel %vm1861, %v1826, 0.0
      %v1870 = vsel %vm1862, %v1825, 0.0
      %v1871 = vsel %vm1863, %v1824, 0.0
      %v1872 = vsel %vm1864, %v1823, 0.0
      %v1873 = vsel %vm1865, %v1822, 0.0
      %v1874 = vsel %vm1866, %v1821, 0.0
      %v1875 = vsel %vm1867, %v1820, 0.0
      %v1876 = vsel %vm1868, %v1819, 0.0
      %1877 = vset.pattern.permute.xlu0 8
      %1878 = vperm.xlu0 %1877, %v370
      %v1879 = vpop.permute.xlu0 %1878
      %v1881 = vmul.f32 %v1879, %v1869
      %v1882 = vmul.f32 %v1879, %v1870
      %v1883 = vmul.f32 %v1879, %v1871
      %v1884 = vmul.f32 %v1879, %v1872
      %v1885 = vmul.f32 %v1879, %v1873
      %v1886 = vmul.f32 %v1879, %v1874
      %v1887 = vmul.f32 %v1879, %v1875
      %v1888 = vmul.f32 %v1879, %v1876
      %v1889 = vadd.f32 %v1794, %v1881
      %v1890 = vadd.f32 %v1795, %v1882
      %v1891 = vadd.f32 %v1796, %v1883
      %v1892 = vadd.f32 %v1797, %v1884
      %v1893 = vadd.f32 %v1798, %v1885
      %v1894 = vadd.f32 %v1799, %v1886
      %v1895 = vadd.f32 %v1800, %v1887
      %v1896 = vadd.f32 %v1801, %v1888
      %1897 = vrot.lane.b32.xlu0 %v1027, 30
      %v1898 = vpop.permute.xlu0 %1897
      %1899 = vrot.lane.b32.xlu0 %v1028, 30
      %v1900 = vpop.permute.xlu0 %1899
      %1901 = vrot.lane.b32.xlu0 %v1029, 30
      %v1902 = vpop.permute.xlu0 %1901
      %1903 = vrot.lane.b32.xlu0 %v1030, 30
      %v1904 = vpop.permute.xlu0 %1903
      %1905 = vrot.lane.b32.xlu0 %v1031, 30
      %v1906 = vpop.permute.xlu0 %1905
      %1907 = vrot.lane.b32.xlu0 %v1032, 30
      %v1908 = vpop.permute.xlu0 %1907
      %1909 = vrot.lane.b32.xlu0 %v1033, 30
      %v1910 = vpop.permute.xlu0 %1909
      %1911 = vrot.lane.b32.xlu0 %v1034, 30
      %v1912 = vpop.permute.xlu0 %1911
      %vm1913 = vcmp.lt.s32.totalorder %v1052, 30
      %v1914 = vsel %vm1913, %v1910, %v1912
      %v1915 = vsel %vm1913, %v1908, %v1910
      %v1916 = vsel %vm1913, %v1906, %v1908
      %v1917 = vsel %vm1913, %v1904, %v1906
      %v1918 = vsel %vm1913, %v1902, %v1904
      %v1919 = vsel %vm1913, %v1900, %v1902
      %v1920 = vsel %vm1913, %v1898, %v1900
      %v1921 = vsel %vm1913, %v1912, %v1898
      %vm1922 = vmand %vm1542, %vm1446
      %v1923 = vsel %vm1922, 1, 0
      %v1924 = vlaneseq
      %v1925 = vshrl.u32 %v1924, 7
      %v1926 = vsub.s32 0, %v1925
      %v1927 = vrot.slane %v1923, %v1926
      %v1928 = vlaneseq
      %v1929 = vshrl.u32 %v1928, 7
      %v1930 = vsub.s32 1, %v1929
      %v1931 = vrot.slane %v1923, %v1930
      %v1932 = vlaneseq
      %v1933 = vshrl.u32 %v1932, 7
      %v1934 = vsub.s32 2, %v1933
      %v1935 = vrot.slane %v1923, %v1934
      %v1936 = vlaneseq
      %v1937 = vshrl.u32 %v1936, 7
      %v1938 = vsub.s32 3, %v1937
      %v1939 = vrot.slane %v1923, %v1938
      %v1940 = vlaneseq
      %v1941 = vshrl.u32 %v1940, 7
      %v1942 = vsub.s32 4, %v1941
      %v1943 = vrot.slane %v1923, %v1942
      %v1944 = vlaneseq
      %v1945 = vshrl.u32 %v1944, 7
      %v1946 = vsub.s32 5, %v1945
      %v1947 = vrot.slane %v1923, %v1946
      %v1948 = vlaneseq
      %v1949 = vshrl.u32 %v1948, 7
      %v1950 = vsub.s32 6, %v1949
      %v1951 = vrot.slane %v1923, %v1950
      %v1952 = vlaneseq
      %v1953 = vshrl.u32 %v1952, 7
      %v1954 = vsub.s32 7, %v1953
      %v1955 = vrot.slane %v1923, %v1954
      %vm1956 = vcmp.eq.s32.totalorder %v1927, 1
      %vm1957 = vcmp.eq.s32.totalorder %v1931, 1
      %vm1958 = vcmp.eq.s32.totalorder %v1935, 1
      %vm1959 = vcmp.eq.s32.totalorder %v1939, 1
      %vm1960 = vcmp.eq.s32.totalorder %v1943, 1
      %vm1961 = vcmp.eq.s32.totalorder %v1947, 1
      %vm1962 = vcmp.eq.s32.totalorder %v1951, 1
      %vm1963 = vcmp.eq.s32.totalorder %v1955, 1
      %v1964 = vsel %vm1956, %v1921, 0.0
      %v1965 = vsel %vm1957, %v1920, 0.0
      %v1966 = vsel %vm1958, %v1919, 0.0
      %v1967 = vsel %vm1959, %v1918, 0.0
      %v1968 = vsel %vm1960, %v1917, 0.0
      %v1969 = vsel %vm1961, %v1916, 0.0
      %v1970 = vsel %vm1962, %v1915, 0.0
      %v1971 = vsel %vm1963, %v1914, 0.0
      %1972 = vset.pattern.permute.xlu0 9
      %1973 = vperm.xlu0 %1972, %v370
      %v1974 = vpop.permute.xlu0 %1973
      %v1976 = vmul.f32 %v1974, %v1964
      %v1977 = vmul.f32 %v1974, %v1965
      %v1978 = vmul.f32 %v1974, %v1966
      %v1979 = vmul.f32 %v1974, %v1967
      %v1980 = vmul.f32 %v1974, %v1968
      %v1981 = vmul.f32 %v1974, %v1969
      %v1982 = vmul.f32 %v1974, %v1970
      %v1983 = vmul.f32 %v1974, %v1971
      %v1984 = vadd.f32 %v1889, %v1976
      %v1985 = vadd.f32 %v1890, %v1977
      %v1986 = vadd.f32 %v1891, %v1978
      %v1987 = vadd.f32 %v1892, %v1979
      %v1988 = vadd.f32 %v1893, %v1980
      %v1989 = vadd.f32 %v1894, %v1981
      %v1990 = vadd.f32 %v1895, %v1982
      %v1991 = vadd.f32 %v1896, %v1983
      %1992 = vrot.lane.b32.xlu0 %v1027, 2
      %v1993 = vpop.permute.xlu0 %1992
      %1994 = vrot.lane.b32.xlu0 %v1028, 2
      %v1995 = vpop.permute.xlu0 %1994
      %1996 = vrot.lane.b32.xlu0 %v1029, 2
      %v1997 = vpop.permute.xlu0 %1996
      %1998 = vrot.lane.b32.xlu0 %v1030, 2
      %v1999 = vpop.permute.xlu0 %1998
      %2000 = vrot.lane.b32.xlu0 %v1031, 2
      %v2001 = vpop.permute.xlu0 %2000
      %2002 = vrot.lane.b32.xlu0 %v1032, 2
      %v2003 = vpop.permute.xlu0 %2002
      %2004 = vrot.lane.b32.xlu0 %v1033, 2
      %v2005 = vpop.permute.xlu0 %2004
      %2006 = vrot.lane.b32.xlu0 %v1034, 2
      %v2007 = vpop.permute.xlu0 %2006
      %vm2008 = vcmp.lt.s32.totalorder %v1052, 2
      %v2009 = vsel %vm2008, %v2005, %v2007
      %v2010 = vsel %vm2008, %v2003, %v2005
      %v2011 = vsel %vm2008, %v2001, %v2003
      %v2012 = vsel %vm2008, %v1999, %v2001
      %v2013 = vsel %vm2008, %v1997, %v1999
      %v2014 = vsel %vm2008, %v1995, %v1997
      %v2015 = vsel %vm2008, %v1993, %v1995
      %v2016 = vsel %vm2008, %v2007, %v1993
      %v2017 = vsel %vm1063, 1, 0
      %v2018 = vlaneseq
      %v2019 = vshrl.u32 %v2018, 7
      %v2020 = vsub.s32 0, %v2019
      %v2021 = vrot.slane %v2017, %v2020
      %v2022 = vlaneseq
      %v2023 = vshrl.u32 %v2022, 7
      %v2024 = vsub.s32 1, %v2023
      %v2025 = vrot.slane %v2017, %v2024
      %v2026 = vlaneseq
      %v2027 = vshrl.u32 %v2026, 7
      %v2028 = vsub.s32 2, %v2027
      %v2029 = vrot.slane %v2017, %v2028
      %v2030 = vlaneseq
      %v2031 = vshrl.u32 %v2030, 7
      %v2032 = vsub.s32 3, %v2031
      %v2033 = vrot.slane %v2017, %v2032
      %v2034 = vlaneseq
      %v2035 = vshrl.u32 %v2034, 7
      %v2036 = vsub.s32 4, %v2035
      %v2037 = vrot.slane %v2017, %v2036
      %v2038 = vlaneseq
      %v2039 = vshrl.u32 %v2038, 7
      %v2040 = vsub.s32 5, %v2039
      %v2041 = vrot.slane %v2017, %v2040
      %v2042 = vlaneseq
      %v2043 = vshrl.u32 %v2042, 7
      %v2044 = vsub.s32 6, %v2043
      %v2045 = vrot.slane %v2017, %v2044
      %v2046 = vlaneseq
      %v2047 = vshrl.u32 %v2046, 7
      %v2048 = vsub.s32 7, %v2047
      %v2049 = vrot.slane %v2017, %v2048
      %vm2050 = vcmp.eq.s32.totalorder %v2021, 1
      %vm2051 = vcmp.eq.s32.totalorder %v2025, 1
      %vm2052 = vcmp.eq.s32.totalorder %v2029, 1
      %vm2053 = vcmp.eq.s32.totalorder %v2033, 1
      %vm2054 = vcmp.eq.s32.totalorder %v2037, 1
      %vm2055 = vcmp.eq.s32.totalorder %v2041, 1
      %vm2056 = vcmp.eq.s32.totalorder %v2045, 1
      %vm2057 = vcmp.eq.s32.totalorder %v2049, 1
      %v2058 = vsel %vm2050, %v2016, 0.0
      %v2059 = vsel %vm2051, %v2015, 0.0
      %v2060 = vsel %vm2052, %v2014, 0.0
      %v2061 = vsel %vm2053, %v2013, 0.0
      %v2062 = vsel %vm2054, %v2012, 0.0
      %v2063 = vsel %vm2055, %v2011, 0.0
      %v2064 = vsel %vm2056, %v2010, 0.0
      %v2065 = vsel %vm2057, %v2009, 0.0
      %2066 = vset.pattern.permute.xlu0 10
      %2067 = vperm.xlu0 %2066, %v370
      %v2068 = vpop.permute.xlu0 %2067
      %v2070 = vmul.f32 %v2068, %v2058
      %v2071 = vmul.f32 %v2068, %v2059
      %v2072 = vmul.f32 %v2068, %v2060
      %v2073 = vmul.f32 %v2068, %v2061
      %v2074 = vmul.f32 %v2068, %v2062
      %v2075 = vmul.f32 %v2068, %v2063
      %v2076 = vmul.f32 %v2068, %v2064
      %v2077 = vmul.f32 %v2068, %v2065
      %v2078 = vadd.f32 %v1984, %v2070
      %v2079 = vadd.f32 %v1985, %v2071
      %v2080 = vadd.f32 %v1986, %v2072
      %v2081 = vadd.f32 %v1987, %v2073
      %v2082 = vadd.f32 %v1988, %v2074
      %v2083 = vadd.f32 %v1989, %v2075
      %v2084 = vadd.f32 %v1990, %v2076
      %v2085 = vadd.f32 %v1991, %v2077
      %2086 = vrot.lane.b32.xlu0 %v1027, 1
      %v2087 = vpop.permute.xlu0 %2086
      %2088 = vrot.lane.b32.xlu0 %v1028, 1
      %v2089 = vpop.permute.xlu0 %2088
      %2090 = vrot.lane.b32.xlu0 %v1029, 1
      %v2091 = vpop.permute.xlu0 %2090
      %2092 = vrot.lane.b32.xlu0 %v1030, 1
      %v2093 = vpop.permute.xlu0 %2092
      %2094 = vrot.lane.b32.xlu0 %v1031, 1
      %v2095 = vpop.permute.xlu0 %2094
      %2096 = vrot.lane.b32.xlu0 %v1032, 1
      %v2097 = vpop.permute.xlu0 %2096
      %2098 = vrot.lane.b32.xlu0 %v1033, 1
      %v2099 = vpop.permute.xlu0 %2098
      %2100 = vrot.lane.b32.xlu0 %v1034, 1
      %v2101 = vpop.permute.xlu0 %2100
      %vm2102 = vcmp.lt.s32.totalorder %v1052, 1
      %v2103 = vsel %vm2102, %v2099, %v2101
      %v2104 = vsel %vm2102, %v2097, %v2099
      %v2105 = vsel %vm2102, %v2095, %v2097
      %v2106 = vsel %vm2102, %v2093, %v2095
      %v2107 = vsel %vm2102, %v2091, %v2093
      %v2108 = vsel %vm2102, %v2089, %v2091
      %v2109 = vsel %vm2102, %v2087, %v2089
      %v2110 = vsel %vm2102, %v2101, %v2087
      %v2111 = vsel %vm1160, 1, 0
      %v2112 = vlaneseq
      %v2113 = vshrl.u32 %v2112, 7
      %v2114 = vsub.s32 0, %v2113
      %v2115 = vrot.slane %v2111, %v2114
      %v2116 = vlaneseq
      %v2117 = vshrl.u32 %v2116, 7
      %v2118 = vsub.s32 1, %v2117
      %v2119 = vrot.slane %v2111, %v2118
      %v2120 = vlaneseq
      %v2121 = vshrl.u32 %v2120, 7
      %v2122 = vsub.s32 2, %v2121
      %v2123 = vrot.slane %v2111, %v2122
      %v2124 = vlaneseq
      %v2125 = vshrl.u32 %v2124, 7
      %v2126 = vsub.s32 3, %v2125
      %v2127 = vrot.slane %v2111, %v2126
      %v2128 = vlaneseq
      %v2129 = vshrl.u32 %v2128, 7
      %v2130 = vsub.s32 4, %v2129
      %v2131 = vrot.slane %v2111, %v2130
      %v2132 = vlaneseq
      %v2133 = vshrl.u32 %v2132, 7
      %v2134 = vsub.s32 5, %v2133
      %v2135 = vrot.slane %v2111, %v2134
      %v2136 = vlaneseq
      %v2137 = vshrl.u32 %v2136, 7
      %v2138 = vsub.s32 6, %v2137
      %v2139 = vrot.slane %v2111, %v2138
      %v2140 = vlaneseq
      %v2141 = vshrl.u32 %v2140, 7
      %v2142 = vsub.s32 7, %v2141
      %v2143 = vrot.slane %v2111, %v2142
      %vm2144 = vcmp.eq.s32.totalorder %v2115, 1
      %vm2145 = vcmp.eq.s32.totalorder %v2119, 1
      %vm2146 = vcmp.eq.s32.totalorder %v2123, 1
      %vm2147 = vcmp.eq.s32.totalorder %v2127, 1
      %vm2148 = vcmp.eq.s32.totalorder %v2131, 1
      %vm2149 = vcmp.eq.s32.totalorder %v2135, 1
      %vm2150 = vcmp.eq.s32.totalorder %v2139, 1
      %vm2151 = vcmp.eq.s32.totalorder %v2143, 1
      %v2152 = vsel %vm2144, %v2110, 0.0
      %v2153 = vsel %vm2145, %v2109, 0.0
      %v2154 = vsel %vm2146, %v2108, 0.0
      %v2155 = vsel %vm2147, %v2107, 0.0
      %v2156 = vsel %vm2148, %v2106, 0.0
      %v2157 = vsel %vm2149, %v2105, 0.0
      %v2158 = vsel %vm2150, %v2104, 0.0
      %v2159 = vsel %vm2151, %v2103, 0.0
      %2160 = vset.pattern.permute.xlu0 11
      %2161 = vperm.xlu0 %2160, %v370
      %v2162 = vpop.permute.xlu0 %2161
      %v2164 = vmul.f32 %v2162, %v2152
      %v2165 = vmul.f32 %v2162, %v2153
      %v2166 = vmul.f32 %v2162, %v2154
      %v2167 = vmul.f32 %v2162, %v2155
      %v2168 = vmul.f32 %v2162, %v2156
      %v2169 = vmul.f32 %v2162, %v2157
      %v2170 = vmul.f32 %v2162, %v2158
      %v2171 = vmul.f32 %v2162, %v2159
      %v2172 = vadd.f32 %v2078, %v2164
      %v2173 = vadd.f32 %v2079, %v2165
      %v2174 = vadd.f32 %v2080, %v2166
      %v2175 = vadd.f32 %v2081, %v2167
      %v2176 = vadd.f32 %v2082, %v2168
      %v2177 = vadd.f32 %v2083, %v2169
      %v2178 = vadd.f32 %v2084, %v2170
      %v2179 = vadd.f32 %v2085, %v2171
      %2180 = vset.pattern.permute.xlu0 12
      %2181 = vperm.xlu0 %2180, %v370
      %v2182 = vpop.permute.xlu0 %2181
      %v2184 = vmul.f32 %v2182, %v1027
      %v2185 = vmul.f32 %v2182, %v1028
      %v2186 = vmul.f32 %v2182, %v1029
      %v2187 = vmul.f32 %v2182, %v1030
      %v2188 = vmul.f32 %v2182, %v1031
      %v2189 = vmul.f32 %v2182, %v1032
      %v2190 = vmul.f32 %v2182, %v1033
      %v2191 = vmul.f32 %v2182, %v1034
      %v2192 = vadd.f32 %v2172, %v2184
      %v2193 = vadd.f32 %v2173, %v2185
      %v2194 = vadd.f32 %v2174, %v2186
      %v2195 = vadd.f32 %v2175, %v2187
      %v2196 = vadd.f32 %v2176, %v2188
      %v2197 = vadd.f32 %v2177, %v2189
      %v2198 = vadd.f32 %v2178, %v2190
      %v2199 = vadd.f32 %v2179, %v2191
      %2200 = vrot.lane.b32.xlu0 %v1027, 127
      %v2201 = vpop.permute.xlu0 %2200
      %2202 = vrot.lane.b32.xlu0 %v1028, 127
      %v2203 = vpop.permute.xlu0 %2202
      %2204 = vrot.lane.b32.xlu0 %v1029, 127
      %v2205 = vpop.permute.xlu0 %2204
      %2206 = vrot.lane.b32.xlu0 %v1030, 127
      %v2207 = vpop.permute.xlu0 %2206
      %2208 = vrot.lane.b32.xlu0 %v1031, 127
      %v2209 = vpop.permute.xlu0 %2208
      %2210 = vrot.lane.b32.xlu0 %v1032, 127
      %v2211 = vpop.permute.xlu0 %2210
      %2212 = vrot.lane.b32.xlu0 %v1033, 127
      %v2213 = vpop.permute.xlu0 %2212
      %2214 = vrot.lane.b32.xlu0 %v1034, 127
      %v2215 = vpop.permute.xlu0 %2214
      %vm2216 = vcmp.lt.s32.totalorder %v1052, 127
      %v2217 = vsel %vm2216, %v2213, %v2215
      %v2218 = vsel %vm2216, %v2211, %v2213
      %v2219 = vsel %vm2216, %v2209, %v2211
      %v2220 = vsel %vm2216, %v2207, %v2209
      %v2221 = vsel %vm2216, %v2205, %v2207
      %v2222 = vsel %vm2216, %v2203, %v2205
      %v2223 = vsel %vm2216, %v2201, %v2203
      %v2224 = vsel %vm2216, %v2215, %v2201
      %v2225 = vsel %vm1350, 1, 0
      %v2226 = vlaneseq
      %v2227 = vshrl.u32 %v2226, 7
      %v2228 = vsub.s32 0, %v2227
      %v2229 = vrot.slane %v2225, %v2228
      %v2230 = vlaneseq
      %v2231 = vshrl.u32 %v2230, 7
      %v2232 = vsub.s32 1, %v2231
      %v2233 = vrot.slane %v2225, %v2232
      %v2234 = vlaneseq
      %v2235 = vshrl.u32 %v2234, 7
      %v2236 = vsub.s32 2, %v2235
      %v2237 = vrot.slane %v2225, %v2236
      %v2238 = vlaneseq
      %v2239 = vshrl.u32 %v2238, 7
      %v2240 = vsub.s32 3, %v2239
      %v2241 = vrot.slane %v2225, %v2240
      %v2242 = vlaneseq
      %v2243 = vshrl.u32 %v2242, 7
      %v2244 = vsub.s32 4, %v2243
      %v2245 = vrot.slane %v2225, %v2244
      %v2246 = vlaneseq
      %v2247 = vshrl.u32 %v2246, 7
      %v2248 = vsub.s32 5, %v2247
      %v2249 = vrot.slane %v2225, %v2248
      %v2250 = vlaneseq
      %v2251 = vshrl.u32 %v2250, 7
      %v2252 = vsub.s32 6, %v2251
      %v2253 = vrot.slane %v2225, %v2252
      %v2254 = vlaneseq
      %v2255 = vshrl.u32 %v2254, 7
      %v2256 = vsub.s32 7, %v2255
      %v2257 = vrot.slane %v2225, %v2256
      %vm2258 = vcmp.eq.s32.totalorder %v2229, 1
      %vm2259 = vcmp.eq.s32.totalorder %v2233, 1
      %vm2260 = vcmp.eq.s32.totalorder %v2237, 1
      %vm2261 = vcmp.eq.s32.totalorder %v2241, 1
      %vm2262 = vcmp.eq.s32.totalorder %v2245, 1
      %vm2263 = vcmp.eq.s32.totalorder %v2249, 1
      %vm2264 = vcmp.eq.s32.totalorder %v2253, 1
      %vm2265 = vcmp.eq.s32.totalorder %v2257, 1
      %v2266 = vsel %vm2258, %v2223, 0.0
      %v2267 = vsel %vm2259, %v2222, 0.0
      %v2268 = vsel %vm2260, %v2221, 0.0
      %v2269 = vsel %vm2261, %v2220, 0.0
      %v2270 = vsel %vm2262, %v2219, 0.0
      %v2271 = vsel %vm2263, %v2218, 0.0
      %v2272 = vsel %vm2264, %v2217, 0.0
      %v2273 = vsel %vm2265, %v2224, 0.0
      %2274 = vset.pattern.permute.xlu0 13
      %2275 = vperm.xlu0 %2274, %v370
      %v2276 = vpop.permute.xlu0 %2275
      %v2278 = vmul.f32 %v2276, %v2266
      %v2279 = vmul.f32 %v2276, %v2267
      %v2280 = vmul.f32 %v2276, %v2268
      %v2281 = vmul.f32 %v2276, %v2269
      %v2282 = vmul.f32 %v2276, %v2270
      %v2283 = vmul.f32 %v2276, %v2271
      %v2284 = vmul.f32 %v2276, %v2272
      %v2285 = vmul.f32 %v2276, %v2273
      %v2286 = vadd.f32 %v2192, %v2278
      %v2287 = vadd.f32 %v2193, %v2279
      %v2288 = vadd.f32 %v2194, %v2280
      %v2289 = vadd.f32 %v2195, %v2281
      %v2290 = vadd.f32 %v2196, %v2282
      %v2291 = vadd.f32 %v2197, %v2283
      %v2292 = vadd.f32 %v2198, %v2284
      %v2293 = vadd.f32 %v2199, %v2285
      %2294 = vrot.lane.b32.xlu0 %v1027, 126
      %v2295 = vpop.permute.xlu0 %2294
      %2296 = vrot.lane.b32.xlu0 %v1028, 126
      %v2297 = vpop.permute.xlu0 %2296
      %2298 = vrot.lane.b32.xlu0 %v1029, 126
      %v2299 = vpop.permute.xlu0 %2298
      %2300 = vrot.lane.b32.xlu0 %v1030, 126
      %v2301 = vpop.permute.xlu0 %2300
      %2302 = vrot.lane.b32.xlu0 %v1031, 126
      %v2303 = vpop.permute.xlu0 %2302
      %2304 = vrot.lane.b32.xlu0 %v1032, 126
      %v2305 = vpop.permute.xlu0 %2304
      %2306 = vrot.lane.b32.xlu0 %v1033, 126
      %v2307 = vpop.permute.xlu0 %2306
      %2308 = vrot.lane.b32.xlu0 %v1034, 126
      %v2309 = vpop.permute.xlu0 %2308
      %vm2310 = vcmp.lt.s32.totalorder %v1052, 126
      %v2311 = vsel %vm2310, %v2307, %v2309
      %v2312 = vsel %vm2310, %v2305, %v2307
      %v2313 = vsel %vm2310, %v2303, %v2305
      %v2314 = vsel %vm2310, %v2301, %v2303
      %v2315 = vsel %vm2310, %v2299, %v2301
      %v2316 = vsel %vm2310, %v2297, %v2299
      %v2317 = vsel %vm2310, %v2295, %v2297
      %v2318 = vsel %vm2310, %v2309, %v2295
      %v2319 = vsel %vm1446, 1, 0
      %v2320 = vlaneseq
      %v2321 = vshrl.u32 %v2320, 7
      %v2322 = vsub.s32 0, %v2321
      %v2323 = vrot.slane %v2319, %v2322
      %v2324 = vlaneseq
      %v2325 = vshrl.u32 %v2324, 7
      %v2326 = vsub.s32 1, %v2325
      %v2327 = vrot.slane %v2319, %v2326
      %v2328 = vlaneseq
      %v2329 = vshrl.u32 %v2328, 7
      %v2330 = vsub.s32 2, %v2329
      %v2331 = vrot.slane %v2319, %v2330
      %v2332 = vlaneseq
      %v2333 = vshrl.u32 %v2332, 7
      %v2334 = vsub.s32 3, %v2333
      %v2335 = vrot.slane %v2319, %v2334
      %v2336 = vlaneseq
      %v2337 = vshrl.u32 %v2336, 7
      %v2338 = vsub.s32 4, %v2337
      %v2339 = vrot.slane %v2319, %v2338
      %v2340 = vlaneseq
      %v2341 = vshrl.u32 %v2340, 7
      %v2342 = vsub.s32 5, %v2341
      %v2343 = vrot.slane %v2319, %v2342
      %v2344 = vlaneseq
      %v2345 = vshrl.u32 %v2344, 7
      %v2346 = vsub.s32 6, %v2345
      %v2347 = vrot.slane %v2319, %v2346
      %v2348 = vlaneseq
      %v2349 = vshrl.u32 %v2348, 7
      %v2350 = vsub.s32 7, %v2349
      %v2351 = vrot.slane %v2319, %v2350
      %vm2352 = vcmp.eq.s32.totalorder %v2323, 1
      %vm2353 = vcmp.eq.s32.totalorder %v2327, 1
      %vm2354 = vcmp.eq.s32.totalorder %v2331, 1
      %vm2355 = vcmp.eq.s32.totalorder %v2335, 1
      %vm2356 = vcmp.eq.s32.totalorder %v2339, 1
      %vm2357 = vcmp.eq.s32.totalorder %v2343, 1
      %vm2358 = vcmp.eq.s32.totalorder %v2347, 1
      %vm2359 = vcmp.eq.s32.totalorder %v2351, 1
      %v2360 = vsel %vm2352, %v2317, 0.0
      %v2361 = vsel %vm2353, %v2316, 0.0
      %v2362 = vsel %vm2354, %v2315, 0.0
      %v2363 = vsel %vm2355, %v2314, 0.0
      %v2364 = vsel %vm2356, %v2313, 0.0
      %v2365 = vsel %vm2357, %v2312, 0.0
      %v2366 = vsel %vm2358, %v2311, 0.0
      %v2367 = vsel %vm2359, %v2318, 0.0
      %2368 = vset.pattern.permute.xlu0 14
      %2369 = vperm.xlu0 %2368, %v370
      %v2370 = vpop.permute.xlu0 %2369
      %v2372 = vmul.f32 %v2370, %v2360
      %v2373 = vmul.f32 %v2370, %v2361
      %v2374 = vmul.f32 %v2370, %v2362
      %v2375 = vmul.f32 %v2370, %v2363
      %v2376 = vmul.f32 %v2370, %v2364
      %v2377 = vmul.f32 %v2370, %v2365
      %v2378 = vmul.f32 %v2370, %v2366
      %v2379 = vmul.f32 %v2370, %v2367
      %v2380 = vadd.f32 %v2286, %v2372
      %v2381 = vadd.f32 %v2287, %v2373
      %v2382 = vadd.f32 %v2288, %v2374
      %v2383 = vadd.f32 %v2289, %v2375
      %v2384 = vadd.f32 %v2290, %v2376
      %v2385 = vadd.f32 %v2291, %v2377
      %v2386 = vadd.f32 %v2292, %v2378
      %v2387 = vadd.f32 %v2293, %v2379
      %2388 = vrot.lane.b32.xlu0 %v1027, 98
      %v2389 = vpop.permute.xlu0 %2388
      %2390 = vrot.lane.b32.xlu0 %v1028, 98
      %v2391 = vpop.permute.xlu0 %2390
      %2392 = vrot.lane.b32.xlu0 %v1029, 98
      %v2393 = vpop.permute.xlu0 %2392
      %2394 = vrot.lane.b32.xlu0 %v1030, 98
      %v2395 = vpop.permute.xlu0 %2394
      %2396 = vrot.lane.b32.xlu0 %v1031, 98
      %v2397 = vpop.permute.xlu0 %2396
      %2398 = vrot.lane.b32.xlu0 %v1032, 98
      %v2399 = vpop.permute.xlu0 %2398
      %2400 = vrot.lane.b32.xlu0 %v1033, 98
      %v2401 = vpop.permute.xlu0 %2400
      %2402 = vrot.lane.b32.xlu0 %v1034, 98
      %v2403 = vpop.permute.xlu0 %2402
      %vm2404 = vcmp.lt.s32.totalorder %v1052, 98
      %v2405 = vsel %vm2404, %v2401, %v2403
      %v2406 = vsel %vm2404, %v2399, %v2401
      %v2407 = vsel %vm2404, %v2397, %v2399
      %v2408 = vsel %vm2404, %v2395, %v2397
      %v2409 = vsel %vm2404, %v2393, %v2395
      %v2410 = vsel %vm2404, %v2391, %v2393
      %v2411 = vsel %vm2404, %v2389, %v2391
      %v2412 = vsel %vm2404, %v2403, %v2389
      %vm2413 = vcmp.lt.s32.totalorder %v368, 31
      %vm2414 = vmand %vm2413, %vm1063
      %v2415 = vsel %vm2414, 1, 0
      %v2416 = vlaneseq
      %v2417 = vshrl.u32 %v2416, 7
      %v2418 = vsub.s32 0, %v2417
      %v2419 = vrot.slane %v2415, %v2418
      %v2420 = vlaneseq
      %v2421 = vshrl.u32 %v2420, 7
      %v2422 = vsub.s32 1, %v2421
      %v2423 = vrot.slane %v2415, %v2422
      %v2424 = vlaneseq
      %v2425 = vshrl.u32 %v2424, 7
      %v2426 = vsub.s32 2, %v2425
      %v2427 = vrot.slane %v2415, %v2426
      %v2428 = vlaneseq
      %v2429 = vshrl.u32 %v2428, 7
      %v2430 = vsub.s32 3, %v2429
      %v2431 = vrot.slane %v2415, %v2430
      %v2432 = vlaneseq
      %v2433 = vshrl.u32 %v2432, 7
      %v2434 = vsub.s32 4, %v2433
      %v2435 = vrot.slane %v2415, %v2434
      %v2436 = vlaneseq
      %v2437 = vshrl.u32 %v2436, 7
      %v2438 = vsub.s32 5, %v2437
      %v2439 = vrot.slane %v2415, %v2438
      %v2440 = vlaneseq
      %v2441 = vshrl.u32 %v2440, 7
      %v2442 = vsub.s32 6, %v2441
      %v2443 = vrot.slane %v2415, %v2442
      %v2444 = vlaneseq
      %v2445 = vshrl.u32 %v2444, 7
      %v2446 = vsub.s32 7, %v2445
      %v2447 = vrot.slane %v2415, %v2446
      %vm2448 = vcmp.eq.s32.totalorder %v2419, 1
      %vm2449 = vcmp.eq.s32.totalorder %v2423, 1
      %vm2450 = vcmp.eq.s32.totalorder %v2427, 1
      %vm2451 = vcmp.eq.s32.totalorder %v2431, 1
      %vm2452 = vcmp.eq.s32.totalorder %v2435, 1
      %vm2453 = vcmp.eq.s32.totalorder %v2439, 1
      %vm2454 = vcmp.eq.s32.totalorder %v2443, 1
      %vm2455 = vcmp.eq.s32.totalorder %v2447, 1
      %v2456 = vsel %vm2448, %v2411, 0.0
      %v2457 = vsel %vm2449, %v2410, 0.0
      %v2458 = vsel %vm2450, %v2409, 0.0
      %v2459 = vsel %vm2451, %v2408, 0.0
      %v2460 = vsel %vm2452, %v2407, 0.0
      %v2461 = vsel %vm2453, %v2406, 0.0
      %v2462 = vsel %vm2454, %v2405, 0.0
      %v2463 = vsel %vm2455, %v2412, 0.0
      %2464 = vset.pattern.permute.xlu0 15
      %2465 = vperm.xlu0 %2464, %v370
      %v2466 = vpop.permute.xlu0 %2465
      %v2468 = vmul.f32 %v2466, %v2456
      %v2469 = vmul.f32 %v2466, %v2457
      %v2470 = vmul.f32 %v2466, %v2458
      %v2471 = vmul.f32 %v2466, %v2459
      %v2472 = vmul.f32 %v2466, %v2460
      %v2473 = vmul.f32 %v2466, %v2461
      %v2474 = vmul.f32 %v2466, %v2462
      %v2475 = vmul.f32 %v2466, %v2463
      %v2476 = vadd.f32 %v2380, %v2468
      %v2477 = vadd.f32 %v2381, %v2469
      %v2478 = vadd.f32 %v2382, %v2470
      %v2479 = vadd.f32 %v2383, %v2471
      %v2480 = vadd.f32 %v2384, %v2472
      %v2481 = vadd.f32 %v2385, %v2473
      %v2482 = vadd.f32 %v2386, %v2474
      %v2483 = vadd.f32 %v2387, %v2475
      %2484 = vrot.lane.b32.xlu0 %v1027, 97
      %v2485 = vpop.permute.xlu0 %2484
      %2486 = vrot.lane.b32.xlu0 %v1028, 97
      %v2487 = vpop.permute.xlu0 %2486
      %2488 = vrot.lane.b32.xlu0 %v1029, 97
      %v2489 = vpop.permute.xlu0 %2488
      %2490 = vrot.lane.b32.xlu0 %v1030, 97
      %v2491 = vpop.permute.xlu0 %2490
      %2492 = vrot.lane.b32.xlu0 %v1031, 97
      %v2493 = vpop.permute.xlu0 %2492
      %2494 = vrot.lane.b32.xlu0 %v1032, 97
      %v2495 = vpop.permute.xlu0 %2494
      %2496 = vrot.lane.b32.xlu0 %v1033, 97
      %v2497 = vpop.permute.xlu0 %2496
      %2498 = vrot.lane.b32.xlu0 %v1034, 97
      %v2499 = vpop.permute.xlu0 %2498
      %vm2500 = vcmp.lt.s32.totalorder %v1052, 97
      %v2501 = vsel %vm2500, %v2497, %v2499
      %v2502 = vsel %vm2500, %v2495, %v2497
      %v2503 = vsel %vm2500, %v2493, %v2495
      %v2504 = vsel %vm2500, %v2491, %v2493
      %v2505 = vsel %vm2500, %v2489, %v2491
      %v2506 = vsel %vm2500, %v2487, %v2489
      %v2507 = vsel %vm2500, %v2485, %v2487
      %v2508 = vsel %vm2500, %v2499, %v2485
      %vm2509 = vmand %vm2413, %vm1160
      %v2510 = vsel %vm2509, 1, 0
      %v2511 = vlaneseq
      %v2512 = vshrl.u32 %v2511, 7
      %v2513 = vsub.s32 0, %v2512
      %v2514 = vrot.slane %v2510, %v2513
      %v2515 = vlaneseq
      %v2516 = vshrl.u32 %v2515, 7
      %v2517 = vsub.s32 1, %v2516
      %v2518 = vrot.slane %v2510, %v2517
      %v2519 = vlaneseq
      %v2520 = vshrl.u32 %v2519, 7
      %v2521 = vsub.s32 2, %v2520
      %v2522 = vrot.slane %v2510, %v2521
      %v2523 = vlaneseq
      %v2524 = vshrl.u32 %v2523, 7
      %v2525 = vsub.s32 3, %v2524
      %v2526 = vrot.slane %v2510, %v2525
      %v2527 = vlaneseq
      %v2528 = vshrl.u32 %v2527, 7
      %v2529 = vsub.s32 4, %v2528
      %v2530 = vrot.slane %v2510, %v2529
      %v2531 = vlaneseq
      %v2532 = vshrl.u32 %v2531, 7
      %v2533 = vsub.s32 5, %v2532
      %v2534 = vrot.slane %v2510, %v2533
      %v2535 = vlaneseq
      %v2536 = vshrl.u32 %v2535, 7
      %v2537 = vsub.s32 6, %v2536
      %v2538 = vrot.slane %v2510, %v2537
      %v2539 = vlaneseq
      %v2540 = vshrl.u32 %v2539, 7
      %v2541 = vsub.s32 7, %v2540
      %v2542 = vrot.slane %v2510, %v2541
      %vm2543 = vcmp.eq.s32.totalorder %v2514, 1
      %vm2544 = vcmp.eq.s32.totalorder %v2518, 1
      %vm2545 = vcmp.eq.s32.totalorder %v2522, 1
      %vm2546 = vcmp.eq.s32.totalorder %v2526, 1
      %vm2547 = vcmp.eq.s32.totalorder %v2530, 1
      %vm2548 = vcmp.eq.s32.totalorder %v2534, 1
      %vm2549 = vcmp.eq.s32.totalorder %v2538, 1
      %vm2550 = vcmp.eq.s32.totalorder %v2542, 1
      %v2551 = vsel %vm2543, %v2507, 0.0
      %v2552 = vsel %vm2544, %v2506, 0.0
      %v2553 = vsel %vm2545, %v2505, 0.0
      %v2554 = vsel %vm2546, %v2504, 0.0
      %v2555 = vsel %vm2547, %v2503, 0.0
      %v2556 = vsel %vm2548, %v2502, 0.0
      %v2557 = vsel %vm2549, %v2501, 0.0
      %v2558 = vsel %vm2550, %v2508, 0.0
      %2559 = vset.pattern.permute.xlu0 16
      %2560 = vperm.xlu0 %2559, %v370
      %v2561 = vpop.permute.xlu0 %2560
      %v2563 = vmul.f32 %v2561, %v2551
      %v2564 = vmul.f32 %v2561, %v2552
      %v2565 = vmul.f32 %v2561, %v2553
      %v2566 = vmul.f32 %v2561, %v2554
      %v2567 = vmul.f32 %v2561, %v2555
      %v2568 = vmul.f32 %v2561, %v2556
      %v2569 = vmul.f32 %v2561, %v2557
      %v2570 = vmul.f32 %v2561, %v2558
      %v2571 = vadd.f32 %v2476, %v2563
      %v2572 = vadd.f32 %v2477, %v2564
      %v2573 = vadd.f32 %v2478, %v2565
      %v2574 = vadd.f32 %v2479, %v2566
      %v2575 = vadd.f32 %v2480, %v2567
      %v2576 = vadd.f32 %v2481, %v2568
      %v2577 = vadd.f32 %v2482, %v2569
      %v2578 = vadd.f32 %v2483, %v2570
      %2579 = vrot.lane.b32.xlu0 %v1027, 96
      %v2580 = vpop.permute.xlu0 %2579
      %2581 = vrot.lane.b32.xlu0 %v1028, 96
      %v2582 = vpop.permute.xlu0 %2581
      %2583 = vrot.lane.b32.xlu0 %v1029, 96
      %v2584 = vpop.permute.xlu0 %2583
      %2585 = vrot.lane.b32.xlu0 %v1030, 96
      %v2586 = vpop.permute.xlu0 %2585
      %2587 = vrot.lane.b32.xlu0 %v1031, 96
      %v2588 = vpop.permute.xlu0 %2587
      %2589 = vrot.lane.b32.xlu0 %v1032, 96
      %v2590 = vpop.permute.xlu0 %2589
      %2591 = vrot.lane.b32.xlu0 %v1033, 96
      %v2592 = vpop.permute.xlu0 %2591
      %2593 = vrot.lane.b32.xlu0 %v1034, 96
      %v2594 = vpop.permute.xlu0 %2593
      %vm2595 = vcmp.lt.s32.totalorder %v1052, 96
      %v2596 = vsel %vm2595, %v2592, %v2594
      %v2597 = vsel %vm2595, %v2590, %v2592
      %v2598 = vsel %vm2595, %v2588, %v2590
      %v2599 = vsel %vm2595, %v2586, %v2588
      %v2600 = vsel %vm2595, %v2584, %v2586
      %v2601 = vsel %vm2595, %v2582, %v2584
      %v2602 = vsel %vm2595, %v2580, %v2582
      %v2603 = vsel %vm2595, %v2594, %v2580
      %v2604 = vsel %vm2413, 1, 0
      %v2605 = vlaneseq
      %v2606 = vshrl.u32 %v2605, 7
      %v2607 = vsub.s32 0, %v2606
      %v2608 = vrot.slane %v2604, %v2607
      %v2609 = vlaneseq
      %v2610 = vshrl.u32 %v2609, 7
      %v2611 = vsub.s32 1, %v2610
      %v2612 = vrot.slane %v2604, %v2611
      %v2613 = vlaneseq
      %v2614 = vshrl.u32 %v2613, 7
      %v2615 = vsub.s32 2, %v2614
      %v2616 = vrot.slane %v2604, %v2615
      %v2617 = vlaneseq
      %v2618 = vshrl.u32 %v2617, 7
      %v2619 = vsub.s32 3, %v2618
      %v2620 = vrot.slane %v2604, %v2619
      %v2621 = vlaneseq
      %v2622 = vshrl.u32 %v2621, 7
      %v2623 = vsub.s32 4, %v2622
      %v2624 = vrot.slane %v2604, %v2623
      %v2625 = vlaneseq
      %v2626 = vshrl.u32 %v2625, 7
      %v2627 = vsub.s32 5, %v2626
      %v2628 = vrot.slane %v2604, %v2627
      %v2629 = vlaneseq
      %v2630 = vshrl.u32 %v2629, 7
      %v2631 = vsub.s32 6, %v2630
      %v2632 = vrot.slane %v2604, %v2631
      %v2633 = vlaneseq
      %v2634 = vshrl.u32 %v2633, 7
      %v2635 = vsub.s32 7, %v2634
      %v2636 = vrot.slane %v2604, %v2635
      %vm2637 = vcmp.eq.s32.totalorder %v2608, 1
      %vm2638 = vcmp.eq.s32.totalorder %v2612, 1
      %vm2639 = vcmp.eq.s32.totalorder %v2616, 1
      %vm2640 = vcmp.eq.s32.totalorder %v2620, 1
      %vm2641 = vcmp.eq.s32.totalorder %v2624, 1
      %vm2642 = vcmp.eq.s32.totalorder %v2628, 1
      %vm2643 = vcmp.eq.s32.totalorder %v2632, 1
      %vm2644 = vcmp.eq.s32.totalorder %v2636, 1
      %v2645 = vsel %vm2637, %v2602, 0.0
      %v2646 = vsel %vm2638, %v2601, 0.0
      %v2647 = vsel %vm2639, %v2600, 0.0
      %v2648 = vsel %vm2640, %v2599, 0.0
      %v2649 = vsel %vm2641, %v2598, 0.0
      %v2650 = vsel %vm2642, %v2597, 0.0
      %v2651 = vsel %vm2643, %v2596, 0.0
      %v2652 = vsel %vm2644, %v2603, 0.0
      %2653 = vset.pattern.permute.xlu0 17
      %2654 = vperm.xlu0 %2653, %v370
      %v2655 = vpop.permute.xlu0 %2654
      %v2657 = vmul.f32 %v2655, %v2645
      %v2658 = vmul.f32 %v2655, %v2646
      %v2659 = vmul.f32 %v2655, %v2647
      %v2660 = vmul.f32 %v2655, %v2648
      %v2661 = vmul.f32 %v2655, %v2649
      %v2662 = vmul.f32 %v2655, %v2650
      %v2663 = vmul.f32 %v2655, %v2651
      %v2664 = vmul.f32 %v2655, %v2652
      %v2665 = vadd.f32 %v2571, %v2657
      %v2666 = vadd.f32 %v2572, %v2658
      %v2667 = vadd.f32 %v2573, %v2659
      %v2668 = vadd.f32 %v2574, %v2660
      %v2669 = vadd.f32 %v2575, %v2661
      %v2670 = vadd.f32 %v2576, %v2662
      %v2671 = vadd.f32 %v2577, %v2663
      %v2672 = vadd.f32 %v2578, %v2664
      %2673 = vrot.lane.b32.xlu0 %v1027, 95
      %v2674 = vpop.permute.xlu0 %2673
      %2675 = vrot.lane.b32.xlu0 %v1028, 95
      %v2676 = vpop.permute.xlu0 %2675
      %2677 = vrot.lane.b32.xlu0 %v1029, 95
      %v2678 = vpop.permute.xlu0 %2677
      %2679 = vrot.lane.b32.xlu0 %v1030, 95
      %v2680 = vpop.permute.xlu0 %2679
      %2681 = vrot.lane.b32.xlu0 %v1031, 95
      %v2682 = vpop.permute.xlu0 %2681
      %2683 = vrot.lane.b32.xlu0 %v1032, 95
      %v2684 = vpop.permute.xlu0 %2683
      %2685 = vrot.lane.b32.xlu0 %v1033, 95
      %v2686 = vpop.permute.xlu0 %2685
      %2687 = vrot.lane.b32.xlu0 %v1034, 95
      %v2688 = vpop.permute.xlu0 %2687
      %vm2689 = vcmp.lt.s32.totalorder %v1052, 95
      %v2690 = vsel %vm2689, %v2686, %v2688
      %v2691 = vsel %vm2689, %v2684, %v2686
      %v2692 = vsel %vm2689, %v2682, %v2684
      %v2693 = vsel %vm2689, %v2680, %v2682
      %v2694 = vsel %vm2689, %v2678, %v2680
      %v2695 = vsel %vm2689, %v2676, %v2678
      %v2696 = vsel %vm2689, %v2674, %v2676
      %v2697 = vsel %vm2689, %v2688, %v2674
      %vm2698 = vmand %vm2413, %vm1350
      %v2699 = vsel %vm2698, 1, 0
      %v2700 = vlaneseq
      %v2701 = vshrl.u32 %v2700, 7
      %v2702 = vsub.s32 0, %v2701
      %v2703 = vrot.slane %v2699, %v2702
      %v2704 = vlaneseq
      %v2705 = vshrl.u32 %v2704, 7
      %v2706 = vsub.s32 1, %v2705
      %v2707 = vrot.slane %v2699, %v2706
      %v2708 = vlaneseq
      %v2709 = vshrl.u32 %v2708, 7
      %v2710 = vsub.s32 2, %v2709
      %v2711 = vrot.slane %v2699, %v2710
      %v2712 = vlaneseq
      %v2713 = vshrl.u32 %v2712, 7
      %v2714 = vsub.s32 3, %v2713
      %v2715 = vrot.slane %v2699, %v2714
      %v2716 = vlaneseq
      %v2717 = vshrl.u32 %v2716, 7
      %v2718 = vsub.s32 4, %v2717
      %v2719 = vrot.slane %v2699, %v2718
      %v2720 = vlaneseq
      %v2721 = vshrl.u32 %v2720, 7
      %v2722 = vsub.s32 5, %v2721
      %v2723 = vrot.slane %v2699, %v2722
      %v2724 = vlaneseq
      %v2725 = vshrl.u32 %v2724, 7
      %v2726 = vsub.s32 6, %v2725
      %v2727 = vrot.slane %v2699, %v2726
      %v2728 = vlaneseq
      %v2729 = vshrl.u32 %v2728, 7
      %v2730 = vsub.s32 7, %v2729
      %v2731 = vrot.slane %v2699, %v2730
      %vm2732 = vcmp.eq.s32.totalorder %v2703, 1
      %vm2733 = vcmp.eq.s32.totalorder %v2707, 1
      %vm2734 = vcmp.eq.s32.totalorder %v2711, 1
      %vm2735 = vcmp.eq.s32.totalorder %v2715, 1
      %vm2736 = vcmp.eq.s32.totalorder %v2719, 1
      %vm2737 = vcmp.eq.s32.totalorder %v2723, 1
      %vm2738 = vcmp.eq.s32.totalorder %v2727, 1
      %vm2739 = vcmp.eq.s32.totalorder %v2731, 1
      %v2740 = vsel %vm2732, %v2696, 0.0
      %v2741 = vsel %vm2733, %v2695, 0.0
      %v2742 = vsel %vm2734, %v2694, 0.0
      %v2743 = vsel %vm2735, %v2693, 0.0
      %v2744 = vsel %vm2736, %v2692, 0.0
      %v2745 = vsel %vm2737, %v2691, 0.0
      %v2746 = vsel %vm2738, %v2690, 0.0
      %v2747 = vsel %vm2739, %v2697, 0.0
      %2748 = vset.pattern.permute.xlu0 18
      %2749 = vperm.xlu0 %2748, %v370
      %v2750 = vpop.permute.xlu0 %2749
      %v2752 = vmul.f32 %v2750, %v2740
      %v2753 = vmul.f32 %v2750, %v2741
      %v2754 = vmul.f32 %v2750, %v2742
      %v2755 = vmul.f32 %v2750, %v2743
      %v2756 = vmul.f32 %v2750, %v2744
      %v2757 = vmul.f32 %v2750, %v2745
      %v2758 = vmul.f32 %v2750, %v2746
      %v2759 = vmul.f32 %v2750, %v2747
      %v2760 = vadd.f32 %v2665, %v2752
      %v2761 = vadd.f32 %v2666, %v2753
      %v2762 = vadd.f32 %v2667, %v2754
      %v2763 = vadd.f32 %v2668, %v2755
      %v2764 = vadd.f32 %v2669, %v2756
      %v2765 = vadd.f32 %v2670, %v2757
      %v2766 = vadd.f32 %v2671, %v2758
      %v2767 = vadd.f32 %v2672, %v2759
      %2768 = vrot.lane.b32.xlu0 %v1027, 94
      %v2769 = vpop.permute.xlu0 %2768
      %2770 = vrot.lane.b32.xlu0 %v1028, 94
      %v2771 = vpop.permute.xlu0 %2770
      %2772 = vrot.lane.b32.xlu0 %v1029, 94
      %v2773 = vpop.permute.xlu0 %2772
      %2774 = vrot.lane.b32.xlu0 %v1030, 94
      %v2775 = vpop.permute.xlu0 %2774
      %2776 = vrot.lane.b32.xlu0 %v1031, 94
      %v2777 = vpop.permute.xlu0 %2776
      %2778 = vrot.lane.b32.xlu0 %v1032, 94
      %v2779 = vpop.permute.xlu0 %2778
      %2780 = vrot.lane.b32.xlu0 %v1033, 94
      %v2781 = vpop.permute.xlu0 %2780
      %2782 = vrot.lane.b32.xlu0 %v1034, 94
      %v2783 = vpop.permute.xlu0 %2782
      %vm2784 = vcmp.lt.s32.totalorder %v1052, 94
      %v2785 = vsel %vm2784, %v2781, %v2783
      %v2786 = vsel %vm2784, %v2779, %v2781
      %v2787 = vsel %vm2784, %v2777, %v2779
      %v2788 = vsel %vm2784, %v2775, %v2777
      %v2789 = vsel %vm2784, %v2773, %v2775
      %v2790 = vsel %vm2784, %v2771, %v2773
      %v2791 = vsel %vm2784, %v2769, %v2771
      %v2792 = vsel %vm2784, %v2783, %v2769
      %vm2793 = vmand %vm2413, %vm1446
      %v2794 = vsel %vm2793, 1, 0
      %v2795 = vlaneseq
      %v2796 = vshrl.u32 %v2795, 7
      %v2797 = vsub.s32 0, %v2796
      %v2798 = vrot.slane %v2794, %v2797
      %v2799 = vlaneseq
      %v2800 = vshrl.u32 %v2799, 7
      %v2801 = vsub.s32 1, %v2800
      %v2802 = vrot.slane %v2794, %v2801
      %v2803 = vlaneseq
      %v2804 = vshrl.u32 %v2803, 7
      %v2805 = vsub.s32 2, %v2804
      %v2806 = vrot.slane %v2794, %v2805
      %v2807 = vlaneseq
      %v2808 = vshrl.u32 %v2807, 7
      %v2809 = vsub.s32 3, %v2808
      %v2810 = vrot.slane %v2794, %v2809
      %v2811 = vlaneseq
      %v2812 = vshrl.u32 %v2811, 7
      %v2813 = vsub.s32 4, %v2812
      %v2814 = vrot.slane %v2794, %v2813
      %v2815 = vlaneseq
      %v2816 = vshrl.u32 %v2815, 7
      %v2817 = vsub.s32 5, %v2816
      %v2818 = vrot.slane %v2794, %v2817
      %v2819 = vlaneseq
      %v2820 = vshrl.u32 %v2819, 7
      %v2821 = vsub.s32 6, %v2820
      %v2822 = vrot.slane %v2794, %v2821
      %v2823 = vlaneseq
      %v2824 = vshrl.u32 %v2823, 7
      %v2825 = vsub.s32 7, %v2824
      %v2826 = vrot.slane %v2794, %v2825
      %vm2827 = vcmp.eq.s32.totalorder %v2798, 1
      %vm2828 = vcmp.eq.s32.totalorder %v2802, 1
      %vm2829 = vcmp.eq.s32.totalorder %v2806, 1
      %vm2830 = vcmp.eq.s32.totalorder %v2810, 1
      %vm2831 = vcmp.eq.s32.totalorder %v2814, 1
      %vm2832 = vcmp.eq.s32.totalorder %v2818, 1
      %vm2833 = vcmp.eq.s32.totalorder %v2822, 1
      %vm2834 = vcmp.eq.s32.totalorder %v2826, 1
      %v2835 = vsel %vm2827, %v2791, 0.0
      %v2836 = vsel %vm2828, %v2790, 0.0
      %v2837 = vsel %vm2829, %v2789, 0.0
      %v2838 = vsel %vm2830, %v2788, 0.0
      %v2839 = vsel %vm2831, %v2787, 0.0
      %v2840 = vsel %vm2832, %v2786, 0.0
      %v2841 = vsel %vm2833, %v2785, 0.0
      %v2842 = vsel %vm2834, %v2792, 0.0
      %2843 = vset.pattern.permute.xlu0 19
      %2844 = vperm.xlu0 %2843, %v370
      %v2845 = vpop.permute.xlu0 %2844
      %v2847 = vmul.f32 %v2845, %v2835
      %v2848 = vmul.f32 %v2845, %v2836
      %v2849 = vmul.f32 %v2845, %v2837
      %v2850 = vmul.f32 %v2845, %v2838
      %v2851 = vmul.f32 %v2845, %v2839
      %v2852 = vmul.f32 %v2845, %v2840
      %v2853 = vmul.f32 %v2845, %v2841
      %v2854 = vmul.f32 %v2845, %v2842
      %v2855 = vadd.f32 %v2760, %v2847
      %v2856 = vadd.f32 %v2761, %v2848
      %v2857 = vadd.f32 %v2762, %v2849
      %v2858 = vadd.f32 %v2763, %v2850
      %v2859 = vadd.f32 %v2764, %v2851
      %v2860 = vadd.f32 %v2765, %v2852
      %v2861 = vadd.f32 %v2766, %v2853
      %v2862 = vadd.f32 %v2767, %v2854
      %vm2863 = vcmp.lt.s32.totalorder %v368, 30
      %vm2864 = vmand %vm2863, %vm1063
      %v2865 = vsel %vm2864, 1, 0
      %v2866 = vlaneseq
      %v2867 = vshrl.u32 %v2866, 7
      %v2868 = vsub.s32 0, %v2867
      %v2869 = vrot.slane %v2865, %v2868
      %v2870 = vlaneseq
      %v2871 = vshrl.u32 %v2870, 7
      %v2872 = vsub.s32 1, %v2871
      %v2873 = vrot.slane %v2865, %v2872
      %v2874 = vlaneseq
      %v2875 = vshrl.u32 %v2874, 7
      %v2876 = vsub.s32 2, %v2875
      %v2877 = vrot.slane %v2865, %v2876
      %v2878 = vlaneseq
      %v2879 = vshrl.u32 %v2878, 7
      %v2880 = vsub.s32 3, %v2879
      %v2881 = vrot.slane %v2865, %v2880
      %v2882 = vlaneseq
      %v2883 = vshrl.u32 %v2882, 7
      %v2884 = vsub.s32 4, %v2883
      %v2885 = vrot.slane %v2865, %v2884
      %v2886 = vlaneseq
      %v2887 = vshrl.u32 %v2886, 7
      %v2888 = vsub.s32 5, %v2887
      %v2889 = vrot.slane %v2865, %v2888
      %v2890 = vlaneseq
      %v2891 = vshrl.u32 %v2890, 7
      %v2892 = vsub.s32 6, %v2891
      %v2893 = vrot.slane %v2865, %v2892
      %v2894 = vlaneseq
      %v2895 = vshrl.u32 %v2894, 7
      %v2896 = vsub.s32 7, %v2895
      %v2897 = vrot.slane %v2865, %v2896
      %vm2898 = vcmp.eq.s32.totalorder %v2869, 1
      %vm2899 = vcmp.eq.s32.totalorder %v2873, 1
      %vm2900 = vcmp.eq.s32.totalorder %v2877, 1
      %vm2901 = vcmp.eq.s32.totalorder %v2881, 1
      %vm2902 = vcmp.eq.s32.totalorder %v2885, 1
      %vm2903 = vcmp.eq.s32.totalorder %v2889, 1
      %vm2904 = vcmp.eq.s32.totalorder %v2893, 1
      %vm2905 = vcmp.eq.s32.totalorder %v2897, 1
      %v2906 = vsel %vm2898, %v1060, 0.0
      %v2907 = vsel %vm2899, %v1059, 0.0
      %v2908 = vsel %vm2900, %v1058, 0.0
      %v2909 = vsel %vm2901, %v1057, 0.0
      %v2910 = vsel %vm2902, %v1056, 0.0
      %v2911 = vsel %vm2903, %v1055, 0.0
      %v2912 = vsel %vm2904, %v1054, 0.0
      %v2913 = vsel %vm2905, %v1061, 0.0
      %2914 = vset.pattern.permute.xlu0 20
      %2915 = vperm.xlu0 %2914, %v370
      %v2916 = vpop.permute.xlu0 %2915
      %v2918 = vmul.f32 %v2916, %v2906
      %v2919 = vmul.f32 %v2916, %v2907
      %v2920 = vmul.f32 %v2916, %v2908
      %v2921 = vmul.f32 %v2916, %v2909
      %v2922 = vmul.f32 %v2916, %v2910
      %v2923 = vmul.f32 %v2916, %v2911
      %v2924 = vmul.f32 %v2916, %v2912
      %v2925 = vmul.f32 %v2916, %v2913
      %v2926 = vadd.f32 %v2855, %v2918
      %v2927 = vadd.f32 %v2856, %v2919
      %v2928 = vadd.f32 %v2857, %v2920
      %v2929 = vadd.f32 %v2858, %v2921
      %v2930 = vadd.f32 %v2859, %v2922
      %v2931 = vadd.f32 %v2860, %v2923
      %v2932 = vadd.f32 %v2861, %v2924
      %v2933 = vadd.f32 %v2862, %v2925
      %vm2934 = vmand %vm2863, %vm1160
      %v2935 = vsel %vm2934, 1, 0
      %v2936 = vlaneseq
      %v2937 = vshrl.u32 %v2936, 7
      %v2938 = vsub.s32 0, %v2937
      %v2939 = vrot.slane %v2935, %v2938
      %v2940 = vlaneseq
      %v2941 = vshrl.u32 %v2940, 7
      %v2942 = vsub.s32 1, %v2941
      %v2943 = vrot.slane %v2935, %v2942
      %v2944 = vlaneseq
      %v2945 = vshrl.u32 %v2944, 7
      %v2946 = vsub.s32 2, %v2945
      %v2947 = vrot.slane %v2935, %v2946
      %v2948 = vlaneseq
      %v2949 = vshrl.u32 %v2948, 7
      %v2950 = vsub.s32 3, %v2949
      %v2951 = vrot.slane %v2935, %v2950
      %v2952 = vlaneseq
      %v2953 = vshrl.u32 %v2952, 7
      %v2954 = vsub.s32 4, %v2953
      %v2955 = vrot.slane %v2935, %v2954
      %v2956 = vlaneseq
      %v2957 = vshrl.u32 %v2956, 7
      %v2958 = vsub.s32 5, %v2957
      %v2959 = vrot.slane %v2935, %v2958
      %v2960 = vlaneseq
      %v2961 = vshrl.u32 %v2960, 7
      %v2962 = vsub.s32 6, %v2961
      %v2963 = vrot.slane %v2935, %v2962
      %v2964 = vlaneseq
      %v2965 = vshrl.u32 %v2964, 7
      %v2966 = vsub.s32 7, %v2965
      %v2967 = vrot.slane %v2935, %v2966
      %vm2968 = vcmp.eq.s32.totalorder %v2939, 1
      %vm2969 = vcmp.eq.s32.totalorder %v2943, 1
      %vm2970 = vcmp.eq.s32.totalorder %v2947, 1
      %vm2971 = vcmp.eq.s32.totalorder %v2951, 1
      %vm2972 = vcmp.eq.s32.totalorder %v2955, 1
      %vm2973 = vcmp.eq.s32.totalorder %v2959, 1
      %vm2974 = vcmp.eq.s32.totalorder %v2963, 1
      %vm2975 = vcmp.eq.s32.totalorder %v2967, 1
      %v2976 = vsel %vm2968, %v1158, 0.0
      %v2977 = vsel %vm2969, %v1157, 0.0
      %v2978 = vsel %vm2970, %v1156, 0.0
      %v2979 = vsel %vm2971, %v1155, 0.0
      %v2980 = vsel %vm2972, %v1154, 0.0
      %v2981 = vsel %vm2973, %v1153, 0.0
      %v2982 = vsel %vm2974, %v1152, 0.0
      %v2983 = vsel %vm2975, %v1159, 0.0
      %2984 = vset.pattern.permute.xlu0 21
      %2985 = vperm.xlu0 %2984, %v370
      %v2986 = vpop.permute.xlu0 %2985
      %v2988 = vmul.f32 %v2986, %v2976
      %v2989 = vmul.f32 %v2986, %v2977
      %v2990 = vmul.f32 %v2986, %v2978
      %v2991 = vmul.f32 %v2986, %v2979
      %v2992 = vmul.f32 %v2986, %v2980
      %v2993 = vmul.f32 %v2986, %v2981
      %v2994 = vmul.f32 %v2986, %v2982
      %v2995 = vmul.f32 %v2986, %v2983
      %v2996 = vadd.f32 %v2926, %v2988
      %v2997 = vadd.f32 %v2927, %v2989
      %v2998 = vadd.f32 %v2928, %v2990
      %v2999 = vadd.f32 %v2929, %v2991
      %v3000 = vadd.f32 %v2930, %v2992
      %v3001 = vadd.f32 %v2931, %v2993
      %v3002 = vadd.f32 %v2932, %v2994
      %v3003 = vadd.f32 %v2933, %v2995
      %v3004 = vsel %vm2863, 1, 0
      %v3005 = vlaneseq
      %v3006 = vshrl.u32 %v3005, 7
      %v3007 = vsub.s32 0, %v3006
      %v3008 = vrot.slane %v3004, %v3007
      %v3009 = vlaneseq
      %v3010 = vshrl.u32 %v3009, 7
      %v3011 = vsub.s32 1, %v3010
      %v3012 = vrot.slane %v3004, %v3011
      %v3013 = vlaneseq
      %v3014 = vshrl.u32 %v3013, 7
      %v3015 = vsub.s32 2, %v3014
      %v3016 = vrot.slane %v3004, %v3015
      %v3017 = vlaneseq
      %v3018 = vshrl.u32 %v3017, 7
      %v3019 = vsub.s32 3, %v3018
      %v3020 = vrot.slane %v3004, %v3019
      %v3021 = vlaneseq
      %v3022 = vshrl.u32 %v3021, 7
      %v3023 = vsub.s32 4, %v3022
      %v3024 = vrot.slane %v3004, %v3023
      %v3025 = vlaneseq
      %v3026 = vshrl.u32 %v3025, 7
      %v3027 = vsub.s32 5, %v3026
      %v3028 = vrot.slane %v3004, %v3027
      %v3029 = vlaneseq
      %v3030 = vshrl.u32 %v3029, 7
      %v3031 = vsub.s32 6, %v3030
      %v3032 = vrot.slane %v3004, %v3031
      %v3033 = vlaneseq
      %v3034 = vshrl.u32 %v3033, 7
      %v3035 = vsub.s32 7, %v3034
      %v3036 = vrot.slane %v3004, %v3035
      %vm3037 = vcmp.eq.s32.totalorder %v3008, 1
      %vm3038 = vcmp.eq.s32.totalorder %v3012, 1
      %vm3039 = vcmp.eq.s32.totalorder %v3016, 1
      %vm3040 = vcmp.eq.s32.totalorder %v3020, 1
      %vm3041 = vcmp.eq.s32.totalorder %v3024, 1
      %vm3042 = vcmp.eq.s32.totalorder %v3028, 1
      %vm3043 = vcmp.eq.s32.totalorder %v3032, 1
      %vm3044 = vcmp.eq.s32.totalorder %v3036, 1
      %v3045 = vsel %vm3037, %v1254, 0.0
      %v3046 = vsel %vm3038, %v1253, 0.0
      %v3047 = vsel %vm3039, %v1252, 0.0
      %v3048 = vsel %vm3040, %v1251, 0.0
      %v3049 = vsel %vm3041, %v1250, 0.0
      %v3050 = vsel %vm3042, %v1249, 0.0
      %v3051 = vsel %vm3043, %v1248, 0.0
      %v3052 = vsel %vm3044, %v1255, 0.0
      %3053 = vset.pattern.permute.xlu0 22
      %3054 = vperm.xlu0 %3053, %v370
      %v3055 = vpop.permute.xlu0 %3054
      %v3057 = vmul.f32 %v3055, %v3045
      %v3058 = vmul.f32 %v3055, %v3046
      %v3059 = vmul.f32 %v3055, %v3047
      %v3060 = vmul.f32 %v3055, %v3048
      %v3061 = vmul.f32 %v3055, %v3049
      %v3062 = vmul.f32 %v3055, %v3050
      %v3063 = vmul.f32 %v3055, %v3051
      %v3064 = vmul.f32 %v3055, %v3052
      %v3065 = vadd.f32 %v2996, %v3057
      %v3066 = vadd.f32 %v2997, %v3058
      %v3067 = vadd.f32 %v2998, %v3059
      %v3068 = vadd.f32 %v2999, %v3060
      %v3069 = vadd.f32 %v3000, %v3061
      %v3070 = vadd.f32 %v3001, %v3062
      %v3071 = vadd.f32 %v3002, %v3063
      %v3072 = vadd.f32 %v3003, %v3064
      %vm3073 = vmand %vm2863, %vm1350
      %v3074 = vsel %vm3073, 1, 0
      %v3075 = vlaneseq
      %v3076 = vshrl.u32 %v3075, 7
      %v3077 = vsub.s32 0, %v3076
      %v3078 = vrot.slane %v3074, %v3077
      %v3079 = vlaneseq
      %v3080 = vshrl.u32 %v3079, 7
      %v3081 = vsub.s32 1, %v3080
      %v3082 = vrot.slane %v3074, %v3081
      %v3083 = vlaneseq
      %v3084 = vshrl.u32 %v3083, 7
      %v3085 = vsub.s32 2, %v3084
      %v3086 = vrot.slane %v3074, %v3085
      %v3087 = vlaneseq
      %v3088 = vshrl.u32 %v3087, 7
      %v3089 = vsub.s32 3, %v3088
      %v3090 = vrot.slane %v3074, %v3089
      %v3091 = vlaneseq
      %v3092 = vshrl.u32 %v3091, 7
      %v3093 = vsub.s32 4, %v3092
      %v3094 = vrot.slane %v3074, %v3093
      %v3095 = vlaneseq
      %v3096 = vshrl.u32 %v3095, 7
      %v3097 = vsub.s32 5, %v3096
      %v3098 = vrot.slane %v3074, %v3097
      %v3099 = vlaneseq
      %v3100 = vshrl.u32 %v3099, 7
      %v3101 = vsub.s32 6, %v3100
      %v3102 = vrot.slane %v3074, %v3101
      %v3103 = vlaneseq
      %v3104 = vshrl.u32 %v3103, 7
      %v3105 = vsub.s32 7, %v3104
      %v3106 = vrot.slane %v3074, %v3105
      %vm3107 = vcmp.eq.s32.totalorder %v3078, 1
      %vm3108 = vcmp.eq.s32.totalorder %v3082, 1
      %vm3109 = vcmp.eq.s32.totalorder %v3086, 1
      %vm3110 = vcmp.eq.s32.totalorder %v3090, 1
      %vm3111 = vcmp.eq.s32.totalorder %v3094, 1
      %vm3112 = vcmp.eq.s32.totalorder %v3098, 1
      %vm3113 = vcmp.eq.s32.totalorder %v3102, 1
      %vm3114 = vcmp.eq.s32.totalorder %v3106, 1
      %v3115 = vsel %vm3107, %v1348, 0.0
      %v3116 = vsel %vm3108, %v1347, 0.0
      %v3117 = vsel %vm3109, %v1346, 0.0
      %v3118 = vsel %vm3110, %v1345, 0.0
      %v3119 = vsel %vm3111, %v1344, 0.0
      %v3120 = vsel %vm3112, %v1343, 0.0
      %v3121 = vsel %vm3113, %v1342, 0.0
      %v3122 = vsel %vm3114, %v1349, 0.0
      %3123 = vset.pattern.permute.xlu0 23
      %3124 = vperm.xlu0 %3123, %v370
      %v3125 = vpop.permute.xlu0 %3124
      %v3127 = vmul.f32 %v3125, %v3115
      %v3128 = vmul.f32 %v3125, %v3116
      %v3129 = vmul.f32 %v3125, %v3117
      %v3130 = vmul.f32 %v3125, %v3118
      %v3131 = vmul.f32 %v3125, %v3119
      %v3132 = vmul.f32 %v3125, %v3120
      %v3133 = vmul.f32 %v3125, %v3121
      %v3134 = vmul.f32 %v3125, %v3122
      %v3135 = vadd.f32 %v3065, %v3127
      %v3136 = vadd.f32 %v3066, %v3128
      %v3137 = vadd.f32 %v3067, %v3129
      %v3138 = vadd.f32 %v3068, %v3130
      %v3139 = vadd.f32 %v3069, %v3131
      %v3140 = vadd.f32 %v3070, %v3132
      %v3141 = vadd.f32 %v3071, %v3133
      %v3142 = vadd.f32 %v3072, %v3134
      %vm3143 = vmand %vm2863, %vm1446
      %v3144 = vsel %vm3143, 1, 0
      %v3145 = vlaneseq
      %v3146 = vshrl.u32 %v3145, 7
      %v3147 = vsub.s32 0, %v3146
      %v3148 = vrot.slane %v3144, %v3147
      %v3149 = vlaneseq
      %v3150 = vshrl.u32 %v3149, 7
      %v3151 = vsub.s32 1, %v3150
      %v3152 = vrot.slane %v3144, %v3151
      %v3153 = vlaneseq
      %v3154 = vshrl.u32 %v3153, 7
      %v3155 = vsub.s32 2, %v3154
      %v3156 = vrot.slane %v3144, %v3155
      %v3157 = vlaneseq
      %v3158 = vshrl.u32 %v3157, 7
      %v3159 = vsub.s32 3, %v3158
      %v3160 = vrot.slane %v3144, %v3159
      %v3161 = vlaneseq
      %v3162 = vshrl.u32 %v3161, 7
      %v3163 = vsub.s32 4, %v3162
      %v3164 = vrot.slane %v3144, %v3163
      %v3165 = vlaneseq
      %v3166 = vshrl.u32 %v3165, 7
      %v3167 = vsub.s32 5, %v3166
      %v3168 = vrot.slane %v3144, %v3167
      %v3169 = vlaneseq
      %v3170 = vshrl.u32 %v3169, 7
      %v3171 = vsub.s32 6, %v3170
      %v3172 = vrot.slane %v3144, %v3171
      %v3173 = vlaneseq
      %v3174 = vshrl.u32 %v3173, 7
      %v3175 = vsub.s32 7, %v3174
      %v3176 = vrot.slane %v3144, %v3175
      %vm3177 = vcmp.eq.s32.totalorder %v3148, 1
      %vm3178 = vcmp.eq.s32.totalorder %v3152, 1
      %vm3179 = vcmp.eq.s32.totalorder %v3156, 1
      %vm3180 = vcmp.eq.s32.totalorder %v3160, 1
      %vm3181 = vcmp.eq.s32.totalorder %v3164, 1
      %vm3182 = vcmp.eq.s32.totalorder %v3168, 1
      %vm3183 = vcmp.eq.s32.totalorder %v3172, 1
      %vm3184 = vcmp.eq.s32.totalorder %v3176, 1
      %v3185 = vsel %vm3177, %v1444, 0.0
      %v3186 = vsel %vm3178, %v1443, 0.0
      %v3187 = vsel %vm3179, %v1442, 0.0
      %v3188 = vsel %vm3180, %v1441, 0.0
      %v3189 = vsel %vm3181, %v1440, 0.0
      %v3190 = vsel %vm3182, %v1439, 0.0
      %v3191 = vsel %vm3183, %v1438, 0.0
      %v3192 = vsel %vm3184, %v1445, 0.0
      %3193 = vset.pattern.permute.xlu0 24
      %3194 = vperm.xlu0 %3193, %v370
      %v3195 = vpop.permute.xlu0 %3194
      %v3197 = vmul.f32 %v3195, %v3185
      %v3198 = vmul.f32 %v3195, %v3186
      %v3199 = vmul.f32 %v3195, %v3187
      %v3200 = vmul.f32 %v3195, %v3188
      %v3201 = vmul.f32 %v3195, %v3189
      %v3202 = vmul.f32 %v3195, %v3190
      %v3203 = vmul.f32 %v3195, %v3191
      %v3204 = vmul.f32 %v3195, %v3192
      %v3205 = vadd.f32 %v3135, %v3197
      %v3206 = vadd.f32 %v3136, %v3198
      %v3207 = vadd.f32 %v3137, %v3199
      %v3208 = vadd.f32 %v3138, %v3200
      %v3209 = vadd.f32 %v3139, %v3201
      %v3210 = vadd.f32 %v3140, %v3202
      %v3211 = vadd.f32 %v3141, %v3203
      %v3212 = vadd.f32 %v3142, %v3204
      %3213 = vset.pattern.permute.xlu0 25
      %3214 = vperm.xlu0 %3213, %v370
      %v3215 = vpop.permute.xlu0 %3214
      %v3217 = vadd.f32 %v3205, %v3215
      %v3218 = vadd.f32 %v3206, %v3215
      %v3219 = vadd.f32 %v3207, %v3215
      %v3220 = vadd.f32 %v3208, %v3215
      %v3221 = vadd.f32 %v3209, %v3215
      %v3222 = vadd.f32 %v3210, %v3215
      %v3223 = vadd.f32 %v3211, %v3215
      %v3224 = vadd.f32 %v3212, %v3215
      %3225 = vrot.lane.b32.xlu0 %v3217, 10
      %v3226 = vpop.permute.xlu0 %3225
      %3227 = vrot.lane.b32.xlu0 %v3218, 10
      %v3228 = vpop.permute.xlu0 %3227
      %3229 = vrot.lane.b32.xlu0 %v3219, 10
      %v3230 = vpop.permute.xlu0 %3229
      %3231 = vrot.lane.b32.xlu0 %v3220, 10
      %v3232 = vpop.permute.xlu0 %3231
      %3233 = vrot.lane.b32.xlu0 %v3221, 10
      %v3234 = vpop.permute.xlu0 %3233
      %3235 = vrot.lane.b32.xlu0 %v3222, 10
      %v3236 = vpop.permute.xlu0 %3235
      %3237 = vrot.lane.b32.xlu0 %v3223, 10
      %v3238 = vpop.permute.xlu0 %3237
      %3239 = vrot.lane.b32.xlu0 %v3224, 10
      %v3240 = vpop.permute.xlu0 %3239
      %vm3241 = vcmp.lt.s32.totalorder %v1052, 10
      %v3242 = vsel %vm3241, %v3238, %v3240
      %v3243 = vsel %vm3241, %v3236, %v3238
      %v3244 = vsel %vm3241, %v3234, %v3236
      %v3245 = vsel %vm3241, %v3232, %v3234
      %v3246 = vsel %vm3241, %v3230, %v3232
      %v3247 = vsel %vm3241, %v3228, %v3230
      %v3248 = vsel %vm3241, %v3226, %v3228
      %v3249 = vsel %vm3241, %v3240, %v3226
      %vm3250 = vcmp.ge.s32.totalorder %v369, 10
      %v3251 = vsel %vm3250, 1, 0
      %v3252 = vlaneseq
      %v3253 = vshrl.u32 %v3252, 7
      %v3254 = vsub.s32 0, %v3253
      %v3255 = vrot.slane %v3251, %v3254
      %v3256 = vlaneseq
      %v3257 = vshrl.u32 %v3256, 7
      %v3258 = vsub.s32 1, %v3257
      %v3259 = vrot.slane %v3251, %v3258
      %v3260 = vlaneseq
      %v3261 = vshrl.u32 %v3260, 7
      %v3262 = vsub.s32 2, %v3261
      %v3263 = vrot.slane %v3251, %v3262
      %v3264 = vlaneseq
      %v3265 = vshrl.u32 %v3264, 7
      %v3266 = vsub.s32 3, %v3265
      %v3267 = vrot.slane %v3251, %v3266
      %v3268 = vlaneseq
      %v3269 = vshrl.u32 %v3268, 7
      %v3270 = vsub.s32 4, %v3269
      %v3271 = vrot.slane %v3251, %v3270
      %v3272 = vlaneseq
      %v3273 = vshrl.u32 %v3272, 7
      %v3274 = vsub.s32 5, %v3273
      %v3275 = vrot.slane %v3251, %v3274
      %v3276 = vlaneseq
      %v3277 = vshrl.u32 %v3276, 7
      %v3278 = vsub.s32 6, %v3277
      %v3279 = vrot.slane %v3251, %v3278
      %v3280 = vlaneseq
      %v3281 = vshrl.u32 %v3280, 7
      %v3282 = vsub.s32 7, %v3281
      %v3283 = vrot.slane %v3251, %v3282
      %vm3284 = vcmp.eq.s32.totalorder %v3255, 1
      %vm3285 = vcmp.eq.s32.totalorder %v3259, 1
      %vm3286 = vcmp.eq.s32.totalorder %v3263, 1
      %vm3287 = vcmp.eq.s32.totalorder %v3267, 1
      %vm3288 = vcmp.eq.s32.totalorder %v3271, 1
      %vm3289 = vcmp.eq.s32.totalorder %v3275, 1
      %vm3290 = vcmp.eq.s32.totalorder %v3279, 1
      %vm3291 = vcmp.eq.s32.totalorder %v3283, 1
      %v3292 = vsel %vm3284, %v3249, 0.0
      %v3293 = vsel %vm3285, %v3248, 0.0
      %v3294 = vsel %vm3286, %v3247, 0.0
      %v3295 = vsel %vm3287, %v3246, 0.0
      %v3296 = vsel %vm3288, %v3245, 0.0
      %v3297 = vsel %vm3289, %v3244, 0.0
      %v3298 = vsel %vm3290, %v3243, 0.0
      %v3299 = vsel %vm3291, %v3242, 0.0
      %3300 = vset.pattern.permute.xlu0 66
      %3301 = vperm.xlu0 %3300, %v370
      %v3302 = vpop.permute.xlu0 %3301
      %v3304 = vmul.f32 %v3302, %v3292
      %v3305 = vmul.f32 %v3302, %v3293
      %v3306 = vmul.f32 %v3302, %v3294
      %v3307 = vmul.f32 %v3302, %v3295
      %v3308 = vmul.f32 %v3302, %v3296
      %v3309 = vmul.f32 %v3302, %v3297
      %v3310 = vmul.f32 %v3302, %v3298
      %v3311 = vmul.f32 %v3302, %v3299
      %v3312 = vadd.f32 %v3304, 0.0
      %v3313 = vadd.f32 %v3305, 0.0
      %v3314 = vadd.f32 %v3306, 0.0
      %v3315 = vadd.f32 %v3307, 0.0
      %v3316 = vadd.f32 %v3308, 0.0
      %v3317 = vadd.f32 %v3309, 0.0
      %v3318 = vadd.f32 %v3310, 0.0
      %v3319 = vadd.f32 %v3311, 0.0
      %3320 = vrot.lane.b32.xlu0 %v3217, 9
      %v3321 = vpop.permute.xlu0 %3320
      %3322 = vrot.lane.b32.xlu0 %v3218, 9
      %v3323 = vpop.permute.xlu0 %3322
      %3324 = vrot.lane.b32.xlu0 %v3219, 9
      %v3325 = vpop.permute.xlu0 %3324
      %3326 = vrot.lane.b32.xlu0 %v3220, 9
      %v3327 = vpop.permute.xlu0 %3326
      %3328 = vrot.lane.b32.xlu0 %v3221, 9
      %v3329 = vpop.permute.xlu0 %3328
      %3330 = vrot.lane.b32.xlu0 %v3222, 9
      %v3331 = vpop.permute.xlu0 %3330
      %3332 = vrot.lane.b32.xlu0 %v3223, 9
      %v3333 = vpop.permute.xlu0 %3332
      %3334 = vrot.lane.b32.xlu0 %v3224, 9
      %v3335 = vpop.permute.xlu0 %3334
      %vm3336 = vcmp.lt.s32.totalorder %v1052, 9
      %v3337 = vsel %vm3336, %v3333, %v3335
      %v3338 = vsel %vm3336, %v3331, %v3333
      %v3339 = vsel %vm3336, %v3329, %v3331
      %v3340 = vsel %vm3336, %v3327, %v3329
      %v3341 = vsel %vm3336, %v3325, %v3327
      %v3342 = vsel %vm3336, %v3323, %v3325
      %v3343 = vsel %vm3336, %v3321, %v3323
      %v3344 = vsel %vm3336, %v3335, %v3321
      %vm3345 = vcmp.ge.s32.totalorder %v369, 9
      %v3346 = vsel %vm3345, 1, 0
      %v3347 = vlaneseq
      %v3348 = vshrl.u32 %v3347, 7
      %v3349 = vsub.s32 0, %v3348
      %v3350 = vrot.slane %v3346, %v3349
      %v3351 = vlaneseq
      %v3352 = vshrl.u32 %v3351, 7
      %v3353 = vsub.s32 1, %v3352
      %v3354 = vrot.slane %v3346, %v3353
      %v3355 = vlaneseq
      %v3356 = vshrl.u32 %v3355, 7
      %v3357 = vsub.s32 2, %v3356
      %v3358 = vrot.slane %v3346, %v3357
      %v3359 = vlaneseq
      %v3360 = vshrl.u32 %v3359, 7
      %v3361 = vsub.s32 3, %v3360
      %v3362 = vrot.slane %v3346, %v3361
      %v3363 = vlaneseq
      %v3364 = vshrl.u32 %v3363, 7
      %v3365 = vsub.s32 4, %v3364
      %v3366 = vrot.slane %v3346, %v3365
      %v3367 = vlaneseq
      %v3368 = vshrl.u32 %v3367, 7
      %v3369 = vsub.s32 5, %v3368
      %v3370 = vrot.slane %v3346, %v3369
      %v3371 = vlaneseq
      %v3372 = vshrl.u32 %v3371, 7
      %v3373 = vsub.s32 6, %v3372
      %v3374 = vrot.slane %v3346, %v3373
      %v3375 = vlaneseq
      %v3376 = vshrl.u32 %v3375, 7
      %v3377 = vsub.s32 7, %v3376
      %v3378 = vrot.slane %v3346, %v3377
      %vm3379 = vcmp.eq.s32.totalorder %v3350, 1
      %vm3380 = vcmp.eq.s32.totalorder %v3354, 1
      %vm3381 = vcmp.eq.s32.totalorder %v3358, 1
      %vm3382 = vcmp.eq.s32.totalorder %v3362, 1
      %vm3383 = vcmp.eq.s32.totalorder %v3366, 1
      %vm3384 = vcmp.eq.s32.totalorder %v3370, 1
      %vm3385 = vcmp.eq.s32.totalorder %v3374, 1
      %vm3386 = vcmp.eq.s32.totalorder %v3378, 1
      %v3387 = vsel %vm3379, %v3344, 0.0
      %v3388 = vsel %vm3380, %v3343, 0.0
      %v3389 = vsel %vm3381, %v3342, 0.0
      %v3390 = vsel %vm3382, %v3341, 0.0
      %v3391 = vsel %vm3383, %v3340, 0.0
      %v3392 = vsel %vm3384, %v3339, 0.0
      %v3393 = vsel %vm3385, %v3338, 0.0
      %v3394 = vsel %vm3386, %v3337, 0.0
      %3395 = vset.pattern.permute.xlu0 67
      %3396 = vperm.xlu0 %3395, %v370
      %v3397 = vpop.permute.xlu0 %3396
      %v3399 = vmul.f32 %v3397, %v3387
      %v3400 = vmul.f32 %v3397, %v3388
      %v3401 = vmul.f32 %v3397, %v3389
      %v3402 = vmul.f32 %v3397, %v3390
      %v3403 = vmul.f32 %v3397, %v3391
      %v3404 = vmul.f32 %v3397, %v3392
      %v3405 = vmul.f32 %v3397, %v3393
      %v3406 = vmul.f32 %v3397, %v3394
      %v3407 = vadd.f32 %v3312, %v3399
      %v3408 = vadd.f32 %v3313, %v3400
      %v3409 = vadd.f32 %v3314, %v3401
      %v3410 = vadd.f32 %v3315, %v3402
      %v3411 = vadd.f32 %v3316, %v3403
      %v3412 = vadd.f32 %v3317, %v3404
      %v3413 = vadd.f32 %v3318, %v3405
      %v3414 = vadd.f32 %v3319, %v3406
      %3415 = vrot.lane.b32.xlu0 %v3217, 8
      %v3416 = vpop.permute.xlu0 %3415
      %3417 = vrot.lane.b32.xlu0 %v3218, 8
      %v3418 = vpop.permute.xlu0 %3417
      %3419 = vrot.lane.b32.xlu0 %v3219, 8
      %v3420 = vpop.permute.xlu0 %3419
      %3421 = vrot.lane.b32.xlu0 %v3220, 8
      %v3422 = vpop.permute.xlu0 %3421
      %3423 = vrot.lane.b32.xlu0 %v3221, 8
      %v3424 = vpop.permute.xlu0 %3423
      %3425 = vrot.lane.b32.xlu0 %v3222, 8
      %v3426 = vpop.permute.xlu0 %3425
      %3427 = vrot.lane.b32.xlu0 %v3223, 8
      %v3428 = vpop.permute.xlu0 %3427
      %3429 = vrot.lane.b32.xlu0 %v3224, 8
      %v3430 = vpop.permute.xlu0 %3429
      %vm3431 = vcmp.lt.s32.totalorder %v1052, 8
      %v3432 = vsel %vm3431, %v3428, %v3430
      %v3433 = vsel %vm3431, %v3426, %v3428
      %v3434 = vsel %vm3431, %v3424, %v3426
      %v3435 = vsel %vm3431, %v3422, %v3424
      %v3436 = vsel %vm3431, %v3420, %v3422
      %v3437 = vsel %vm3431, %v3418, %v3420
      %v3438 = vsel %vm3431, %v3416, %v3418
      %v3439 = vsel %vm3431, %v3430, %v3416
      %vm3440 = vcmp.ge.s32.totalorder %v369, 8
      %v3441 = vsel %vm3440, 1, 0
      %v3442 = vlaneseq
      %v3443 = vshrl.u32 %v3442, 7
      %v3444 = vsub.s32 0, %v3443
      %v3445 = vrot.slane %v3441, %v3444
      %v3446 = vlaneseq
      %v3447 = vshrl.u32 %v3446, 7
      %v3448 = vsub.s32 1, %v3447
      %v3449 = vrot.slane %v3441, %v3448
      %v3450 = vlaneseq
      %v3451 = vshrl.u32 %v3450, 7
      %v3452 = vsub.s32 2, %v3451
      %v3453 = vrot.slane %v3441, %v3452
      %v3454 = vlaneseq
      %v3455 = vshrl.u32 %v3454, 7
      %v3456 = vsub.s32 3, %v3455
      %v3457 = vrot.slane %v3441, %v3456
      %v3458 = vlaneseq
      %v3459 = vshrl.u32 %v3458, 7
      %v3460 = vsub.s32 4, %v3459
      %v3461 = vrot.slane %v3441, %v3460
      %v3462 = vlaneseq
      %v3463 = vshrl.u32 %v3462, 7
      %v3464 = vsub.s32 5, %v3463
      %v3465 = vrot.slane %v3441, %v3464
      %v3466 = vlaneseq
      %v3467 = vshrl.u32 %v3466, 7
      %v3468 = vsub.s32 6, %v3467
      %v3469 = vrot.slane %v3441, %v3468
      %v3470 = vlaneseq
      %v3471 = vshrl.u32 %v3470, 7
      %v3472 = vsub.s32 7, %v3471
      %v3473 = vrot.slane %v3441, %v3472
      %vm3474 = vcmp.eq.s32.totalorder %v3445, 1
      %vm3475 = vcmp.eq.s32.totalorder %v3449, 1
      %vm3476 = vcmp.eq.s32.totalorder %v3453, 1
      %vm3477 = vcmp.eq.s32.totalorder %v3457, 1
      %vm3478 = vcmp.eq.s32.totalorder %v3461, 1
      %vm3479 = vcmp.eq.s32.totalorder %v3465, 1
      %vm3480 = vcmp.eq.s32.totalorder %v3469, 1
      %vm3481 = vcmp.eq.s32.totalorder %v3473, 1
      %v3482 = vsel %vm3474, %v3439, 0.0
      %v3483 = vsel %vm3475, %v3438, 0.0
      %v3484 = vsel %vm3476, %v3437, 0.0
      %v3485 = vsel %vm3477, %v3436, 0.0
      %v3486 = vsel %vm3478, %v3435, 0.0
      %v3487 = vsel %vm3479, %v3434, 0.0
      %v3488 = vsel %vm3480, %v3433, 0.0
      %v3489 = vsel %vm3481, %v3432, 0.0
      %3490 = vset.pattern.permute.xlu0 68
      %3491 = vperm.xlu0 %3490, %v370
      %v3492 = vpop.permute.xlu0 %3491
      %v3494 = vmul.f32 %v3492, %v3482
      %v3495 = vmul.f32 %v3492, %v3483
      %v3496 = vmul.f32 %v3492, %v3484
      %v3497 = vmul.f32 %v3492, %v3485
      %v3498 = vmul.f32 %v3492, %v3486
      %v3499 = vmul.f32 %v3492, %v3487
      %v3500 = vmul.f32 %v3492, %v3488
      %v3501 = vmul.f32 %v3492, %v3489
      %v3502 = vadd.f32 %v3407, %v3494
      %v3503 = vadd.f32 %v3408, %v3495
      %v3504 = vadd.f32 %v3409, %v3496
      %v3505 = vadd.f32 %v3410, %v3497
      %v3506 = vadd.f32 %v3411, %v3498
      %v3507 = vadd.f32 %v3412, %v3499
      %v3508 = vadd.f32 %v3413, %v3500
      %v3509 = vadd.f32 %v3414, %v3501
      %3510 = vrot.lane.b32.xlu0 %v3217, 7
      %v3511 = vpop.permute.xlu0 %3510
      %3512 = vrot.lane.b32.xlu0 %v3218, 7
      %v3513 = vpop.permute.xlu0 %3512
      %3514 = vrot.lane.b32.xlu0 %v3219, 7
      %v3515 = vpop.permute.xlu0 %3514
      %3516 = vrot.lane.b32.xlu0 %v3220, 7
      %v3517 = vpop.permute.xlu0 %3516
      %3518 = vrot.lane.b32.xlu0 %v3221, 7
      %v3519 = vpop.permute.xlu0 %3518
      %3520 = vrot.lane.b32.xlu0 %v3222, 7
      %v3521 = vpop.permute.xlu0 %3520
      %3522 = vrot.lane.b32.xlu0 %v3223, 7
      %v3523 = vpop.permute.xlu0 %3522
      %3524 = vrot.lane.b32.xlu0 %v3224, 7
      %v3525 = vpop.permute.xlu0 %3524
      %vm3526 = vcmp.lt.s32.totalorder %v1052, 7
      %v3527 = vsel %vm3526, %v3523, %v3525
      %v3528 = vsel %vm3526, %v3521, %v3523
      %v3529 = vsel %vm3526, %v3519, %v3521
      %v3530 = vsel %vm3526, %v3517, %v3519
      %v3531 = vsel %vm3526, %v3515, %v3517
      %v3532 = vsel %vm3526, %v3513, %v3515
      %v3533 = vsel %vm3526, %v3511, %v3513
      %v3534 = vsel %vm3526, %v3525, %v3511
      %vm3535 = vcmp.ge.s32.totalorder %v369, 7
      %v3536 = vsel %vm3535, 1, 0
      %v3537 = vlaneseq
      %v3538 = vshrl.u32 %v3537, 7
      %v3539 = vsub.s32 0, %v3538
      %v3540 = vrot.slane %v3536, %v3539
      %v3541 = vlaneseq
      %v3542 = vshrl.u32 %v3541, 7
      %v3543 = vsub.s32 1, %v3542
      %v3544 = vrot.slane %v3536, %v3543
      %v3545 = vlaneseq
      %v3546 = vshrl.u32 %v3545, 7
      %v3547 = vsub.s32 2, %v3546
      %v3548 = vrot.slane %v3536, %v3547
      %v3549 = vlaneseq
      %v3550 = vshrl.u32 %v3549, 7
      %v3551 = vsub.s32 3, %v3550
      %v3552 = vrot.slane %v3536, %v3551
      %v3553 = vlaneseq
      %v3554 = vshrl.u32 %v3553, 7
      %v3555 = vsub.s32 4, %v3554
      %v3556 = vrot.slane %v3536, %v3555
      %v3557 = vlaneseq
      %v3558 = vshrl.u32 %v3557, 7
      %v3559 = vsub.s32 5, %v3558
      %v3560 = vrot.slane %v3536, %v3559
      %v3561 = vlaneseq
      %v3562 = vshrl.u32 %v3561, 7
      %v3563 = vsub.s32 6, %v3562
      %v3564 = vrot.slane %v3536, %v3563
      %v3565 = vlaneseq
      %v3566 = vshrl.u32 %v3565, 7
      %v3567 = vsub.s32 7, %v3566
      %v3568 = vrot.slane %v3536, %v3567
      %vm3569 = vcmp.eq.s32.totalorder %v3540, 1
      %vm3570 = vcmp.eq.s32.totalorder %v3544, 1
      %vm3571 = vcmp.eq.s32.totalorder %v3548, 1
      %vm3572 = vcmp.eq.s32.totalorder %v3552, 1
      %vm3573 = vcmp.eq.s32.totalorder %v3556, 1
      %vm3574 = vcmp.eq.s32.totalorder %v3560, 1
      %vm3575 = vcmp.eq.s32.totalorder %v3564, 1
      %vm3576 = vcmp.eq.s32.totalorder %v3568, 1
      %v3577 = vsel %vm3569, %v3534, 0.0
      %v3578 = vsel %vm3570, %v3533, 0.0
      %v3579 = vsel %vm3571, %v3532, 0.0
      %v3580 = vsel %vm3572, %v3531, 0.0
      %v3581 = vsel %vm3573, %v3530, 0.0
      %v3582 = vsel %vm3574, %v3529, 0.0
      %v3583 = vsel %vm3575, %v3528, 0.0
      %v3584 = vsel %vm3576, %v3527, 0.0
      %3585 = vset.pattern.permute.xlu0 69
      %3586 = vperm.xlu0 %3585, %v370
      %v3587 = vpop.permute.xlu0 %3586
      %v3589 = vmul.f32 %v3587, %v3577
      %v3590 = vmul.f32 %v3587, %v3578
      %v3591 = vmul.f32 %v3587, %v3579
      %v3592 = vmul.f32 %v3587, %v3580
      %v3593 = vmul.f32 %v3587, %v3581
      %v3594 = vmul.f32 %v3587, %v3582
      %v3595 = vmul.f32 %v3587, %v3583
      %v3596 = vmul.f32 %v3587, %v3584
      %v3597 = vadd.f32 %v3502, %v3589
      %v3598 = vadd.f32 %v3503, %v3590
      %v3599 = vadd.f32 %v3504, %v3591
      %v3600 = vadd.f32 %v3505, %v3592
      %v3601 = vadd.f32 %v3506, %v3593
      %v3602 = vadd.f32 %v3507, %v3594
      %v3603 = vadd.f32 %v3508, %v3595
      %v3604 = vadd.f32 %v3509, %v3596
      %3605 = vrot.lane.b32.xlu0 %v3217, 6
      %v3606 = vpop.permute.xlu0 %3605
      %3607 = vrot.lane.b32.xlu0 %v3218, 6
      %v3608 = vpop.permute.xlu0 %3607
      %3609 = vrot.lane.b32.xlu0 %v3219, 6
      %v3610 = vpop.permute.xlu0 %3609
      %3611 = vrot.lane.b32.xlu0 %v3220, 6
      %v3612 = vpop.permute.xlu0 %3611
      %3613 = vrot.lane.b32.xlu0 %v3221, 6
      %v3614 = vpop.permute.xlu0 %3613
      %3615 = vrot.lane.b32.xlu0 %v3222, 6
      %v3616 = vpop.permute.xlu0 %3615
      %3617 = vrot.lane.b32.xlu0 %v3223, 6
      %v3618 = vpop.permute.xlu0 %3617
      %3619 = vrot.lane.b32.xlu0 %v3224, 6
      %v3620 = vpop.permute.xlu0 %3619
      %vm3621 = vcmp.lt.s32.totalorder %v1052, 6
      %v3622 = vsel %vm3621, %v3618, %v3620
      %v3623 = vsel %vm3621, %v3616, %v3618
      %v3624 = vsel %vm3621, %v3614, %v3616
      %v3625 = vsel %vm3621, %v3612, %v3614
      %v3626 = vsel %vm3621, %v3610, %v3612
      %v3627 = vsel %vm3621, %v3608, %v3610
      %v3628 = vsel %vm3621, %v3606, %v3608
      %v3629 = vsel %vm3621, %v3620, %v3606
      %vm3630 = vcmp.ge.s32.totalorder %v369, 6
      %v3631 = vsel %vm3630, 1, 0
      %v3632 = vlaneseq
      %v3633 = vshrl.u32 %v3632, 7
      %v3634 = vsub.s32 0, %v3633
      %v3635 = vrot.slane %v3631, %v3634
      %v3636 = vlaneseq
      %v3637 = vshrl.u32 %v3636, 7
      %v3638 = vsub.s32 1, %v3637
      %v3639 = vrot.slane %v3631, %v3638
      %v3640 = vlaneseq
      %v3641 = vshrl.u32 %v3640, 7
      %v3642 = vsub.s32 2, %v3641
      %v3643 = vrot.slane %v3631, %v3642
      %v3644 = vlaneseq
      %v3645 = vshrl.u32 %v3644, 7
      %v3646 = vsub.s32 3, %v3645
      %v3647 = vrot.slane %v3631, %v3646
      %v3648 = vlaneseq
      %v3649 = vshrl.u32 %v3648, 7
      %v3650 = vsub.s32 4, %v3649
      %v3651 = vrot.slane %v3631, %v3650
      %v3652 = vlaneseq
      %v3653 = vshrl.u32 %v3652, 7
      %v3654 = vsub.s32 5, %v3653
      %v3655 = vrot.slane %v3631, %v3654
      %v3656 = vlaneseq
      %v3657 = vshrl.u32 %v3656, 7
      %v3658 = vsub.s32 6, %v3657
      %v3659 = vrot.slane %v3631, %v3658
      %v3660 = vlaneseq
      %v3661 = vshrl.u32 %v3660, 7
      %v3662 = vsub.s32 7, %v3661
      %v3663 = vrot.slane %v3631, %v3662
      %vm3664 = vcmp.eq.s32.totalorder %v3635, 1
      %vm3665 = vcmp.eq.s32.totalorder %v3639, 1
      %vm3666 = vcmp.eq.s32.totalorder %v3643, 1
      %vm3667 = vcmp.eq.s32.totalorder %v3647, 1
      %vm3668 = vcmp.eq.s32.totalorder %v3651, 1
      %vm3669 = vcmp.eq.s32.totalorder %v3655, 1
      %vm3670 = vcmp.eq.s32.totalorder %v3659, 1
      %vm3671 = vcmp.eq.s32.totalorder %v3663, 1
      %v3672 = vsel %vm3664, %v3629, 0.0
      %v3673 = vsel %vm3665, %v3628, 0.0
      %v3674 = vsel %vm3666, %v3627, 0.0
      %v3675 = vsel %vm3667, %v3626, 0.0
      %v3676 = vsel %vm3668, %v3625, 0.0
      %v3677 = vsel %vm3669, %v3624, 0.0
      %v3678 = vsel %vm3670, %v3623, 0.0
      %v3679 = vsel %vm3671, %v3622, 0.0
      %3680 = vset.pattern.permute.xlu0 70
      %3681 = vperm.xlu0 %3680, %v370
      %v3682 = vpop.permute.xlu0 %3681
      %v3684 = vmul.f32 %v3682, %v3672
      %v3685 = vmul.f32 %v3682, %v3673
      %v3686 = vmul.f32 %v3682, %v3674
      %v3687 = vmul.f32 %v3682, %v3675
      %v3688 = vmul.f32 %v3682, %v3676
      %v3689 = vmul.f32 %v3682, %v3677
      %v3690 = vmul.f32 %v3682, %v3678
      %v3691 = vmul.f32 %v3682, %v3679
      %v3692 = vadd.f32 %v3597, %v3684
      %v3693 = vadd.f32 %v3598, %v3685
      %v3694 = vadd.f32 %v3599, %v3686
      %v3695 = vadd.f32 %v3600, %v3687
      %v3696 = vadd.f32 %v3601, %v3688
      %v3697 = vadd.f32 %v3602, %v3689
      %v3698 = vadd.f32 %v3603, %v3690
      %v3699 = vadd.f32 %v3604, %v3691
      %3700 = vrot.lane.b32.xlu0 %v3217, 5
      %v3701 = vpop.permute.xlu0 %3700
      %3702 = vrot.lane.b32.xlu0 %v3218, 5
      %v3703 = vpop.permute.xlu0 %3702
      %3704 = vrot.lane.b32.xlu0 %v3219, 5
      %v3705 = vpop.permute.xlu0 %3704
      %3706 = vrot.lane.b32.xlu0 %v3220, 5
      %v3707 = vpop.permute.xlu0 %3706
      %3708 = vrot.lane.b32.xlu0 %v3221, 5
      %v3709 = vpop.permute.xlu0 %3708
      %3710 = vrot.lane.b32.xlu0 %v3222, 5
      %v3711 = vpop.permute.xlu0 %3710
      %3712 = vrot.lane.b32.xlu0 %v3223, 5
      %v3713 = vpop.permute.xlu0 %3712
      %3714 = vrot.lane.b32.xlu0 %v3224, 5
      %v3715 = vpop.permute.xlu0 %3714
      %vm3716 = vcmp.lt.s32.totalorder %v1052, 5
      %v3717 = vsel %vm3716, %v3713, %v3715
      %v3718 = vsel %vm3716, %v3711, %v3713
      %v3719 = vsel %vm3716, %v3709, %v3711
      %v3720 = vsel %vm3716, %v3707, %v3709
      %v3721 = vsel %vm3716, %v3705, %v3707
      %v3722 = vsel %vm3716, %v3703, %v3705
      %v3723 = vsel %vm3716, %v3701, %v3703
      %v3724 = vsel %vm3716, %v3715, %v3701
      %vm3725 = vcmp.ge.s32.totalorder %v369, 5
      %v3726 = vsel %vm3725, 1, 0
      %v3727 = vlaneseq
      %v3728 = vshrl.u32 %v3727, 7
      %v3729 = vsub.s32 0, %v3728
      %v3730 = vrot.slane %v3726, %v3729
      %v3731 = vlaneseq
      %v3732 = vshrl.u32 %v3731, 7
      %v3733 = vsub.s32 1, %v3732
      %v3734 = vrot.slane %v3726, %v3733
      %v3735 = vlaneseq
      %v3736 = vshrl.u32 %v3735, 7
      %v3737 = vsub.s32 2, %v3736
      %v3738 = vrot.slane %v3726, %v3737
      %v3739 = vlaneseq
      %v3740 = vshrl.u32 %v3739, 7
      %v3741 = vsub.s32 3, %v3740
      %v3742 = vrot.slane %v3726, %v3741
      %v3743 = vlaneseq
      %v3744 = vshrl.u32 %v3743, 7
      %v3745 = vsub.s32 4, %v3744
      %v3746 = vrot.slane %v3726, %v3745
      %v3747 = vlaneseq
      %v3748 = vshrl.u32 %v3747, 7
      %v3749 = vsub.s32 5, %v3748
      %v3750 = vrot.slane %v3726, %v3749
      %v3751 = vlaneseq
      %v3752 = vshrl.u32 %v3751, 7
      %v3753 = vsub.s32 6, %v3752
      %v3754 = vrot.slane %v3726, %v3753
      %v3755 = vlaneseq
      %v3756 = vshrl.u32 %v3755, 7
      %v3757 = vsub.s32 7, %v3756
      %v3758 = vrot.slane %v3726, %v3757
      %vm3759 = vcmp.eq.s32.totalorder %v3730, 1
      %vm3760 = vcmp.eq.s32.totalorder %v3734, 1
      %vm3761 = vcmp.eq.s32.totalorder %v3738, 1
      %vm3762 = vcmp.eq.s32.totalorder %v3742, 1
      %vm3763 = vcmp.eq.s32.totalorder %v3746, 1
      %vm3764 = vcmp.eq.s32.totalorder %v3750, 1
      %vm3765 = vcmp.eq.s32.totalorder %v3754, 1
      %vm3766 = vcmp.eq.s32.totalorder %v3758, 1
      %v3767 = vsel %vm3759, %v3724, 0.0
      %v3768 = vsel %vm3760, %v3723, 0.0
      %v3769 = vsel %vm3761, %v3722, 0.0
      %v3770 = vsel %vm3762, %v3721, 0.0
      %v3771 = vsel %vm3763, %v3720, 0.0
      %v3772 = vsel %vm3764, %v3719, 0.0
      %v3773 = vsel %vm3765, %v3718, 0.0
      %v3774 = vsel %vm3766, %v3717, 0.0
      %3775 = vset.pattern.permute.xlu0 71
      %3776 = vperm.xlu0 %3775, %v370
      %v3777 = vpop.permute.xlu0 %3776
      %v3779 = vmul.f32 %v3777, %v3767
      %v3780 = vmul.f32 %v3777, %v3768
      %v3781 = vmul.f32 %v3777, %v3769
      %v3782 = vmul.f32 %v3777, %v3770
      %v3783 = vmul.f32 %v3777, %v3771
      %v3784 = vmul.f32 %v3777, %v3772
      %v3785 = vmul.f32 %v3777, %v3773
      %v3786 = vmul.f32 %v3777, %v3774
      %v3787 = vadd.f32 %v3692, %v3779
      %v3788 = vadd.f32 %v3693, %v3780
      %v3789 = vadd.f32 %v3694, %v3781
      %v3790 = vadd.f32 %v3695, %v3782
      %v3791 = vadd.f32 %v3696, %v3783
      %v3792 = vadd.f32 %v3697, %v3784
      %v3793 = vadd.f32 %v3698, %v3785
      %v3794 = vadd.f32 %v3699, %v3786
      %3795 = vset.pattern.permute.xlu0 42
      %3796 = vperm.xlu0 %3795, %v370
      %v3797 = vpop.permute.xlu0 %3796
      %v3799 = vmul.f32 %v3797, %v3767
      %v3800 = vmul.f32 %v3797, %v3768
      %v3801 = vmul.f32 %v3797, %v3769
      %v3802 = vmul.f32 %v3797, %v3770
      %v3803 = vmul.f32 %v3797, %v3771
      %v3804 = vmul.f32 %v3797, %v3772
      %v3805 = vmul.f32 %v3797, %v3773
      %v3806 = vmul.f32 %v3797, %v3774
      %v3807 = vadd.f32 %v3799, 0.0
      %v3808 = vadd.f32 %v3800, 0.0
      %v3809 = vadd.f32 %v3801, 0.0
      %v3810 = vadd.f32 %v3802, 0.0
      %v3811 = vadd.f32 %v3803, 0.0
      %v3812 = vadd.f32 %v3804, 0.0
      %v3813 = vadd.f32 %v3805, 0.0
      %v3814 = vadd.f32 %v3806, 0.0
      %3815 = vrot.lane.b32.xlu0 %v3217, 4
      %v3816 = vpop.permute.xlu0 %3815
      %3817 = vrot.lane.b32.xlu0 %v3218, 4
      %v3818 = vpop.permute.xlu0 %3817
      %3819 = vrot.lane.b32.xlu0 %v3219, 4
      %v3820 = vpop.permute.xlu0 %3819
      %3821 = vrot.lane.b32.xlu0 %v3220, 4
      %v3822 = vpop.permute.xlu0 %3821
      %3823 = vrot.lane.b32.xlu0 %v3221, 4
      %v3824 = vpop.permute.xlu0 %3823
      %3825 = vrot.lane.b32.xlu0 %v3222, 4
      %v3826 = vpop.permute.xlu0 %3825
      %3827 = vrot.lane.b32.xlu0 %v3223, 4
      %v3828 = vpop.permute.xlu0 %3827
      %3829 = vrot.lane.b32.xlu0 %v3224, 4
      %v3830 = vpop.permute.xlu0 %3829
      %vm3831 = vcmp.lt.s32.totalorder %v1052, 4
      %v3832 = vsel %vm3831, %v3828, %v3830
      %v3833 = vsel %vm3831, %v3826, %v3828
      %v3834 = vsel %vm3831, %v3824, %v3826
      %v3835 = vsel %vm3831, %v3822, %v3824
      %v3836 = vsel %vm3831, %v3820, %v3822
      %v3837 = vsel %vm3831, %v3818, %v3820
      %v3838 = vsel %vm3831, %v3816, %v3818
      %v3839 = vsel %vm3831, %v3830, %v3816
      %vm3840 = vcmp.ge.s32.totalorder %v369, 4
      %v3841 = vsel %vm3840, 1, 0
      %v3842 = vlaneseq
      %v3843 = vshrl.u32 %v3842, 7
      %v3844 = vsub.s32 0, %v3843
      %v3845 = vrot.slane %v3841, %v3844
      %v3846 = vlaneseq
      %v3847 = vshrl.u32 %v3846, 7
      %v3848 = vsub.s32 1, %v3847
      %v3849 = vrot.slane %v3841, %v3848
      %v3850 = vlaneseq
      %v3851 = vshrl.u32 %v3850, 7
      %v3852 = vsub.s32 2, %v3851
      %v3853 = vrot.slane %v3841, %v3852
      %v3854 = vlaneseq
      %v3855 = vshrl.u32 %v3854, 7
      %v3856 = vsub.s32 3, %v3855
      %v3857 = vrot.slane %v3841, %v3856
      %v3858 = vlaneseq
      %v3859 = vshrl.u32 %v3858, 7
      %v3860 = vsub.s32 4, %v3859
      %v3861 = vrot.slane %v3841, %v3860
      %v3862 = vlaneseq
      %v3863 = vshrl.u32 %v3862, 7
      %v3864 = vsub.s32 5, %v3863
      %v3865 = vrot.slane %v3841, %v3864
      %v3866 = vlaneseq
      %v3867 = vshrl.u32 %v3866, 7
      %v3868 = vsub.s32 6, %v3867
      %v3869 = vrot.slane %v3841, %v3868
      %v3870 = vlaneseq
      %v3871 = vshrl.u32 %v3870, 7
      %v3872 = vsub.s32 7, %v3871
      %v3873 = vrot.slane %v3841, %v3872
      %vm3874 = vcmp.eq.s32.totalorder %v3845, 1
      %vm3875 = vcmp.eq.s32.totalorder %v3849, 1
      %vm3876 = vcmp.eq.s32.totalorder %v3853, 1
      %vm3877 = vcmp.eq.s32.totalorder %v3857, 1
      %vm3878 = vcmp.eq.s32.totalorder %v3861, 1
      %vm3879 = vcmp.eq.s32.totalorder %v3865, 1
      %vm3880 = vcmp.eq.s32.totalorder %v3869, 1
      %vm3881 = vcmp.eq.s32.totalorder %v3873, 1
      %v3882 = vsel %vm3874, %v3839, 0.0
      %v3883 = vsel %vm3875, %v3838, 0.0
      %v3884 = vsel %vm3876, %v3837, 0.0
      %v3885 = vsel %vm3877, %v3836, 0.0
      %v3886 = vsel %vm3878, %v3835, 0.0
      %v3887 = vsel %vm3879, %v3834, 0.0
      %v3888 = vsel %vm3880, %v3833, 0.0
      %v3889 = vsel %vm3881, %v3832, 0.0
      %3890 = vset.pattern.permute.xlu0 72
      %3891 = vperm.xlu0 %3890, %v370
      %v3892 = vpop.permute.xlu0 %3891
      %v3894 = vmul.f32 %v3892, %v3882
      %v3895 = vmul.f32 %v3892, %v3883
      %v3896 = vmul.f32 %v3892, %v3884
      %v3897 = vmul.f32 %v3892, %v3885
      %v3898 = vmul.f32 %v3892, %v3886
      %v3899 = vmul.f32 %v3892, %v3887
      %v3900 = vmul.f32 %v3892, %v3888
      %v3901 = vmul.f32 %v3892, %v3889
      %v3902 = vadd.f32 %v3787, %v3894
      %v3903 = vadd.f32 %v3788, %v3895
      %v3904 = vadd.f32 %v3789, %v3896
      %v3905 = vadd.f32 %v3790, %v3897
      %v3906 = vadd.f32 %v3791, %v3898
      %v3907 = vadd.f32 %v3792, %v3899
      %v3908 = vadd.f32 %v3793, %v3900
      %v3909 = vadd.f32 %v3794, %v3901
      %3910 = vset.pattern.permute.xlu0 43
      %3911 = vperm.xlu0 %3910, %v370
      %v3912 = vpop.permute.xlu0 %3911
      %v3914 = vmul.f32 %v3912, %v3882
      %v3915 = vmul.f32 %v3912, %v3883
      %v3916 = vmul.f32 %v3912, %v3884
      %v3917 = vmul.f32 %v3912, %v3885
      %v3918 = vmul.f32 %v3912, %v3886
      %v3919 = vmul.f32 %v3912, %v3887
      %v3920 = vmul.f32 %v3912, %v3888
      %v3921 = vmul.f32 %v3912, %v3889
      %v3922 = vadd.f32 %v3807, %v3914
      %v3923 = vadd.f32 %v3808, %v3915
      %v3924 = vadd.f32 %v3809, %v3916
      %v3925 = vadd.f32 %v3810, %v3917
      %v3926 = vadd.f32 %v3811, %v3918
      %v3927 = vadd.f32 %v3812, %v3919
      %v3928 = vadd.f32 %v3813, %v3920
      %v3929 = vadd.f32 %v3814, %v3921
      %3930 = vrot.lane.b32.xlu0 %v3217, 3
      %v3931 = vpop.permute.xlu0 %3930
      %3932 = vrot.lane.b32.xlu0 %v3218, 3
      %v3933 = vpop.permute.xlu0 %3932
      %3934 = vrot.lane.b32.xlu0 %v3219, 3
      %v3935 = vpop.permute.xlu0 %3934
      %3936 = vrot.lane.b32.xlu0 %v3220, 3
      %v3937 = vpop.permute.xlu0 %3936
      %3938 = vrot.lane.b32.xlu0 %v3221, 3
      %v3939 = vpop.permute.xlu0 %3938
      %3940 = vrot.lane.b32.xlu0 %v3222, 3
      %v3941 = vpop.permute.xlu0 %3940
      %3942 = vrot.lane.b32.xlu0 %v3223, 3
      %v3943 = vpop.permute.xlu0 %3942
      %3944 = vrot.lane.b32.xlu0 %v3224, 3
      %v3945 = vpop.permute.xlu0 %3944
      %vm3946 = vcmp.lt.s32.totalorder %v1052, 3
      %v3947 = vsel %vm3946, %v3943, %v3945
      %v3948 = vsel %vm3946, %v3941, %v3943
      %v3949 = vsel %vm3946, %v3939, %v3941
      %v3950 = vsel %vm3946, %v3937, %v3939
      %v3951 = vsel %vm3946, %v3935, %v3937
      %v3952 = vsel %vm3946, %v3933, %v3935
      %v3953 = vsel %vm3946, %v3931, %v3933
      %v3954 = vsel %vm3946, %v3945, %v3931
      %vm3955 = vcmp.ge.s32.totalorder %v369, 3
      %v3956 = vsel %vm3955, 1, 0
      %v3957 = vlaneseq
      %v3958 = vshrl.u32 %v3957, 7
      %v3959 = vsub.s32 0, %v3958
      %v3960 = vrot.slane %v3956, %v3959
      %v3961 = vlaneseq
      %v3962 = vshrl.u32 %v3961, 7
      %v3963 = vsub.s32 1, %v3962
      %v3964 = vrot.slane %v3956, %v3963
      %v3965 = vlaneseq
      %v3966 = vshrl.u32 %v3965, 7
      %v3967 = vsub.s32 2, %v3966
      %v3968 = vrot.slane %v3956, %v3967
      %v3969 = vlaneseq
      %v3970 = vshrl.u32 %v3969, 7
      %v3971 = vsub.s32 3, %v3970
      %v3972 = vrot.slane %v3956, %v3971
      %v3973 = vlaneseq
      %v3974 = vshrl.u32 %v3973, 7
      %v3975 = vsub.s32 4, %v3974
      %v3976 = vrot.slane %v3956, %v3975
      %v3977 = vlaneseq
      %v3978 = vshrl.u32 %v3977, 7
      %v3979 = vsub.s32 5, %v3978
      %v3980 = vrot.slane %v3956, %v3979
      %v3981 = vlaneseq
      %v3982 = vshrl.u32 %v3981, 7
      %v3983 = vsub.s32 6, %v3982
      %v3984 = vrot.slane %v3956, %v3983
      %v3985 = vlaneseq
      %v3986 = vshrl.u32 %v3985, 7
      %v3987 = vsub.s32 7, %v3986
      %v3988 = vrot.slane %v3956, %v3987
      %vm3989 = vcmp.eq.s32.totalorder %v3960, 1
      %vm3990 = vcmp.eq.s32.totalorder %v3964, 1
      %vm3991 = vcmp.eq.s32.totalorder %v3968, 1
      %vm3992 = vcmp.eq.s32.totalorder %v3972, 1
      %vm3993 = vcmp.eq.s32.totalorder %v3976, 1
      %vm3994 = vcmp.eq.s32.totalorder %v3980, 1
      %vm3995 = vcmp.eq.s32.totalorder %v3984, 1
      %vm3996 = vcmp.eq.s32.totalorder %v3988, 1
      %v3997 = vsel %vm3989, %v3954, 0.0
      %v3998 = vsel %vm3990, %v3953, 0.0
      %v3999 = vsel %vm3991, %v3952, 0.0
      %v4000 = vsel %vm3992, %v3951, 0.0
      %v4001 = vsel %vm3993, %v3950, 0.0
      %v4002 = vsel %vm3994, %v3949, 0.0
      %v4003 = vsel %vm3995, %v3948, 0.0
      %v4004 = vsel %vm3996, %v3947, 0.0
      %4005 = vset.pattern.permute.xlu0 73
      %4006 = vperm.xlu0 %4005, %v370
      %v4007 = vpop.permute.xlu0 %4006
      %v4009 = vmul.f32 %v4007, %v3997
      %v4010 = vmul.f32 %v4007, %v3998
      %v4011 = vmul.f32 %v4007, %v3999
      %v4012 = vmul.f32 %v4007, %v4000
      %v4013 = vmul.f32 %v4007, %v4001
      %v4014 = vmul.f32 %v4007, %v4002
      %v4015 = vmul.f32 %v4007, %v4003
      %v4016 = vmul.f32 %v4007, %v4004
      %v4017 = vadd.f32 %v3902, %v4009
      %v4018 = vadd.f32 %v3903, %v4010
      %v4019 = vadd.f32 %v3904, %v4011
      %v4020 = vadd.f32 %v3905, %v4012
      %v4021 = vadd.f32 %v3906, %v4013
      %v4022 = vadd.f32 %v3907, %v4014
      %v4023 = vadd.f32 %v3908, %v4015
      %v4024 = vadd.f32 %v3909, %v4016
      %4025 = vset.pattern.permute.xlu0 44
      %4026 = vperm.xlu0 %4025, %v370
      %v4027 = vpop.permute.xlu0 %4026
      %v4029 = vmul.f32 %v4027, %v3997
      %v4030 = vmul.f32 %v4027, %v3998
      %v4031 = vmul.f32 %v4027, %v3999
      %v4032 = vmul.f32 %v4027, %v4000
      %v4033 = vmul.f32 %v4027, %v4001
      %v4034 = vmul.f32 %v4027, %v4002
      %v4035 = vmul.f32 %v4027, %v4003
      %v4036 = vmul.f32 %v4027, %v4004
      %v4037 = vadd.f32 %v3922, %v4029
      %v4038 = vadd.f32 %v3923, %v4030
      %v4039 = vadd.f32 %v3924, %v4031
      %v4040 = vadd.f32 %v3925, %v4032
      %v4041 = vadd.f32 %v3926, %v4033
      %v4042 = vadd.f32 %v3927, %v4034
      %v4043 = vadd.f32 %v3928, %v4035
      %v4044 = vadd.f32 %v3929, %v4036
      %4045 = vset.pattern.permute.xlu0 26
      %4046 = vperm.xlu0 %4045, %v370
      %v4047 = vpop.permute.xlu0 %4046
      %v4049 = vmul.f32 %v4047, %v3997
      %v4050 = vmul.f32 %v4047, %v3998
      %v4051 = vmul.f32 %v4047, %v3999
      %v4052 = vmul.f32 %v4047, %v4000
      %v4053 = vmul.f32 %v4047, %v4001
      %v4054 = vmul.f32 %v4047, %v4002
      %v4055 = vmul.f32 %v4047, %v4003
      %v4056 = vmul.f32 %v4047, %v4004
      %v4057 = vadd.f32 %v4049, 0.0
      %v4058 = vadd.f32 %v4050, 0.0
      %v4059 = vadd.f32 %v4051, 0.0
      %v4060 = vadd.f32 %v4052, 0.0
      %v4061 = vadd.f32 %v4053, 0.0
      %v4062 = vadd.f32 %v4054, 0.0
      %v4063 = vadd.f32 %v4055, 0.0
      %v4064 = vadd.f32 %v4056, 0.0
      %4065 = vrot.lane.b32.xlu0 %v3217, 2
      %v4066 = vpop.permute.xlu0 %4065
      %4067 = vrot.lane.b32.xlu0 %v3218, 2
      %v4068 = vpop.permute.xlu0 %4067
      %4069 = vrot.lane.b32.xlu0 %v3219, 2
      %v4070 = vpop.permute.xlu0 %4069
      %4071 = vrot.lane.b32.xlu0 %v3220, 2
      %v4072 = vpop.permute.xlu0 %4071
      %4073 = vrot.lane.b32.xlu0 %v3221, 2
      %v4074 = vpop.permute.xlu0 %4073
      %4075 = vrot.lane.b32.xlu0 %v3222, 2
      %v4076 = vpop.permute.xlu0 %4075
      %4077 = vrot.lane.b32.xlu0 %v3223, 2
      %v4078 = vpop.permute.xlu0 %4077
      %4079 = vrot.lane.b32.xlu0 %v3224, 2
      %v4080 = vpop.permute.xlu0 %4079
      %v4081 = vsel %vm2008, %v4078, %v4080
      %v4082 = vsel %vm2008, %v4076, %v4078
      %v4083 = vsel %vm2008, %v4074, %v4076
      %v4084 = vsel %vm2008, %v4072, %v4074
      %v4085 = vsel %vm2008, %v4070, %v4072
      %v4086 = vsel %vm2008, %v4068, %v4070
      %v4087 = vsel %vm2008, %v4066, %v4068
      %v4088 = vsel %vm2008, %v4080, %v4066
      %v4089 = vsel %vm2050, %v4088, 0.0
      %v4090 = vsel %vm2051, %v4087, 0.0
      %v4091 = vsel %vm2052, %v4086, 0.0
      %v4092 = vsel %vm2053, %v4085, 0.0
      %v4093 = vsel %vm2054, %v4084, 0.0
      %v4094 = vsel %vm2055, %v4083, 0.0
      %v4095 = vsel %vm2056, %v4082, 0.0
      %v4096 = vsel %vm2057, %v4081, 0.0
      %4097 = vset.pattern.permute.xlu0 74
      %4098 = vperm.xlu0 %4097, %v370
      %v4099 = vpop.permute.xlu0 %4098
      %v4101 = vmul.f32 %v4099, %v4089
      %v4102 = vmul.f32 %v4099, %v4090
      %v4103 = vmul.f32 %v4099, %v4091
      %v4104 = vmul.f32 %v4099, %v4092
      %v4105 = vmul.f32 %v4099, %v4093
      %v4106 = vmul.f32 %v4099, %v4094
      %v4107 = vmul.f32 %v4099, %v4095
      %v4108 = vmul.f32 %v4099, %v4096
      %v4109 = vadd.f32 %v4017, %v4101
      %v4110 = vadd.f32 %v4018, %v4102
      %v4111 = vadd.f32 %v4019, %v4103
      %v4112 = vadd.f32 %v4020, %v4104
      %v4113 = vadd.f32 %v4021, %v4105
      %v4114 = vadd.f32 %v4022, %v4106
      %v4115 = vadd.f32 %v4023, %v4107
      %v4116 = vadd.f32 %v4024, %v4108
      %4117 = vset.pattern.permute.xlu0 45
      %4118 = vperm.xlu0 %4117, %v370
      %v4119 = vpop.permute.xlu0 %4118
      %v4121 = vmul.f32 %v4119, %v4089
      %v4122 = vmul.f32 %v4119, %v4090
      %v4123 = vmul.f32 %v4119, %v4091
      %v4124 = vmul.f32 %v4119, %v4092
      %v4125 = vmul.f32 %v4119, %v4093
      %v4126 = vmul.f32 %v4119, %v4094
      %v4127 = vmul.f32 %v4119, %v4095
      %v4128 = vmul.f32 %v4119, %v4096
      %v4129 = vadd.f32 %v4037, %v4121
      %v4130 = vadd.f32 %v4038, %v4122
      %v4131 = vadd.f32 %v4039, %v4123
      %v4132 = vadd.f32 %v4040, %v4124
      %v4133 = vadd.f32 %v4041, %v4125
      %v4134 = vadd.f32 %v4042, %v4126
      %v4135 = vadd.f32 %v4043, %v4127
      %v4136 = vadd.f32 %v4044, %v4128
      %4137 = vset.pattern.permute.xlu0 27
      %4138 = vperm.xlu0 %4137, %v370
      %v4139 = vpop.permute.xlu0 %4138
      %v4141 = vmul.f32 %v4139, %v4089
      %v4142 = vmul.f32 %v4139, %v4090
      %v4143 = vmul.f32 %v4139, %v4091
      %v4144 = vmul.f32 %v4139, %v4092
      %v4145 = vmul.f32 %v4139, %v4093
      %v4146 = vmul.f32 %v4139, %v4094
      %v4147 = vmul.f32 %v4139, %v4095
      %v4148 = vmul.f32 %v4139, %v4096
      %v4149 = vadd.f32 %v4057, %v4141
      %v4150 = vadd.f32 %v4058, %v4142
      %v4151 = vadd.f32 %v4059, %v4143
      %v4152 = vadd.f32 %v4060, %v4144
      %v4153 = vadd.f32 %v4061, %v4145
      %v4154 = vadd.f32 %v4062, %v4146
      %v4155 = vadd.f32 %v4063, %v4147
      %v4156 = vadd.f32 %v4064, %v4148
      %4157 = vrot.lane.b32.xlu0 %v3217, 1
      %v4158 = vpop.permute.xlu0 %4157
      %4159 = vrot.lane.b32.xlu0 %v3218, 1
      %v4160 = vpop.permute.xlu0 %4159
      %4161 = vrot.lane.b32.xlu0 %v3219, 1
      %v4162 = vpop.permute.xlu0 %4161
      %4163 = vrot.lane.b32.xlu0 %v3220, 1
      %v4164 = vpop.permute.xlu0 %4163
      %4165 = vrot.lane.b32.xlu0 %v3221, 1
      %v4166 = vpop.permute.xlu0 %4165
      %4167 = vrot.lane.b32.xlu0 %v3222, 1
      %v4168 = vpop.permute.xlu0 %4167
      %4169 = vrot.lane.b32.xlu0 %v3223, 1
      %v4170 = vpop.permute.xlu0 %4169
      %4171 = vrot.lane.b32.xlu0 %v3224, 1
      %v4172 = vpop.permute.xlu0 %4171
      %v4173 = vsel %vm2102, %v4170, %v4172
      %v4174 = vsel %vm2102, %v4168, %v4170
      %v4175 = vsel %vm2102, %v4166, %v4168
      %v4176 = vsel %vm2102, %v4164, %v4166
      %v4177 = vsel %vm2102, %v4162, %v4164
      %v4178 = vsel %vm2102, %v4160, %v4162
      %v4179 = vsel %vm2102, %v4158, %v4160
      %v4180 = vsel %vm2102, %v4172, %v4158
      %v4181 = vsel %vm2144, %v4180, 0.0
      %v4182 = vsel %vm2145, %v4179, 0.0
      %v4183 = vsel %vm2146, %v4178, 0.0
      %v4184 = vsel %vm2147, %v4177, 0.0
      %v4185 = vsel %vm2148, %v4176, 0.0
      %v4186 = vsel %vm2149, %v4175, 0.0
      %v4187 = vsel %vm2150, %v4174, 0.0
      %v4188 = vsel %vm2151, %v4173, 0.0
      %4189 = vset.pattern.permute.xlu0 75
      %4190 = vperm.xlu0 %4189, %v370
      %v4191 = vpop.permute.xlu0 %4190
      %v4193 = vmul.f32 %v4191, %v4181
      %v4194 = vmul.f32 %v4191, %v4182
      %v4195 = vmul.f32 %v4191, %v4183
      %v4196 = vmul.f32 %v4191, %v4184
      %v4197 = vmul.f32 %v4191, %v4185
      %v4198 = vmul.f32 %v4191, %v4186
      %v4199 = vmul.f32 %v4191, %v4187
      %v4200 = vmul.f32 %v4191, %v4188
      %v4201 = vadd.f32 %v4109, %v4193
      %v4202 = vadd.f32 %v4110, %v4194
      %v4203 = vadd.f32 %v4111, %v4195
      %v4204 = vadd.f32 %v4112, %v4196
      %v4205 = vadd.f32 %v4113, %v4197
      %v4206 = vadd.f32 %v4114, %v4198
      %v4207 = vadd.f32 %v4115, %v4199
      %v4208 = vadd.f32 %v4116, %v4200
      %4209 = vset.pattern.permute.xlu0 46
      %4210 = vperm.xlu0 %4209, %v370
      %v4211 = vpop.permute.xlu0 %4210
      %v4213 = vmul.f32 %v4211, %v4181
      %v4214 = vmul.f32 %v4211, %v4182
      %v4215 = vmul.f32 %v4211, %v4183
      %v4216 = vmul.f32 %v4211, %v4184
      %v4217 = vmul.f32 %v4211, %v4185
      %v4218 = vmul.f32 %v4211, %v4186
      %v4219 = vmul.f32 %v4211, %v4187
      %v4220 = vmul.f32 %v4211, %v4188
      %v4221 = vadd.f32 %v4129, %v4213
      %v4222 = vadd.f32 %v4130, %v4214
      %v4223 = vadd.f32 %v4131, %v4215
      %v4224 = vadd.f32 %v4132, %v4216
      %v4225 = vadd.f32 %v4133, %v4217
      %v4226 = vadd.f32 %v4134, %v4218
      %v4227 = vadd.f32 %v4135, %v4219
      %v4228 = vadd.f32 %v4136, %v4220
      %4229 = vset.pattern.permute.xlu0 28
      %4230 = vperm.xlu0 %4229, %v370
      %v4231 = vpop.permute.xlu0 %4230
      %v4233 = vmul.f32 %v4231, %v4181
      %v4234 = vmul.f32 %v4231, %v4182
      %v4235 = vmul.f32 %v4231, %v4183
      %v4236 = vmul.f32 %v4231, %v4184
      %v4237 = vmul.f32 %v4231, %v4185
      %v4238 = vmul.f32 %v4231, %v4186
      %v4239 = vmul.f32 %v4231, %v4187
      %v4240 = vmul.f32 %v4231, %v4188
      %v4241 = vadd.f32 %v4149, %v4233
      %v4242 = vadd.f32 %v4150, %v4234
      %v4243 = vadd.f32 %v4151, %v4235
      %v4244 = vadd.f32 %v4152, %v4236
      %v4245 = vadd.f32 %v4153, %v4237
      %v4246 = vadd.f32 %v4154, %v4238
      %v4247 = vadd.f32 %v4155, %v4239
      %v4248 = vadd.f32 %v4156, %v4240
      %4249 = vset.pattern.permute.xlu0 76
      %4250 = vperm.xlu0 %4249, %v370
      %v4251 = vpop.permute.xlu0 %4250
      %v4253 = vmul.f32 %v4251, %v3217
      %v4254 = vmul.f32 %v4251, %v3218
      %v4255 = vmul.f32 %v4251, %v3219
      %v4256 = vmul.f32 %v4251, %v3220
      %v4257 = vmul.f32 %v4251, %v3221
      %v4258 = vmul.f32 %v4251, %v3222
      %v4259 = vmul.f32 %v4251, %v3223
      %v4260 = vmul.f32 %v4251, %v3224
      %v4261 = vadd.f32 %v4201, %v4253
      %v4262 = vadd.f32 %v4202, %v4254
      %v4263 = vadd.f32 %v4203, %v4255
      %v4264 = vadd.f32 %v4204, %v4256
      %v4265 = vadd.f32 %v4205, %v4257
      %v4266 = vadd.f32 %v4206, %v4258
      %v4267 = vadd.f32 %v4207, %v4259
      %v4268 = vadd.f32 %v4208, %v4260
      %4269 = vset.pattern.permute.xlu0 47
      %4270 = vperm.xlu0 %4269, %v370
      %v4271 = vpop.permute.xlu0 %4270
      %v4273 = vmul.f32 %v4271, %v3217
      %v4274 = vmul.f32 %v4271, %v3218
      %v4275 = vmul.f32 %v4271, %v3219
      %v4276 = vmul.f32 %v4271, %v3220
      %v4277 = vmul.f32 %v4271, %v3221
      %v4278 = vmul.f32 %v4271, %v3222
      %v4279 = vmul.f32 %v4271, %v3223
      %v4280 = vmul.f32 %v4271, %v3224
      %v4281 = vadd.f32 %v4221, %v4273
      %v4282 = vadd.f32 %v4222, %v4274
      %v4283 = vadd.f32 %v4223, %v4275
      %v4284 = vadd.f32 %v4224, %v4276
      %v4285 = vadd.f32 %v4225, %v4277
      %v4286 = vadd.f32 %v4226, %v4278
      %v4287 = vadd.f32 %v4227, %v4279
      %v4288 = vadd.f32 %v4228, %v4280
      %4289 = vset.pattern.permute.xlu0 29
      %4290 = vperm.xlu0 %4289, %v370
      %v4291 = vpop.permute.xlu0 %4290
      %v4293 = vmul.f32 %v4291, %v3217
      %v4294 = vmul.f32 %v4291, %v3218
      %v4295 = vmul.f32 %v4291, %v3219
      %v4296 = vmul.f32 %v4291, %v3220
      %v4297 = vmul.f32 %v4291, %v3221
      %v4298 = vmul.f32 %v4291, %v3222
      %v4299 = vmul.f32 %v4291, %v3223
      %v4300 = vmul.f32 %v4291, %v3224
      %v4301 = vadd.f32 %v4241, %v4293
      %v4302 = vadd.f32 %v4242, %v4294
      %v4303 = vadd.f32 %v4243, %v4295
      %v4304 = vadd.f32 %v4244, %v4296
      %v4305 = vadd.f32 %v4245, %v4297
      %v4306 = vadd.f32 %v4246, %v4298
      %v4307 = vadd.f32 %v4247, %v4299
      %v4308 = vadd.f32 %v4248, %v4300
      %4309 = vrot.lane.b32.xlu0 %v3217, 127
      %v4310 = vpop.permute.xlu0 %4309
      %4311 = vrot.lane.b32.xlu0 %v3218, 127
      %v4312 = vpop.permute.xlu0 %4311
      %4313 = vrot.lane.b32.xlu0 %v3219, 127
      %v4314 = vpop.permute.xlu0 %4313
      %4315 = vrot.lane.b32.xlu0 %v3220, 127
      %v4316 = vpop.permute.xlu0 %4315
      %4317 = vrot.lane.b32.xlu0 %v3221, 127
      %v4318 = vpop.permute.xlu0 %4317
      %4319 = vrot.lane.b32.xlu0 %v3222, 127
      %v4320 = vpop.permute.xlu0 %4319
      %4321 = vrot.lane.b32.xlu0 %v3223, 127
      %v4322 = vpop.permute.xlu0 %4321
      %4323 = vrot.lane.b32.xlu0 %v3224, 127
      %v4324 = vpop.permute.xlu0 %4323
      %v4325 = vsel %vm2216, %v4322, %v4324
      %v4326 = vsel %vm2216, %v4320, %v4322
      %v4327 = vsel %vm2216, %v4318, %v4320
      %v4328 = vsel %vm2216, %v4316, %v4318
      %v4329 = vsel %vm2216, %v4314, %v4316
      %v4330 = vsel %vm2216, %v4312, %v4314
      %v4331 = vsel %vm2216, %v4310, %v4312
      %v4332 = vsel %vm2216, %v4324, %v4310
      %v4333 = vsel %vm2258, %v4331, 0.0
      %v4334 = vsel %vm2259, %v4330, 0.0
      %v4335 = vsel %vm2260, %v4329, 0.0
      %v4336 = vsel %vm2261, %v4328, 0.0
      %v4337 = vsel %vm2262, %v4327, 0.0
      %v4338 = vsel %vm2263, %v4326, 0.0
      %v4339 = vsel %vm2264, %v4325, 0.0
      %v4340 = vsel %vm2265, %v4332, 0.0
      %4341 = vset.pattern.permute.xlu0 77
      %4342 = vperm.xlu0 %4341, %v370
      %v4343 = vpop.permute.xlu0 %4342
      %v4345 = vmul.f32 %v4343, %v4333
      %v4346 = vmul.f32 %v4343, %v4334
      %v4347 = vmul.f32 %v4343, %v4335
      %v4348 = vmul.f32 %v4343, %v4336
      %v4349 = vmul.f32 %v4343, %v4337
      %v4350 = vmul.f32 %v4343, %v4338
      %v4351 = vmul.f32 %v4343, %v4339
      %v4352 = vmul.f32 %v4343, %v4340
      %v4353 = vadd.f32 %v4261, %v4345
      %v4354 = vadd.f32 %v4262, %v4346
      %v4355 = vadd.f32 %v4263, %v4347
      %v4356 = vadd.f32 %v4264, %v4348
      %v4357 = vadd.f32 %v4265, %v4349
      %v4358 = vadd.f32 %v4266, %v4350
      %v4359 = vadd.f32 %v4267, %v4351
      %v4360 = vadd.f32 %v4268, %v4352
      %4361 = vset.pattern.permute.xlu0 48
      %4362 = vperm.xlu0 %4361, %v370
      %v4363 = vpop.permute.xlu0 %4362
      %v4365 = vmul.f32 %v4363, %v4333
      %v4366 = vmul.f32 %v4363, %v4334
      %v4367 = vmul.f32 %v4363, %v4335
      %v4368 = vmul.f32 %v4363, %v4336
      %v4369 = vmul.f32 %v4363, %v4337
      %v4370 = vmul.f32 %v4363, %v4338
      %v4371 = vmul.f32 %v4363, %v4339
      %v4372 = vmul.f32 %v4363, %v4340
      %v4373 = vadd.f32 %v4281, %v4365
      %v4374 = vadd.f32 %v4282, %v4366
      %v4375 = vadd.f32 %v4283, %v4367
      %v4376 = vadd.f32 %v4284, %v4368
      %v4377 = vadd.f32 %v4285, %v4369
      %v4378 = vadd.f32 %v4286, %v4370
      %v4379 = vadd.f32 %v4287, %v4371
      %v4380 = vadd.f32 %v4288, %v4372
      %4381 = vset.pattern.permute.xlu0 30
      %4382 = vperm.xlu0 %4381, %v370
      %v4383 = vpop.permute.xlu0 %4382
      %v4385 = vmul.f32 %v4383, %v4333
      %v4386 = vmul.f32 %v4383, %v4334
      %v4387 = vmul.f32 %v4383, %v4335
      %v4388 = vmul.f32 %v4383, %v4336
      %v4389 = vmul.f32 %v4383, %v4337
      %v4390 = vmul.f32 %v4383, %v4338
      %v4391 = vmul.f32 %v4383, %v4339
      %v4392 = vmul.f32 %v4383, %v4340
      %v4393 = vadd.f32 %v4301, %v4385
      %v4394 = vadd.f32 %v4302, %v4386
      %v4395 = vadd.f32 %v4303, %v4387
      %v4396 = vadd.f32 %v4304, %v4388
      %v4397 = vadd.f32 %v4305, %v4389
      %v4398 = vadd.f32 %v4306, %v4390
      %v4399 = vadd.f32 %v4307, %v4391
      %v4400 = vadd.f32 %v4308, %v4392
      %4401 = vrot.lane.b32.xlu0 %v3217, 126
      %v4402 = vpop.permute.xlu0 %4401
      %4403 = vrot.lane.b32.xlu0 %v3218, 126
      %v4404 = vpop.permute.xlu0 %4403
      %4405 = vrot.lane.b32.xlu0 %v3219, 126
      %v4406 = vpop.permute.xlu0 %4405
      %4407 = vrot.lane.b32.xlu0 %v3220, 126
      %v4408 = vpop.permute.xlu0 %4407
      %4409 = vrot.lane.b32.xlu0 %v3221, 126
      %v4410 = vpop.permute.xlu0 %4409
      %4411 = vrot.lane.b32.xlu0 %v3222, 126
      %v4412 = vpop.permute.xlu0 %4411
      %4413 = vrot.lane.b32.xlu0 %v3223, 126
      %v4414 = vpop.permute.xlu0 %4413
      %4415 = vrot.lane.b32.xlu0 %v3224, 126
      %v4416 = vpop.permute.xlu0 %4415
      %v4417 = vsel %vm2310, %v4414, %v4416
      %v4418 = vsel %vm2310, %v4412, %v4414
      %v4419 = vsel %vm2310, %v4410, %v4412
      %v4420 = vsel %vm2310, %v4408, %v4410
      %v4421 = vsel %vm2310, %v4406, %v4408
      %v4422 = vsel %vm2310, %v4404, %v4406
      %v4423 = vsel %vm2310, %v4402, %v4404
      %v4424 = vsel %vm2310, %v4416, %v4402
      %v4425 = vsel %vm2352, %v4423, 0.0
      %v4426 = vsel %vm2353, %v4422, 0.0
      %v4427 = vsel %vm2354, %v4421, 0.0
      %v4428 = vsel %vm2355, %v4420, 0.0
      %v4429 = vsel %vm2356, %v4419, 0.0
      %v4430 = vsel %vm2357, %v4418, 0.0
      %v4431 = vsel %vm2358, %v4417, 0.0
      %v4432 = vsel %vm2359, %v4424, 0.0
      %4433 = vset.pattern.permute.xlu0 78
      %4434 = vperm.xlu0 %4433, %v370
      %v4435 = vpop.permute.xlu0 %4434
      %v4437 = vmul.f32 %v4435, %v4425
      %v4438 = vmul.f32 %v4435, %v4426
      %v4439 = vmul.f32 %v4435, %v4427
      %v4440 = vmul.f32 %v4435, %v4428
      %v4441 = vmul.f32 %v4435, %v4429
      %v4442 = vmul.f32 %v4435, %v4430
      %v4443 = vmul.f32 %v4435, %v4431
      %v4444 = vmul.f32 %v4435, %v4432
      %v4445 = vadd.f32 %v4353, %v4437
      %v4446 = vadd.f32 %v4354, %v4438
      %v4447 = vadd.f32 %v4355, %v4439
      %v4448 = vadd.f32 %v4356, %v4440
      %v4449 = vadd.f32 %v4357, %v4441
      %v4450 = vadd.f32 %v4358, %v4442
      %v4451 = vadd.f32 %v4359, %v4443
      %v4452 = vadd.f32 %v4360, %v4444
      %4453 = vset.pattern.permute.xlu0 49
      %4454 = vperm.xlu0 %4453, %v370
      %v4455 = vpop.permute.xlu0 %4454
      %v4457 = vmul.f32 %v4455, %v4425
      %v4458 = vmul.f32 %v4455, %v4426
      %v4459 = vmul.f32 %v4455, %v4427
      %v4460 = vmul.f32 %v4455, %v4428
      %v4461 = vmul.f32 %v4455, %v4429
      %v4462 = vmul.f32 %v4455, %v4430
      %v4463 = vmul.f32 %v4455, %v4431
      %v4464 = vmul.f32 %v4455, %v4432
      %v4465 = vadd.f32 %v4373, %v4457
      %v4466 = vadd.f32 %v4374, %v4458
      %v4467 = vadd.f32 %v4375, %v4459
      %v4468 = vadd.f32 %v4376, %v4460
      %v4469 = vadd.f32 %v4377, %v4461
      %v4470 = vadd.f32 %v4378, %v4462
      %v4471 = vadd.f32 %v4379, %v4463
      %v4472 = vadd.f32 %v4380, %v4464
      %4473 = vset.pattern.permute.xlu0 31
      %4474 = vperm.xlu0 %4473, %v370
      %v4475 = vpop.permute.xlu0 %4474
      %v4477 = vmul.f32 %v4475, %v4425
      %v4478 = vmul.f32 %v4475, %v4426
      %v4479 = vmul.f32 %v4475, %v4427
      %v4480 = vmul.f32 %v4475, %v4428
      %v4481 = vmul.f32 %v4475, %v4429
      %v4482 = vmul.f32 %v4475, %v4430
      %v4483 = vmul.f32 %v4475, %v4431
      %v4484 = vmul.f32 %v4475, %v4432
      %v4485 = vadd.f32 %v4393, %v4477
      %v4486 = vadd.f32 %v4394, %v4478
      %v4487 = vadd.f32 %v4395, %v4479
      %v4488 = vadd.f32 %v4396, %v4480
      %v4489 = vadd.f32 %v4397, %v4481
      %v4490 = vadd.f32 %v4398, %v4482
      %v4491 = vadd.f32 %v4399, %v4483
      %v4492 = vadd.f32 %v4400, %v4484
      %4493 = vrot.lane.b32.xlu0 %v3217, 125
      %v4494 = vpop.permute.xlu0 %4493
      %4495 = vrot.lane.b32.xlu0 %v3218, 125
      %v4496 = vpop.permute.xlu0 %4495
      %4497 = vrot.lane.b32.xlu0 %v3219, 125
      %v4498 = vpop.permute.xlu0 %4497
      %4499 = vrot.lane.b32.xlu0 %v3220, 125
      %v4500 = vpop.permute.xlu0 %4499
      %4501 = vrot.lane.b32.xlu0 %v3221, 125
      %v4502 = vpop.permute.xlu0 %4501
      %4503 = vrot.lane.b32.xlu0 %v3222, 125
      %v4504 = vpop.permute.xlu0 %4503
      %4505 = vrot.lane.b32.xlu0 %v3223, 125
      %v4506 = vpop.permute.xlu0 %4505
      %4507 = vrot.lane.b32.xlu0 %v3224, 125
      %v4508 = vpop.permute.xlu0 %4507
      %vm4509 = vcmp.lt.s32.totalorder %v1052, 125
      %v4510 = vsel %vm4509, %v4506, %v4508
      %v4511 = vsel %vm4509, %v4504, %v4506
      %v4512 = vsel %vm4509, %v4502, %v4504
      %v4513 = vsel %vm4509, %v4500, %v4502
      %v4514 = vsel %vm4509, %v4498, %v4500
      %v4515 = vsel %vm4509, %v4496, %v4498
      %v4516 = vsel %vm4509, %v4494, %v4496
      %v4517 = vsel %vm4509, %v4508, %v4494
      %vm4518 = vcmp.lt.s32.totalorder %v369, 29
      %v4519 = vsel %vm4518, 1, 0
      %v4520 = vlaneseq
      %v4521 = vshrl.u32 %v4520, 7
      %v4522 = vsub.s32 0, %v4521
      %v4523 = vrot.slane %v4519, %v4522
      %v4524 = vlaneseq
      %v4525 = vshrl.u32 %v4524, 7
      %v4526 = vsub.s32 1, %v4525
      %v4527 = vrot.slane %v4519, %v4526
      %v4528 = vlaneseq
      %v4529 = vshrl.u32 %v4528, 7
      %v4530 = vsub.s32 2, %v4529
      %v4531 = vrot.slane %v4519, %v4530
      %v4532 = vlaneseq
      %v4533 = vshrl.u32 %v4532, 7
      %v4534 = vsub.s32 3, %v4533
      %v4535 = vrot.slane %v4519, %v4534
      %v4536 = vlaneseq
      %v4537 = vshrl.u32 %v4536, 7
      %v4538 = vsub.s32 4, %v4537
      %v4539 = vrot.slane %v4519, %v4538
      %v4540 = vlaneseq
      %v4541 = vshrl.u32 %v4540, 7
      %v4542 = vsub.s32 5, %v4541
      %v4543 = vrot.slane %v4519, %v4542
      %v4544 = vlaneseq
      %v4545 = vshrl.u32 %v4544, 7
      %v4546 = vsub.s32 6, %v4545
      %v4547 = vrot.slane %v4519, %v4546
      %v4548 = vlaneseq
      %v4549 = vshrl.u32 %v4548, 7
      %v4550 = vsub.s32 7, %v4549
      %v4551 = vrot.slane %v4519, %v4550
      %vm4552 = vcmp.eq.s32.totalorder %v4523, 1
      %vm4553 = vcmp.eq.s32.totalorder %v4527, 1
      %vm4554 = vcmp.eq.s32.totalorder %v4531, 1
      %vm4555 = vcmp.eq.s32.totalorder %v4535, 1
      %vm4556 = vcmp.eq.s32.totalorder %v4539, 1
      %vm4557 = vcmp.eq.s32.totalorder %v4543, 1
      %vm4558 = vcmp.eq.s32.totalorder %v4547, 1
      %vm4559 = vcmp.eq.s32.totalorder %v4551, 1
      %v4560 = vsel %vm4552, %v4516, 0.0
      %v4561 = vsel %vm4553, %v4515, 0.0
      %v4562 = vsel %vm4554, %v4514, 0.0
      %v4563 = vsel %vm4555, %v4513, 0.0
      %v4564 = vsel %vm4556, %v4512, 0.0
      %v4565 = vsel %vm4557, %v4511, 0.0
      %v4566 = vsel %vm4558, %v4510, 0.0
      %v4567 = vsel %vm4559, %v4517, 0.0
      %4568 = vset.pattern.permute.xlu0 79
      %4569 = vperm.xlu0 %4568, %v370
      %v4570 = vpop.permute.xlu0 %4569
      %v4572 = vmul.f32 %v4570, %v4560
      %v4573 = vmul.f32 %v4570, %v4561
      %v4574 = vmul.f32 %v4570, %v4562
      %v4575 = vmul.f32 %v4570, %v4563
      %v4576 = vmul.f32 %v4570, %v4564
      %v4577 = vmul.f32 %v4570, %v4565
      %v4578 = vmul.f32 %v4570, %v4566
      %v4579 = vmul.f32 %v4570, %v4567
      %v4580 = vadd.f32 %v4445, %v4572
      %v4581 = vadd.f32 %v4446, %v4573
      %v4582 = vadd.f32 %v4447, %v4574
      %v4583 = vadd.f32 %v4448, %v4575
      %v4584 = vadd.f32 %v4449, %v4576
      %v4585 = vadd.f32 %v4450, %v4577
      %v4586 = vadd.f32 %v4451, %v4578
      %v4587 = vadd.f32 %v4452, %v4579
      %4588 = vset.pattern.permute.xlu0 50
      %4589 = vperm.xlu0 %4588, %v370
      %v4590 = vpop.permute.xlu0 %4589
      %v4592 = vmul.f32 %v4590, %v4560
      %v4593 = vmul.f32 %v4590, %v4561
      %v4594 = vmul.f32 %v4590, %v4562
      %v4595 = vmul.f32 %v4590, %v4563
      %v4596 = vmul.f32 %v4590, %v4564
      %v4597 = vmul.f32 %v4590, %v4565
      %v4598 = vmul.f32 %v4590, %v4566
      %v4599 = vmul.f32 %v4590, %v4567
      %v4600 = vadd.f32 %v4465, %v4592
      %v4601 = vadd.f32 %v4466, %v4593
      %v4602 = vadd.f32 %v4467, %v4594
      %v4603 = vadd.f32 %v4468, %v4595
      %v4604 = vadd.f32 %v4469, %v4596
      %v4605 = vadd.f32 %v4470, %v4597
      %v4606 = vadd.f32 %v4471, %v4598
      %v4607 = vadd.f32 %v4472, %v4599
      %4608 = vset.pattern.permute.xlu0 32
      %4609 = vperm.xlu0 %4608, %v370
      %v4610 = vpop.permute.xlu0 %4609
      %v4612 = vmul.f32 %v4610, %v4560
      %v4613 = vmul.f32 %v4610, %v4561
      %v4614 = vmul.f32 %v4610, %v4562
      %v4615 = vmul.f32 %v4610, %v4563
      %v4616 = vmul.f32 %v4610, %v4564
      %v4617 = vmul.f32 %v4610, %v4565
      %v4618 = vmul.f32 %v4610, %v4566
      %v4619 = vmul.f32 %v4610, %v4567
      %v4620 = vadd.f32 %v4485, %v4612
      %v4621 = vadd.f32 %v4486, %v4613
      %v4622 = vadd.f32 %v4487, %v4614
      %v4623 = vadd.f32 %v4488, %v4615
      %v4624 = vadd.f32 %v4489, %v4616
      %v4625 = vadd.f32 %v4490, %v4617
      %v4626 = vadd.f32 %v4491, %v4618
      %v4627 = vadd.f32 %v4492, %v4619
      %4628 = vrot.lane.b32.xlu0 %v3217, 124
      %v4629 = vpop.permute.xlu0 %4628
      %4630 = vrot.lane.b32.xlu0 %v3218, 124
      %v4631 = vpop.permute.xlu0 %4630
      %4632 = vrot.lane.b32.xlu0 %v3219, 124
      %v4633 = vpop.permute.xlu0 %4632
      %4634 = vrot.lane.b32.xlu0 %v3220, 124
      %v4635 = vpop.permute.xlu0 %4634
      %4636 = vrot.lane.b32.xlu0 %v3221, 124
      %v4637 = vpop.permute.xlu0 %4636
      %4638 = vrot.lane.b32.xlu0 %v3222, 124
      %v4639 = vpop.permute.xlu0 %4638
      %4640 = vrot.lane.b32.xlu0 %v3223, 124
      %v4641 = vpop.permute.xlu0 %4640
      %4642 = vrot.lane.b32.xlu0 %v3224, 124
      %v4643 = vpop.permute.xlu0 %4642
      %vm4644 = vcmp.lt.s32.totalorder %v1052, 124
      %v4645 = vsel %vm4644, %v4641, %v4643
      %v4646 = vsel %vm4644, %v4639, %v4641
      %v4647 = vsel %vm4644, %v4637, %v4639
      %v4648 = vsel %vm4644, %v4635, %v4637
      %v4649 = vsel %vm4644, %v4633, %v4635
      %v4650 = vsel %vm4644, %v4631, %v4633
      %v4651 = vsel %vm4644, %v4629, %v4631
      %v4652 = vsel %vm4644, %v4643, %v4629
      %vm4653 = vcmp.lt.s32.totalorder %v369, 28
      %v4654 = vsel %vm4653, 1, 0
      %v4655 = vlaneseq
      %v4656 = vshrl.u32 %v4655, 7
      %v4657 = vsub.s32 0, %v4656
      %v4658 = vrot.slane %v4654, %v4657
      %v4659 = vlaneseq
      %v4660 = vshrl.u32 %v4659, 7
      %v4661 = vsub.s32 1, %v4660
      %v4662 = vrot.slane %v4654, %v4661
      %v4663 = vlaneseq
      %v4664 = vshrl.u32 %v4663, 7
      %v4665 = vsub.s32 2, %v4664
      %v4666 = vrot.slane %v4654, %v4665
      %v4667 = vlaneseq
      %v4668 = vshrl.u32 %v4667, 7
      %v4669 = vsub.s32 3, %v4668
      %v4670 = vrot.slane %v4654, %v4669
      %v4671 = vlaneseq
      %v4672 = vshrl.u32 %v4671, 7
      %v4673 = vsub.s32 4, %v4672
      %v4674 = vrot.slane %v4654, %v4673
      %v4675 = vlaneseq
      %v4676 = vshrl.u32 %v4675, 7
      %v4677 = vsub.s32 5, %v4676
      %v4678 = vrot.slane %v4654, %v4677
      %v4679 = vlaneseq
      %v4680 = vshrl.u32 %v4679, 7
      %v4681 = vsub.s32 6, %v4680
      %v4682 = vrot.slane %v4654, %v4681
      %v4683 = vlaneseq
      %v4684 = vshrl.u32 %v4683, 7
      %v4685 = vsub.s32 7, %v4684
      %v4686 = vrot.slane %v4654, %v4685
      %vm4687 = vcmp.eq.s32.totalorder %v4658, 1
      %vm4688 = vcmp.eq.s32.totalorder %v4662, 1
      %vm4689 = vcmp.eq.s32.totalorder %v4666, 1
      %vm4690 = vcmp.eq.s32.totalorder %v4670, 1
      %vm4691 = vcmp.eq.s32.totalorder %v4674, 1
      %vm4692 = vcmp.eq.s32.totalorder %v4678, 1
      %vm4693 = vcmp.eq.s32.totalorder %v4682, 1
      %vm4694 = vcmp.eq.s32.totalorder %v4686, 1
      %v4695 = vsel %vm4687, %v4651, 0.0
      %v4696 = vsel %vm4688, %v4650, 0.0
      %v4697 = vsel %vm4689, %v4649, 0.0
      %v4698 = vsel %vm4690, %v4648, 0.0
      %v4699 = vsel %vm4691, %v4647, 0.0
      %v4700 = vsel %vm4692, %v4646, 0.0
      %v4701 = vsel %vm4693, %v4645, 0.0
      %v4702 = vsel %vm4694, %v4652, 0.0
      %4703 = vset.pattern.permute.xlu0 80
      %4704 = vperm.xlu0 %4703, %v370
      %v4705 = vpop.permute.xlu0 %4704
      %v4707 = vmul.f32 %v4705, %v4695
      %v4708 = vmul.f32 %v4705, %v4696
      %v4709 = vmul.f32 %v4705, %v4697
      %v4710 = vmul.f32 %v4705, %v4698
      %v4711 = vmul.f32 %v4705, %v4699
      %v4712 = vmul.f32 %v4705, %v4700
      %v4713 = vmul.f32 %v4705, %v4701
      %v4714 = vmul.f32 %v4705, %v4702
      %v4715 = vadd.f32 %v4580, %v4707
      %v4716 = vadd.f32 %v4581, %v4708
      %v4717 = vadd.f32 %v4582, %v4709
      %v4718 = vadd.f32 %v4583, %v4710
      %v4719 = vadd.f32 %v4584, %v4711
      %v4720 = vadd.f32 %v4585, %v4712
      %v4721 = vadd.f32 %v4586, %v4713
      %v4722 = vadd.f32 %v4587, %v4714
      %4723 = vset.pattern.permute.xlu0 51
      %4724 = vperm.xlu0 %4723, %v370
      %v4725 = vpop.permute.xlu0 %4724
      %v4727 = vmul.f32 %v4725, %v4695
      %v4728 = vmul.f32 %v4725, %v4696
      %v4729 = vmul.f32 %v4725, %v4697
      %v4730 = vmul.f32 %v4725, %v4698
      %v4731 = vmul.f32 %v4725, %v4699
      %v4732 = vmul.f32 %v4725, %v4700
      %v4733 = vmul.f32 %v4725, %v4701
      %v4734 = vmul.f32 %v4725, %v4702
      %v4735 = vadd.f32 %v4600, %v4727
      %v4736 = vadd.f32 %v4601, %v4728
      %v4737 = vadd.f32 %v4602, %v4729
      %v4738 = vadd.f32 %v4603, %v4730
      %v4739 = vadd.f32 %v4604, %v4731
      %v4740 = vadd.f32 %v4605, %v4732
      %v4741 = vadd.f32 %v4606, %v4733
      %v4742 = vadd.f32 %v4607, %v4734
      %4743 = vrot.lane.b32.xlu0 %v3217, 123
      %v4744 = vpop.permute.xlu0 %4743
      %4745 = vrot.lane.b32.xlu0 %v3218, 123
      %v4746 = vpop.permute.xlu0 %4745
      %4747 = vrot.lane.b32.xlu0 %v3219, 123
      %v4748 = vpop.permute.xlu0 %4747
      %4749 = vrot.lane.b32.xlu0 %v3220, 123
      %v4750 = vpop.permute.xlu0 %4749
      %4751 = vrot.lane.b32.xlu0 %v3221, 123
      %v4752 = vpop.permute.xlu0 %4751
      %4753 = vrot.lane.b32.xlu0 %v3222, 123
      %v4754 = vpop.permute.xlu0 %4753
      %4755 = vrot.lane.b32.xlu0 %v3223, 123
      %v4756 = vpop.permute.xlu0 %4755
      %4757 = vrot.lane.b32.xlu0 %v3224, 123
      %v4758 = vpop.permute.xlu0 %4757
      %vm4759 = vcmp.lt.s32.totalorder %v1052, 123
      %v4760 = vsel %vm4759, %v4756, %v4758
      %v4761 = vsel %vm4759, %v4754, %v4756
      %v4762 = vsel %vm4759, %v4752, %v4754
      %v4763 = vsel %vm4759, %v4750, %v4752
      %v4764 = vsel %vm4759, %v4748, %v4750
      %v4765 = vsel %vm4759, %v4746, %v4748
      %v4766 = vsel %vm4759, %v4744, %v4746
      %v4767 = vsel %vm4759, %v4758, %v4744
      %vm4768 = vcmp.lt.s32.totalorder %v369, 27
      %v4769 = vsel %vm4768, 1, 0
      %v4770 = vlaneseq
      %v4771 = vshrl.u32 %v4770, 7
      %v4772 = vsub.s32 0, %v4771
      %v4773 = vrot.slane %v4769, %v4772
      %v4774 = vlaneseq
      %v4775 = vshrl.u32 %v4774, 7
      %v4776 = vsub.s32 1, %v4775
      %v4777 = vrot.slane %v4769, %v4776
      %v4778 = vlaneseq
      %v4779 = vshrl.u32 %v4778, 7
      %v4780 = vsub.s32 2, %v4779
      %v4781 = vrot.slane %v4769, %v4780
      %v4782 = vlaneseq
      %v4783 = vshrl.u32 %v4782, 7
      %v4784 = vsub.s32 3, %v4783
      %v4785 = vrot.slane %v4769, %v4784
      %v4786 = vlaneseq
      %v4787 = vshrl.u32 %v4786, 7
      %v4788 = vsub.s32 4, %v4787
      %v4789 = vrot.slane %v4769, %v4788
      %v4790 = vlaneseq
      %v4791 = vshrl.u32 %v4790, 7
      %v4792 = vsub.s32 5, %v4791
      %v4793 = vrot.slane %v4769, %v4792
      %v4794 = vlaneseq
      %v4795 = vshrl.u32 %v4794, 7
      %v4796 = vsub.s32 6, %v4795
      %v4797 = vrot.slane %v4769, %v4796
      %v4798 = vlaneseq
      %v4799 = vshrl.u32 %v4798, 7
      %v4800 = vsub.s32 7, %v4799
      %v4801 = vrot.slane %v4769, %v4800
      %vm4802 = vcmp.eq.s32.totalorder %v4773, 1
      %vm4803 = vcmp.eq.s32.totalorder %v4777, 1
      %vm4804 = vcmp.eq.s32.totalorder %v4781, 1
      %vm4805 = vcmp.eq.s32.totalorder %v4785, 1
      %vm4806 = vcmp.eq.s32.totalorder %v4789, 1
      %vm4807 = vcmp.eq.s32.totalorder %v4793, 1
      %vm4808 = vcmp.eq.s32.totalorder %v4797, 1
      %vm4809 = vcmp.eq.s32.totalorder %v4801, 1
      %v4810 = vsel %vm4802, %v4766, 0.0
      %v4811 = vsel %vm4803, %v4765, 0.0
      %v4812 = vsel %vm4804, %v4764, 0.0
      %v4813 = vsel %vm4805, %v4763, 0.0
      %v4814 = vsel %vm4806, %v4762, 0.0
      %v4815 = vsel %vm4807, %v4761, 0.0
      %v4816 = vsel %vm4808, %v4760, 0.0
      %v4817 = vsel %vm4809, %v4767, 0.0
      %4818 = vset.pattern.permute.xlu0 81
      %4819 = vperm.xlu0 %4818, %v370
      %v4820 = vpop.permute.xlu0 %4819
      %v4822 = vmul.f32 %v4820, %v4810
      %v4823 = vmul.f32 %v4820, %v4811
      %v4824 = vmul.f32 %v4820, %v4812
      %v4825 = vmul.f32 %v4820, %v4813
      %v4826 = vmul.f32 %v4820, %v4814
      %v4827 = vmul.f32 %v4820, %v4815
      %v4828 = vmul.f32 %v4820, %v4816
      %v4829 = vmul.f32 %v4820, %v4817
      %v4830 = vadd.f32 %v4715, %v4822
      %v4831 = vadd.f32 %v4716, %v4823
      %v4832 = vadd.f32 %v4717, %v4824
      %v4833 = vadd.f32 %v4718, %v4825
      %v4834 = vadd.f32 %v4719, %v4826
      %v4835 = vadd.f32 %v4720, %v4827
      %v4836 = vadd.f32 %v4721, %v4828
      %v4837 = vadd.f32 %v4722, %v4829
      %4838 = vset.pattern.permute.xlu0 52
      %4839 = vperm.xlu0 %4838, %v370
      %v4840 = vpop.permute.xlu0 %4839
      %v4842 = vmul.f32 %v4840, %v4810
      %v4843 = vmul.f32 %v4840, %v4811
      %v4844 = vmul.f32 %v4840, %v4812
      %v4845 = vmul.f32 %v4840, %v4813
      %v4846 = vmul.f32 %v4840, %v4814
      %v4847 = vmul.f32 %v4840, %v4815
      %v4848 = vmul.f32 %v4840, %v4816
      %v4849 = vmul.f32 %v4840, %v4817
      %v4850 = vadd.f32 %v4735, %v4842
      %v4851 = vadd.f32 %v4736, %v4843
      %v4852 = vadd.f32 %v4737, %v4844
      %v4853 = vadd.f32 %v4738, %v4845
      %v4854 = vadd.f32 %v4739, %v4846
      %v4855 = vadd.f32 %v4740, %v4847
      %v4856 = vadd.f32 %v4741, %v4848
      %v4857 = vadd.f32 %v4742, %v4849
      %4858 = vrot.lane.b32.xlu0 %v3217, 122
      %v4859 = vpop.permute.xlu0 %4858
      %4860 = vrot.lane.b32.xlu0 %v3218, 122
      %v4861 = vpop.permute.xlu0 %4860
      %4862 = vrot.lane.b32.xlu0 %v3219, 122
      %v4863 = vpop.permute.xlu0 %4862
      %4864 = vrot.lane.b32.xlu0 %v3220, 122
      %v4865 = vpop.permute.xlu0 %4864
      %4866 = vrot.lane.b32.xlu0 %v3221, 122
      %v4867 = vpop.permute.xlu0 %4866
      %4868 = vrot.lane.b32.xlu0 %v3222, 122
      %v4869 = vpop.permute.xlu0 %4868
      %4870 = vrot.lane.b32.xlu0 %v3223, 122
      %v4871 = vpop.permute.xlu0 %4870
      %4872 = vrot.lane.b32.xlu0 %v3224, 122
      %v4873 = vpop.permute.xlu0 %4872
      %vm4874 = vcmp.lt.s32.totalorder %v1052, 122
      %v4875 = vsel %vm4874, %v4871, %v4873
      %v4876 = vsel %vm4874, %v4869, %v4871
      %v4877 = vsel %vm4874, %v4867, %v4869
      %v4878 = vsel %vm4874, %v4865, %v4867
      %v4879 = vsel %vm4874, %v4863, %v4865
      %v4880 = vsel %vm4874, %v4861, %v4863
      %v4881 = vsel %vm4874, %v4859, %v4861
      %v4882 = vsel %vm4874, %v4873, %v4859
      %vm4883 = vcmp.lt.s32.totalorder %v369, 26
      %v4884 = vsel %vm4883, 1, 0
      %v4885 = vlaneseq
      %v4886 = vshrl.u32 %v4885, 7
      %v4887 = vsub.s32 0, %v4886
      %v4888 = vrot.slane %v4884, %v4887
      %v4889 = vlaneseq
      %v4890 = vshrl.u32 %v4889, 7
      %v4891 = vsub.s32 1, %v4890
      %v4892 = vrot.slane %v4884, %v4891
      %v4893 = vlaneseq
      %v4894 = vshrl.u32 %v4893, 7
      %v4895 = vsub.s32 2, %v4894
      %v4896 = vrot.slane %v4884, %v4895
      %v4897 = vlaneseq
      %v4898 = vshrl.u32 %v4897, 7
      %v4899 = vsub.s32 3, %v4898
      %v4900 = vrot.slane %v4884, %v4899
      %v4901 = vlaneseq
      %v4902 = vshrl.u32 %v4901, 7
      %v4903 = vsub.s32 4, %v4902
      %v4904 = vrot.slane %v4884, %v4903
      %v4905 = vlaneseq
      %v4906 = vshrl.u32 %v4905, 7
      %v4907 = vsub.s32 5, %v4906
      %v4908 = vrot.slane %v4884, %v4907
      %v4909 = vlaneseq
      %v4910 = vshrl.u32 %v4909, 7
      %v4911 = vsub.s32 6, %v4910
      %v4912 = vrot.slane %v4884, %v4911
      %v4913 = vlaneseq
      %v4914 = vshrl.u32 %v4913, 7
      %v4915 = vsub.s32 7, %v4914
      %v4916 = vrot.slane %v4884, %v4915
      %vm4917 = vcmp.eq.s32.totalorder %v4888, 1
      %vm4918 = vcmp.eq.s32.totalorder %v4892, 1
      %vm4919 = vcmp.eq.s32.totalorder %v4896, 1
      %vm4920 = vcmp.eq.s32.totalorder %v4900, 1
      %vm4921 = vcmp.eq.s32.totalorder %v4904, 1
      %vm4922 = vcmp.eq.s32.totalorder %v4908, 1
      %vm4923 = vcmp.eq.s32.totalorder %v4912, 1
      %vm4924 = vcmp.eq.s32.totalorder %v4916, 1
      %v4925 = vsel %vm4917, %v4881, 0.0
      %v4926 = vsel %vm4918, %v4880, 0.0
      %v4927 = vsel %vm4919, %v4879, 0.0
      %v4928 = vsel %vm4920, %v4878, 0.0
      %v4929 = vsel %vm4921, %v4877, 0.0
      %v4930 = vsel %vm4922, %v4876, 0.0
      %v4931 = vsel %vm4923, %v4875, 0.0
      %v4932 = vsel %vm4924, %v4882, 0.0
      %4933 = vset.pattern.permute.xlu0 82
      %4934 = vperm.xlu0 %4933, %v370
      %v4935 = vpop.permute.xlu0 %4934
      %v4937 = vmul.f32 %v4935, %v4925
      %v4938 = vmul.f32 %v4935, %v4926
      %v4939 = vmul.f32 %v4935, %v4927
      %v4940 = vmul.f32 %v4935, %v4928
      %v4941 = vmul.f32 %v4935, %v4929
      %v4942 = vmul.f32 %v4935, %v4930
      %v4943 = vmul.f32 %v4935, %v4931
      %v4944 = vmul.f32 %v4935, %v4932
      %v4945 = vadd.f32 %v4830, %v4937
      %v4946 = vadd.f32 %v4831, %v4938
      %v4947 = vadd.f32 %v4832, %v4939
      %v4948 = vadd.f32 %v4833, %v4940
      %v4949 = vadd.f32 %v4834, %v4941
      %v4950 = vadd.f32 %v4835, %v4942
      %v4951 = vadd.f32 %v4836, %v4943
      %v4952 = vadd.f32 %v4837, %v4944
      %4953 = vrot.lane.b32.xlu0 %v3217, 121
      %v4954 = vpop.permute.xlu0 %4953
      %4955 = vrot.lane.b32.xlu0 %v3218, 121
      %v4956 = vpop.permute.xlu0 %4955
      %4957 = vrot.lane.b32.xlu0 %v3219, 121
      %v4958 = vpop.permute.xlu0 %4957
      %4959 = vrot.lane.b32.xlu0 %v3220, 121
      %v4960 = vpop.permute.xlu0 %4959
      %4961 = vrot.lane.b32.xlu0 %v3221, 121
      %v4962 = vpop.permute.xlu0 %4961
      %4963 = vrot.lane.b32.xlu0 %v3222, 121
      %v4964 = vpop.permute.xlu0 %4963
      %4965 = vrot.lane.b32.xlu0 %v3223, 121
      %v4966 = vpop.permute.xlu0 %4965
      %4967 = vrot.lane.b32.xlu0 %v3224, 121
      %v4968 = vpop.permute.xlu0 %4967
      %vm4969 = vcmp.lt.s32.totalorder %v1052, 121
      %v4970 = vsel %vm4969, %v4966, %v4968
      %v4971 = vsel %vm4969, %v4964, %v4966
      %v4972 = vsel %vm4969, %v4962, %v4964
      %v4973 = vsel %vm4969, %v4960, %v4962
      %v4974 = vsel %vm4969, %v4958, %v4960
      %v4975 = vsel %vm4969, %v4956, %v4958
      %v4976 = vsel %vm4969, %v4954, %v4956
      %v4977 = vsel %vm4969, %v4968, %v4954
      %vm4978 = vcmp.lt.s32.totalorder %v369, 25
      %v4979 = vsel %vm4978, 1, 0
      %v4980 = vlaneseq
      %v4981 = vshrl.u32 %v4980, 7
      %v4982 = vsub.s32 0, %v4981
      %v4983 = vrot.slane %v4979, %v4982
      %v4984 = vlaneseq
      %v4985 = vshrl.u32 %v4984, 7
      %v4986 = vsub.s32 1, %v4985
      %v4987 = vrot.slane %v4979, %v4986
      %v4988 = vlaneseq
      %v4989 = vshrl.u32 %v4988, 7
      %v4990 = vsub.s32 2, %v4989
      %v4991 = vrot.slane %v4979, %v4990
      %v4992 = vlaneseq
      %v4993 = vshrl.u32 %v4992, 7
      %v4994 = vsub.s32 3, %v4993
      %v4995 = vrot.slane %v4979, %v4994
      %v4996 = vlaneseq
      %v4997 = vshrl.u32 %v4996, 7
      %v4998 = vsub.s32 4, %v4997
      %v4999 = vrot.slane %v4979, %v4998
      %v5000 = vlaneseq
      %v5001 = vshrl.u32 %v5000, 7
      %v5002 = vsub.s32 5, %v5001
      %v5003 = vrot.slane %v4979, %v5002
      %v5004 = vlaneseq
      %v5005 = vshrl.u32 %v5004, 7
      %v5006 = vsub.s32 6, %v5005
      %v5007 = vrot.slane %v4979, %v5006
      %v5008 = vlaneseq
      %v5009 = vshrl.u32 %v5008, 7
      %v5010 = vsub.s32 7, %v5009
      %v5011 = vrot.slane %v4979, %v5010
      %vm5012 = vcmp.eq.s32.totalorder %v4983, 1
      %vm5013 = vcmp.eq.s32.totalorder %v4987, 1
      %vm5014 = vcmp.eq.s32.totalorder %v4991, 1
      %vm5015 = vcmp.eq.s32.totalorder %v4995, 1
      %vm5016 = vcmp.eq.s32.totalorder %v4999, 1
      %vm5017 = vcmp.eq.s32.totalorder %v5003, 1
      %vm5018 = vcmp.eq.s32.totalorder %v5007, 1
      %vm5019 = vcmp.eq.s32.totalorder %v5011, 1
      %v5020 = vsel %vm5012, %v4976, 0.0
      %v5021 = vsel %vm5013, %v4975, 0.0
      %v5022 = vsel %vm5014, %v4974, 0.0
      %v5023 = vsel %vm5015, %v4973, 0.0
      %v5024 = vsel %vm5016, %v4972, 0.0
      %v5025 = vsel %vm5017, %v4971, 0.0
      %v5026 = vsel %vm5018, %v4970, 0.0
      %v5027 = vsel %vm5019, %v4977, 0.0
      %5028 = vset.pattern.permute.xlu0 83
      %5029 = vperm.xlu0 %5028, %v370
      %v5030 = vpop.permute.xlu0 %5029
      %v5032 = vmul.f32 %v5030, %v5020
      %v5033 = vmul.f32 %v5030, %v5021
      %v5034 = vmul.f32 %v5030, %v5022
      %v5035 = vmul.f32 %v5030, %v5023
      %v5036 = vmul.f32 %v5030, %v5024
      %v5037 = vmul.f32 %v5030, %v5025
      %v5038 = vmul.f32 %v5030, %v5026
      %v5039 = vmul.f32 %v5030, %v5027
      %v5040 = vadd.f32 %v4945, %v5032
      %v5041 = vadd.f32 %v4946, %v5033
      %v5042 = vadd.f32 %v4947, %v5034
      %v5043 = vadd.f32 %v4948, %v5035
      %v5044 = vadd.f32 %v4949, %v5036
      %v5045 = vadd.f32 %v4950, %v5037
      %v5046 = vadd.f32 %v4951, %v5038
      %v5047 = vadd.f32 %v4952, %v5039
      %5048 = vrot.lane.b32.xlu0 %v3217, 120
      %v5049 = vpop.permute.xlu0 %5048
      %5050 = vrot.lane.b32.xlu0 %v3218, 120
      %v5051 = vpop.permute.xlu0 %5050
      %5052 = vrot.lane.b32.xlu0 %v3219, 120
      %v5053 = vpop.permute.xlu0 %5052
      %5054 = vrot.lane.b32.xlu0 %v3220, 120
      %v5055 = vpop.permute.xlu0 %5054
      %5056 = vrot.lane.b32.xlu0 %v3221, 120
      %v5057 = vpop.permute.xlu0 %5056
      %5058 = vrot.lane.b32.xlu0 %v3222, 120
      %v5059 = vpop.permute.xlu0 %5058
      %5060 = vrot.lane.b32.xlu0 %v3223, 120
      %v5061 = vpop.permute.xlu0 %5060
      %5062 = vrot.lane.b32.xlu0 %v3224, 120
      %v5063 = vpop.permute.xlu0 %5062
      %vm5064 = vcmp.lt.s32.totalorder %v1052, 120
      %v5065 = vsel %vm5064, %v5061, %v5063
      %v5066 = vsel %vm5064, %v5059, %v5061
      %v5067 = vsel %vm5064, %v5057, %v5059
      %v5068 = vsel %vm5064, %v5055, %v5057
      %v5069 = vsel %vm5064, %v5053, %v5055
      %v5070 = vsel %vm5064, %v5051, %v5053
      %v5071 = vsel %vm5064, %v5049, %v5051
      %v5072 = vsel %vm5064, %v5063, %v5049
      %vm5073 = vcmp.lt.s32.totalorder %v369, 24
      %v5074 = vsel %vm5073, 1, 0
      %v5075 = vlaneseq
      %v5076 = vshrl.u32 %v5075, 7
      %v5077 = vsub.s32 0, %v5076
      %v5078 = vrot.slane %v5074, %v5077
      %v5079 = vlaneseq
      %v5080 = vshrl.u32 %v5079, 7
      %v5081 = vsub.s32 1, %v5080
      %v5082 = vrot.slane %v5074, %v5081
      %v5083 = vlaneseq
      %v5084 = vshrl.u32 %v5083, 7
      %v5085 = vsub.s32 2, %v5084
      %v5086 = vrot.slane %v5074, %v5085
      %v5087 = vlaneseq
      %v5088 = vshrl.u32 %v5087, 7
      %v5089 = vsub.s32 3, %v5088
      %v5090 = vrot.slane %v5074, %v5089
      %v5091 = vlaneseq
      %v5092 = vshrl.u32 %v5091, 7
      %v5093 = vsub.s32 4, %v5092
      %v5094 = vrot.slane %v5074, %v5093
      %v5095 = vlaneseq
      %v5096 = vshrl.u32 %v5095, 7
      %v5097 = vsub.s32 5, %v5096
      %v5098 = vrot.slane %v5074, %v5097
      %v5099 = vlaneseq
      %v5100 = vshrl.u32 %v5099, 7
      %v5101 = vsub.s32 6, %v5100
      %v5102 = vrot.slane %v5074, %v5101
      %v5103 = vlaneseq
      %v5104 = vshrl.u32 %v5103, 7
      %v5105 = vsub.s32 7, %v5104
      %v5106 = vrot.slane %v5074, %v5105
      %vm5107 = vcmp.eq.s32.totalorder %v5078, 1
      %vm5108 = vcmp.eq.s32.totalorder %v5082, 1
      %vm5109 = vcmp.eq.s32.totalorder %v5086, 1
      %vm5110 = vcmp.eq.s32.totalorder %v5090, 1
      %vm5111 = vcmp.eq.s32.totalorder %v5094, 1
      %vm5112 = vcmp.eq.s32.totalorder %v5098, 1
      %vm5113 = vcmp.eq.s32.totalorder %v5102, 1
      %vm5114 = vcmp.eq.s32.totalorder %v5106, 1
      %v5115 = vsel %vm5107, %v5071, 0.0
      %v5116 = vsel %vm5108, %v5070, 0.0
      %v5117 = vsel %vm5109, %v5069, 0.0
      %v5118 = vsel %vm5110, %v5068, 0.0
      %v5119 = vsel %vm5111, %v5067, 0.0
      %v5120 = vsel %vm5112, %v5066, 0.0
      %v5121 = vsel %vm5113, %v5065, 0.0
      %v5122 = vsel %vm5114, %v5072, 0.0
      %5123 = vset.pattern.permute.xlu0 84
      %5124 = vperm.xlu0 %5123, %v370
      %v5125 = vpop.permute.xlu0 %5124
      %v5127 = vmul.f32 %v5125, %v5115
      %v5128 = vmul.f32 %v5125, %v5116
      %v5129 = vmul.f32 %v5125, %v5117
      %v5130 = vmul.f32 %v5125, %v5118
      %v5131 = vmul.f32 %v5125, %v5119
      %v5132 = vmul.f32 %v5125, %v5120
      %v5133 = vmul.f32 %v5125, %v5121
      %v5134 = vmul.f32 %v5125, %v5122
      %v5135 = vadd.f32 %v5040, %v5127
      %v5136 = vadd.f32 %v5041, %v5128
      %v5137 = vadd.f32 %v5042, %v5129
      %v5138 = vadd.f32 %v5043, %v5130
      %v5139 = vadd.f32 %v5044, %v5131
      %v5140 = vadd.f32 %v5045, %v5132
      %v5141 = vadd.f32 %v5046, %v5133
      %v5142 = vadd.f32 %v5047, %v5134
      %5143 = vrot.lane.b32.xlu0 %v3217, 119
      %v5144 = vpop.permute.xlu0 %5143
      %5145 = vrot.lane.b32.xlu0 %v3218, 119
      %v5146 = vpop.permute.xlu0 %5145
      %5147 = vrot.lane.b32.xlu0 %v3219, 119
      %v5148 = vpop.permute.xlu0 %5147
      %5149 = vrot.lane.b32.xlu0 %v3220, 119
      %v5150 = vpop.permute.xlu0 %5149
      %5151 = vrot.lane.b32.xlu0 %v3221, 119
      %v5152 = vpop.permute.xlu0 %5151
      %5153 = vrot.lane.b32.xlu0 %v3222, 119
      %v5154 = vpop.permute.xlu0 %5153
      %5155 = vrot.lane.b32.xlu0 %v3223, 119
      %v5156 = vpop.permute.xlu0 %5155
      %5157 = vrot.lane.b32.xlu0 %v3224, 119
      %v5158 = vpop.permute.xlu0 %5157
      %vm5159 = vcmp.lt.s32.totalorder %v1052, 119
      %v5160 = vsel %vm5159, %v5156, %v5158
      %v5161 = vsel %vm5159, %v5154, %v5156
      %v5162 = vsel %vm5159, %v5152, %v5154
      %v5163 = vsel %vm5159, %v5150, %v5152
      %v5164 = vsel %vm5159, %v5148, %v5150
      %v5165 = vsel %vm5159, %v5146, %v5148
      %v5166 = vsel %vm5159, %v5144, %v5146
      %v5167 = vsel %vm5159, %v5158, %v5144
      %vm5168 = vcmp.lt.s32.totalorder %v369, 23
      %v5169 = vsel %vm5168, 1, 0
      %v5170 = vlaneseq
      %v5171 = vshrl.u32 %v5170, 7
      %v5172 = vsub.s32 0, %v5171
      %v5173 = vrot.slane %v5169, %v5172
      %v5174 = vlaneseq
      %v5175 = vshrl.u32 %v5174, 7
      %v5176 = vsub.s32 1, %v5175
      %v5177 = vrot.slane %v5169, %v5176
      %v5178 = vlaneseq
      %v5179 = vshrl.u32 %v5178, 7
      %v5180 = vsub.s32 2, %v5179
      %v5181 = vrot.slane %v5169, %v5180
      %v5182 = vlaneseq
      %v5183 = vshrl.u32 %v5182, 7
      %v5184 = vsub.s32 3, %v5183
      %v5185 = vrot.slane %v5169, %v5184
      %v5186 = vlaneseq
      %v5187 = vshrl.u32 %v5186, 7
      %v5188 = vsub.s32 4, %v5187
      %v5189 = vrot.slane %v5169, %v5188
      %v5190 = vlaneseq
      %v5191 = vshrl.u32 %v5190, 7
      %v5192 = vsub.s32 5, %v5191
      %v5193 = vrot.slane %v5169, %v5192
      %v5194 = vlaneseq
      %v5195 = vshrl.u32 %v5194, 7
      %v5196 = vsub.s32 6, %v5195
      %v5197 = vrot.slane %v5169, %v5196
      %v5198 = vlaneseq
      %v5199 = vshrl.u32 %v5198, 7
      %v5200 = vsub.s32 7, %v5199
      %v5201 = vrot.slane %v5169, %v5200
      %vm5202 = vcmp.eq.s32.totalorder %v5173, 1
      %vm5203 = vcmp.eq.s32.totalorder %v5177, 1
      %vm5204 = vcmp.eq.s32.totalorder %v5181, 1
      %vm5205 = vcmp.eq.s32.totalorder %v5185, 1
      %vm5206 = vcmp.eq.s32.totalorder %v5189, 1
      %vm5207 = vcmp.eq.s32.totalorder %v5193, 1
      %vm5208 = vcmp.eq.s32.totalorder %v5197, 1
      %vm5209 = vcmp.eq.s32.totalorder %v5201, 1
      %v5210 = vsel %vm5202, %v5166, 0.0
      %v5211 = vsel %vm5203, %v5165, 0.0
      %v5212 = vsel %vm5204, %v5164, 0.0
      %v5213 = vsel %vm5205, %v5163, 0.0
      %v5214 = vsel %vm5206, %v5162, 0.0
      %v5215 = vsel %vm5207, %v5161, 0.0
      %v5216 = vsel %vm5208, %v5160, 0.0
      %v5217 = vsel %vm5209, %v5167, 0.0
      %5218 = vset.pattern.permute.xlu0 85
      %5219 = vperm.xlu0 %5218, %v370
      %v5220 = vpop.permute.xlu0 %5219
      %v5222 = vmul.f32 %v5220, %v5210
      %v5223 = vmul.f32 %v5220, %v5211
      %v5224 = vmul.f32 %v5220, %v5212
      %v5225 = vmul.f32 %v5220, %v5213
      %v5226 = vmul.f32 %v5220, %v5214
      %v5227 = vmul.f32 %v5220, %v5215
      %v5228 = vmul.f32 %v5220, %v5216
      %v5229 = vmul.f32 %v5220, %v5217
      %v5230 = vadd.f32 %v5135, %v5222
      %v5231 = vadd.f32 %v5136, %v5223
      %v5232 = vadd.f32 %v5137, %v5224
      %v5233 = vadd.f32 %v5138, %v5225
      %v5234 = vadd.f32 %v5139, %v5226
      %v5235 = vadd.f32 %v5140, %v5227
      %v5236 = vadd.f32 %v5141, %v5228
      %v5237 = vadd.f32 %v5142, %v5229
      %5238 = vrot.lane.b32.xlu0 %v3217, 118
      %v5239 = vpop.permute.xlu0 %5238
      %5240 = vrot.lane.b32.xlu0 %v3218, 118
      %v5241 = vpop.permute.xlu0 %5240
      %5242 = vrot.lane.b32.xlu0 %v3219, 118
      %v5243 = vpop.permute.xlu0 %5242
      %5244 = vrot.lane.b32.xlu0 %v3220, 118
      %v5245 = vpop.permute.xlu0 %5244
      %5246 = vrot.lane.b32.xlu0 %v3221, 118
      %v5247 = vpop.permute.xlu0 %5246
      %5248 = vrot.lane.b32.xlu0 %v3222, 118
      %v5249 = vpop.permute.xlu0 %5248
      %5250 = vrot.lane.b32.xlu0 %v3223, 118
      %v5251 = vpop.permute.xlu0 %5250
      %5252 = vrot.lane.b32.xlu0 %v3224, 118
      %v5253 = vpop.permute.xlu0 %5252
      %vm5254 = vcmp.lt.s32.totalorder %v1052, 118
      %v5255 = vsel %vm5254, %v5251, %v5253
      %v5256 = vsel %vm5254, %v5249, %v5251
      %v5257 = vsel %vm5254, %v5247, %v5249
      %v5258 = vsel %vm5254, %v5245, %v5247
      %v5259 = vsel %vm5254, %v5243, %v5245
      %v5260 = vsel %vm5254, %v5241, %v5243
      %v5261 = vsel %vm5254, %v5239, %v5241
      %v5262 = vsel %vm5254, %v5253, %v5239
      %vm5263 = vcmp.lt.s32.totalorder %v369, 22
      %v5264 = vsel %vm5263, 1, 0
      %v5265 = vlaneseq
      %v5266 = vshrl.u32 %v5265, 7
      %v5267 = vsub.s32 0, %v5266
      %v5268 = vrot.slane %v5264, %v5267
      %v5269 = vlaneseq
      %v5270 = vshrl.u32 %v5269, 7
      %v5271 = vsub.s32 1, %v5270
      %v5272 = vrot.slane %v5264, %v5271
      %v5273 = vlaneseq
      %v5274 = vshrl.u32 %v5273, 7
      %v5275 = vsub.s32 2, %v5274
      %v5276 = vrot.slane %v5264, %v5275
      %v5277 = vlaneseq
      %v5278 = vshrl.u32 %v5277, 7
      %v5279 = vsub.s32 3, %v5278
      %v5280 = vrot.slane %v5264, %v5279
      %v5281 = vlaneseq
      %v5282 = vshrl.u32 %v5281, 7
      %v5283 = vsub.s32 4, %v5282
      %v5284 = vrot.slane %v5264, %v5283
      %v5285 = vlaneseq
      %v5286 = vshrl.u32 %v5285, 7
      %v5287 = vsub.s32 5, %v5286
      %v5288 = vrot.slane %v5264, %v5287
      %v5289 = vlaneseq
      %v5290 = vshrl.u32 %v5289, 7
      %v5291 = vsub.s32 6, %v5290
      %v5292 = vrot.slane %v5264, %v5291
      %v5293 = vlaneseq
      %v5294 = vshrl.u32 %v5293, 7
      %v5295 = vsub.s32 7, %v5294
      %v5296 = vrot.slane %v5264, %v5295
      %vm5297 = vcmp.eq.s32.totalorder %v5268, 1
      %vm5298 = vcmp.eq.s32.totalorder %v5272, 1
      %vm5299 = vcmp.eq.s32.totalorder %v5276, 1
      %vm5300 = vcmp.eq.s32.totalorder %v5280, 1
      %vm5301 = vcmp.eq.s32.totalorder %v5284, 1
      %vm5302 = vcmp.eq.s32.totalorder %v5288, 1
      %vm5303 = vcmp.eq.s32.totalorder %v5292, 1
      %vm5304 = vcmp.eq.s32.totalorder %v5296, 1
      %v5305 = vsel %vm5297, %v5261, 0.0
      %v5306 = vsel %vm5298, %v5260, 0.0
      %v5307 = vsel %vm5299, %v5259, 0.0
      %v5308 = vsel %vm5300, %v5258, 0.0
      %v5309 = vsel %vm5301, %v5257, 0.0
      %v5310 = vsel %vm5302, %v5256, 0.0
      %v5311 = vsel %vm5303, %v5255, 0.0
      %v5312 = vsel %vm5304, %v5262, 0.0
      %5313 = vset.pattern.permute.xlu0 86
      %5314 = vperm.xlu0 %5313, %v370
      %v5315 = vpop.permute.xlu0 %5314
      %v5317 = vmul.f32 %v5315, %v5305
      %v5318 = vmul.f32 %v5315, %v5306
      %v5319 = vmul.f32 %v5315, %v5307
      %v5320 = vmul.f32 %v5315, %v5308
      %v5321 = vmul.f32 %v5315, %v5309
      %v5322 = vmul.f32 %v5315, %v5310
      %v5323 = vmul.f32 %v5315, %v5311
      %v5324 = vmul.f32 %v5315, %v5312
      %v5325 = vadd.f32 %v5230, %v5317
      %v5326 = vadd.f32 %v5231, %v5318
      %v5327 = vadd.f32 %v5232, %v5319
      %v5328 = vadd.f32 %v5233, %v5320
      %v5329 = vadd.f32 %v5234, %v5321
      %v5330 = vadd.f32 %v5235, %v5322
      %v5331 = vadd.f32 %v5236, %v5323
      %v5332 = vadd.f32 %v5237, %v5324
      %5333 = vset.pattern.permute.xlu0 33
      %5334 = vperm.xlu0 %5333, %v370
      %v5335 = vpop.permute.xlu0 %5334
      %v5337 = vadd.f32 %v4620, %v5335
      %v5338 = vadd.f32 %v4621, %v5335
      %v5339 = vadd.f32 %v4622, %v5335
      %v5340 = vadd.f32 %v4623, %v5335
      %v5341 = vadd.f32 %v4624, %v5335
      %v5342 = vadd.f32 %v4625, %v5335
      %v5343 = vadd.f32 %v4626, %v5335
      %v5344 = vadd.f32 %v4627, %v5335
      %5345 = vset.pattern.permute.xlu0 53
      %5346 = vperm.xlu0 %5345, %v370
      %v5347 = vpop.permute.xlu0 %5346
      %v5349 = vadd.f32 %v4850, %v5347
      %v5350 = vadd.f32 %v4851, %v5347
      %v5351 = vadd.f32 %v4852, %v5347
      %v5352 = vadd.f32 %v4853, %v5347
      %v5353 = vadd.f32 %v4854, %v5347
      %v5354 = vadd.f32 %v4855, %v5347
      %v5355 = vadd.f32 %v4856, %v5347
      %v5356 = vadd.f32 %v4857, %v5347
      %5357 = vset.pattern.permute.xlu0 87
      %5358 = vperm.xlu0 %5357, %v370
      %v5359 = vpop.permute.xlu0 %5358
      %v5361 = vadd.f32 %v5325, %v5359
      %v5362 = vadd.f32 %v5326, %v5359
      %v5363 = vadd.f32 %v5327, %v5359
      %v5364 = vadd.f32 %v5328, %v5359
      %v5365 = vadd.f32 %v5329, %v5359
      %v5366 = vadd.f32 %v5330, %v5359
      %v5367 = vadd.f32 %v5331, %v5359
      %v5368 = vadd.f32 %v5332, %v5359
      %5369 = vrot.lane.b32.xlu0 %v5337, 96
      %v5370 = vpop.permute.xlu0 %5369
      %5371 = vrot.lane.b32.xlu0 %v5338, 96
      %v5372 = vpop.permute.xlu0 %5371
      %5373 = vrot.lane.b32.xlu0 %v5339, 96
      %v5374 = vpop.permute.xlu0 %5373
      %5375 = vrot.lane.b32.xlu0 %v5340, 96
      %v5376 = vpop.permute.xlu0 %5375
      %5377 = vrot.lane.b32.xlu0 %v5341, 96
      %v5378 = vpop.permute.xlu0 %5377
      %5379 = vrot.lane.b32.xlu0 %v5342, 96
      %v5380 = vpop.permute.xlu0 %5379
      %5381 = vrot.lane.b32.xlu0 %v5343, 96
      %v5382 = vpop.permute.xlu0 %5381
      %5383 = vrot.lane.b32.xlu0 %v5344, 96
      %v5384 = vpop.permute.xlu0 %5383
      %v5385 = vsel %vm2595, %v5382, %v5384
      %v5386 = vsel %vm2595, %v5380, %v5382
      %v5387 = vsel %vm2595, %v5378, %v5380
      %v5388 = vsel %vm2595, %v5376, %v5378
      %v5389 = vsel %vm2595, %v5374, %v5376
      %v5390 = vsel %vm2595, %v5372, %v5374
      %v5391 = vsel %vm2595, %v5370, %v5372
      %v5392 = vsel %vm2595, %v5384, %v5370
      %vm5393 = vcmp.ge.s32.totalorder %v368, 3
      %v5394 = vsel %vm5393, 1, 0
      %v5395 = vlaneseq
      %v5396 = vshrl.u32 %v5395, 7
      %v5397 = vsub.s32 0, %v5396
      %v5398 = vrot.slane %v5394, %v5397
      %v5399 = vlaneseq
      %v5400 = vshrl.u32 %v5399, 7
      %v5401 = vsub.s32 1, %v5400
      %v5402 = vrot.slane %v5394, %v5401
      %v5403 = vlaneseq
      %v5404 = vshrl.u32 %v5403, 7
      %v5405 = vsub.s32 2, %v5404
      %v5406 = vrot.slane %v5394, %v5405
      %v5407 = vlaneseq
      %v5408 = vshrl.u32 %v5407, 7
      %v5409 = vsub.s32 3, %v5408
      %v5410 = vrot.slane %v5394, %v5409
      %v5411 = vlaneseq
      %v5412 = vshrl.u32 %v5411, 7
      %v5413 = vsub.s32 4, %v5412
      %v5414 = vrot.slane %v5394, %v5413
      %v5415 = vlaneseq
      %v5416 = vshrl.u32 %v5415, 7
      %v5417 = vsub.s32 5, %v5416
      %v5418 = vrot.slane %v5394, %v5417
      %v5419 = vlaneseq
      %v5420 = vshrl.u32 %v5419, 7
      %v5421 = vsub.s32 6, %v5420
      %v5422 = vrot.slane %v5394, %v5421
      %v5423 = vlaneseq
      %v5424 = vshrl.u32 %v5423, 7
      %v5425 = vsub.s32 7, %v5424
      %v5426 = vrot.slane %v5394, %v5425
      %vm5427 = vcmp.eq.s32.totalorder %v5398, 1
      %vm5428 = vcmp.eq.s32.totalorder %v5402, 1
      %vm5429 = vcmp.eq.s32.totalorder %v5406, 1
      %vm5430 = vcmp.eq.s32.totalorder %v5410, 1
      %vm5431 = vcmp.eq.s32.totalorder %v5414, 1
      %vm5432 = vcmp.eq.s32.totalorder %v5418, 1
      %vm5433 = vcmp.eq.s32.totalorder %v5422, 1
      %vm5434 = vcmp.eq.s32.totalorder %v5426, 1
      %v5435 = vsel %vm5427, %v5392, 0.0
      %v5436 = vsel %vm5428, %v5391, 0.0
      %v5437 = vsel %vm5429, %v5390, 0.0
      %v5438 = vsel %vm5430, %v5389, 0.0
      %v5439 = vsel %vm5431, %v5388, 0.0
      %v5440 = vsel %vm5432, %v5387, 0.0
      %v5441 = vsel %vm5433, %v5386, 0.0
      %v5442 = vsel %vm5434, %v5385, 0.0
      %5443 = vset.pattern.permute.xlu0 34
      %5444 = vperm.xlu0 %5443, %v370
      %v5445 = vpop.permute.xlu0 %5444
      %v5447 = vmul.f32 %v5445, %v5435
      %v5448 = vmul.f32 %v5445, %v5436
      %v5449 = vmul.f32 %v5445, %v5437
      %v5450 = vmul.f32 %v5445, %v5438
      %v5451 = vmul.f32 %v5445, %v5439
      %v5452 = vmul.f32 %v5445, %v5440
      %v5453 = vmul.f32 %v5445, %v5441
      %v5454 = vmul.f32 %v5445, %v5442
      %v5455 = vadd.f32 %v5447, 0.0
      %v5456 = vadd.f32 %v5448, 0.0
      %v5457 = vadd.f32 %v5449, 0.0
      %v5458 = vadd.f32 %v5450, 0.0
      %v5459 = vadd.f32 %v5451, 0.0
      %v5460 = vadd.f32 %v5452, 0.0
      %v5461 = vadd.f32 %v5453, 0.0
      %v5462 = vadd.f32 %v5454, 0.0
      %5463 = vrot.lane.b32.xlu0 %v5337, 64
      %v5464 = vpop.permute.xlu0 %5463
      %5465 = vrot.lane.b32.xlu0 %v5338, 64
      %v5466 = vpop.permute.xlu0 %5465
      %5467 = vrot.lane.b32.xlu0 %v5339, 64
      %v5468 = vpop.permute.xlu0 %5467
      %5469 = vrot.lane.b32.xlu0 %v5340, 64
      %v5470 = vpop.permute.xlu0 %5469
      %5471 = vrot.lane.b32.xlu0 %v5341, 64
      %v5472 = vpop.permute.xlu0 %5471
      %5473 = vrot.lane.b32.xlu0 %v5342, 64
      %v5474 = vpop.permute.xlu0 %5473
      %5475 = vrot.lane.b32.xlu0 %v5343, 64
      %v5476 = vpop.permute.xlu0 %5475
      %5477 = vrot.lane.b32.xlu0 %v5344, 64
      %v5478 = vpop.permute.xlu0 %5477
      %v5479 = vsel %vm1247, %v5476, %v5478
      %v5480 = vsel %vm1247, %v5474, %v5476
      %v5481 = vsel %vm1247, %v5472, %v5474
      %v5482 = vsel %vm1247, %v5470, %v5472
      %v5483 = vsel %vm1247, %v5468, %v5470
      %v5484 = vsel %vm1247, %v5466, %v5468
      %v5485 = vsel %vm1247, %v5464, %v5466
      %v5486 = vsel %vm1247, %v5478, %v5464
      %v5487 = vsel %vm1289, %v5486, 0.0
      %v5488 = vsel %vm1290, %v5485, 0.0
      %v5489 = vsel %vm1291, %v5484, 0.0
      %v5490 = vsel %vm1292, %v5483, 0.0
      %v5491 = vsel %vm1293, %v5482, 0.0
      %v5492 = vsel %vm1294, %v5481, 0.0
      %v5493 = vsel %vm1295, %v5480, 0.0
      %v5494 = vsel %vm1296, %v5479, 0.0
      %5495 = vset.pattern.permute.xlu0 35
      %5496 = vperm.xlu0 %5495, %v370
      %v5497 = vpop.permute.xlu0 %5496
      %v5499 = vmul.f32 %v5497, %v5487
      %v5500 = vmul.f32 %v5497, %v5488
      %v5501 = vmul.f32 %v5497, %v5489
      %v5502 = vmul.f32 %v5497, %v5490
      %v5503 = vmul.f32 %v5497, %v5491
      %v5504 = vmul.f32 %v5497, %v5492
      %v5505 = vmul.f32 %v5497, %v5493
      %v5506 = vmul.f32 %v5497, %v5494
      %v5507 = vadd.f32 %v5455, %v5499
      %v5508 = vadd.f32 %v5456, %v5500
      %v5509 = vadd.f32 %v5457, %v5501
      %v5510 = vadd.f32 %v5458, %v5502
      %v5511 = vadd.f32 %v5459, %v5503
      %v5512 = vadd.f32 %v5460, %v5504
      %v5513 = vadd.f32 %v5461, %v5505
      %v5514 = vadd.f32 %v5462, %v5506
      %5515 = vrot.lane.b32.xlu0 %v5337, 32
      %v5516 = vpop.permute.xlu0 %5515
      %5517 = vrot.lane.b32.xlu0 %v5338, 32
      %v5518 = vpop.permute.xlu0 %5517
      %5519 = vrot.lane.b32.xlu0 %v5339, 32
      %v5520 = vpop.permute.xlu0 %5519
      %5521 = vrot.lane.b32.xlu0 %v5340, 32
      %v5522 = vpop.permute.xlu0 %5521
      %5523 = vrot.lane.b32.xlu0 %v5341, 32
      %v5524 = vpop.permute.xlu0 %5523
      %5525 = vrot.lane.b32.xlu0 %v5342, 32
      %v5526 = vpop.permute.xlu0 %5525
      %5527 = vrot.lane.b32.xlu0 %v5343, 32
      %v5528 = vpop.permute.xlu0 %5527
      %5529 = vrot.lane.b32.xlu0 %v5344, 32
      %v5530 = vpop.permute.xlu0 %5529
      %v5531 = vsel %vm1724, %v5528, %v5530
      %v5532 = vsel %vm1724, %v5526, %v5528
      %v5533 = vsel %vm1724, %v5524, %v5526
      %v5534 = vsel %vm1724, %v5522, %v5524
      %v5535 = vsel %vm1724, %v5520, %v5522
      %v5536 = vsel %vm1724, %v5518, %v5520
      %v5537 = vsel %vm1724, %v5516, %v5518
      %v5538 = vsel %vm1724, %v5530, %v5516
      %v5539 = vsel %vm1766, %v5538, 0.0
      %v5540 = vsel %vm1767, %v5537, 0.0
      %v5541 = vsel %vm1768, %v5536, 0.0
      %v5542 = vsel %vm1769, %v5535, 0.0
      %v5543 = vsel %vm1770, %v5534, 0.0
      %v5544 = vsel %vm1771, %v5533, 0.0
      %v5545 = vsel %vm1772, %v5532, 0.0
      %v5546 = vsel %vm1773, %v5531, 0.0
      %5547 = vset.pattern.permute.xlu0 36
      %5548 = vperm.xlu0 %5547, %v370
      %v5549 = vpop.permute.xlu0 %5548
      %v5551 = vmul.f32 %v5549, %v5539
      %v5552 = vmul.f32 %v5549, %v5540
      %v5553 = vmul.f32 %v5549, %v5541
      %v5554 = vmul.f32 %v5549, %v5542
      %v5555 = vmul.f32 %v5549, %v5543
      %v5556 = vmul.f32 %v5549, %v5544
      %v5557 = vmul.f32 %v5549, %v5545
      %v5558 = vmul.f32 %v5549, %v5546
      %v5559 = vadd.f32 %v5507, %v5551
      %v5560 = vadd.f32 %v5508, %v5552
      %v5561 = vadd.f32 %v5509, %v5553
      %v5562 = vadd.f32 %v5510, %v5554
      %v5563 = vadd.f32 %v5511, %v5555
      %v5564 = vadd.f32 %v5512, %v5556
      %v5565 = vadd.f32 %v5513, %v5557
      %v5566 = vadd.f32 %v5514, %v5558
      %5567 = vset.pattern.permute.xlu0 37
      %5568 = vperm.xlu0 %5567, %v370
      %v5569 = vpop.permute.xlu0 %5568
      %v5571 = vmul.f32 %v5569, %v5337
      %v5572 = vmul.f32 %v5569, %v5338
      %v5573 = vmul.f32 %v5569, %v5339
      %v5574 = vmul.f32 %v5569, %v5340
      %v5575 = vmul.f32 %v5569, %v5341
      %v5576 = vmul.f32 %v5569, %v5342
      %v5577 = vmul.f32 %v5569, %v5343
      %v5578 = vmul.f32 %v5569, %v5344
      %v5579 = vadd.f32 %v5559, %v5571
      %v5580 = vadd.f32 %v5560, %v5572
      %v5581 = vadd.f32 %v5561, %v5573
      %v5582 = vadd.f32 %v5562, %v5574
      %v5583 = vadd.f32 %v5563, %v5575
      %v5584 = vadd.f32 %v5564, %v5576
      %v5585 = vadd.f32 %v5565, %v5577
      %v5586 = vadd.f32 %v5566, %v5578
      %v5587 = vsel %vm2637, %v5391, 0.0
      %v5588 = vsel %vm2638, %v5390, 0.0
      %v5589 = vsel %vm2639, %v5389, 0.0
      %v5590 = vsel %vm2640, %v5388, 0.0
      %v5591 = vsel %vm2641, %v5387, 0.0
      %v5592 = vsel %vm2642, %v5386, 0.0
      %v5593 = vsel %vm2643, %v5385, 0.0
      %v5594 = vsel %vm2644, %v5392, 0.0
      %5595 = vset.pattern.permute.xlu0 38
      %5596 = vperm.xlu0 %5595, %v370
      %v5597 = vpop.permute.xlu0 %5596
      %v5599 = vmul.f32 %v5597, %v5587
      %v5600 = vmul.f32 %v5597, %v5588
      %v5601 = vmul.f32 %v5597, %v5589
      %v5602 = vmul.f32 %v5597, %v5590
      %v5603 = vmul.f32 %v5597, %v5591
      %v5604 = vmul.f32 %v5597, %v5592
      %v5605 = vmul.f32 %v5597, %v5593
      %v5606 = vmul.f32 %v5597, %v5594
      %v5607 = vadd.f32 %v5579, %v5599
      %v5608 = vadd.f32 %v5580, %v5600
      %v5609 = vadd.f32 %v5581, %v5601
      %v5610 = vadd.f32 %v5582, %v5602
      %v5611 = vadd.f32 %v5583, %v5603
      %v5612 = vadd.f32 %v5584, %v5604
      %v5613 = vadd.f32 %v5585, %v5605
      %v5614 = vadd.f32 %v5586, %v5606
      %v5615 = vsel %vm3037, %v5485, 0.0
      %v5616 = vsel %vm3038, %v5484, 0.0
      %v5617 = vsel %vm3039, %v5483, 0.0
      %v5618 = vsel %vm3040, %v5482, 0.0
      %v5619 = vsel %vm3041, %v5481, 0.0
      %v5620 = vsel %vm3042, %v5480, 0.0
      %v5621 = vsel %vm3043, %v5479, 0.0
      %v5622 = vsel %vm3044, %v5486, 0.0
      %5623 = vset.pattern.permute.xlu0 39
      %5624 = vperm.xlu0 %5623, %v370
      %v5625 = vpop.permute.xlu0 %5624
      %v5627 = vmul.f32 %v5625, %v5615
      %v5628 = vmul.f32 %v5625, %v5616
      %v5629 = vmul.f32 %v5625, %v5617
      %v5630 = vmul.f32 %v5625, %v5618
      %v5631 = vmul.f32 %v5625, %v5619
      %v5632 = vmul.f32 %v5625, %v5620
      %v5633 = vmul.f32 %v5625, %v5621
      %v5634 = vmul.f32 %v5625, %v5622
      %v5635 = vadd.f32 %v5607, %v5627
      %v5636 = vadd.f32 %v5608, %v5628
      %v5637 = vadd.f32 %v5609, %v5629
      %v5638 = vadd.f32 %v5610, %v5630
      %v5639 = vadd.f32 %v5611, %v5631
      %v5640 = vadd.f32 %v5612, %v5632
      %v5641 = vadd.f32 %v5613, %v5633
      %v5642 = vadd.f32 %v5614, %v5634
      %vm5643 = vcmp.lt.s32.totalorder %v368, 29
      %v5644 = vsel %vm5643, 1, 0
      %v5645 = vlaneseq
      %v5646 = vshrl.u32 %v5645, 7
      %v5647 = vsub.s32 0, %v5646
      %v5648 = vrot.slane %v5644, %v5647
      %v5649 = vlaneseq
      %v5650 = vshrl.u32 %v5649, 7
      %v5651 = vsub.s32 1, %v5650
      %v5652 = vrot.slane %v5644, %v5651
      %v5653 = vlaneseq
      %v5654 = vshrl.u32 %v5653, 7
      %v5655 = vsub.s32 2, %v5654
      %v5656 = vrot.slane %v5644, %v5655
      %v5657 = vlaneseq
      %v5658 = vshrl.u32 %v5657, 7
      %v5659 = vsub.s32 3, %v5658
      %v5660 = vrot.slane %v5644, %v5659
      %v5661 = vlaneseq
      %v5662 = vshrl.u32 %v5661, 7
      %v5663 = vsub.s32 4, %v5662
      %v5664 = vrot.slane %v5644, %v5663
      %v5665 = vlaneseq
      %v5666 = vshrl.u32 %v5665, 7
      %v5667 = vsub.s32 5, %v5666
      %v5668 = vrot.slane %v5644, %v5667
      %v5669 = vlaneseq
      %v5670 = vshrl.u32 %v5669, 7
      %v5671 = vsub.s32 6, %v5670
      %v5672 = vrot.slane %v5644, %v5671
      %v5673 = vlaneseq
      %v5674 = vshrl.u32 %v5673, 7
      %v5675 = vsub.s32 7, %v5674
      %v5676 = vrot.slane %v5644, %v5675
      %vm5677 = vcmp.eq.s32.totalorder %v5648, 1
      %vm5678 = vcmp.eq.s32.totalorder %v5652, 1
      %vm5679 = vcmp.eq.s32.totalorder %v5656, 1
      %vm5680 = vcmp.eq.s32.totalorder %v5660, 1
      %vm5681 = vcmp.eq.s32.totalorder %v5664, 1
      %vm5682 = vcmp.eq.s32.totalorder %v5668, 1
      %vm5683 = vcmp.eq.s32.totalorder %v5672, 1
      %vm5684 = vcmp.eq.s32.totalorder %v5676, 1
      %v5685 = vsel %vm5677, %v5537, 0.0
      %v5686 = vsel %vm5678, %v5536, 0.0
      %v5687 = vsel %vm5679, %v5535, 0.0
      %v5688 = vsel %vm5680, %v5534, 0.0
      %v5689 = vsel %vm5681, %v5533, 0.0
      %v5690 = vsel %vm5682, %v5532, 0.0
      %v5691 = vsel %vm5683, %v5531, 0.0
      %v5692 = vsel %vm5684, %v5538, 0.0
      %5693 = vset.pattern.permute.xlu0 40
      %5694 = vperm.xlu0 %5693, %v370
      %v5695 = vpop.permute.xlu0 %5694
      %v5697 = vmul.f32 %v5695, %v5685
      %v5698 = vmul.f32 %v5695, %v5686
      %v5699 = vmul.f32 %v5695, %v5687
      %v5700 = vmul.f32 %v5695, %v5688
      %v5701 = vmul.f32 %v5695, %v5689
      %v5702 = vmul.f32 %v5695, %v5690
      %v5703 = vmul.f32 %v5695, %v5691
      %v5704 = vmul.f32 %v5695, %v5692
      %v5705 = vadd.f32 %v5635, %v5697
      %v5706 = vadd.f32 %v5636, %v5698
      %v5707 = vadd.f32 %v5637, %v5699
      %v5708 = vadd.f32 %v5638, %v5700
      %v5709 = vadd.f32 %v5639, %v5701
      %v5710 = vadd.f32 %v5640, %v5702
      %v5711 = vadd.f32 %v5641, %v5703
      %v5712 = vadd.f32 %v5642, %v5704
      %v5713 = vadd.f32 %v3217, %v5705
      %v5714 = vadd.f32 %v3218, %v5706
      %v5715 = vadd.f32 %v3219, %v5707
      %v5716 = vadd.f32 %v3220, %v5708
      %v5717 = vadd.f32 %v3221, %v5709
      %v5718 = vadd.f32 %v3222, %v5710
      %v5719 = vadd.f32 %v3223, %v5711
      %v5720 = vadd.f32 %v3224, %v5712
      %5721 = vset.pattern.permute.xlu0 41
      %5722 = vperm.xlu0 %5721, %v370
      %v5723 = vpop.permute.xlu0 %5722
      %v5725 = vadd.f32 %v5713, %v5723
      %v5726 = vadd.f32 %v5714, %v5723
      %v5727 = vadd.f32 %v5715, %v5723
      %v5728 = vadd.f32 %v5716, %v5723
      %v5729 = vadd.f32 %v5717, %v5723
      %v5730 = vadd.f32 %v5718, %v5723
      %v5731 = vadd.f32 %v5719, %v5723
      %v5732 = vadd.f32 %v5720, %v5723
      %5733 = vrot.lane.b32.xlu0 %v5349, 32
      %v5734 = vpop.permute.xlu0 %5733
      %5735 = vrot.lane.b32.xlu0 %v5350, 32
      %v5736 = vpop.permute.xlu0 %5735
      %5737 = vrot.lane.b32.xlu0 %v5351, 32
      %v5738 = vpop.permute.xlu0 %5737
      %5739 = vrot.lane.b32.xlu0 %v5352, 32
      %v5740 = vpop.permute.xlu0 %5739
      %5741 = vrot.lane.b32.xlu0 %v5353, 32
      %v5742 = vpop.permute.xlu0 %5741
      %5743 = vrot.lane.b32.xlu0 %v5354, 32
      %v5744 = vpop.permute.xlu0 %5743
      %5745 = vrot.lane.b32.xlu0 %v5355, 32
      %v5746 = vpop.permute.xlu0 %5745
      %5747 = vrot.lane.b32.xlu0 %v5356, 32
      %v5748 = vpop.permute.xlu0 %5747
      %v5749 = vsel %vm1724, %v5746, %v5748
      %v5750 = vsel %vm1724, %v5744, %v5746
      %v5751 = vsel %vm1724, %v5742, %v5744
      %v5752 = vsel %vm1724, %v5740, %v5742
      %v5753 = vsel %vm1724, %v5738, %v5740
      %v5754 = vsel %vm1724, %v5736, %v5738
      %v5755 = vsel %vm1724, %v5734, %v5736
      %v5756 = vsel %vm1724, %v5748, %v5734
      %vm5757 = vcmp.ge.s32.totalorder %v368, 5
      %v5758 = vsel %vm5757, 1, 0
      %v5759 = vlaneseq
      %v5760 = vshrl.u32 %v5759, 7
      %v5761 = vsub.s32 0, %v5760
      %v5762 = vrot.slane %v5758, %v5761
      %v5763 = vlaneseq
      %v5764 = vshrl.u32 %v5763, 7
      %v5765 = vsub.s32 1, %v5764
      %v5766 = vrot.slane %v5758, %v5765
      %v5767 = vlaneseq
      %v5768 = vshrl.u32 %v5767, 7
      %v5769 = vsub.s32 2, %v5768
      %v5770 = vrot.slane %v5758, %v5769
      %v5771 = vlaneseq
      %v5772 = vshrl.u32 %v5771, 7
      %v5773 = vsub.s32 3, %v5772
      %v5774 = vrot.slane %v5758, %v5773
      %v5775 = vlaneseq
      %v5776 = vshrl.u32 %v5775, 7
      %v5777 = vsub.s32 4, %v5776
      %v5778 = vrot.slane %v5758, %v5777
      %v5779 = vlaneseq
      %v5780 = vshrl.u32 %v5779, 7
      %v5781 = vsub.s32 5, %v5780
      %v5782 = vrot.slane %v5758, %v5781
      %v5783 = vlaneseq
      %v5784 = vshrl.u32 %v5783, 7
      %v5785 = vsub.s32 6, %v5784
      %v5786 = vrot.slane %v5758, %v5785
      %v5787 = vlaneseq
      %v5788 = vshrl.u32 %v5787, 7
      %v5789 = vsub.s32 7, %v5788
      %v5790 = vrot.slane %v5758, %v5789
      %vm5791 = vcmp.eq.s32.totalorder %v5762, 1
      %vm5792 = vcmp.eq.s32.totalorder %v5766, 1
      %vm5793 = vcmp.eq.s32.totalorder %v5770, 1
      %vm5794 = vcmp.eq.s32.totalorder %v5774, 1
      %vm5795 = vcmp.eq.s32.totalorder %v5778, 1
      %vm5796 = vcmp.eq.s32.totalorder %v5782, 1
      %vm5797 = vcmp.eq.s32.totalorder %v5786, 1
      %vm5798 = vcmp.eq.s32.totalorder %v5790, 1
      %v5799 = vsel %vm5791, %v5749, 0.0
      %v5800 = vsel %vm5792, %v5756, 0.0
      %v5801 = vsel %vm5793, %v5755, 0.0
      %v5802 = vsel %vm5794, %v5754, 0.0
      %v5803 = vsel %vm5795, %v5753, 0.0
      %v5804 = vsel %vm5796, %v5752, 0.0
      %v5805 = vsel %vm5797, %v5751, 0.0
      %v5806 = vsel %vm5798, %v5750, 0.0
      %5807 = vset.pattern.permute.xlu0 54
      %5808 = vperm.xlu0 %5807, %v370
      %v5809 = vpop.permute.xlu0 %5808
      %v5811 = vmul.f32 %v5809, %v5799
      %v5812 = vmul.f32 %v5809, %v5800
      %v5813 = vmul.f32 %v5809, %v5801
      %v5814 = vmul.f32 %v5809, %v5802
      %v5815 = vmul.f32 %v5809, %v5803
      %v5816 = vmul.f32 %v5809, %v5804
      %v5817 = vmul.f32 %v5809, %v5805
      %v5818 = vmul.f32 %v5809, %v5806
      %v5819 = vadd.f32 %v5811, 0.0
      %v5820 = vadd.f32 %v5812, 0.0
      %v5821 = vadd.f32 %v5813, 0.0
      %v5822 = vadd.f32 %v5814, 0.0
      %v5823 = vadd.f32 %v5815, 0.0
      %v5824 = vadd.f32 %v5816, 0.0
      %v5825 = vadd.f32 %v5817, 0.0
      %v5826 = vadd.f32 %v5818, 0.0
      %vm5827 = vcmp.ge.s32.totalorder %v368, 4
      %v5828 = vsel %vm5827, 1, 0
      %v5829 = vlaneseq
      %v5830 = vshrl.u32 %v5829, 7
      %v5831 = vsub.s32 0, %v5830
      %v5832 = vrot.slane %v5828, %v5831
      %v5833 = vlaneseq
      %v5834 = vshrl.u32 %v5833, 7
      %v5835 = vsub.s32 1, %v5834
      %v5836 = vrot.slane %v5828, %v5835
      %v5837 = vlaneseq
      %v5838 = vshrl.u32 %v5837, 7
      %v5839 = vsub.s32 2, %v5838
      %v5840 = vrot.slane %v5828, %v5839
      %v5841 = vlaneseq
      %v5842 = vshrl.u32 %v5841, 7
      %v5843 = vsub.s32 3, %v5842
      %v5844 = vrot.slane %v5828, %v5843
      %v5845 = vlaneseq
      %v5846 = vshrl.u32 %v5845, 7
      %v5847 = vsub.s32 4, %v5846
      %v5848 = vrot.slane %v5828, %v5847
      %v5849 = vlaneseq
      %v5850 = vshrl.u32 %v5849, 7
      %v5851 = vsub.s32 5, %v5850
      %v5852 = vrot.slane %v5828, %v5851
      %v5853 = vlaneseq
      %v5854 = vshrl.u32 %v5853, 7
      %v5855 = vsub.s32 6, %v5854
      %v5856 = vrot.slane %v5828, %v5855
      %v5857 = vlaneseq
      %v5858 = vshrl.u32 %v5857, 7
      %v5859 = vsub.s32 7, %v5858
      %v5860 = vrot.slane %v5828, %v5859
      %vm5861 = vcmp.eq.s32.totalorder %v5832, 1
      %vm5862 = vcmp.eq.s32.totalorder %v5836, 1
      %vm5863 = vcmp.eq.s32.totalorder %v5840, 1
      %vm5864 = vcmp.eq.s32.totalorder %v5844, 1
      %vm5865 = vcmp.eq.s32.totalorder %v5848, 1
      %vm5866 = vcmp.eq.s32.totalorder %v5852, 1
      %vm5867 = vcmp.eq.s32.totalorder %v5856, 1
      %vm5868 = vcmp.eq.s32.totalorder %v5860, 1
      %v5869 = vsel %vm5861, %v5356, 0.0
      %v5870 = vsel %vm5862, %v5349, 0.0
      %v5871 = vsel %vm5863, %v5350, 0.0
      %v5872 = vsel %vm5864, %v5351, 0.0
      %v5873 = vsel %vm5865, %v5352, 0.0
      %v5874 = vsel %vm5866, %v5353, 0.0
      %v5875 = vsel %vm5867, %v5354, 0.0
      %v5876 = vsel %vm5868, %v5355, 0.0
      %5877 = vset.pattern.permute.xlu0 55
      %5878 = vperm.xlu0 %5877, %v370
      %v5879 = vpop.permute.xlu0 %5878
      %v5881 = vmul.f32 %v5879, %v5869
      %v5882 = vmul.f32 %v5879, %v5870
      %v5883 = vmul.f32 %v5879, %v5871
      %v5884 = vmul.f32 %v5879, %v5872
      %v5885 = vmul.f32 %v5879, %v5873
      %v5886 = vmul.f32 %v5879, %v5874
      %v5887 = vmul.f32 %v5879, %v5875
      %v5888 = vmul.f32 %v5879, %v5876
      %v5889 = vadd.f32 %v5819, %v5881
      %v5890 = vadd.f32 %v5820, %v5882
      %v5891 = vadd.f32 %v5821, %v5883
      %v5892 = vadd.f32 %v5822, %v5884
      %v5893 = vadd.f32 %v5823, %v5885
      %v5894 = vadd.f32 %v5824, %v5886
      %v5895 = vadd.f32 %v5825, %v5887
      %v5896 = vadd.f32 %v5826, %v5888
      %5897 = vrot.lane.b32.xlu0 %v5349, 96
      %v5898 = vpop.permute.xlu0 %5897
      %5899 = vrot.lane.b32.xlu0 %v5350, 96
      %v5900 = vpop.permute.xlu0 %5899
      %5901 = vrot.lane.b32.xlu0 %v5351, 96
      %v5902 = vpop.permute.xlu0 %5901
      %5903 = vrot.lane.b32.xlu0 %v5352, 96
      %v5904 = vpop.permute.xlu0 %5903
      %5905 = vrot.lane.b32.xlu0 %v5353, 96
      %v5906 = vpop.permute.xlu0 %5905
      %5907 = vrot.lane.b32.xlu0 %v5354, 96
      %v5908 = vpop.permute.xlu0 %5907
      %5909 = vrot.lane.b32.xlu0 %v5355, 96
      %v5910 = vpop.permute.xlu0 %5909
      %5911 = vrot.lane.b32.xlu0 %v5356, 96
      %v5912 = vpop.permute.xlu0 %5911
      %v5913 = vsel %vm2595, %v5910, %v5912
      %v5914 = vsel %vm2595, %v5908, %v5910
      %v5915 = vsel %vm2595, %v5906, %v5908
      %v5916 = vsel %vm2595, %v5904, %v5906
      %v5917 = vsel %vm2595, %v5902, %v5904
      %v5918 = vsel %vm2595, %v5900, %v5902
      %v5919 = vsel %vm2595, %v5898, %v5900
      %v5920 = vsel %vm2595, %v5912, %v5898
      %v5921 = vsel %vm5427, %v5920, 0.0
      %v5922 = vsel %vm5428, %v5919, 0.0
      %v5923 = vsel %vm5429, %v5918, 0.0
      %v5924 = vsel %vm5430, %v5917, 0.0
      %v5925 = vsel %vm5431, %v5916, 0.0
      %v5926 = vsel %vm5432, %v5915, 0.0
      %v5927 = vsel %vm5433, %v5914, 0.0
      %v5928 = vsel %vm5434, %v5913, 0.0
      %5929 = vset.pattern.permute.xlu0 56
      %5930 = vperm.xlu0 %5929, %v370
      %v5931 = vpop.permute.xlu0 %5930
      %v5933 = vmul.f32 %v5931, %v5921
      %v5934 = vmul.f32 %v5931, %v5922
      %v5935 = vmul.f32 %v5931, %v5923
      %v5936 = vmul.f32 %v5931, %v5924
      %v5937 = vmul.f32 %v5931, %v5925
      %v5938 = vmul.f32 %v5931, %v5926
      %v5939 = vmul.f32 %v5931, %v5927
      %v5940 = vmul.f32 %v5931, %v5928
      %v5941 = vadd.f32 %v5889, %v5933
      %v5942 = vadd.f32 %v5890, %v5934
      %v5943 = vadd.f32 %v5891, %v5935
      %v5944 = vadd.f32 %v5892, %v5936
      %v5945 = vadd.f32 %v5893, %v5937
      %v5946 = vadd.f32 %v5894, %v5938
      %v5947 = vadd.f32 %v5895, %v5939
      %v5948 = vadd.f32 %v5896, %v5940
      %5949 = vrot.lane.b32.xlu0 %v5349, 64
      %v5950 = vpop.permute.xlu0 %5949
      %5951 = vrot.lane.b32.xlu0 %v5350, 64
      %v5952 = vpop.permute.xlu0 %5951
      %5953 = vrot.lane.b32.xlu0 %v5351, 64
      %v5954 = vpop.permute.xlu0 %5953
      %5955 = vrot.lane.b32.xlu0 %v5352, 64
      %v5956 = vpop.permute.xlu0 %5955
      %5957 = vrot.lane.b32.xlu0 %v5353, 64
      %v5958 = vpop.permute.xlu0 %5957
      %5959 = vrot.lane.b32.xlu0 %v5354, 64
      %v5960 = vpop.permute.xlu0 %5959
      %5961 = vrot.lane.b32.xlu0 %v5355, 64
      %v5962 = vpop.permute.xlu0 %5961
      %5963 = vrot.lane.b32.xlu0 %v5356, 64
      %v5964 = vpop.permute.xlu0 %5963
      %v5965 = vsel %vm1247, %v5962, %v5964
      %v5966 = vsel %vm1247, %v5960, %v5962
      %v5967 = vsel %vm1247, %v5958, %v5960
      %v5968 = vsel %vm1247, %v5956, %v5958
      %v5969 = vsel %vm1247, %v5954, %v5956
      %v5970 = vsel %vm1247, %v5952, %v5954
      %v5971 = vsel %vm1247, %v5950, %v5952
      %v5972 = vsel %vm1247, %v5964, %v5950
      %v5973 = vsel %vm1289, %v5972, 0.0
      %v5974 = vsel %vm1290, %v5971, 0.0
      %v5975 = vsel %vm1291, %v5970, 0.0
      %v5976 = vsel %vm1292, %v5969, 0.0
      %v5977 = vsel %vm1293, %v5968, 0.0
      %v5978 = vsel %vm1294, %v5967, 0.0
      %v5979 = vsel %vm1295, %v5966, 0.0
      %v5980 = vsel %vm1296, %v5965, 0.0
      %5981 = vset.pattern.permute.xlu0 57
      %5982 = vperm.xlu0 %5981, %v370
      %v5983 = vpop.permute.xlu0 %5982
      %v5985 = vmul.f32 %v5983, %v5973
      %v5986 = vmul.f32 %v5983, %v5974
      %v5987 = vmul.f32 %v5983, %v5975
      %v5988 = vmul.f32 %v5983, %v5976
      %v5989 = vmul.f32 %v5983, %v5977
      %v5990 = vmul.f32 %v5983, %v5978
      %v5991 = vmul.f32 %v5983, %v5979
      %v5992 = vmul.f32 %v5983, %v5980
      %v5993 = vadd.f32 %v5941, %v5985
      %v5994 = vadd.f32 %v5942, %v5986
      %v5995 = vadd.f32 %v5943, %v5987
      %v5996 = vadd.f32 %v5944, %v5988
      %v5997 = vadd.f32 %v5945, %v5989
      %v5998 = vadd.f32 %v5946, %v5990
      %v5999 = vadd.f32 %v5947, %v5991
      %v6000 = vadd.f32 %v5948, %v5992
      %v6001 = vsel %vm1766, %v5756, 0.0
      %v6002 = vsel %vm1767, %v5755, 0.0
      %v6003 = vsel %vm1768, %v5754, 0.0
      %v6004 = vsel %vm1769, %v5753, 0.0
      %v6005 = vsel %vm1770, %v5752, 0.0
      %v6006 = vsel %vm1771, %v5751, 0.0
      %v6007 = vsel %vm1772, %v5750, 0.0
      %v6008 = vsel %vm1773, %v5749, 0.0
      %6009 = vset.pattern.permute.xlu0 58
      %6010 = vperm.xlu0 %6009, %v370
      %v6011 = vpop.permute.xlu0 %6010
      %v6013 = vmul.f32 %v6011, %v6001
      %v6014 = vmul.f32 %v6011, %v6002
      %v6015 = vmul.f32 %v6011, %v6003
      %v6016 = vmul.f32 %v6011, %v6004
      %v6017 = vmul.f32 %v6011, %v6005
      %v6018 = vmul.f32 %v6011, %v6006
      %v6019 = vmul.f32 %v6011, %v6007
      %v6020 = vmul.f32 %v6011, %v6008
      %v6021 = vadd.f32 %v5993, %v6013
      %v6022 = vadd.f32 %v5994, %v6014
      %v6023 = vadd.f32 %v5995, %v6015
      %v6024 = vadd.f32 %v5996, %v6016
      %v6025 = vadd.f32 %v5997, %v6017
      %v6026 = vadd.f32 %v5998, %v6018
      %v6027 = vadd.f32 %v5999, %v6019
      %v6028 = vadd.f32 %v6000, %v6020
      %6029 = vset.pattern.permute.xlu0 59
      %6030 = vperm.xlu0 %6029, %v370
      %v6031 = vpop.permute.xlu0 %6030
      %v6033 = vmul.f32 %v6031, %v5349
      %v6034 = vmul.f32 %v6031, %v5350
      %v6035 = vmul.f32 %v6031, %v5351
      %v6036 = vmul.f32 %v6031, %v5352
      %v6037 = vmul.f32 %v6031, %v5353
      %v6038 = vmul.f32 %v6031, %v5354
      %v6039 = vmul.f32 %v6031, %v5355
      %v6040 = vmul.f32 %v6031, %v5356
      %v6041 = vadd.f32 %v6021, %v6033
      %v6042 = vadd.f32 %v6022, %v6034
      %v6043 = vadd.f32 %v6023, %v6035
      %v6044 = vadd.f32 %v6024, %v6036
      %v6045 = vadd.f32 %v6025, %v6037
      %v6046 = vadd.f32 %v6026, %v6038
      %v6047 = vadd.f32 %v6027, %v6039
      %v6048 = vadd.f32 %v6028, %v6040
      %v6049 = vsel %vm2637, %v5919, 0.0
      %v6050 = vsel %vm2638, %v5918, 0.0
      %v6051 = vsel %vm2639, %v5917, 0.0
      %v6052 = vsel %vm2640, %v5916, 0.0
      %v6053 = vsel %vm2641, %v5915, 0.0
      %v6054 = vsel %vm2642, %v5914, 0.0
      %v6055 = vsel %vm2643, %v5913, 0.0
      %v6056 = vsel %vm2644, %v5920, 0.0
      %6057 = vset.pattern.permute.xlu0 60
      %6058 = vperm.xlu0 %6057, %v370
      %v6059 = vpop.permute.xlu0 %6058
      %v6061 = vmul.f32 %v6059, %v6049
      %v6062 = vmul.f32 %v6059, %v6050
      %v6063 = vmul.f32 %v6059, %v6051
      %v6064 = vmul.f32 %v6059, %v6052
      %v6065 = vmul.f32 %v6059, %v6053
      %v6066 = vmul.f32 %v6059, %v6054
      %v6067 = vmul.f32 %v6059, %v6055
      %v6068 = vmul.f32 %v6059, %v6056
      %v6069 = vadd.f32 %v6041, %v6061
      %v6070 = vadd.f32 %v6042, %v6062
      %v6071 = vadd.f32 %v6043, %v6063
      %v6072 = vadd.f32 %v6044, %v6064
      %v6073 = vadd.f32 %v6045, %v6065
      %v6074 = vadd.f32 %v6046, %v6066
      %v6075 = vadd.f32 %v6047, %v6067
      %v6076 = vadd.f32 %v6048, %v6068
      %v6077 = vsel %vm3037, %v5971, 0.0
      %v6078 = vsel %vm3038, %v5970, 0.0
      %v6079 = vsel %vm3039, %v5969, 0.0
      %v6080 = vsel %vm3040, %v5968, 0.0
      %v6081 = vsel %vm3041, %v5967, 0.0
      %v6082 = vsel %vm3042, %v5966, 0.0
      %v6083 = vsel %vm3043, %v5965, 0.0
      %v6084 = vsel %vm3044, %v5972, 0.0
      %6085 = vset.pattern.permute.xlu0 61
      %6086 = vperm.xlu0 %6085, %v370
      %v6087 = vpop.permute.xlu0 %6086
      %v6089 = vmul.f32 %v6087, %v6077
      %v6090 = vmul.f32 %v6087, %v6078
      %v6091 = vmul.f32 %v6087, %v6079
      %v6092 = vmul.f32 %v6087, %v6080
      %v6093 = vmul.f32 %v6087, %v6081
      %v6094 = vmul.f32 %v6087, %v6082
      %v6095 = vmul.f32 %v6087, %v6083
      %v6096 = vmul.f32 %v6087, %v6084
      %v6097 = vadd.f32 %v6069, %v6089
      %v6098 = vadd.f32 %v6070, %v6090
      %v6099 = vadd.f32 %v6071, %v6091
      %v6100 = vadd.f32 %v6072, %v6092
      %v6101 = vadd.f32 %v6073, %v6093
      %v6102 = vadd.f32 %v6074, %v6094
      %v6103 = vadd.f32 %v6075, %v6095
      %v6104 = vadd.f32 %v6076, %v6096
      %v6105 = vsel %vm5677, %v5755, 0.0
      %v6106 = vsel %vm5678, %v5754, 0.0
      %v6107 = vsel %vm5679, %v5753, 0.0
      %v6108 = vsel %vm5680, %v5752, 0.0
      %v6109 = vsel %vm5681, %v5751, 0.0
      %v6110 = vsel %vm5682, %v5750, 0.0
      %v6111 = vsel %vm5683, %v5749, 0.0
      %v6112 = vsel %vm5684, %v5756, 0.0
      %6113 = vset.pattern.permute.xlu0 62
      %6114 = vperm.xlu0 %6113, %v370
      %v6115 = vpop.permute.xlu0 %6114
      %v6117 = vmul.f32 %v6115, %v6105
      %v6118 = vmul.f32 %v6115, %v6106
      %v6119 = vmul.f32 %v6115, %v6107
      %v6120 = vmul.f32 %v6115, %v6108
      %v6121 = vmul.f32 %v6115, %v6109
      %v6122 = vmul.f32 %v6115, %v6110
      %v6123 = vmul.f32 %v6115, %v6111
      %v6124 = vmul.f32 %v6115, %v6112
      %v6125 = vadd.f32 %v6097, %v6117
      %v6126 = vadd.f32 %v6098, %v6118
      %v6127 = vadd.f32 %v6099, %v6119
      %v6128 = vadd.f32 %v6100, %v6120
      %v6129 = vadd.f32 %v6101, %v6121
      %v6130 = vadd.f32 %v6102, %v6122
      %v6131 = vadd.f32 %v6103, %v6123
      %v6132 = vadd.f32 %v6104, %v6124
      %vm6133 = vcmp.lt.s32.totalorder %v368, 28
      %v6134 = vsel %vm6133, 1, 0
      %v6135 = vlaneseq
      %v6136 = vshrl.u32 %v6135, 7
      %v6137 = vsub.s32 0, %v6136
      %v6138 = vrot.slane %v6134, %v6137
      %v6139 = vlaneseq
      %v6140 = vshrl.u32 %v6139, 7
      %v6141 = vsub.s32 1, %v6140
      %v6142 = vrot.slane %v6134, %v6141
      %v6143 = vlaneseq
      %v6144 = vshrl.u32 %v6143, 7
      %v6145 = vsub.s32 2, %v6144
      %v6146 = vrot.slane %v6134, %v6145
      %v6147 = vlaneseq
      %v6148 = vshrl.u32 %v6147, 7
      %v6149 = vsub.s32 3, %v6148
      %v6150 = vrot.slane %v6134, %v6149
      %v6151 = vlaneseq
      %v6152 = vshrl.u32 %v6151, 7
      %v6153 = vsub.s32 4, %v6152
      %v6154 = vrot.slane %v6134, %v6153
      %v6155 = vlaneseq
      %v6156 = vshrl.u32 %v6155, 7
      %v6157 = vsub.s32 5, %v6156
      %v6158 = vrot.slane %v6134, %v6157
      %v6159 = vlaneseq
      %v6160 = vshrl.u32 %v6159, 7
      %v6161 = vsub.s32 6, %v6160
      %v6162 = vrot.slane %v6134, %v6161
      %v6163 = vlaneseq
      %v6164 = vshrl.u32 %v6163, 7
      %v6165 = vsub.s32 7, %v6164
      %v6166 = vrot.slane %v6134, %v6165
      %vm6167 = vcmp.eq.s32.totalorder %v6138, 1
      %vm6168 = vcmp.eq.s32.totalorder %v6142, 1
      %vm6169 = vcmp.eq.s32.totalorder %v6146, 1
      %vm6170 = vcmp.eq.s32.totalorder %v6150, 1
      %vm6171 = vcmp.eq.s32.totalorder %v6154, 1
      %vm6172 = vcmp.eq.s32.totalorder %v6158, 1
      %vm6173 = vcmp.eq.s32.totalorder %v6162, 1
      %vm6174 = vcmp.eq.s32.totalorder %v6166, 1
      %v6175 = vsel %vm6167, %v5350, 0.0
      %v6176 = vsel %vm6168, %v5351, 0.0
      %v6177 = vsel %vm6169, %v5352, 0.0
      %v6178 = vsel %vm6170, %v5353, 0.0
      %v6179 = vsel %vm6171, %v5354, 0.0
      %v6180 = vsel %vm6172, %v5355, 0.0
      %v6181 = vsel %vm6173, %v5356, 0.0
      %v6182 = vsel %vm6174, %v5349, 0.0
      %6183 = vset.pattern.permute.xlu0 63
      %6184 = vperm.xlu0 %6183, %v370
      %v6185 = vpop.permute.xlu0 %6184
      %v6187 = vmul.f32 %v6185, %v6175
      %v6188 = vmul.f32 %v6185, %v6176
      %v6189 = vmul.f32 %v6185, %v6177
      %v6190 = vmul.f32 %v6185, %v6178
      %v6191 = vmul.f32 %v6185, %v6179
      %v6192 = vmul.f32 %v6185, %v6180
      %v6193 = vmul.f32 %v6185, %v6181
      %v6194 = vmul.f32 %v6185, %v6182
      %v6195 = vadd.f32 %v6125, %v6187
      %v6196 = vadd.f32 %v6126, %v6188
      %v6197 = vadd.f32 %v6127, %v6189
      %v6198 = vadd.f32 %v6128, %v6190
      %v6199 = vadd.f32 %v6129, %v6191
      %v6200 = vadd.f32 %v6130, %v6192
      %v6201 = vadd.f32 %v6131, %v6193
      %v6202 = vadd.f32 %v6132, %v6194
      %vm6203 = vcmp.lt.s32.totalorder %v368, 27
      %v6204 = vsel %vm6203, 1, 0
      %v6205 = vlaneseq
      %v6206 = vshrl.u32 %v6205, 7
      %v6207 = vsub.s32 0, %v6206
      %v6208 = vrot.slane %v6204, %v6207
      %v6209 = vlaneseq
      %v6210 = vshrl.u32 %v6209, 7
      %v6211 = vsub.s32 1, %v6210
      %v6212 = vrot.slane %v6204, %v6211
      %v6213 = vlaneseq
      %v6214 = vshrl.u32 %v6213, 7
      %v6215 = vsub.s32 2, %v6214
      %v6216 = vrot.slane %v6204, %v6215
      %v6217 = vlaneseq
      %v6218 = vshrl.u32 %v6217, 7
      %v6219 = vsub.s32 3, %v6218
      %v6220 = vrot.slane %v6204, %v6219
      %v6221 = vlaneseq
      %v6222 = vshrl.u32 %v6221, 7
      %v6223 = vsub.s32 4, %v6222
      %v6224 = vrot.slane %v6204, %v6223
      %v6225 = vlaneseq
      %v6226 = vshrl.u32 %v6225, 7
      %v6227 = vsub.s32 5, %v6226
      %v6228 = vrot.slane %v6204, %v6227
      %v6229 = vlaneseq
      %v6230 = vshrl.u32 %v6229, 7
      %v6231 = vsub.s32 6, %v6230
      %v6232 = vrot.slane %v6204, %v6231
      %v6233 = vlaneseq
      %v6234 = vshrl.u32 %v6233, 7
      %v6235 = vsub.s32 7, %v6234
      %v6236 = vrot.slane %v6204, %v6235
      %vm6237 = vcmp.eq.s32.totalorder %v6208, 1
      %vm6238 = vcmp.eq.s32.totalorder %v6212, 1
      %vm6239 = vcmp.eq.s32.totalorder %v6216, 1
      %vm6240 = vcmp.eq.s32.totalorder %v6220, 1
      %vm6241 = vcmp.eq.s32.totalorder %v6224, 1
      %vm6242 = vcmp.eq.s32.totalorder %v6228, 1
      %vm6243 = vcmp.eq.s32.totalorder %v6232, 1
      %vm6244 = vcmp.eq.s32.totalorder %v6236, 1
      %v6245 = vsel %vm6237, %v5918, 0.0
      %v6246 = vsel %vm6238, %v5917, 0.0
      %v6247 = vsel %vm6239, %v5916, 0.0
      %v6248 = vsel %vm6240, %v5915, 0.0
      %v6249 = vsel %vm6241, %v5914, 0.0
      %v6250 = vsel %vm6242, %v5913, 0.0
      %v6251 = vsel %vm6243, %v5920, 0.0
      %v6252 = vsel %vm6244, %v5919, 0.0
      %6253 = vset.pattern.permute.xlu0 64
      %6254 = vperm.xlu0 %6253, %v370
      %v6255 = vpop.permute.xlu0 %6254
      %v6257 = vmul.f32 %v6255, %v6245
      %v6258 = vmul.f32 %v6255, %v6246
      %v6259 = vmul.f32 %v6255, %v6247
      %v6260 = vmul.f32 %v6255, %v6248
      %v6261 = vmul.f32 %v6255, %v6249
      %v6262 = vmul.f32 %v6255, %v6250
      %v6263 = vmul.f32 %v6255, %v6251
      %v6264 = vmul.f32 %v6255, %v6252
      %v6265 = vadd.f32 %v6195, %v6257
      %v6266 = vadd.f32 %v6196, %v6258
      %v6267 = vadd.f32 %v6197, %v6259
      %v6268 = vadd.f32 %v6198, %v6260
      %v6269 = vadd.f32 %v6199, %v6261
      %v6270 = vadd.f32 %v6200, %v6262
      %v6271 = vadd.f32 %v6201, %v6263
      %v6272 = vadd.f32 %v6202, %v6264
      %v6273 = vadd.f32 %v5725, %v6265
      %v6274 = vadd.f32 %v5726, %v6266
      %v6275 = vadd.f32 %v5727, %v6267
      %v6276 = vadd.f32 %v5728, %v6268
      %v6277 = vadd.f32 %v5729, %v6269
      %v6278 = vadd.f32 %v5730, %v6270
      %v6279 = vadd.f32 %v5731, %v6271
      %v6280 = vadd.f32 %v5732, %v6272
      %6281 = vset.pattern.permute.xlu0 65
      %6282 = vperm.xlu0 %6281, %v370
      %v6283 = vpop.permute.xlu0 %6282
      %v6285 = vadd.f32 %v6273, %v6283
      %v6286 = vadd.f32 %v6274, %v6283
      %v6287 = vadd.f32 %v6275, %v6283
      %v6288 = vadd.f32 %v6276, %v6283
      %v6289 = vadd.f32 %v6277, %v6283
      %v6290 = vadd.f32 %v6278, %v6283
      %v6291 = vadd.f32 %v6279, %v6283
      %v6292 = vadd.f32 %v6280, %v6283
      %6293 = vrot.lane.b32.xlu0 %v5361, 64
      %v6294 = vpop.permute.xlu0 %6293
      %6295 = vrot.lane.b32.xlu0 %v5362, 64
      %v6296 = vpop.permute.xlu0 %6295
      %6297 = vrot.lane.b32.xlu0 %v5363, 64
      %v6298 = vpop.permute.xlu0 %6297
      %6299 = vrot.lane.b32.xlu0 %v5364, 64
      %v6300 = vpop.permute.xlu0 %6299
      %6301 = vrot.lane.b32.xlu0 %v5365, 64
      %v6302 = vpop.permute.xlu0 %6301
      %6303 = vrot.lane.b32.xlu0 %v5366, 64
      %v6304 = vpop.permute.xlu0 %6303
      %6305 = vrot.lane.b32.xlu0 %v5367, 64
      %v6306 = vpop.permute.xlu0 %6305
      %6307 = vrot.lane.b32.xlu0 %v5368, 64
      %v6308 = vpop.permute.xlu0 %6307
      %v6309 = vsel %vm1247, %v6306, %v6308
      %v6310 = vsel %vm1247, %v6304, %v6306
      %v6311 = vsel %vm1247, %v6302, %v6304
      %v6312 = vsel %vm1247, %v6300, %v6302
      %v6313 = vsel %vm1247, %v6298, %v6300
      %v6314 = vsel %vm1247, %v6296, %v6298
      %v6315 = vsel %vm1247, %v6294, %v6296
      %v6316 = vsel %vm1247, %v6308, %v6294
      %vm6317 = vcmp.ge.s32.totalorder %v368, 10
      %v6318 = vsel %vm6317, 1, 0
      %v6319 = vlaneseq
      %v6320 = vshrl.u32 %v6319, 7
      %v6321 = vsub.s32 0, %v6320
      %v6322 = vrot.slane %v6318, %v6321
      %v6323 = vlaneseq
      %v6324 = vshrl.u32 %v6323, 7
      %v6325 = vsub.s32 1, %v6324
      %v6326 = vrot.slane %v6318, %v6325
      %v6327 = vlaneseq
      %v6328 = vshrl.u32 %v6327, 7
      %v6329 = vsub.s32 2, %v6328
      %v6330 = vrot.slane %v6318, %v6329
      %v6331 = vlaneseq
      %v6332 = vshrl.u32 %v6331, 7
      %v6333 = vsub.s32 3, %v6332
      %v6334 = vrot.slane %v6318, %v6333
      %v6335 = vlaneseq
      %v6336 = vshrl.u32 %v6335, 7
      %v6337 = vsub.s32 4, %v6336
      %v6338 = vrot.slane %v6318, %v6337
      %v6339 = vlaneseq
      %v6340 = vshrl.u32 %v6339, 7
      %v6341 = vsub.s32 5, %v6340
      %v6342 = vrot.slane %v6318, %v6341
      %v6343 = vlaneseq
      %v6344 = vshrl.u32 %v6343, 7
      %v6345 = vsub.s32 6, %v6344
      %v6346 = vrot.slane %v6318, %v6345
      %v6347 = vlaneseq
      %v6348 = vshrl.u32 %v6347, 7
      %v6349 = vsub.s32 7, %v6348
      %v6350 = vrot.slane %v6318, %v6349
      %vm6351 = vcmp.eq.s32.totalorder %v6322, 1
      %vm6352 = vcmp.eq.s32.totalorder %v6326, 1
      %vm6353 = vcmp.eq.s32.totalorder %v6330, 1
      %vm6354 = vcmp.eq.s32.totalorder %v6334, 1
      %vm6355 = vcmp.eq.s32.totalorder %v6338, 1
      %vm6356 = vcmp.eq.s32.totalorder %v6342, 1
      %vm6357 = vcmp.eq.s32.totalorder %v6346, 1
      %vm6358 = vcmp.eq.s32.totalorder %v6350, 1
      %v6359 = vsel %vm6351, %v6310, 0.0
      %v6360 = vsel %vm6352, %v6309, 0.0
      %v6361 = vsel %vm6353, %v6316, 0.0
      %v6362 = vsel %vm6354, %v6315, 0.0
      %v6363 = vsel %vm6355, %v6314, 0.0
      %v6364 = vsel %vm6356, %v6313, 0.0
      %v6365 = vsel %vm6357, %v6312, 0.0
      %v6366 = vsel %vm6358, %v6311, 0.0
      %6367 = vset.pattern.permute.xlu0 88
      %6368 = vperm.xlu0 %6367, %v370
      %v6369 = vpop.permute.xlu0 %6368
      %v6371 = vmul.f32 %v6369, %v6359
      %v6372 = vmul.f32 %v6369, %v6360
      %v6373 = vmul.f32 %v6369, %v6361
      %v6374 = vmul.f32 %v6369, %v6362
      %v6375 = vmul.f32 %v6369, %v6363
      %v6376 = vmul.f32 %v6369, %v6364
      %v6377 = vmul.f32 %v6369, %v6365
      %v6378 = vmul.f32 %v6369, %v6366
      %v6379 = vadd.f32 %v6371, 0.0
      %v6380 = vadd.f32 %v6372, 0.0
      %v6381 = vadd.f32 %v6373, 0.0
      %v6382 = vadd.f32 %v6374, 0.0
      %v6383 = vadd.f32 %v6375, 0.0
      %v6384 = vadd.f32 %v6376, 0.0
      %v6385 = vadd.f32 %v6377, 0.0
      %v6386 = vadd.f32 %v6378, 0.0
      %6387 = vrot.lane.b32.xlu0 %v5361, 32
      %v6388 = vpop.permute.xlu0 %6387
      %6389 = vrot.lane.b32.xlu0 %v5362, 32
      %v6390 = vpop.permute.xlu0 %6389
      %6391 = vrot.lane.b32.xlu0 %v5363, 32
      %v6392 = vpop.permute.xlu0 %6391
      %6393 = vrot.lane.b32.xlu0 %v5364, 32
      %v6394 = vpop.permute.xlu0 %6393
      %6395 = vrot.lane.b32.xlu0 %v5365, 32
      %v6396 = vpop.permute.xlu0 %6395
      %6397 = vrot.lane.b32.xlu0 %v5366, 32
      %v6398 = vpop.permute.xlu0 %6397
      %6399 = vrot.lane.b32.xlu0 %v5367, 32
      %v6400 = vpop.permute.xlu0 %6399
      %6401 = vrot.lane.b32.xlu0 %v5368, 32
      %v6402 = vpop.permute.xlu0 %6401
      %v6403 = vsel %vm1724, %v6400, %v6402
      %v6404 = vsel %vm1724, %v6398, %v6400
      %v6405 = vsel %vm1724, %v6396, %v6398
      %v6406 = vsel %vm1724, %v6394, %v6396
      %v6407 = vsel %vm1724, %v6392, %v6394
      %v6408 = vsel %vm1724, %v6390, %v6392
      %v6409 = vsel %vm1724, %v6388, %v6390
      %v6410 = vsel %vm1724, %v6402, %v6388
      %vm6411 = vcmp.ge.s32.totalorder %v368, 9
      %v6412 = vsel %vm6411, 1, 0
      %v6413 = vlaneseq
      %v6414 = vshrl.u32 %v6413, 7
      %v6415 = vsub.s32 0, %v6414
      %v6416 = vrot.slane %v6412, %v6415
      %v6417 = vlaneseq
      %v6418 = vshrl.u32 %v6417, 7
      %v6419 = vsub.s32 1, %v6418
      %v6420 = vrot.slane %v6412, %v6419
      %v6421 = vlaneseq
      %v6422 = vshrl.u32 %v6421, 7
      %v6423 = vsub.s32 2, %v6422
      %v6424 = vrot.slane %v6412, %v6423
      %v6425 = vlaneseq
      %v6426 = vshrl.u32 %v6425, 7
      %v6427 = vsub.s32 3, %v6426
      %v6428 = vrot.slane %v6412, %v6427
      %v6429 = vlaneseq
      %v6430 = vshrl.u32 %v6429, 7
      %v6431 = vsub.s32 4, %v6430
      %v6432 = vrot.slane %v6412, %v6431
      %v6433 = vlaneseq
      %v6434 = vshrl.u32 %v6433, 7
      %v6435 = vsub.s32 5, %v6434
      %v6436 = vrot.slane %v6412, %v6435
      %v6437 = vlaneseq
      %v6438 = vshrl.u32 %v6437, 7
      %v6439 = vsub.s32 6, %v6438
      %v6440 = vrot.slane %v6412, %v6439
      %v6441 = vlaneseq
      %v6442 = vshrl.u32 %v6441, 7
      %v6443 = vsub.s32 7, %v6442
      %v6444 = vrot.slane %v6412, %v6443
      %vm6445 = vcmp.eq.s32.totalorder %v6416, 1
      %vm6446 = vcmp.eq.s32.totalorder %v6420, 1
      %vm6447 = vcmp.eq.s32.totalorder %v6424, 1
      %vm6448 = vcmp.eq.s32.totalorder %v6428, 1
      %vm6449 = vcmp.eq.s32.totalorder %v6432, 1
      %vm6450 = vcmp.eq.s32.totalorder %v6436, 1
      %vm6451 = vcmp.eq.s32.totalorder %v6440, 1
      %vm6452 = vcmp.eq.s32.totalorder %v6444, 1
      %v6453 = vsel %vm6445, %v6404, 0.0
      %v6454 = vsel %vm6446, %v6403, 0.0
      %v6455 = vsel %vm6447, %v6410, 0.0
      %v6456 = vsel %vm6448, %v6409, 0.0
      %v6457 = vsel %vm6449, %v6408, 0.0
      %v6458 = vsel %vm6450, %v6407, 0.0
      %v6459 = vsel %vm6451, %v6406, 0.0
      %v6460 = vsel %vm6452, %v6405, 0.0
      %6461 = vset.pattern.permute.xlu0 89
      %6462 = vperm.xlu0 %6461, %v370
      %v6463 = vpop.permute.xlu0 %6462
      %v6465 = vmul.f32 %v6463, %v6453
      %v6466 = vmul.f32 %v6463, %v6454
      %v6467 = vmul.f32 %v6463, %v6455
      %v6468 = vmul.f32 %v6463, %v6456
      %v6469 = vmul.f32 %v6463, %v6457
      %v6470 = vmul.f32 %v6463, %v6458
      %v6471 = vmul.f32 %v6463, %v6459
      %v6472 = vmul.f32 %v6463, %v6460
      %v6473 = vadd.f32 %v6379, %v6465
      %v6474 = vadd.f32 %v6380, %v6466
      %v6475 = vadd.f32 %v6381, %v6467
      %v6476 = vadd.f32 %v6382, %v6468
      %v6477 = vadd.f32 %v6383, %v6469
      %v6478 = vadd.f32 %v6384, %v6470
      %v6479 = vadd.f32 %v6385, %v6471
      %v6480 = vadd.f32 %v6386, %v6472
      %vm6481 = vcmp.ge.s32.totalorder %v368, 8
      %v6482 = vsel %vm6481, 1, 0
      %v6483 = vlaneseq
      %v6484 = vshrl.u32 %v6483, 7
      %v6485 = vsub.s32 0, %v6484
      %v6486 = vrot.slane %v6482, %v6485
      %v6487 = vlaneseq
      %v6488 = vshrl.u32 %v6487, 7
      %v6489 = vsub.s32 1, %v6488
      %v6490 = vrot.slane %v6482, %v6489
      %v6491 = vlaneseq
      %v6492 = vshrl.u32 %v6491, 7
      %v6493 = vsub.s32 2, %v6492
      %v6494 = vrot.slane %v6482, %v6493
      %v6495 = vlaneseq
      %v6496 = vshrl.u32 %v6495, 7
      %v6497 = vsub.s32 3, %v6496
      %v6498 = vrot.slane %v6482, %v6497
      %v6499 = vlaneseq
      %v6500 = vshrl.u32 %v6499, 7
      %v6501 = vsub.s32 4, %v6500
      %v6502 = vrot.slane %v6482, %v6501
      %v6503 = vlaneseq
      %v6504 = vshrl.u32 %v6503, 7
      %v6505 = vsub.s32 5, %v6504
      %v6506 = vrot.slane %v6482, %v6505
      %v6507 = vlaneseq
      %v6508 = vshrl.u32 %v6507, 7
      %v6509 = vsub.s32 6, %v6508
      %v6510 = vrot.slane %v6482, %v6509
      %v6511 = vlaneseq
      %v6512 = vshrl.u32 %v6511, 7
      %v6513 = vsub.s32 7, %v6512
      %v6514 = vrot.slane %v6482, %v6513
      %vm6515 = vcmp.eq.s32.totalorder %v6486, 1
      %vm6516 = vcmp.eq.s32.totalorder %v6490, 1
      %vm6517 = vcmp.eq.s32.totalorder %v6494, 1
      %vm6518 = vcmp.eq.s32.totalorder %v6498, 1
      %vm6519 = vcmp.eq.s32.totalorder %v6502, 1
      %vm6520 = vcmp.eq.s32.totalorder %v6506, 1
      %vm6521 = vcmp.eq.s32.totalorder %v6510, 1
      %vm6522 = vcmp.eq.s32.totalorder %v6514, 1
      %v6523 = vsel %vm6515, %v5367, 0.0
      %v6524 = vsel %vm6516, %v5368, 0.0
      %v6525 = vsel %vm6517, %v5361, 0.0
      %v6526 = vsel %vm6518, %v5362, 0.0
      %v6527 = vsel %vm6519, %v5363, 0.0
      %v6528 = vsel %vm6520, %v5364, 0.0
      %v6529 = vsel %vm6521, %v5365, 0.0
      %v6530 = vsel %vm6522, %v5366, 0.0
      %6531 = vset.pattern.permute.xlu0 90
      %6532 = vperm.xlu0 %6531, %v370
      %v6533 = vpop.permute.xlu0 %6532
      %v6535 = vmul.f32 %v6533, %v6523
      %v6536 = vmul.f32 %v6533, %v6524
      %v6537 = vmul.f32 %v6533, %v6525
      %v6538 = vmul.f32 %v6533, %v6526
      %v6539 = vmul.f32 %v6533, %v6527
      %v6540 = vmul.f32 %v6533, %v6528
      %v6541 = vmul.f32 %v6533, %v6529
      %v6542 = vmul.f32 %v6533, %v6530
      %v6543 = vadd.f32 %v6473, %v6535
      %v6544 = vadd.f32 %v6474, %v6536
      %v6545 = vadd.f32 %v6475, %v6537
      %v6546 = vadd.f32 %v6476, %v6538
      %v6547 = vadd.f32 %v6477, %v6539
      %v6548 = vadd.f32 %v6478, %v6540
      %v6549 = vadd.f32 %v6479, %v6541
      %v6550 = vadd.f32 %v6480, %v6542
      %6551 = vrot.lane.b32.xlu0 %v5361, 96
      %v6552 = vpop.permute.xlu0 %6551
      %6553 = vrot.lane.b32.xlu0 %v5362, 96
      %v6554 = vpop.permute.xlu0 %6553
      %6555 = vrot.lane.b32.xlu0 %v5363, 96
      %v6556 = vpop.permute.xlu0 %6555
      %6557 = vrot.lane.b32.xlu0 %v5364, 96
      %v6558 = vpop.permute.xlu0 %6557
      %6559 = vrot.lane.b32.xlu0 %v5365, 96
      %v6560 = vpop.permute.xlu0 %6559
      %6561 = vrot.lane.b32.xlu0 %v5366, 96
      %v6562 = vpop.permute.xlu0 %6561
      %6563 = vrot.lane.b32.xlu0 %v5367, 96
      %v6564 = vpop.permute.xlu0 %6563
      %6565 = vrot.lane.b32.xlu0 %v5368, 96
      %v6566 = vpop.permute.xlu0 %6565
      %v6567 = vsel %vm2595, %v6564, %v6566
      %v6568 = vsel %vm2595, %v6562, %v6564
      %v6569 = vsel %vm2595, %v6560, %v6562
      %v6570 = vsel %vm2595, %v6558, %v6560
      %v6571 = vsel %vm2595, %v6556, %v6558
      %v6572 = vsel %vm2595, %v6554, %v6556
      %v6573 = vsel %vm2595, %v6552, %v6554
      %v6574 = vsel %vm2595, %v6566, %v6552
      %vm6575 = vcmp.ge.s32.totalorder %v368, 7
      %v6576 = vsel %vm6575, 1, 0
      %v6577 = vlaneseq
      %v6578 = vshrl.u32 %v6577, 7
      %v6579 = vsub.s32 0, %v6578
      %v6580 = vrot.slane %v6576, %v6579
      %v6581 = vlaneseq
      %v6582 = vshrl.u32 %v6581, 7
      %v6583 = vsub.s32 1, %v6582
      %v6584 = vrot.slane %v6576, %v6583
      %v6585 = vlaneseq
      %v6586 = vshrl.u32 %v6585, 7
      %v6587 = vsub.s32 2, %v6586
      %v6588 = vrot.slane %v6576, %v6587
      %v6589 = vlaneseq
      %v6590 = vshrl.u32 %v6589, 7
      %v6591 = vsub.s32 3, %v6590
      %v6592 = vrot.slane %v6576, %v6591
      %v6593 = vlaneseq
      %v6594 = vshrl.u32 %v6593, 7
      %v6595 = vsub.s32 4, %v6594
      %v6596 = vrot.slane %v6576, %v6595
      %v6597 = vlaneseq
      %v6598 = vshrl.u32 %v6597, 7
      %v6599 = vsub.s32 5, %v6598
      %v6600 = vrot.slane %v6576, %v6599
      %v6601 = vlaneseq
      %v6602 = vshrl.u32 %v6601, 7
      %v6603 = vsub.s32 6, %v6602
      %v6604 = vrot.slane %v6576, %v6603
      %v6605 = vlaneseq
      %v6606 = vshrl.u32 %v6605, 7
      %v6607 = vsub.s32 7, %v6606
      %v6608 = vrot.slane %v6576, %v6607
      %vm6609 = vcmp.eq.s32.totalorder %v6580, 1
      %vm6610 = vcmp.eq.s32.totalorder %v6584, 1
      %vm6611 = vcmp.eq.s32.totalorder %v6588, 1
      %vm6612 = vcmp.eq.s32.totalorder %v6592, 1
      %vm6613 = vcmp.eq.s32.totalorder %v6596, 1
      %vm6614 = vcmp.eq.s32.totalorder %v6600, 1
      %vm6615 = vcmp.eq.s32.totalorder %v6604, 1
      %vm6616 = vcmp.eq.s32.totalorder %v6608, 1
      %v6617 = vsel %vm6609, %v6567, 0.0
      %v6618 = vsel %vm6610, %v6574, 0.0
      %v6619 = vsel %vm6611, %v6573, 0.0
      %v6620 = vsel %vm6612, %v6572, 0.0
      %v6621 = vsel %vm6613, %v6571, 0.0
      %v6622 = vsel %vm6614, %v6570, 0.0
      %v6623 = vsel %vm6615, %v6569, 0.0
      %v6624 = vsel %vm6616, %v6568, 0.0
      %6625 = vset.pattern.permute.xlu0 91
      %6626 = vperm.xlu0 %6625, %v370
      %v6627 = vpop.permute.xlu0 %6626
      %v6629 = vmul.f32 %v6627, %v6617
      %v6630 = vmul.f32 %v6627, %v6618
      %v6631 = vmul.f32 %v6627, %v6619
      %v6632 = vmul.f32 %v6627, %v6620
      %v6633 = vmul.f32 %v6627, %v6621
      %v6634 = vmul.f32 %v6627, %v6622
      %v6635 = vmul.f32 %v6627, %v6623
      %v6636 = vmul.f32 %v6627, %v6624
      %v6637 = vadd.f32 %v6543, %v6629
      %v6638 = vadd.f32 %v6544, %v6630
      %v6639 = vadd.f32 %v6545, %v6631
      %v6640 = vadd.f32 %v6546, %v6632
      %v6641 = vadd.f32 %v6547, %v6633
      %v6642 = vadd.f32 %v6548, %v6634
      %v6643 = vadd.f32 %v6549, %v6635
      %v6644 = vadd.f32 %v6550, %v6636
      %vm6645 = vcmp.ge.s32.totalorder %v368, 6
      %v6646 = vsel %vm6645, 1, 0
      %v6647 = vlaneseq
      %v6648 = vshrl.u32 %v6647, 7
      %v6649 = vsub.s32 0, %v6648
      %v6650 = vrot.slane %v6646, %v6649
      %v6651 = vlaneseq
      %v6652 = vshrl.u32 %v6651, 7
      %v6653 = vsub.s32 1, %v6652
      %v6654 = vrot.slane %v6646, %v6653
      %v6655 = vlaneseq
      %v6656 = vshrl.u32 %v6655, 7
      %v6657 = vsub.s32 2, %v6656
      %v6658 = vrot.slane %v6646, %v6657
      %v6659 = vlaneseq
      %v6660 = vshrl.u32 %v6659, 7
      %v6661 = vsub.s32 3, %v6660
      %v6662 = vrot.slane %v6646, %v6661
      %v6663 = vlaneseq
      %v6664 = vshrl.u32 %v6663, 7
      %v6665 = vsub.s32 4, %v6664
      %v6666 = vrot.slane %v6646, %v6665
      %v6667 = vlaneseq
      %v6668 = vshrl.u32 %v6667, 7
      %v6669 = vsub.s32 5, %v6668
      %v6670 = vrot.slane %v6646, %v6669
      %v6671 = vlaneseq
      %v6672 = vshrl.u32 %v6671, 7
      %v6673 = vsub.s32 6, %v6672
      %v6674 = vrot.slane %v6646, %v6673
      %v6675 = vlaneseq
      %v6676 = vshrl.u32 %v6675, 7
      %v6677 = vsub.s32 7, %v6676
      %v6678 = vrot.slane %v6646, %v6677
      %vm6679 = vcmp.eq.s32.totalorder %v6650, 1
      %vm6680 = vcmp.eq.s32.totalorder %v6654, 1
      %vm6681 = vcmp.eq.s32.totalorder %v6658, 1
      %vm6682 = vcmp.eq.s32.totalorder %v6662, 1
      %vm6683 = vcmp.eq.s32.totalorder %v6666, 1
      %vm6684 = vcmp.eq.s32.totalorder %v6670, 1
      %vm6685 = vcmp.eq.s32.totalorder %v6674, 1
      %vm6686 = vcmp.eq.s32.totalorder %v6678, 1
      %v6687 = vsel %vm6679, %v6309, 0.0
      %v6688 = vsel %vm6680, %v6316, 0.0
      %v6689 = vsel %vm6681, %v6315, 0.0
      %v6690 = vsel %vm6682, %v6314, 0.0
      %v6691 = vsel %vm6683, %v6313, 0.0
      %v6692 = vsel %vm6684, %v6312, 0.0
      %v6693 = vsel %vm6685, %v6311, 0.0
      %v6694 = vsel %vm6686, %v6310, 0.0
      %6695 = vset.pattern.permute.xlu0 92
      %6696 = vperm.xlu0 %6695, %v370
      %v6697 = vpop.permute.xlu0 %6696
      %v6699 = vmul.f32 %v6697, %v6687
      %v6700 = vmul.f32 %v6697, %v6688
      %v6701 = vmul.f32 %v6697, %v6689
      %v6702 = vmul.f32 %v6697, %v6690
      %v6703 = vmul.f32 %v6697, %v6691
      %v6704 = vmul.f32 %v6697, %v6692
      %v6705 = vmul.f32 %v6697, %v6693
      %v6706 = vmul.f32 %v6697, %v6694
      %v6707 = vadd.f32 %v6637, %v6699
      %v6708 = vadd.f32 %v6638, %v6700
      %v6709 = vadd.f32 %v6639, %v6701
      %v6710 = vadd.f32 %v6640, %v6702
      %v6711 = vadd.f32 %v6641, %v6703
      %v6712 = vadd.f32 %v6642, %v6704
      %v6713 = vadd.f32 %v6643, %v6705
      %v6714 = vadd.f32 %v6644, %v6706
      %v6715 = vsel %vm5791, %v6403, 0.0
      %v6716 = vsel %vm5792, %v6410, 0.0
      %v6717 = vsel %vm5793, %v6409, 0.0
      %v6718 = vsel %vm5794, %v6408, 0.0
      %v6719 = vsel %vm5795, %v6407, 0.0
      %v6720 = vsel %vm5796, %v6406, 0.0
      %v6721 = vsel %vm5797, %v6405, 0.0
      %v6722 = vsel %vm5798, %v6404, 0.0
      %6723 = vset.pattern.permute.xlu0 93
      %6724 = vperm.xlu0 %6723, %v370
      %v6725 = vpop.permute.xlu0 %6724
      %v6727 = vmul.f32 %v6725, %v6715
      %v6728 = vmul.f32 %v6725, %v6716
      %v6729 = vmul.f32 %v6725, %v6717
      %v6730 = vmul.f32 %v6725, %v6718
      %v6731 = vmul.f32 %v6725, %v6719
      %v6732 = vmul.f32 %v6725, %v6720
      %v6733 = vmul.f32 %v6725, %v6721
      %v6734 = vmul.f32 %v6725, %v6722
      %v6735 = vadd.f32 %v6707, %v6727
      %v6736 = vadd.f32 %v6708, %v6728
      %v6737 = vadd.f32 %v6709, %v6729
      %v6738 = vadd.f32 %v6710, %v6730
      %v6739 = vadd.f32 %v6711, %v6731
      %v6740 = vadd.f32 %v6712, %v6732
      %v6741 = vadd.f32 %v6713, %v6733
      %v6742 = vadd.f32 %v6714, %v6734
      %v6743 = vsel %vm5861, %v5368, 0.0
      %v6744 = vsel %vm5862, %v5361, 0.0
      %v6745 = vsel %vm5863, %v5362, 0.0
      %v6746 = vsel %vm5864, %v5363, 0.0
      %v6747 = vsel %vm5865, %v5364, 0.0
      %v6748 = vsel %vm5866, %v5365, 0.0
      %v6749 = vsel %vm5867, %v5366, 0.0
      %v6750 = vsel %vm5868, %v5367, 0.0
      %6751 = vset.pattern.permute.xlu0 94
      %6752 = vperm.xlu0 %6751, %v370
      %v6753 = vpop.permute.xlu0 %6752
      %v6755 = vmul.f32 %v6753, %v6743
      %v6756 = vmul.f32 %v6753, %v6744
      %v6757 = vmul.f32 %v6753, %v6745
      %v6758 = vmul.f32 %v6753, %v6746
      %v6759 = vmul.f32 %v6753, %v6747
      %v6760 = vmul.f32 %v6753, %v6748
      %v6761 = vmul.f32 %v6753, %v6749
      %v6762 = vmul.f32 %v6753, %v6750
      %v6763 = vadd.f32 %v6735, %v6755
      %v6764 = vadd.f32 %v6736, %v6756
      %v6765 = vadd.f32 %v6737, %v6757
      %v6766 = vadd.f32 %v6738, %v6758
      %v6767 = vadd.f32 %v6739, %v6759
      %v6768 = vadd.f32 %v6740, %v6760
      %v6769 = vadd.f32 %v6741, %v6761
      %v6770 = vadd.f32 %v6742, %v6762
      %v6771 = vsel %vm5427, %v6574, 0.0
      %v6772 = vsel %vm5428, %v6573, 0.0
      %v6773 = vsel %vm5429, %v6572, 0.0
      %v6774 = vsel %vm5430, %v6571, 0.0
      %v6775 = vsel %vm5431, %v6570, 0.0
      %v6776 = vsel %vm5432, %v6569, 0.0
      %v6777 = vsel %vm5433, %v6568, 0.0
      %v6778 = vsel %vm5434, %v6567, 0.0
      %6779 = vset.pattern.permute.xlu0 95
      %6780 = vperm.xlu0 %6779, %v370
      %v6781 = vpop.permute.xlu0 %6780
      %v6783 = vmul.f32 %v6781, %v6771
      %v6784 = vmul.f32 %v6781, %v6772
      %v6785 = vmul.f32 %v6781, %v6773
      %v6786 = vmul.f32 %v6781, %v6774
      %v6787 = vmul.f32 %v6781, %v6775
      %v6788 = vmul.f32 %v6781, %v6776
      %v6789 = vmul.f32 %v6781, %v6777
      %v6790 = vmul.f32 %v6781, %v6778
      %v6791 = vadd.f32 %v6763, %v6783
      %v6792 = vadd.f32 %v6764, %v6784
      %v6793 = vadd.f32 %v6765, %v6785
      %v6794 = vadd.f32 %v6766, %v6786
      %v6795 = vadd.f32 %v6767, %v6787
      %v6796 = vadd.f32 %v6768, %v6788
      %v6797 = vadd.f32 %v6769, %v6789
      %v6798 = vadd.f32 %v6770, %v6790
      %v6799 = vsel %vm1289, %v6316, 0.0
      %v6800 = vsel %vm1290, %v6315, 0.0
      %v6801 = vsel %vm1291, %v6314, 0.0
      %v6802 = vsel %vm1292, %v6313, 0.0
      %v6803 = vsel %vm1293, %v6312, 0.0
      %v6804 = vsel %vm1294, %v6311, 0.0
      %v6805 = vsel %vm1295, %v6310, 0.0
      %v6806 = vsel %vm1296, %v6309, 0.0
      %6807 = vset.pattern.permute.xlu0 96
      %6808 = vperm.xlu0 %6807, %v370
      %v6809 = vpop.permute.xlu0 %6808
      %v6811 = vmul.f32 %v6809, %v6799
      %v6812 = vmul.f32 %v6809, %v6800
      %v6813 = vmul.f32 %v6809, %v6801
      %v6814 = vmul.f32 %v6809, %v6802
      %v6815 = vmul.f32 %v6809, %v6803
      %v6816 = vmul.f32 %v6809, %v6804
      %v6817 = vmul.f32 %v6809, %v6805
      %v6818 = vmul.f32 %v6809, %v6806
      %v6819 = vadd.f32 %v6791, %v6811
      %v6820 = vadd.f32 %v6792, %v6812
      %v6821 = vadd.f32 %v6793, %v6813
      %v6822 = vadd.f32 %v6794, %v6814
      %v6823 = vadd.f32 %v6795, %v6815
      %v6824 = vadd.f32 %v6796, %v6816
      %v6825 = vadd.f32 %v6797, %v6817
      %v6826 = vadd.f32 %v6798, %v6818
      %v6827 = vsel %vm1766, %v6410, 0.0
      %v6828 = vsel %vm1767, %v6409, 0.0
      %v6829 = vsel %vm1768, %v6408, 0.0
      %v6830 = vsel %vm1769, %v6407, 0.0
      %v6831 = vsel %vm1770, %v6406, 0.0
      %v6832 = vsel %vm1771, %v6405, 0.0
      %v6833 = vsel %vm1772, %v6404, 0.0
      %v6834 = vsel %vm1773, %v6403, 0.0
      %6835 = vset.pattern.permute.xlu0 97
      %6836 = vperm.xlu0 %6835, %v370
      %v6837 = vpop.permute.xlu0 %6836
      %v6839 = vmul.f32 %v6837, %v6827
      %v6840 = vmul.f32 %v6837, %v6828
      %v6841 = vmul.f32 %v6837, %v6829
      %v6842 = vmul.f32 %v6837, %v6830
      %v6843 = vmul.f32 %v6837, %v6831
      %v6844 = vmul.f32 %v6837, %v6832
      %v6845 = vmul.f32 %v6837, %v6833
      %v6846 = vmul.f32 %v6837, %v6834
      %v6847 = vadd.f32 %v6819, %v6839
      %v6848 = vadd.f32 %v6820, %v6840
      %v6849 = vadd.f32 %v6821, %v6841
      %v6850 = vadd.f32 %v6822, %v6842
      %v6851 = vadd.f32 %v6823, %v6843
      %v6852 = vadd.f32 %v6824, %v6844
      %v6853 = vadd.f32 %v6825, %v6845
      %v6854 = vadd.f32 %v6826, %v6846
      %6855 = vset.pattern.permute.xlu0 98
      %6856 = vperm.xlu0 %6855, %v370
      %v6857 = vpop.permute.xlu0 %6856
      %v6859 = vmul.f32 %v6857, %v5361
      %v6860 = vmul.f32 %v6857, %v5362
      %v6861 = vmul.f32 %v6857, %v5363
      %v6862 = vmul.f32 %v6857, %v5364
      %v6863 = vmul.f32 %v6857, %v5365
      %v6864 = vmul.f32 %v6857, %v5366
      %v6865 = vmul.f32 %v6857, %v5367
      %v6866 = vmul.f32 %v6857, %v5368
      %v6867 = vadd.f32 %v6847, %v6859
      %v6868 = vadd.f32 %v6848, %v6860
      %v6869 = vadd.f32 %v6849, %v6861
      %v6870 = vadd.f32 %v6850, %v6862
      %v6871 = vadd.f32 %v6851, %v6863
      %v6872 = vadd.f32 %v6852, %v6864
      %v6873 = vadd.f32 %v6853, %v6865
      %v6874 = vadd.f32 %v6854, %v6866
      %v6875 = vsel %vm2637, %v6573, 0.0
      %v6876 = vsel %vm2638, %v6572, 0.0
      %v6877 = vsel %vm2639, %v6571, 0.0
      %v6878 = vsel %vm2640, %v6570, 0.0
      %v6879 = vsel %vm2641, %v6569, 0.0
      %v6880 = vsel %vm2642, %v6568, 0.0
      %v6881 = vsel %vm2643, %v6567, 0.0
      %v6882 = vsel %vm2644, %v6574, 0.0
      %6883 = vset.pattern.permute.xlu0 99
      %6884 = vperm.xlu0 %6883, %v370
      %v6885 = vpop.permute.xlu0 %6884
      %v6887 = vmul.f32 %v6885, %v6875
      %v6888 = vmul.f32 %v6885, %v6876
      %v6889 = vmul.f32 %v6885, %v6877
      %v6890 = vmul.f32 %v6885, %v6878
      %v6891 = vmul.f32 %v6885, %v6879
      %v6892 = vmul.f32 %v6885, %v6880
      %v6893 = vmul.f32 %v6885, %v6881
      %v6894 = vmul.f32 %v6885, %v6882
      %v6895 = vadd.f32 %v6867, %v6887
      %v6896 = vadd.f32 %v6868, %v6888
      %v6897 = vadd.f32 %v6869, %v6889
      %v6898 = vadd.f32 %v6870, %v6890
      %v6899 = vadd.f32 %v6871, %v6891
      %v6900 = vadd.f32 %v6872, %v6892
      %v6901 = vadd.f32 %v6873, %v6893
      %v6902 = vadd.f32 %v6874, %v6894
      %v6903 = vsel %vm3037, %v6315, 0.0
      %v6904 = vsel %vm3038, %v6314, 0.0
      %v6905 = vsel %vm3039, %v6313, 0.0
      %v6906 = vsel %vm3040, %v6312, 0.0
      %v6907 = vsel %vm3041, %v6311, 0.0
      %v6908 = vsel %vm3042, %v6310, 0.0
      %v6909 = vsel %vm3043, %v6309, 0.0
      %v6910 = vsel %vm3044, %v6316, 0.0
      %6911 = vset.pattern.permute.xlu0 100
      %6912 = vperm.xlu0 %6911, %v370
      %v6913 = vpop.permute.xlu0 %6912
      %v6915 = vmul.f32 %v6913, %v6903
      %v6916 = vmul.f32 %v6913, %v6904
      %v6917 = vmul.f32 %v6913, %v6905
      %v6918 = vmul.f32 %v6913, %v6906
      %v6919 = vmul.f32 %v6913, %v6907
      %v6920 = vmul.f32 %v6913, %v6908
      %v6921 = vmul.f32 %v6913, %v6909
      %v6922 = vmul.f32 %v6913, %v6910
      %v6923 = vadd.f32 %v6895, %v6915
      %v6924 = vadd.f32 %v6896, %v6916
      %v6925 = vadd.f32 %v6897, %v6917
      %v6926 = vadd.f32 %v6898, %v6918
      %v6927 = vadd.f32 %v6899, %v6919
      %v6928 = vadd.f32 %v6900, %v6920
      %v6929 = vadd.f32 %v6901, %v6921
      %v6930 = vadd.f32 %v6902, %v6922
      %v6931 = vsel %vm5677, %v6409, 0.0
      %v6932 = vsel %vm5678, %v6408, 0.0
      %v6933 = vsel %vm5679, %v6407, 0.0
      %v6934 = vsel %vm5680, %v6406, 0.0
      %v6935 = vsel %vm5681, %v6405, 0.0
      %v6936 = vsel %vm5682, %v6404, 0.0
      %v6937 = vsel %vm5683, %v6403, 0.0
      %v6938 = vsel %vm5684, %v6410, 0.0
      %6939 = vset.pattern.permute.xlu0 101
      %6940 = vperm.xlu0 %6939, %v370
      %v6941 = vpop.permute.xlu0 %6940
      %v6943 = vmul.f32 %v6941, %v6931
      %v6944 = vmul.f32 %v6941, %v6932
      %v6945 = vmul.f32 %v6941, %v6933
      %v6946 = vmul.f32 %v6941, %v6934
      %v6947 = vmul.f32 %v6941, %v6935
      %v6948 = vmul.f32 %v6941, %v6936
      %v6949 = vmul.f32 %v6941, %v6937
      %v6950 = vmul.f32 %v6941, %v6938
      %v6951 = vadd.f32 %v6923, %v6943
      %v6952 = vadd.f32 %v6924, %v6944
      %v6953 = vadd.f32 %v6925, %v6945
      %v6954 = vadd.f32 %v6926, %v6946
      %v6955 = vadd.f32 %v6927, %v6947
      %v6956 = vadd.f32 %v6928, %v6948
      %v6957 = vadd.f32 %v6929, %v6949
      %v6958 = vadd.f32 %v6930, %v6950
      %v6959 = vsel %vm6167, %v5362, 0.0
      %v6960 = vsel %vm6168, %v5363, 0.0
      %v6961 = vsel %vm6169, %v5364, 0.0
      %v6962 = vsel %vm6170, %v5365, 0.0
      %v6963 = vsel %vm6171, %v5366, 0.0
      %v6964 = vsel %vm6172, %v5367, 0.0
      %v6965 = vsel %vm6173, %v5368, 0.0
      %v6966 = vsel %vm6174, %v5361, 0.0
      %6967 = vset.pattern.permute.xlu0 102
      %6968 = vperm.xlu0 %6967, %v370
      %v6969 = vpop.permute.xlu0 %6968
      %v6971 = vmul.f32 %v6969, %v6959
      %v6972 = vmul.f32 %v6969, %v6960
      %v6973 = vmul.f32 %v6969, %v6961
      %v6974 = vmul.f32 %v6969, %v6962
      %v6975 = vmul.f32 %v6969, %v6963
      %v6976 = vmul.f32 %v6969, %v6964
      %v6977 = vmul.f32 %v6969, %v6965
      %v6978 = vmul.f32 %v6969, %v6966
      %v6979 = vadd.f32 %v6951, %v6971
      %v6980 = vadd.f32 %v6952, %v6972
      %v6981 = vadd.f32 %v6953, %v6973
      %v6982 = vadd.f32 %v6954, %v6974
      %v6983 = vadd.f32 %v6955, %v6975
      %v6984 = vadd.f32 %v6956, %v6976
      %v6985 = vadd.f32 %v6957, %v6977
      %v6986 = vadd.f32 %v6958, %v6978
      %v6987 = vsel %vm6237, %v6572, 0.0
      %v6988 = vsel %vm6238, %v6571, 0.0
      %v6989 = vsel %vm6239, %v6570, 0.0
      %v6990 = vsel %vm6240, %v6569, 0.0
      %v6991 = vsel %vm6241, %v6568, 0.0
      %v6992 = vsel %vm6242, %v6567, 0.0
      %v6993 = vsel %vm6243, %v6574, 0.0
      %v6994 = vsel %vm6244, %v6573, 0.0
      %6995 = vset.pattern.permute.xlu0 103
      %6996 = vperm.xlu0 %6995, %v370
      %v6997 = vpop.permute.xlu0 %6996
      %v6999 = vmul.f32 %v6997, %v6987
      %v7000 = vmul.f32 %v6997, %v6988
      %v7001 = vmul.f32 %v6997, %v6989
      %v7002 = vmul.f32 %v6997, %v6990
      %v7003 = vmul.f32 %v6997, %v6991
      %v7004 = vmul.f32 %v6997, %v6992
      %v7005 = vmul.f32 %v6997, %v6993
      %v7006 = vmul.f32 %v6997, %v6994
      %v7007 = vadd.f32 %v6979, %v6999
      %v7008 = vadd.f32 %v6980, %v7000
      %v7009 = vadd.f32 %v6981, %v7001
      %v7010 = vadd.f32 %v6982, %v7002
      %v7011 = vadd.f32 %v6983, %v7003
      %v7012 = vadd.f32 %v6984, %v7004
      %v7013 = vadd.f32 %v6985, %v7005
      %v7014 = vadd.f32 %v6986, %v7006
      %vm7015 = vcmp.lt.s32.totalorder %v368, 26
      %v7016 = vsel %vm7015, 1, 0
      %v7017 = vlaneseq
      %v7018 = vshrl.u32 %v7017, 7
      %v7019 = vsub.s32 0, %v7018
      %v7020 = vrot.slane %v7016, %v7019
      %v7021 = vlaneseq
      %v7022 = vshrl.u32 %v7021, 7
      %v7023 = vsub.s32 1, %v7022
      %v7024 = vrot.slane %v7016, %v7023
      %v7025 = vlaneseq
      %v7026 = vshrl.u32 %v7025, 7
      %v7027 = vsub.s32 2, %v7026
      %v7028 = vrot.slane %v7016, %v7027
      %v7029 = vlaneseq
      %v7030 = vshrl.u32 %v7029, 7
      %v7031 = vsub.s32 3, %v7030
      %v7032 = vrot.slane %v7016, %v7031
      %v7033 = vlaneseq
      %v7034 = vshrl.u32 %v7033, 7
      %v7035 = vsub.s32 4, %v7034
      %v7036 = vrot.slane %v7016, %v7035
      %v7037 = vlaneseq
      %v7038 = vshrl.u32 %v7037, 7
      %v7039 = vsub.s32 5, %v7038
      %v7040 = vrot.slane %v7016, %v7039
      %v7041 = vlaneseq
      %v7042 = vshrl.u32 %v7041, 7
      %v7043 = vsub.s32 6, %v7042
      %v7044 = vrot.slane %v7016, %v7043
      %v7045 = vlaneseq
      %v7046 = vshrl.u32 %v7045, 7
      %v7047 = vsub.s32 7, %v7046
      %v7048 = vrot.slane %v7016, %v7047
      %vm7049 = vcmp.eq.s32.totalorder %v7020, 1
      %vm7050 = vcmp.eq.s32.totalorder %v7024, 1
      %vm7051 = vcmp.eq.s32.totalorder %v7028, 1
      %vm7052 = vcmp.eq.s32.totalorder %v7032, 1
      %vm7053 = vcmp.eq.s32.totalorder %v7036, 1
      %vm7054 = vcmp.eq.s32.totalorder %v7040, 1
      %vm7055 = vcmp.eq.s32.totalorder %v7044, 1
      %vm7056 = vcmp.eq.s32.totalorder %v7048, 1
      %v7057 = vsel %vm7049, %v6314, 0.0
      %v7058 = vsel %vm7050, %v6313, 0.0
      %v7059 = vsel %vm7051, %v6312, 0.0
      %v7060 = vsel %vm7052, %v6311, 0.0
      %v7061 = vsel %vm7053, %v6310, 0.0
      %v7062 = vsel %vm7054, %v6309, 0.0
      %v7063 = vsel %vm7055, %v6316, 0.0
      %v7064 = vsel %vm7056, %v6315, 0.0
      %7065 = vset.pattern.permute.xlu0 104
      %7066 = vperm.xlu0 %7065, %v370
      %v7067 = vpop.permute.xlu0 %7066
      %v7069 = vmul.f32 %v7067, %v7057
      %v7070 = vmul.f32 %v7067, %v7058
      %v7071 = vmul.f32 %v7067, %v7059
      %v7072 = vmul.f32 %v7067, %v7060
      %v7073 = vmul.f32 %v7067, %v7061
      %v7074 = vmul.f32 %v7067, %v7062
      %v7075 = vmul.f32 %v7067, %v7063
      %v7076 = vmul.f32 %v7067, %v7064
      %v7077 = vadd.f32 %v7007, %v7069
      %v7078 = vadd.f32 %v7008, %v7070
      %v7079 = vadd.f32 %v7009, %v7071
      %v7080 = vadd.f32 %v7010, %v7072
      %v7081 = vadd.f32 %v7011, %v7073
      %v7082 = vadd.f32 %v7012, %v7074
      %v7083 = vadd.f32 %v7013, %v7075
      %v7084 = vadd.f32 %v7014, %v7076
      %vm7085 = vcmp.lt.s32.totalorder %v368, 25
      %v7086 = vsel %vm7085, 1, 0
      %v7087 = vlaneseq
      %v7088 = vshrl.u32 %v7087, 7
      %v7089 = vsub.s32 0, %v7088
      %v7090 = vrot.slane %v7086, %v7089
      %v7091 = vlaneseq
      %v7092 = vshrl.u32 %v7091, 7
      %v7093 = vsub.s32 1, %v7092
      %v7094 = vrot.slane %v7086, %v7093
      %v7095 = vlaneseq
      %v7096 = vshrl.u32 %v7095, 7
      %v7097 = vsub.s32 2, %v7096
      %v7098 = vrot.slane %v7086, %v7097
      %v7099 = vlaneseq
      %v7100 = vshrl.u32 %v7099, 7
      %v7101 = vsub.s32 3, %v7100
      %v7102 = vrot.slane %v7086, %v7101
      %v7103 = vlaneseq
      %v7104 = vshrl.u32 %v7103, 7
      %v7105 = vsub.s32 4, %v7104
      %v7106 = vrot.slane %v7086, %v7105
      %v7107 = vlaneseq
      %v7108 = vshrl.u32 %v7107, 7
      %v7109 = vsub.s32 5, %v7108
      %v7110 = vrot.slane %v7086, %v7109
      %v7111 = vlaneseq
      %v7112 = vshrl.u32 %v7111, 7
      %v7113 = vsub.s32 6, %v7112
      %v7114 = vrot.slane %v7086, %v7113
      %v7115 = vlaneseq
      %v7116 = vshrl.u32 %v7115, 7
      %v7117 = vsub.s32 7, %v7116
      %v7118 = vrot.slane %v7086, %v7117
      %vm7119 = vcmp.eq.s32.totalorder %v7090, 1
      %vm7120 = vcmp.eq.s32.totalorder %v7094, 1
      %vm7121 = vcmp.eq.s32.totalorder %v7098, 1
      %vm7122 = vcmp.eq.s32.totalorder %v7102, 1
      %vm7123 = vcmp.eq.s32.totalorder %v7106, 1
      %vm7124 = vcmp.eq.s32.totalorder %v7110, 1
      %vm7125 = vcmp.eq.s32.totalorder %v7114, 1
      %vm7126 = vcmp.eq.s32.totalorder %v7118, 1
      %v7127 = vsel %vm7119, %v6408, 0.0
      %v7128 = vsel %vm7120, %v6407, 0.0
      %v7129 = vsel %vm7121, %v6406, 0.0
      %v7130 = vsel %vm7122, %v6405, 0.0
      %v7131 = vsel %vm7123, %v6404, 0.0
      %v7132 = vsel %vm7124, %v6403, 0.0
      %v7133 = vsel %vm7125, %v6410, 0.0
      %v7134 = vsel %vm7126, %v6409, 0.0
      %7135 = vset.pattern.permute.xlu0 105
      %7136 = vperm.xlu0 %7135, %v370
      %v7137 = vpop.permute.xlu0 %7136
      %v7139 = vmul.f32 %v7137, %v7127
      %v7140 = vmul.f32 %v7137, %v7128
      %v7141 = vmul.f32 %v7137, %v7129
      %v7142 = vmul.f32 %v7137, %v7130
      %v7143 = vmul.f32 %v7137, %v7131
      %v7144 = vmul.f32 %v7137, %v7132
      %v7145 = vmul.f32 %v7137, %v7133
      %v7146 = vmul.f32 %v7137, %v7134
      %v7147 = vadd.f32 %v7077, %v7139
      %v7148 = vadd.f32 %v7078, %v7140
      %v7149 = vadd.f32 %v7079, %v7141
      %v7150 = vadd.f32 %v7080, %v7142
      %v7151 = vadd.f32 %v7081, %v7143
      %v7152 = vadd.f32 %v7082, %v7144
      %v7153 = vadd.f32 %v7083, %v7145
      %v7154 = vadd.f32 %v7084, %v7146
      %vm7155 = vcmp.lt.s32.totalorder %v368, 24
      %v7156 = vsel %vm7155, 1, 0
      %v7157 = vlaneseq
      %v7158 = vshrl.u32 %v7157, 7
      %v7159 = vsub.s32 0, %v7158
      %v7160 = vrot.slane %v7156, %v7159
      %v7161 = vlaneseq
      %v7162 = vshrl.u32 %v7161, 7
      %v7163 = vsub.s32 1, %v7162
      %v7164 = vrot.slane %v7156, %v7163
      %v7165 = vlaneseq
      %v7166 = vshrl.u32 %v7165, 7
      %v7167 = vsub.s32 2, %v7166
      %v7168 = vrot.slane %v7156, %v7167
      %v7169 = vlaneseq
      %v7170 = vshrl.u32 %v7169, 7
      %v7171 = vsub.s32 3, %v7170
      %v7172 = vrot.slane %v7156, %v7171
      %v7173 = vlaneseq
      %v7174 = vshrl.u32 %v7173, 7
      %v7175 = vsub.s32 4, %v7174
      %v7176 = vrot.slane %v7156, %v7175
      %v7177 = vlaneseq
      %v7178 = vshrl.u32 %v7177, 7
      %v7179 = vsub.s32 5, %v7178
      %v7180 = vrot.slane %v7156, %v7179
      %v7181 = vlaneseq
      %v7182 = vshrl.u32 %v7181, 7
      %v7183 = vsub.s32 6, %v7182
      %v7184 = vrot.slane %v7156, %v7183
      %v7185 = vlaneseq
      %v7186 = vshrl.u32 %v7185, 7
      %v7187 = vsub.s32 7, %v7186
      %v7188 = vrot.slane %v7156, %v7187
      %vm7189 = vcmp.eq.s32.totalorder %v7160, 1
      %vm7190 = vcmp.eq.s32.totalorder %v7164, 1
      %vm7191 = vcmp.eq.s32.totalorder %v7168, 1
      %vm7192 = vcmp.eq.s32.totalorder %v7172, 1
      %vm7193 = vcmp.eq.s32.totalorder %v7176, 1
      %vm7194 = vcmp.eq.s32.totalorder %v7180, 1
      %vm7195 = vcmp.eq.s32.totalorder %v7184, 1
      %vm7196 = vcmp.eq.s32.totalorder %v7188, 1
      %v7197 = vsel %vm7189, %v5363, 0.0
      %v7198 = vsel %vm7190, %v5364, 0.0
      %v7199 = vsel %vm7191, %v5365, 0.0
      %v7200 = vsel %vm7192, %v5366, 0.0
      %v7201 = vsel %vm7193, %v5367, 0.0
      %v7202 = vsel %vm7194, %v5368, 0.0
      %v7203 = vsel %vm7195, %v5361, 0.0
      %v7204 = vsel %vm7196, %v5362, 0.0
      %7205 = vset.pattern.permute.xlu0 106
      %7206 = vperm.xlu0 %7205, %v370
      %v7207 = vpop.permute.xlu0 %7206
      %v7209 = vmul.f32 %v7207, %v7197
      %v7210 = vmul.f32 %v7207, %v7198
      %v7211 = vmul.f32 %v7207, %v7199
      %v7212 = vmul.f32 %v7207, %v7200
      %v7213 = vmul.f32 %v7207, %v7201
      %v7214 = vmul.f32 %v7207, %v7202
      %v7215 = vmul.f32 %v7207, %v7203
      %v7216 = vmul.f32 %v7207, %v7204
      %v7217 = vadd.f32 %v7147, %v7209
      %v7218 = vadd.f32 %v7148, %v7210
      %v7219 = vadd.f32 %v7149, %v7211
      %v7220 = vadd.f32 %v7150, %v7212
      %v7221 = vadd.f32 %v7151, %v7213
      %v7222 = vadd.f32 %v7152, %v7214
      %v7223 = vadd.f32 %v7153, %v7215
      %v7224 = vadd.f32 %v7154, %v7216
      %vm7225 = vcmp.lt.s32.totalorder %v368, 23
      %v7226 = vsel %vm7225, 1, 0
      %v7227 = vlaneseq
      %v7228 = vshrl.u32 %v7227, 7
      %v7229 = vsub.s32 0, %v7228
      %v7230 = vrot.slane %v7226, %v7229
      %v7231 = vlaneseq
      %v7232 = vshrl.u32 %v7231, 7
      %v7233 = vsub.s32 1, %v7232
      %v7234 = vrot.slane %v7226, %v7233
      %v7235 = vlaneseq
      %v7236 = vshrl.u32 %v7235, 7
      %v7237 = vsub.s32 2, %v7236
      %v7238 = vrot.slane %v7226, %v7237
      %v7239 = vlaneseq
      %v7240 = vshrl.u32 %v7239, 7
      %v7241 = vsub.s32 3, %v7240
      %v7242 = vrot.slane %v7226, %v7241
      %v7243 = vlaneseq
      %v7244 = vshrl.u32 %v7243, 7
      %v7245 = vsub.s32 4, %v7244
      %v7246 = vrot.slane %v7226, %v7245
      %v7247 = vlaneseq
      %v7248 = vshrl.u32 %v7247, 7
      %v7249 = vsub.s32 5, %v7248
      %v7250 = vrot.slane %v7226, %v7249
      %v7251 = vlaneseq
      %v7252 = vshrl.u32 %v7251, 7
      %v7253 = vsub.s32 6, %v7252
      %v7254 = vrot.slane %v7226, %v7253
      %v7255 = vlaneseq
      %v7256 = vshrl.u32 %v7255, 7
      %v7257 = vsub.s32 7, %v7256
      %v7258 = vrot.slane %v7226, %v7257
      %vm7259 = vcmp.eq.s32.totalorder %v7230, 1
      %vm7260 = vcmp.eq.s32.totalorder %v7234, 1
      %vm7261 = vcmp.eq.s32.totalorder %v7238, 1
      %vm7262 = vcmp.eq.s32.totalorder %v7242, 1
      %vm7263 = vcmp.eq.s32.totalorder %v7246, 1
      %vm7264 = vcmp.eq.s32.totalorder %v7250, 1
      %vm7265 = vcmp.eq.s32.totalorder %v7254, 1
      %vm7266 = vcmp.eq.s32.totalorder %v7258, 1
      %v7267 = vsel %vm7259, %v6571, 0.0
      %v7268 = vsel %vm7260, %v6570, 0.0
      %v7269 = vsel %vm7261, %v6569, 0.0
      %v7270 = vsel %vm7262, %v6568, 0.0
      %v7271 = vsel %vm7263, %v6567, 0.0
      %v7272 = vsel %vm7264, %v6574, 0.0
      %v7273 = vsel %vm7265, %v6573, 0.0
      %v7274 = vsel %vm7266, %v6572, 0.0
      %7275 = vset.pattern.permute.xlu0 107
      %7276 = vperm.xlu0 %7275, %v370
      %v7277 = vpop.permute.xlu0 %7276
      %v7279 = vmul.f32 %v7277, %v7267
      %v7280 = vmul.f32 %v7277, %v7268
      %v7281 = vmul.f32 %v7277, %v7269
      %v7282 = vmul.f32 %v7277, %v7270
      %v7283 = vmul.f32 %v7277, %v7271
      %v7284 = vmul.f32 %v7277, %v7272
      %v7285 = vmul.f32 %v7277, %v7273
      %v7286 = vmul.f32 %v7277, %v7274
      %v7287 = vadd.f32 %v7217, %v7279
      %v7288 = vadd.f32 %v7218, %v7280
      %v7289 = vadd.f32 %v7219, %v7281
      %v7290 = vadd.f32 %v7220, %v7282
      %v7291 = vadd.f32 %v7221, %v7283
      %v7292 = vadd.f32 %v7222, %v7284
      %v7293 = vadd.f32 %v7223, %v7285
      %v7294 = vadd.f32 %v7224, %v7286
      %vm7295 = vcmp.lt.s32.totalorder %v368, 22
      %v7296 = vsel %vm7295, 1, 0
      %v7297 = vlaneseq
      %v7298 = vshrl.u32 %v7297, 7
      %v7299 = vsub.s32 0, %v7298
      %v7300 = vrot.slane %v7296, %v7299
      %v7301 = vlaneseq
      %v7302 = vshrl.u32 %v7301, 7
      %v7303 = vsub.s32 1, %v7302
      %v7304 = vrot.slane %v7296, %v7303
      %v7305 = vlaneseq
      %v7306 = vshrl.u32 %v7305, 7
      %v7307 = vsub.s32 2, %v7306
      %v7308 = vrot.slane %v7296, %v7307
      %v7309 = vlaneseq
      %v7310 = vshrl.u32 %v7309, 7
      %v7311 = vsub.s32 3, %v7310
      %v7312 = vrot.slane %v7296, %v7311
      %v7313 = vlaneseq
      %v7314 = vshrl.u32 %v7313, 7
      %v7315 = vsub.s32 4, %v7314
      %v7316 = vrot.slane %v7296, %v7315
      %v7317 = vlaneseq
      %v7318 = vshrl.u32 %v7317, 7
      %v7319 = vsub.s32 5, %v7318
      %v7320 = vrot.slane %v7296, %v7319
      %v7321 = vlaneseq
      %v7322 = vshrl.u32 %v7321, 7
      %v7323 = vsub.s32 6, %v7322
      %v7324 = vrot.slane %v7296, %v7323
      %v7325 = vlaneseq
      %v7326 = vshrl.u32 %v7325, 7
      %v7327 = vsub.s32 7, %v7326
      %v7328 = vrot.slane %v7296, %v7327
      %vm7329 = vcmp.eq.s32.totalorder %v7300, 1
      %vm7330 = vcmp.eq.s32.totalorder %v7304, 1
      %vm7331 = vcmp.eq.s32.totalorder %v7308, 1
      %vm7332 = vcmp.eq.s32.totalorder %v7312, 1
      %vm7333 = vcmp.eq.s32.totalorder %v7316, 1
      %vm7334 = vcmp.eq.s32.totalorder %v7320, 1
      %vm7335 = vcmp.eq.s32.totalorder %v7324, 1
      %vm7336 = vcmp.eq.s32.totalorder %v7328, 1
      %v7337 = vsel %vm7329, %v6313, 0.0
      %v7338 = vsel %vm7330, %v6312, 0.0
      %v7339 = vsel %vm7331, %v6311, 0.0
      %v7340 = vsel %vm7332, %v6310, 0.0
      %v7341 = vsel %vm7333, %v6309, 0.0
      %v7342 = vsel %vm7334, %v6316, 0.0
      %v7343 = vsel %vm7335, %v6315, 0.0
      %v7344 = vsel %vm7336, %v6314, 0.0
      %7345 = vset.pattern.permute.xlu0 108
      %7346 = vperm.xlu0 %7345, %v370
      %v7347 = vpop.permute.xlu0 %7346
      %v7349 = vmul.f32 %v7347, %v7337
      %v7350 = vmul.f32 %v7347, %v7338
      %v7351 = vmul.f32 %v7347, %v7339
      %v7352 = vmul.f32 %v7347, %v7340
      %v7353 = vmul.f32 %v7347, %v7341
      %v7354 = vmul.f32 %v7347, %v7342
      %v7355 = vmul.f32 %v7347, %v7343
      %v7356 = vmul.f32 %v7347, %v7344
      %v7357 = vadd.f32 %v7287, %v7349
      %v7358 = vadd.f32 %v7288, %v7350
      %v7359 = vadd.f32 %v7289, %v7351
      %v7360 = vadd.f32 %v7290, %v7352
      %v7361 = vadd.f32 %v7291, %v7353
      %v7362 = vadd.f32 %v7292, %v7354
      %v7363 = vadd.f32 %v7293, %v7355
      %v7364 = vadd.f32 %v7294, %v7356
      %v7365 = vadd.f32 %v6285, %v7357
      %v7366 = vadd.f32 %v6286, %v7358
      %v7367 = vadd.f32 %v6287, %v7359
      %v7368 = vadd.f32 %v6288, %v7360
      %v7369 = vadd.f32 %v6289, %v7361
      %v7370 = vadd.f32 %v6290, %v7362
      %v7371 = vadd.f32 %v6291, %v7363
      %v7372 = vadd.f32 %v6292, %v7364
      %7373 = vset.pattern.permute.xlu0 109
      %7374 = vperm.xlu0 %7373, %v370
      %v7375 = vpop.permute.xlu0 %7374
      %v7377 = vadd.f32 %v7365, %v7375
      %v7378 = vadd.f32 %v7366, %v7375
      %v7379 = vadd.f32 %v7367, %v7375
      %v7380 = vadd.f32 %v7368, %v7375
      %v7381 = vadd.f32 %v7369, %v7375
      %v7382 = vadd.f32 %v7370, %v7375
      %v7383 = vadd.f32 %v7371, %v7375
      %v7384 = vadd.f32 %v7372, %v7375
      %v7385 = vld [vmem:[%s6] sm:$0xff]
      %7387 = vset.pattern.permute.xlu0 0
      %7388 = vperm.xlu0 %7387, %v7385
      %v7389 = vpop.permute.xlu0 %7388
      %v7391 = vlaneseq
      %v7392 = vshrl.u32 %v7391, 7
      %v7393 = vsub.s32 0, %v7392
      %v7394 = vrot.slane %v7377, %v7393
      %v7395 = vlaneseq
      %v7396 = vshrl.u32 %v7395, 7
      %v7397 = vsub.s32 0, %v7396
      %v7398 = vrot.slane %v7378, %v7397
      %v7399 = vlaneseq
      %v7400 = vshrl.u32 %v7399, 7
      %v7401 = vsub.s32 0, %v7400
      %v7402 = vrot.slane %v7379, %v7401
      %v7403 = vlaneseq
      %v7404 = vshrl.u32 %v7403, 7
      %v7405 = vsub.s32 0, %v7404
      %v7406 = vrot.slane %v7380, %v7405
      %v7407 = vlaneseq
      %v7408 = vshrl.u32 %v7407, 7
      %v7409 = vsub.s32 0, %v7408
      %v7410 = vrot.slane %v7381, %v7409
      %v7411 = vlaneseq
      %v7412 = vshrl.u32 %v7411, 7
      %v7413 = vsub.s32 0, %v7412
      %v7414 = vrot.slane %v7382, %v7413
      %v7415 = vlaneseq
      %v7416 = vshrl.u32 %v7415, 7
      %v7417 = vsub.s32 0, %v7416
      %v7418 = vrot.slane %v7383, %v7417
      %v7419 = vlaneseq
      %v7420 = vshrl.u32 %v7419, 7
      %v7421 = vsub.s32 0, %v7420
      %v7422 = vrot.slane %v7384, %v7421
      %v7423 = vmul.f32 %v7389, %v7394
      %v7424 = vmul.f32 %v7389, %v7398
      %v7425 = vmul.f32 %v7389, %v7402
      %v7426 = vmul.f32 %v7389, %v7406
      %v7427 = vmul.f32 %v7389, %v7410
      %v7428 = vmul.f32 %v7389, %v7414
      %v7429 = vmul.f32 %v7389, %v7418
      %v7430 = vmul.f32 %v7389, %v7422
      %v7431 = vadd.f32 %v7423, 0.0
      %v7432 = vadd.f32 %v7424, 0.0
      %v7433 = vadd.f32 %v7425, 0.0
      %v7434 = vadd.f32 %v7426, 0.0
      %v7435 = vadd.f32 %v7427, 0.0
      %v7436 = vadd.f32 %v7428, 0.0
      %v7437 = vadd.f32 %v7429, 0.0
      %v7438 = vadd.f32 %v7430, 0.0
      %7439 = vset.pattern.permute.xlu0 1
      %7440 = vperm.xlu0 %7439, %v7385
      %v7441 = vpop.permute.xlu0 %7440
      %v7443 = vlaneseq
      %v7444 = vshrl.u32 %v7443, 7
      %v7445 = vsub.s32 1, %v7444
      %v7446 = vrot.slane %v7377, %v7445
      %v7447 = vlaneseq
      %v7448 = vshrl.u32 %v7447, 7
      %v7449 = vsub.s32 1, %v7448
      %v7450 = vrot.slane %v7378, %v7449
      %v7451 = vlaneseq
      %v7452 = vshrl.u32 %v7451, 7
      %v7453 = vsub.s32 1, %v7452
      %v7454 = vrot.slane %v7379, %v7453
      %v7455 = vlaneseq
      %v7456 = vshrl.u32 %v7455, 7
      %v7457 = vsub.s32 1, %v7456
      %v7458 = vrot.slane %v7380, %v7457
      %v7459 = vlaneseq
      %v7460 = vshrl.u32 %v7459, 7
      %v7461 = vsub.s32 1, %v7460
      %v7462 = vrot.slane %v7381, %v7461
      %v7463 = vlaneseq
      %v7464 = vshrl.u32 %v7463, 7
      %v7465 = vsub.s32 1, %v7464
      %v7466 = vrot.slane %v7382, %v7465
      %v7467 = vlaneseq
      %v7468 = vshrl.u32 %v7467, 7
      %v7469 = vsub.s32 1, %v7468
      %v7470 = vrot.slane %v7383, %v7469
      %v7471 = vlaneseq
      %v7472 = vshrl.u32 %v7471, 7
      %v7473 = vsub.s32 1, %v7472
      %v7474 = vrot.slane %v7384, %v7473
      %v7475 = vmul.f32 %v7441, %v7446
      %v7476 = vmul.f32 %v7441, %v7450
      %v7477 = vmul.f32 %v7441, %v7454
      %v7478 = vmul.f32 %v7441, %v7458
      %v7479 = vmul.f32 %v7441, %v7462
      %v7480 = vmul.f32 %v7441, %v7466
      %v7481 = vmul.f32 %v7441, %v7470
      %v7482 = vmul.f32 %v7441, %v7474
      %v7483 = vadd.f32 %v7431, %v7475
      %v7484 = vadd.f32 %v7432, %v7476
      %v7485 = vadd.f32 %v7433, %v7477
      %v7486 = vadd.f32 %v7434, %v7478
      %v7487 = vadd.f32 %v7435, %v7479
      %v7488 = vadd.f32 %v7436, %v7480
      %v7489 = vadd.f32 %v7437, %v7481
      %v7490 = vadd.f32 %v7438, %v7482
      %7491 = vset.pattern.permute.xlu0 2
      %7492 = vperm.xlu0 %7491, %v7385
      %v7493 = vpop.permute.xlu0 %7492
      %v7495 = vlaneseq
      %v7496 = vshrl.u32 %v7495, 7
      %v7497 = vsub.s32 2, %v7496
      %v7498 = vrot.slane %v7377, %v7497
      %v7499 = vlaneseq
      %v7500 = vshrl.u32 %v7499, 7
      %v7501 = vsub.s32 2, %v7500
      %v7502 = vrot.slane %v7378, %v7501
      %v7503 = vlaneseq
      %v7504 = vshrl.u32 %v7503, 7
      %v7505 = vsub.s32 2, %v7504
      %v7506 = vrot.slane %v7379, %v7505
      %v7507 = vlaneseq
      %v7508 = vshrl.u32 %v7507, 7
      %v7509 = vsub.s32 2, %v7508
      %v7510 = vrot.slane %v7380, %v7509
      %v7511 = vlaneseq
      %v7512 = vshrl.u32 %v7511, 7
      %v7513 = vsub.s32 2, %v7512
      %v7514 = vrot.slane %v7381, %v7513
      %v7515 = vlaneseq
      %v7516 = vshrl.u32 %v7515, 7
      %v7517 = vsub.s32 2, %v7516
      %v7518 = vrot.slane %v7382, %v7517
      %v7519 = vlaneseq
      %v7520 = vshrl.u32 %v7519, 7
      %v7521 = vsub.s32 2, %v7520
      %v7522 = vrot.slane %v7383, %v7521
      %v7523 = vlaneseq
      %v7524 = vshrl.u32 %v7523, 7
      %v7525 = vsub.s32 2, %v7524
      %v7526 = vrot.slane %v7384, %v7525
      %v7527 = vmul.f32 %v7493, %v7498
      %v7528 = vmul.f32 %v7493, %v7502
      %v7529 = vmul.f32 %v7493, %v7506
      %v7530 = vmul.f32 %v7493, %v7510
      %v7531 = vmul.f32 %v7493, %v7514
      %v7532 = vmul.f32 %v7493, %v7518
      %v7533 = vmul.f32 %v7493, %v7522
      %v7534 = vmul.f32 %v7493, %v7526
      %v7535 = vadd.f32 %v7483, %v7527
      %v7536 = vadd.f32 %v7484, %v7528
      %v7537 = vadd.f32 %v7485, %v7529
      %v7538 = vadd.f32 %v7486, %v7530
      %v7539 = vadd.f32 %v7487, %v7531
      %v7540 = vadd.f32 %v7488, %v7532
      %v7541 = vadd.f32 %v7489, %v7533
      %v7542 = vadd.f32 %v7490, %v7534
      %7543 = vset.pattern.permute.xlu0 3
      %7544 = vperm.xlu0 %7543, %v7385
      %v7545 = vpop.permute.xlu0 %7544
      %v7547 = vlaneseq
      %v7548 = vshrl.u32 %v7547, 7
      %v7549 = vsub.s32 3, %v7548
      %v7550 = vrot.slane %v7377, %v7549
      %v7551 = vlaneseq
      %v7552 = vshrl.u32 %v7551, 7
      %v7553 = vsub.s32 3, %v7552
      %v7554 = vrot.slane %v7378, %v7553
      %v7555 = vlaneseq
      %v7556 = vshrl.u32 %v7555, 7
      %v7557 = vsub.s32 3, %v7556
      %v7558 = vrot.slane %v7379, %v7557
      %v7559 = vlaneseq
      %v7560 = vshrl.u32 %v7559, 7
      %v7561 = vsub.s32 3, %v7560
      %v7562 = vrot.slane %v7380, %v7561
      %v7563 = vlaneseq
      %v7564 = vshrl.u32 %v7563, 7
      %v7565 = vsub.s32 3, %v7564
      %v7566 = vrot.slane %v7381, %v7565
      %v7567 = vlaneseq
      %v7568 = vshrl.u32 %v7567, 7
      %v7569 = vsub.s32 3, %v7568
      %v7570 = vrot.slane %v7382, %v7569
      %v7571 = vlaneseq
      %v7572 = vshrl.u32 %v7571, 7
      %v7573 = vsub.s32 3, %v7572
      %v7574 = vrot.slane %v7383, %v7573
      %v7575 = vlaneseq
      %v7576 = vshrl.u32 %v7575, 7
      %v7577 = vsub.s32 3, %v7576
      %v7578 = vrot.slane %v7384, %v7577
      %v7579 = vmul.f32 %v7545, %v7550
      %v7580 = vmul.f32 %v7545, %v7554
      %v7581 = vmul.f32 %v7545, %v7558
      %v7582 = vmul.f32 %v7545, %v7562
      %v7583 = vmul.f32 %v7545, %v7566
      %v7584 = vmul.f32 %v7545, %v7570
      %v7585 = vmul.f32 %v7545, %v7574
      %v7586 = vmul.f32 %v7545, %v7578
      %v7587 = vadd.f32 %v7535, %v7579
      %v7588 = vadd.f32 %v7536, %v7580
      %v7589 = vadd.f32 %v7537, %v7581
      %v7590 = vadd.f32 %v7538, %v7582
      %v7591 = vadd.f32 %v7539, %v7583
      %v7592 = vadd.f32 %v7540, %v7584
      %v7593 = vadd.f32 %v7541, %v7585
      %v7594 = vadd.f32 %v7542, %v7586
      %7595 = vset.pattern.permute.xlu0 4
      %7596 = vperm.xlu0 %7595, %v7385
      %v7597 = vpop.permute.xlu0 %7596
      %v7599 = vlaneseq
      %v7600 = vshrl.u32 %v7599, 7
      %v7601 = vsub.s32 4, %v7600
      %v7602 = vrot.slane %v7377, %v7601
      %v7603 = vlaneseq
      %v7604 = vshrl.u32 %v7603, 7
      %v7605 = vsub.s32 4, %v7604
      %v7606 = vrot.slane %v7378, %v7605
      %v7607 = vlaneseq
      %v7608 = vshrl.u32 %v7607, 7
      %v7609 = vsub.s32 4, %v7608
      %v7610 = vrot.slane %v7379, %v7609
      %v7611 = vlaneseq
      %v7612 = vshrl.u32 %v7611, 7
      %v7613 = vsub.s32 4, %v7612
      %v7614 = vrot.slane %v7380, %v7613
      %v7615 = vlaneseq
      %v7616 = vshrl.u32 %v7615, 7
      %v7617 = vsub.s32 4, %v7616
      %v7618 = vrot.slane %v7381, %v7617
      %v7619 = vlaneseq
      %v7620 = vshrl.u32 %v7619, 7
      %v7621 = vsub.s32 4, %v7620
      %v7622 = vrot.slane %v7382, %v7621
      %v7623 = vlaneseq
      %v7624 = vshrl.u32 %v7623, 7
      %v7625 = vsub.s32 4, %v7624
      %v7626 = vrot.slane %v7383, %v7625
      %v7627 = vlaneseq
      %v7628 = vshrl.u32 %v7627, 7
      %v7629 = vsub.s32 4, %v7628
      %v7630 = vrot.slane %v7384, %v7629
      %v7631 = vmul.f32 %v7597, %v7602
      %v7632 = vmul.f32 %v7597, %v7606
      %v7633 = vmul.f32 %v7597, %v7610
      %v7634 = vmul.f32 %v7597, %v7614
      %v7635 = vmul.f32 %v7597, %v7618
      %v7636 = vmul.f32 %v7597, %v7622
      %v7637 = vmul.f32 %v7597, %v7626
      %v7638 = vmul.f32 %v7597, %v7630
      %v7639 = vadd.f32 %v7587, %v7631
      %v7640 = vadd.f32 %v7588, %v7632
      %v7641 = vadd.f32 %v7589, %v7633
      %v7642 = vadd.f32 %v7590, %v7634
      %v7643 = vadd.f32 %v7591, %v7635
      %v7644 = vadd.f32 %v7592, %v7636
      %v7645 = vadd.f32 %v7593, %v7637
      %v7646 = vadd.f32 %v7594, %v7638
      %7647 = vset.pattern.permute.xlu0 5
      %7648 = vperm.xlu0 %7647, %v7385
      %v7649 = vpop.permute.xlu0 %7648
      %v7651 = vlaneseq
      %v7652 = vshrl.u32 %v7651, 7
      %v7653 = vsub.s32 5, %v7652
      %v7654 = vrot.slane %v7377, %v7653
      %v7655 = vlaneseq
      %v7656 = vshrl.u32 %v7655, 7
      %v7657 = vsub.s32 5, %v7656
      %v7658 = vrot.slane %v7378, %v7657
      %v7659 = vlaneseq
      %v7660 = vshrl.u32 %v7659, 7
      %v7661 = vsub.s32 5, %v7660
      %v7662 = vrot.slane %v7379, %v7661
      %v7663 = vlaneseq
      %v7664 = vshrl.u32 %v7663, 7
      %v7665 = vsub.s32 5, %v7664
      %v7666 = vrot.slane %v7380, %v7665
      %v7667 = vlaneseq
      %v7668 = vshrl.u32 %v7667, 7
      %v7669 = vsub.s32 5, %v7668
      %v7670 = vrot.slane %v7381, %v7669
      %v7671 = vlaneseq
      %v7672 = vshrl.u32 %v7671, 7
      %v7673 = vsub.s32 5, %v7672
      %v7674 = vrot.slane %v7382, %v7673
      %v7675 = vlaneseq
      %v7676 = vshrl.u32 %v7675, 7
      %v7677 = vsub.s32 5, %v7676
      %v7678 = vrot.slane %v7383, %v7677
      %v7679 = vlaneseq
      %v7680 = vshrl.u32 %v7679, 7
      %v7681 = vsub.s32 5, %v7680
      %v7682 = vrot.slane %v7384, %v7681
      %v7683 = vmul.f32 %v7649, %v7654
      %v7684 = vmul.f32 %v7649, %v7658
      %v7685 = vmul.f32 %v7649, %v7662
      %v7686 = vmul.f32 %v7649, %v7666
      %v7687 = vmul.f32 %v7649, %v7670
      %v7688 = vmul.f32 %v7649, %v7674
      %v7689 = vmul.f32 %v7649, %v7678
      %v7690 = vmul.f32 %v7649, %v7682
      %v7691 = vadd.f32 %v7639, %v7683
      %v7692 = vadd.f32 %v7640, %v7684
      %v7693 = vadd.f32 %v7641, %v7685
      %v7694 = vadd.f32 %v7642, %v7686
      %v7695 = vadd.f32 %v7643, %v7687
      %v7696 = vadd.f32 %v7644, %v7688
      %v7697 = vadd.f32 %v7645, %v7689
      %v7698 = vadd.f32 %v7646, %v7690
      %7699 = vset.pattern.permute.xlu0 6
      %7700 = vperm.xlu0 %7699, %v7385
      %v7701 = vpop.permute.xlu0 %7700
      %v7703 = vlaneseq
      %v7704 = vshrl.u32 %v7703, 7
      %v7705 = vsub.s32 6, %v7704
      %v7706 = vrot.slane %v7377, %v7705
      %v7707 = vlaneseq
      %v7708 = vshrl.u32 %v7707, 7
      %v7709 = vsub.s32 6, %v7708
      %v7710 = vrot.slane %v7378, %v7709
      %v7711 = vlaneseq
      %v7712 = vshrl.u32 %v7711, 7
      %v7713 = vsub.s32 6, %v7712
      %v7714 = vrot.slane %v7379, %v7713
      %v7715 = vlaneseq
      %v7716 = vshrl.u32 %v7715, 7
      %v7717 = vsub.s32 6, %v7716
      %v7718 = vrot.slane %v7380, %v7717
      %v7719 = vlaneseq
      %v7720 = vshrl.u32 %v7719, 7
      %v7721 = vsub.s32 6, %v7720
      %v7722 = vrot.slane %v7381, %v7721
      %v7723 = vlaneseq
      %v7724 = vshrl.u32 %v7723, 7
      %v7725 = vsub.s32 6, %v7724
      %v7726 = vrot.slane %v7382, %v7725
      %v7727 = vlaneseq
      %v7728 = vshrl.u32 %v7727, 7
      %v7729 = vsub.s32 6, %v7728
      %v7730 = vrot.slane %v7383, %v7729
      %v7731 = vlaneseq
      %v7732 = vshrl.u32 %v7731, 7
      %v7733 = vsub.s32 6, %v7732
      %v7734 = vrot.slane %v7384, %v7733
      %v7735 = vmul.f32 %v7701, %v7706
      %v7736 = vmul.f32 %v7701, %v7710
      %v7737 = vmul.f32 %v7701, %v7714
      %v7738 = vmul.f32 %v7701, %v7718
      %v7739 = vmul.f32 %v7701, %v7722
      %v7740 = vmul.f32 %v7701, %v7726
      %v7741 = vmul.f32 %v7701, %v7730
      %v7742 = vmul.f32 %v7701, %v7734
      %v7743 = vadd.f32 %v7691, %v7735
      %v7744 = vadd.f32 %v7692, %v7736
      %v7745 = vadd.f32 %v7693, %v7737
      %v7746 = vadd.f32 %v7694, %v7738
      %v7747 = vadd.f32 %v7695, %v7739
      %v7748 = vadd.f32 %v7696, %v7740
      %v7749 = vadd.f32 %v7697, %v7741
      %v7750 = vadd.f32 %v7698, %v7742
      %7751 = vset.pattern.permute.xlu0 7
      %7752 = vperm.xlu0 %7751, %v7385
      %v7753 = vpop.permute.xlu0 %7752
      %v7755 = vlaneseq
      %v7756 = vshrl.u32 %v7755, 7
      %v7757 = vsub.s32 7, %v7756
      %v7758 = vrot.slane %v7377, %v7757
      %v7759 = vlaneseq
      %v7760 = vshrl.u32 %v7759, 7
      %v7761 = vsub.s32 7, %v7760
      %v7762 = vrot.slane %v7378, %v7761
      %v7763 = vlaneseq
      %v7764 = vshrl.u32 %v7763, 7
      %v7765 = vsub.s32 7, %v7764
      %v7766 = vrot.slane %v7379, %v7765
      %v7767 = vlaneseq
      %v7768 = vshrl.u32 %v7767, 7
      %v7769 = vsub.s32 7, %v7768
      %v7770 = vrot.slane %v7380, %v7769
      %v7771 = vlaneseq
      %v7772 = vshrl.u32 %v7771, 7
      %v7773 = vsub.s32 7, %v7772
      %v7774 = vrot.slane %v7381, %v7773
      %v7775 = vlaneseq
      %v7776 = vshrl.u32 %v7775, 7
      %v7777 = vsub.s32 7, %v7776
      %v7778 = vrot.slane %v7382, %v7777
      %v7779 = vlaneseq
      %v7780 = vshrl.u32 %v7779, 7
      %v7781 = vsub.s32 7, %v7780
      %v7782 = vrot.slane %v7383, %v7781
      %v7783 = vlaneseq
      %v7784 = vshrl.u32 %v7783, 7
      %v7785 = vsub.s32 7, %v7784
      %v7786 = vrot.slane %v7384, %v7785
      %v7787 = vmul.f32 %v7753, %v7758
      %v7788 = vmul.f32 %v7753, %v7762
      %v7789 = vmul.f32 %v7753, %v7766
      %v7790 = vmul.f32 %v7753, %v7770
      %v7791 = vmul.f32 %v7753, %v7774
      %v7792 = vmul.f32 %v7753, %v7778
      %v7793 = vmul.f32 %v7753, %v7782
      %v7794 = vmul.f32 %v7753, %v7786
      %v7795 = vadd.f32 %v7743, %v7787
      %v7796 = vadd.f32 %v7744, %v7788
      %v7797 = vadd.f32 %v7745, %v7789
      %v7798 = vadd.f32 %v7746, %v7790
      %v7799 = vadd.f32 %v7747, %v7791
      %v7800 = vadd.f32 %v7748, %v7792
      %v7801 = vadd.f32 %v7749, %v7793
      %v7802 = vadd.f32 %v7750, %v7794
      %v7803 = vld [vmem:[%s7] sm:$0xff]
      %7805 = vset.pattern.permute.xlu0 0
      %7806 = vperm.xlu0 %7805, %v7803
      %v7807 = vpop.permute.xlu0 %7806
      %v7809 = vadd.f32 %v7795, %v7807
      %v7810 = vadd.f32 %v7796, %v7807
      %v7811 = vadd.f32 %v7797, %v7807
      %v7812 = vadd.f32 %v7798, %v7807
      %v7813 = vadd.f32 %v7799, %v7807
      %v7814 = vadd.f32 %v7800, %v7807
      %v7815 = vadd.f32 %v7801, %v7807
      %v7816 = vadd.f32 %v7802, %v7807
      %v7817 = vmul.f32 %v7809, %v1027
      %v7818 = vmul.f32 %v7810, %v1028
      %v7819 = vmul.f32 %v7811, %v1029
      %v7820 = vmul.f32 %v7812, %v1030
      %v7821 = vmul.f32 %v7813, %v1031
      %v7822 = vmul.f32 %v7814, %v1032
      %v7823 = vmul.f32 %v7815, %v1033
      %v7824 = vmul.f32 %v7816, %v1034
      %v7825 = vld [vmem:[%s8] sm:$0xff]
      %7827 = vset.pattern.permute.xlu0 0
      %7828 = vperm.xlu0 %7827, %v7825
      %v7829 = vpop.permute.xlu0 %7828
      %v7831 = vlaneseq
      %v7832 = vshrl.u32 %v7831, 7
      %v7833 = vsub.s32 0, %v7832
      %v7834 = vrot.slane %v7817, %v7833
      %v7835 = vlaneseq
      %v7836 = vshrl.u32 %v7835, 7
      %v7837 = vsub.s32 0, %v7836
      %v7838 = vrot.slane %v7818, %v7837
      %v7839 = vlaneseq
      %v7840 = vshrl.u32 %v7839, 7
      %v7841 = vsub.s32 0, %v7840
      %v7842 = vrot.slane %v7819, %v7841
      %v7843 = vlaneseq
      %v7844 = vshrl.u32 %v7843, 7
      %v7845 = vsub.s32 0, %v7844
      %v7846 = vrot.slane %v7820, %v7845
      %v7847 = vlaneseq
      %v7848 = vshrl.u32 %v7847, 7
      %v7849 = vsub.s32 0, %v7848
      %v7850 = vrot.slane %v7821, %v7849
      %v7851 = vlaneseq
      %v7852 = vshrl.u32 %v7851, 7
      %v7853 = vsub.s32 0, %v7852
      %v7854 = vrot.slane %v7822, %v7853
      %v7855 = vlaneseq
      %v7856 = vshrl.u32 %v7855, 7
      %v7857 = vsub.s32 0, %v7856
      %v7858 = vrot.slane %v7823, %v7857
      %v7859 = vlaneseq
      %v7860 = vshrl.u32 %v7859, 7
      %v7861 = vsub.s32 0, %v7860
      %v7862 = vrot.slane %v7824, %v7861
      %v7863 = vmul.f32 %v7829, %v7834
      %v7864 = vmul.f32 %v7829, %v7838
      %v7865 = vmul.f32 %v7829, %v7842
      %v7866 = vmul.f32 %v7829, %v7846
      %v7867 = vmul.f32 %v7829, %v7850
      %v7868 = vmul.f32 %v7829, %v7854
      %v7869 = vmul.f32 %v7829, %v7858
      %v7870 = vmul.f32 %v7829, %v7862
      %v7871 = vadd.f32 %v7863, 0.0
      %v7872 = vadd.f32 %v7864, 0.0
      %v7873 = vadd.f32 %v7865, 0.0
      %v7874 = vadd.f32 %v7866, 0.0
      %v7875 = vadd.f32 %v7867, 0.0
      %v7876 = vadd.f32 %v7868, 0.0
      %v7877 = vadd.f32 %v7869, 0.0
      %v7878 = vadd.f32 %v7870, 0.0
      %7879 = vset.pattern.permute.xlu0 1
      %7880 = vperm.xlu0 %7879, %v7825
      %v7881 = vpop.permute.xlu0 %7880
      %v7883 = vlaneseq
      %v7884 = vshrl.u32 %v7883, 7
      %v7885 = vsub.s32 1, %v7884
      %v7886 = vrot.slane %v7817, %v7885
      %v7887 = vlaneseq
      %v7888 = vshrl.u32 %v7887, 7
      %v7889 = vsub.s32 1, %v7888
      %v7890 = vrot.slane %v7818, %v7889
      %v7891 = vlaneseq
      %v7892 = vshrl.u32 %v7891, 7
      %v7893 = vsub.s32 1, %v7892
      %v7894 = vrot.slane %v7819, %v7893
      %v7895 = vlaneseq
      %v7896 = vshrl.u32 %v7895, 7
      %v7897 = vsub.s32 1, %v7896
      %v7898 = vrot.slane %v7820, %v7897
      %v7899 = vlaneseq
      %v7900 = vshrl.u32 %v7899, 7
      %v7901 = vsub.s32 1, %v7900
      %v7902 = vrot.slane %v7821, %v7901
      %v7903 = vlaneseq
      %v7904 = vshrl.u32 %v7903, 7
      %v7905 = vsub.s32 1, %v7904
      %v7906 = vrot.slane %v7822, %v7905
      %v7907 = vlaneseq
      %v7908 = vshrl.u32 %v7907, 7
      %v7909 = vsub.s32 1, %v7908
      %v7910 = vrot.slane %v7823, %v7909
      %v7911 = vlaneseq
      %v7912 = vshrl.u32 %v7911, 7
      %v7913 = vsub.s32 1, %v7912
      %v7914 = vrot.slane %v7824, %v7913
      %v7915 = vmul.f32 %v7881, %v7886
      %v7916 = vmul.f32 %v7881, %v7890
      %v7917 = vmul.f32 %v7881, %v7894
      %v7918 = vmul.f32 %v7881, %v7898
      %v7919 = vmul.f32 %v7881, %v7902
      %v7920 = vmul.f32 %v7881, %v7906
      %v7921 = vmul.f32 %v7881, %v7910
      %v7922 = vmul.f32 %v7881, %v7914
      %v7923 = vadd.f32 %v7871, %v7915
      %v7924 = vadd.f32 %v7872, %v7916
      %v7925 = vadd.f32 %v7873, %v7917
      %v7926 = vadd.f32 %v7874, %v7918
      %v7927 = vadd.f32 %v7875, %v7919
      %v7928 = vadd.f32 %v7876, %v7920
      %v7929 = vadd.f32 %v7877, %v7921
      %v7930 = vadd.f32 %v7878, %v7922
      %7931 = vset.pattern.permute.xlu0 2
      %7932 = vperm.xlu0 %7931, %v7825
      %v7933 = vpop.permute.xlu0 %7932
      %v7935 = vlaneseq
      %v7936 = vshrl.u32 %v7935, 7
      %v7937 = vsub.s32 2, %v7936
      %v7938 = vrot.slane %v7817, %v7937
      %v7939 = vlaneseq
      %v7940 = vshrl.u32 %v7939, 7
      %v7941 = vsub.s32 2, %v7940
      %v7942 = vrot.slane %v7818, %v7941
      %v7943 = vlaneseq
      %v7944 = vshrl.u32 %v7943, 7
      %v7945 = vsub.s32 2, %v7944
      %v7946 = vrot.slane %v7819, %v7945
      %v7947 = vlaneseq
      %v7948 = vshrl.u32 %v7947, 7
      %v7949 = vsub.s32 2, %v7948
      %v7950 = vrot.slane %v7820, %v7949
      %v7951 = vlaneseq
      %v7952 = vshrl.u32 %v7951, 7
      %v7953 = vsub.s32 2, %v7952
      %v7954 = vrot.slane %v7821, %v7953
      %v7955 = vlaneseq
      %v7956 = vshrl.u32 %v7955, 7
      %v7957 = vsub.s32 2, %v7956
      %v7958 = vrot.slane %v7822, %v7957
      %v7959 = vlaneseq
      %v7960 = vshrl.u32 %v7959, 7
      %v7961 = vsub.s32 2, %v7960
      %v7962 = vrot.slane %v7823, %v7961
      %v7963 = vlaneseq
      %v7964 = vshrl.u32 %v7963, 7
      %v7965 = vsub.s32 2, %v7964
      %v7966 = vrot.slane %v7824, %v7965
      %v7967 = vmul.f32 %v7933, %v7938
      %v7968 = vmul.f32 %v7933, %v7942
      %v7969 = vmul.f32 %v7933, %v7946
      %v7970 = vmul.f32 %v7933, %v7950
      %v7971 = vmul.f32 %v7933, %v7954
      %v7972 = vmul.f32 %v7933, %v7958
      %v7973 = vmul.f32 %v7933, %v7962
      %v7974 = vmul.f32 %v7933, %v7966
      %v7975 = vadd.f32 %v7923, %v7967
      %v7976 = vadd.f32 %v7924, %v7968
      %v7977 = vadd.f32 %v7925, %v7969
      %v7978 = vadd.f32 %v7926, %v7970
      %v7979 = vadd.f32 %v7927, %v7971
      %v7980 = vadd.f32 %v7928, %v7972
      %v7981 = vadd.f32 %v7929, %v7973
      %v7982 = vadd.f32 %v7930, %v7974
      %7983 = vset.pattern.permute.xlu0 3
      %7984 = vperm.xlu0 %7983, %v7825
      %v7985 = vpop.permute.xlu0 %7984
      %v7987 = vlaneseq
      %v7988 = vshrl.u32 %v7987, 7
      %v7989 = vsub.s32 3, %v7988
      %v7990 = vrot.slane %v7817, %v7989
      %v7991 = vlaneseq
      %v7992 = vshrl.u32 %v7991, 7
      %v7993 = vsub.s32 3, %v7992
      %v7994 = vrot.slane %v7818, %v7993
      %v7995 = vlaneseq
      %v7996 = vshrl.u32 %v7995, 7
      %v7997 = vsub.s32 3, %v7996
      %v7998 = vrot.slane %v7819, %v7997
      %v7999 = vlaneseq
      %v8000 = vshrl.u32 %v7999, 7
      %v8001 = vsub.s32 3, %v8000
      %v8002 = vrot.slane %v7820, %v8001
      %v8003 = vlaneseq
      %v8004 = vshrl.u32 %v8003, 7
      %v8005 = vsub.s32 3, %v8004
      %v8006 = vrot.slane %v7821, %v8005
      %v8007 = vlaneseq
      %v8008 = vshrl.u32 %v8007, 7
      %v8009 = vsub.s32 3, %v8008
      %v8010 = vrot.slane %v7822, %v8009
      %v8011 = vlaneseq
      %v8012 = vshrl.u32 %v8011, 7
      %v8013 = vsub.s32 3, %v8012
      %v8014 = vrot.slane %v7823, %v8013
      %v8015 = vlaneseq
      %v8016 = vshrl.u32 %v8015, 7
      %v8017 = vsub.s32 3, %v8016
      %v8018 = vrot.slane %v7824, %v8017
      %v8019 = vmul.f32 %v7985, %v7990
      %v8020 = vmul.f32 %v7985, %v7994
      %v8021 = vmul.f32 %v7985, %v7998
      %v8022 = vmul.f32 %v7985, %v8002
      %v8023 = vmul.f32 %v7985, %v8006
      %v8024 = vmul.f32 %v7985, %v8010
      %v8025 = vmul.f32 %v7985, %v8014
      %v8026 = vmul.f32 %v7985, %v8018
      %v8027 = vadd.f32 %v7975, %v8019
      %v8028 = vadd.f32 %v7976, %v8020
      %v8029 = vadd.f32 %v7977, %v8021
      %v8030 = vadd.f32 %v7978, %v8022
      %v8031 = vadd.f32 %v7979, %v8023
      %v8032 = vadd.f32 %v7980, %v8024
      %v8033 = vadd.f32 %v7981, %v8025
      %v8034 = vadd.f32 %v7982, %v8026
      %8035 = vset.pattern.permute.xlu0 4
      %8036 = vperm.xlu0 %8035, %v7825
      %v8037 = vpop.permute.xlu0 %8036
      %v8039 = vlaneseq
      %v8040 = vshrl.u32 %v8039, 7
      %v8041 = vsub.s32 4, %v8040
      %v8042 = vrot.slane %v7817, %v8041
      %v8043 = vlaneseq
      %v8044 = vshrl.u32 %v8043, 7
      %v8045 = vsub.s32 4, %v8044
      %v8046 = vrot.slane %v7818, %v8045
      %v8047 = vlaneseq
      %v8048 = vshrl.u32 %v8047, 7
      %v8049 = vsub.s32 4, %v8048
      %v8050 = vrot.slane %v7819, %v8049
      %v8051 = vlaneseq
      %v8052 = vshrl.u32 %v8051, 7
      %v8053 = vsub.s32 4, %v8052
      %v8054 = vrot.slane %v7820, %v8053
      %v8055 = vlaneseq
      %v8056 = vshrl.u32 %v8055, 7
      %v8057 = vsub.s32 4, %v8056
      %v8058 = vrot.slane %v7821, %v8057
      %v8059 = vlaneseq
      %v8060 = vshrl.u32 %v8059, 7
      %v8061 = vsub.s32 4, %v8060
      %v8062 = vrot.slane %v7822, %v8061
      %v8063 = vlaneseq
      %v8064 = vshrl.u32 %v8063, 7
      %v8065 = vsub.s32 4, %v8064
      %v8066 = vrot.slane %v7823, %v8065
      %v8067 = vlaneseq
      %v8068 = vshrl.u32 %v8067, 7
      %v8069 = vsub.s32 4, %v8068
      %v8070 = vrot.slane %v7824, %v8069
      %v8071 = vmul.f32 %v8037, %v8042
      %v8072 = vmul.f32 %v8037, %v8046
      %v8073 = vmul.f32 %v8037, %v8050
      %v8074 = vmul.f32 %v8037, %v8054
      %v8075 = vmul.f32 %v8037, %v8058
      %v8076 = vmul.f32 %v8037, %v8062
      %v8077 = vmul.f32 %v8037, %v8066
      %v8078 = vmul.f32 %v8037, %v8070
      %v8079 = vadd.f32 %v8027, %v8071
      %v8080 = vadd.f32 %v8028, %v8072
      %v8081 = vadd.f32 %v8029, %v8073
      %v8082 = vadd.f32 %v8030, %v8074
      %v8083 = vadd.f32 %v8031, %v8075
      %v8084 = vadd.f32 %v8032, %v8076
      %v8085 = vadd.f32 %v8033, %v8077
      %v8086 = vadd.f32 %v8034, %v8078
      %8087 = vset.pattern.permute.xlu0 5
      %8088 = vperm.xlu0 %8087, %v7825
      %v8089 = vpop.permute.xlu0 %8088
      %v8091 = vlaneseq
      %v8092 = vshrl.u32 %v8091, 7
      %v8093 = vsub.s32 5, %v8092
      %v8094 = vrot.slane %v7817, %v8093
      %v8095 = vlaneseq
      %v8096 = vshrl.u32 %v8095, 7
      %v8097 = vsub.s32 5, %v8096
      %v8098 = vrot.slane %v7818, %v8097
      %v8099 = vlaneseq
      %v8100 = vshrl.u32 %v8099, 7
      %v8101 = vsub.s32 5, %v8100
      %v8102 = vrot.slane %v7819, %v8101
      %v8103 = vlaneseq
      %v8104 = vshrl.u32 %v8103, 7
      %v8105 = vsub.s32 5, %v8104
      %v8106 = vrot.slane %v7820, %v8105
      %v8107 = vlaneseq
      %v8108 = vshrl.u32 %v8107, 7
      %v8109 = vsub.s32 5, %v8108
      %v8110 = vrot.slane %v7821, %v8109
      %v8111 = vlaneseq
      %v8112 = vshrl.u32 %v8111, 7
      %v8113 = vsub.s32 5, %v8112
      %v8114 = vrot.slane %v7822, %v8113
      %v8115 = vlaneseq
      %v8116 = vshrl.u32 %v8115, 7
      %v8117 = vsub.s32 5, %v8116
      %v8118 = vrot.slane %v7823, %v8117
      %v8119 = vlaneseq
      %v8120 = vshrl.u32 %v8119, 7
      %v8121 = vsub.s32 5, %v8120
      %v8122 = vrot.slane %v7824, %v8121
      %v8123 = vmul.f32 %v8089, %v8094
      %v8124 = vmul.f32 %v8089, %v8098
      %v8125 = vmul.f32 %v8089, %v8102
      %v8126 = vmul.f32 %v8089, %v8106
      %v8127 = vmul.f32 %v8089, %v8110
      %v8128 = vmul.f32 %v8089, %v8114
      %v8129 = vmul.f32 %v8089, %v8118
      %v8130 = vmul.f32 %v8089, %v8122
      %v8131 = vadd.f32 %v8079, %v8123
      %v8132 = vadd.f32 %v8080, %v8124
      %v8133 = vadd.f32 %v8081, %v8125
      %v8134 = vadd.f32 %v8082, %v8126
      %v8135 = vadd.f32 %v8083, %v8127
      %v8136 = vadd.f32 %v8084, %v8128
      %v8137 = vadd.f32 %v8085, %v8129
      %v8138 = vadd.f32 %v8086, %v8130
      %8139 = vset.pattern.permute.xlu0 6
      %8140 = vperm.xlu0 %8139, %v7825
      %v8141 = vpop.permute.xlu0 %8140
      %v8143 = vlaneseq
      %v8144 = vshrl.u32 %v8143, 7
      %v8145 = vsub.s32 6, %v8144
      %v8146 = vrot.slane %v7817, %v8145
      %v8147 = vlaneseq
      %v8148 = vshrl.u32 %v8147, 7
      %v8149 = vsub.s32 6, %v8148
      %v8150 = vrot.slane %v7818, %v8149
      %v8151 = vlaneseq
      %v8152 = vshrl.u32 %v8151, 7
      %v8153 = vsub.s32 6, %v8152
      %v8154 = vrot.slane %v7819, %v8153
      %v8155 = vlaneseq
      %v8156 = vshrl.u32 %v8155, 7
      %v8157 = vsub.s32 6, %v8156
      %v8158 = vrot.slane %v7820, %v8157
      %v8159 = vlaneseq
      %v8160 = vshrl.u32 %v8159, 7
      %v8161 = vsub.s32 6, %v8160
      %v8162 = vrot.slane %v7821, %v8161
      %v8163 = vlaneseq
      %v8164 = vshrl.u32 %v8163, 7
      %v8165 = vsub.s32 6, %v8164
      %v8166 = vrot.slane %v7822, %v8165
      %v8167 = vlaneseq
      %v8168 = vshrl.u32 %v8167, 7
      %v8169 = vsub.s32 6, %v8168
      %v8170 = vrot.slane %v7823, %v8169
      %v8171 = vlaneseq
      %v8172 = vshrl.u32 %v8171, 7
      %v8173 = vsub.s32 6, %v8172
      %v8174 = vrot.slane %v7824, %v8173
      %v8175 = vmul.f32 %v8141, %v8146
      %v8176 = vmul.f32 %v8141, %v8150
      %v8177 = vmul.f32 %v8141, %v8154
      %v8178 = vmul.f32 %v8141, %v8158
      %v8179 = vmul.f32 %v8141, %v8162
      %v8180 = vmul.f32 %v8141, %v8166
      %v8181 = vmul.f32 %v8141, %v8170
      %v8182 = vmul.f32 %v8141, %v8174
      %v8183 = vadd.f32 %v8131, %v8175
      %v8184 = vadd.f32 %v8132, %v8176
      %v8185 = vadd.f32 %v8133, %v8177
      %v8186 = vadd.f32 %v8134, %v8178
      %v8187 = vadd.f32 %v8135, %v8179
      %v8188 = vadd.f32 %v8136, %v8180
      %v8189 = vadd.f32 %v8137, %v8181
      %v8190 = vadd.f32 %v8138, %v8182
      %8191 = vset.pattern.permute.xlu0 7
      %8192 = vperm.xlu0 %8191, %v7825
      %v8193 = vpop.permute.xlu0 %8192
      %v8195 = vlaneseq
      %v8196 = vshrl.u32 %v8195, 7
      %v8197 = vsub.s32 7, %v8196
      %v8198 = vrot.slane %v7817, %v8197
      %v8199 = vlaneseq
      %v8200 = vshrl.u32 %v8199, 7
      %v8201 = vsub.s32 7, %v8200
      %v8202 = vrot.slane %v7818, %v8201
      %v8203 = vlaneseq
      %v8204 = vshrl.u32 %v8203, 7
      %v8205 = vsub.s32 7, %v8204
      %v8206 = vrot.slane %v7819, %v8205
      %v8207 = vlaneseq
      %v8208 = vshrl.u32 %v8207, 7
      %v8209 = vsub.s32 7, %v8208
      %v8210 = vrot.slane %v7820, %v8209
      %v8211 = vlaneseq
      %v8212 = vshrl.u32 %v8211, 7
      %v8213 = vsub.s32 7, %v8212
      %v8214 = vrot.slane %v7821, %v8213
      %v8215 = vlaneseq
      %v8216 = vshrl.u32 %v8215, 7
      %v8217 = vsub.s32 7, %v8216
      %v8218 = vrot.slane %v7822, %v8217
      %v8219 = vlaneseq
      %v8220 = vshrl.u32 %v8219, 7
      %v8221 = vsub.s32 7, %v8220
      %v8222 = vrot.slane %v7823, %v8221
      %v8223 = vlaneseq
      %v8224 = vshrl.u32 %v8223, 7
      %v8225 = vsub.s32 7, %v8224
      %v8226 = vrot.slane %v7824, %v8225
      %v8227 = vmul.f32 %v8193, %v8198
      %v8228 = vmul.f32 %v8193, %v8202
      %v8229 = vmul.f32 %v8193, %v8206
      %v8230 = vmul.f32 %v8193, %v8210
      %v8231 = vmul.f32 %v8193, %v8214
      %v8232 = vmul.f32 %v8193, %v8218
      %v8233 = vmul.f32 %v8193, %v8222
      %v8234 = vmul.f32 %v8193, %v8226
      %v8235 = vadd.f32 %v8183, %v8227
      %v8236 = vadd.f32 %v8184, %v8228
      %v8237 = vadd.f32 %v8185, %v8229
      %v8238 = vadd.f32 %v8186, %v8230
      %v8239 = vadd.f32 %v8187, %v8231
      %v8240 = vadd.f32 %v8188, %v8232
      %v8241 = vadd.f32 %v8189, %v8233
      %v8242 = vadd.f32 %v8190, %v8234
      %v8243 = vld [vmem:[%s9] sm:$0xff]
      %8245 = vset.pattern.permute.xlu0 0
      %8246 = vperm.xlu0 %8245, %v8243
      %v8247 = vpop.permute.xlu0 %8246
      %v8249 = vadd.f32 %v8235, %v8247
      %v8250 = vadd.f32 %v8236, %v8247
      %v8251 = vadd.f32 %v8237, %v8247
      %v8252 = vadd.f32 %v8238, %v8247
      %v8253 = vadd.f32 %v8239, %v8247
      %v8254 = vadd.f32 %v8240, %v8247
      %v8255 = vadd.f32 %v8241, %v8247
      %v8256 = vadd.f32 %v8242, %v8247
      %v8257 = vadd.f32 %v8249, %v360
      %v8258 = vadd.f32 %v8250, %v361
      %v8259 = vadd.f32 %v8251, %v362
      %v8260 = vadd.f32 %v8252, %v363
      %v8261 = vadd.f32 %v8253, %v364
      %v8262 = vadd.f32 %v8254, %v365
      %v8263 = vadd.f32 %v8255, %v366
      %v8264 = vadd.f32 %v8256, %v367
      %8265 = vst [vmem:[%s359] sm:$0xff] %v8257
      %8266 = vst [vmem:[%s359 + $0x8] sm:$0xff] %v8258
      %8267 = vst [vmem:[%s359 + $0x10] sm:$0xff] %v8259
      %8268 = vst [vmem:[%s359 + $0x18] sm:$0xff] %v8260
      %8269 = vst [vmem:[%s359 + $0x20] sm:$0xff] %v8261
      %8270 = vst [vmem:[%s359 + $0x28] sm:$0xff] %v8262
      %8271 = vst [vmem:[%s359 + $0x30] sm:$0xff] %v8263
      %8272 = vst [vmem:[%s359 + $0x38] sm:$0xff] %v8264
      %p8273 = scmp.lt.s32.totalorder %s21, 1
      %s8274 = scalar_select %p8273, %s21, 1
      %s8275 = smul.addr %s8274, 8
      %s8276 = smul.addr %s8275, 8
      %s8277 = scalar_lea.vmem %s10, %s8276
      // Predicated region
      $region61: #{spatial_attention_forward.1} parent=59 // pred_check
        %p8278 = pneg %p254
      $region62: #{spatial_attention_forward.1} parent=59 // pred_check_branch
        %8280 = sbr.rel (%p8278) target = $region64
      $region63: #{spatial_attention_forward.1} parent=59 // pred_region
        _
      $region64: #{spatial_attention_forward.1} parent=59 // pred_fallthru
        _
    $region60: #{spatial_attention_forward.1} parent=5 // pred_fallthru
      _
    %p8281 = scmp.le.s32.totalorder 2, %s16
    // Predicated region
    $region65: #{spatial_attention_forward.1} parent=5 // pred_check
      %p8282 = pneg %p8281
    $region66: #{spatial_attention_forward.1} parent=5 // pred_check_branch
      %8284 = sbr.rel (%p8282) target = $region68
    $region67: #{spatial_attention_forward.1} parent=5 // pred_region
      %s8285 = ssub.s32 %s16, 2
      // Predicated region
      $region69: #{spatial_attention_forward.1} parent=67 // pred_check
        %p8286 = pneg %p260
      $region70: #{spatial_attention_forward.1} parent=67 // pred_check_branch
        %8288 = sbr.rel (%p8286) target = $region72
      $region71: #{spatial_attention_forward.1} parent=67 // pred_region
        %p8289 = scmp.lt.s32.totalorder %s22, 1
        %s8290 = scalar_select %p8289, %s22, 1
        %s8291 = smul.addr %s8290, 8
        %s8292 = smul.addr %s8291, 8
        %s8293 = scalar_lea.vmem %s10, %s8292
      $region72: #{spatial_attention_forward.1} parent=67 // pred_fallthru
        _
    $region68: #{spatial_attention_forward.1} parent=5 // pred_fallthru
      _
  $region6: #{spatial_attention_forward.1} parent=0 // loop_footer
    %s20 = sadd.s32 1, %s16
  $region7: #{spatial_attention_forward.1} parent=0 // loop_footer_branch
    %15 = sbr.rel target = $region3
  $region8: #{spatial_attention_forward.1} parent=0 // loop_exit
    _

</llo_original>
